<compile_context>
chip_gen: v7x
topology: tpu7x:2x2x1
jax: 0.10.0
libtpu: 0.0.40
codegen_flags: <defaults>
</compile_context>

<pallas_src>
import numpy as np
import jax
import jax.numpy as jnp
from jax.experimental import pallas as pl
from jax.experimental.pallas import tpu as pltpu


def memory_module_forward(x, w1, gamma, beta, w2):
    """x: [N,Cin,H,W] f32; w1: [C1,Cin,3,3]; gamma,beta: [C1]; w2: [C2,C1,5,5]."""
    N, Cin, H, W = x.shape
    C1 = w1.shape[0]
    C2 = w2.shape[0]

    # ---- column geometry: lane axis = (n, hp, wp) over the conv2-padded grid ----
    Hp, Wp = H + 4, W + 4            # 2 pixels of replicate padding per side (conv2)
    blk = Hp * Wp                    # columns per image
    PG = N * blk                     # padded-grid columns = kernel output width
    max_s = 2 * Wp + 2               # largest |lane shift| a 5x5 tap needs
    OFF = max_s                      # left margin so every shifted window is in-bounds
    WT = -(-(OFF + PG + max_s) // 128) * 128   # total width, rounded to the lane tile

    # ---- trace-time-constant im2col index plumbing (numpy -> one XLA gather) ----
    q = np.arange(WT)
    p = q - OFF
    on_grid = (p >= 0) & (p < PG)
    pc = np.clip(p, 0, PG - 1)
    n_i = pc // blk
    hp = (pc % blk) // Wp
    wp = pc % Wp
    hh = np.clip(hp - 2, 0, H - 1)   # replicate padding of the conv1-output grid
    ww = np.clip(wp - 2, 0, W - 1)
    # conv1 taps (its own replicate pad of 1); rows ordered (ci, ky, kx) == w1.reshape
    th = np.clip(hh[None, :] + (np.arange(3) - 1)[:, None], 0, H - 1)   # [3, WT]
    tw = np.clip(ww[None, :] + (np.arange(3) - 1)[:, None], 0, W - 1)   # [3, WT]
    ci = np.arange(Cin)
    flat_idx = (((n_i[None, None, None, :] * Cin + ci[:, None, None, None]) * H
                 + th[None, :, None, :]) * W
                + tw[None, None, :, :]).reshape(Cin * 9, WT).astype(np.int32)
    patches1 = jnp.take(x.reshape(-1), jnp.asarray(flat_idx), axis=0)   # [Cin*9, WT]

    interior = on_grid & (hp >= 2) & (hp < 2 + H) & (wp >= 2) & (wp < 2 + W)
    mask = jnp.asarray(interior.astype(np.float32))[None, :]            # [1, WT]

    w1m = w1.reshape(C1, Cin * 9).astype(jnp.float32)                   # [C1, Cin*9]
    # conv2 weights with columns ordered (ky, kx, ci) to match the slab stacking below
    w2r = jnp.transpose(w2, (0, 2, 3, 1)).reshape(C2, 25 * C1).astype(jnp.float32)
    g2 = gamma.reshape(C1, 1).astype(jnp.float32)
    b2 = beta.reshape(C1, 1).astype(jnp.float32)

    inv_cnt = 1.0 / float(N * H * W)

    def kernel(p1_ref, mask_ref, w1_ref, g_ref, b_ref, w2_ref, out_ref, y1_ref):
        # ---- conv1: one MXU matmul over the lane-dense im2col patch matrix ----
        y1 = jnp.dot(w1_ref[...], p1_ref[...],
                     preferred_element_type=jnp.float32)                # [C1, WT]
        # ---- BatchNorm2d (training-mode batch stats), single reduction pass ----
        m = mask_ref[...]                                               # [1, WT]
        s1 = jnp.sum(y1 * m, axis=1, keepdims=True)                     # [C1, 1]
        s2 = jnp.sum(y1 * y1 * m, axis=1, keepdims=True)                # [C1, 1]
        mean = s1 * inv_cnt
        var = s2 * inv_cnt - mean * mean                                # biased variance
        scale = g_ref[...] * jax.lax.rsqrt(var + 1e-5)
        shift = b_ref[...] - mean * scale
        # ReLU; padded-grid columns are exact duplicates of edge pixels, so this is
        # already the replicate-padded post-BN/ReLU image conv2 needs.
        y1_ref[...] = jnp.maximum(y1 * scale + shift, 0.0)              # [C1, WT] (VMEM)
        # ---- conv2: per-(ky,kx) lane-shifted slab, one MXU dot reused for all C2 ----
        acc = jnp.zeros((C2, PG), jnp.float32)
        t = 0
        for dy in range(-2, 3):
            for dx in range(-2, 3):
                start = OFF + dy * Wp + dx                              # static, in-bounds
                slab = y1_ref[:, start:start + PG]                      # [C1, PG]
                wt = w2_ref[:, t * C1:(t + 1) * C1]                     # [C2, C1]
                acc = acc + jnp.dot(wt, slab, preferred_element_type=jnp.float32)
                t += 1
        out_ref[...] = jnp.maximum(acc, 0.0)                            # lane-dense store

    vmem = pl.BlockSpec(memory_space=pltpu.MemorySpace.VMEM)
    out_wide = pl.pallas_call(
        kernel,
        out_shape=jax.ShapeDtypeStruct((C2, PG), jnp.float32),
        in_specs=[vmem] * 6,
        out_specs=vmem,
        scratch_shapes=[pltpu.VMEM((C1, WT), jnp.float32)],
        compiler_params=pltpu.CompilerParams(vmem_limit_bytes=32 * 1024 * 1024),
    )(patches1, mask, w1m, g2, b2, w2r)

    # wrapper-side un-padding / relayout back to NCHW (pure XLA layout ops, ~16 KB)
    out = out_wide.reshape(C2, N, Hp, Wp)[:, :, 2:2 + H, 2:2 + W]
    return jnp.transpose(out, (1, 0, 2, 3))


def reference_forward(x, w1, gamma, beta, w2):
    """Pure-JAX reference mirroring PyTorch semantics, for a correctness check."""
    dn = ("NCHW", "OIHW", "NCHW")
    xp = jnp.pad(x, ((0, 0), (0, 0), (1, 1), (1, 1)), mode="edge")
    y = jax.lax.conv_general_dilated(xp, w1, (1, 1), "VALID", dimension_numbers=dn)
    mean = y.mean(axis=(0, 2, 3), keepdims=True)
    var = ((y - mean) ** 2).mean(axis=(0, 2, 3), keepdims=True)
    y = (y - mean) * jax.lax.rsqrt(var + 1e-5)
    y = y * gamma.reshape(1, -1, 1, 1) + beta.reshape(1, -1, 1, 1)
    y = jnp.maximum(y, 0.0)
    yp = jnp.pad(y, ((0, 0), (0, 0), (2, 2), (2, 2)), mode="edge")
    z = jax.lax.conv_general_dilated(yp, w2, (1, 1), "VALID", dimension_numbers=dn)
    return jnp.maximum(z, 0.0)


if __name__ == "__main__":
    key = jax.random.PRNGKey(0)
    k1, k2, k3, k4, k5 = jax.random.split(key, 5)

    N, Cin, H, W = 2, 4, 16, 16   # MemoryModule(in_channel=4)
    C1 = C2 = 5

    x = jax.random.normal(k1, (N, Cin, H, W), jnp.float32)
    w1 = 0.3 * jax.random.normal(k2, (C1, Cin, 3, 3), jnp.float32)   # conv1 weight (OIHW)
    w2 = 0.1 * jax.random.normal(k3, (C2, C1, 5, 5), jnp.float32)    # conv2 weight (OIHW)
    gamma = 1.0 + 0.1 * jax.random.normal(k4, (C1,), jnp.float32)    # bn1 weight
    beta = 0.1 * jax.random.normal(k5, (C1,), jnp.float32)           # bn1 bias

    fwd = jax.jit(memory_module_forward)
    y = jax.block_until_ready(fwd(x, w1, gamma, beta, w2))
    assert y.shape == (N, C2, H, W)

    y_ref = reference_forward(x, w1, gamma, beta, w2)
    err = float(jnp.max(jnp.abs(y - y_ref)))
    assert err < 2e-3, f"max abs error {err}"

    print("KERNEL_OK")
</pallas_src>

<mosaic_0001>
module attributes {stable_mosaic.version = 11 : i64} {
  func.func @kernel(%arg0: memref<36x896xf32, #tpu.memory_space<vmem>>, %arg1: memref<1x896xf32, #tpu.memory_space<vmem>>, %arg2: memref<5x36xf32, #tpu.memory_space<vmem>>, %arg3: memref<5x1xf32, #tpu.memory_space<vmem>>, %arg4: memref<5x1xf32, #tpu.memory_space<vmem>>, %arg5: memref<5x125xf32, #tpu.memory_space<vmem>>, %arg6: memref<5x800xf32, #tpu.memory_space<vmem>>, %arg7: memref<5x896xf32, #tpu.memory_space<vmem>>) attributes {dimension_semantics = [], scalar_prefetch = 0 : i64, scratch_operands = 1 : i64, tpu.core_type = #tpu.core_type<tc>} {
    %c0 = arith.constant 0 : index
    %c0_0 = arith.constant 0 : index
    %0 = vector.load %arg2[%c0, %c0_0] : memref<5x36xf32, #tpu.memory_space<vmem>>, vector<5x36xf32>
    %c0_1 = arith.constant 0 : index
    %c0_2 = arith.constant 0 : index
    %1 = vector.load %arg0[%c0_1, %c0_2] : memref<36x896xf32, #tpu.memory_space<vmem>>, vector<36x896xf32>
    %cst = arith.constant dense<0.000000e+00> : vector<5x896xf32>
    %2 = tpu.matmul %0, %1, %cst {dimension_numbers = #tpu.dot_dimension_numbers<[1], [0], [0], [1], [0, 0, 1, 1], [], []>} : vector<5x36xf32>, vector<36x896xf32>, vector<5x896xf32> -> vector<5x896xf32>
    %c0_3 = arith.constant 0 : index
    %c0_4 = arith.constant 0 : index
    %3 = vector.load %arg1[%c0_3, %c0_4] : memref<1x896xf32, #tpu.memory_space<vmem>>, vector<1x896xf32>
    %4 = vector.broadcast %3 : vector<1x896xf32> to vector<5x896xf32>
    %5 = arith.mulf %2, %4 : vector<5x896xf32>
    %cst_5 = arith.constant dense<0.000000e+00> : vector<5xf32>
    %6 = vector.multi_reduction <add>, %5, %cst_5 [1] : vector<5x896xf32> to vector<5xf32>
    %7 = vector.shape_cast %6 : vector<5xf32> to vector<5x1xf32>
    %8 = arith.mulf %2, %2 : vector<5x896xf32>
    %9 = vector.broadcast %3 : vector<1x896xf32> to vector<5x896xf32>
    %10 = arith.mulf %8, %9 : vector<5x896xf32>
    %cst_6 = arith.constant dense<0.000000e+00> : vector<5xf32>
    %11 = vector.multi_reduction <add>, %10, %cst_6 [1] : vector<5x896xf32> to vector<5xf32>
    %12 = vector.shape_cast %11 : vector<5xf32> to vector<5x1xf32>
    %cst_7 = arith.constant 0.001953125 : f32
    %13 = vector.broadcast %cst_7 : f32 to vector<5x1xf32>
    %14 = arith.mulf %7, %13 : vector<5x1xf32>
    %cst_8 = arith.constant 0.001953125 : f32
    %15 = vector.broadcast %cst_8 : f32 to vector<5x1xf32>
    %16 = arith.mulf %12, %15 : vector<5x1xf32>
    %17 = arith.mulf %14, %14 : vector<5x1xf32>
    %18 = arith.subf %16, %17 : vector<5x1xf32>
    %c0_9 = arith.constant 0 : index
    %c0_10 = arith.constant 0 : index
    %19 = vector.load %arg3[%c0_9, %c0_10] : memref<5x1xf32, #tpu.memory_space<vmem>>, vector<5x1xf32>
    %cst_11 = arith.constant 9.99999974E-6 : f32
    %20 = vector.broadcast %cst_11 : f32 to vector<5x1xf32>
    %21 = arith.addf %18, %20 : vector<5x1xf32>
    %22 = math.rsqrt %21 : vector<5x1xf32>
    %23 = arith.mulf %19, %22 : vector<5x1xf32>
    %c0_12 = arith.constant 0 : index
    %c0_13 = arith.constant 0 : index
    %24 = vector.load %arg4[%c0_12, %c0_13] : memref<5x1xf32, #tpu.memory_space<vmem>>, vector<5x1xf32>
    %25 = arith.mulf %14, %23 : vector<5x1xf32>
    %26 = arith.subf %24, %25 : vector<5x1xf32>
    %27 = vector.broadcast %23 : vector<5x1xf32> to vector<5x896xf32>
    %28 = arith.mulf %2, %27 : vector<5x896xf32>
    %29 = vector.broadcast %26 : vector<5x1xf32> to vector<5x896xf32>
    %30 = arith.addf %28, %29 : vector<5x896xf32>
    %cst_14 = arith.constant 0.000000e+00 : f32
    %31 = vector.broadcast %cst_14 : f32 to vector<5x896xf32>
    %32 = arith.maximumf %30, %31 : vector<5x896xf32>
    %c0_15 = arith.constant 0 : index
    %c0_16 = arith.constant 0 : index
    %33 = vector.load %arg7[%c0_15, %c0_16] : memref<5x896xf32, #tpu.memory_space<vmem>>, vector<5x896xf32>
    tpu.vector_store %arg7[%c0_15, %c0_16], %32 {strides = array<i32>} : memref<5x896xf32, #tpu.memory_space<vmem>>, vector<5x896xf32>,
    %cst_17 = arith.constant 0.000000e+00 : f32
    %34 = vector.broadcast %cst_17 : f32 to vector<5x800xf32>
    %c0_18 = arith.constant 0 : index
    %c0_19 = arith.constant 0 : index
    %35 = vector.load %arg7[%c0_18, %c0_19] : memref<5x896xf32, #tpu.memory_space<vmem>>, vector<5x800xf32>
    %c0_20 = arith.constant 0 : index
    %c0_21 = arith.constant 0 : index
    %36 = vector.load %arg5[%c0_20, %c0_21] : memref<5x125xf32, #tpu.memory_space<vmem>>, vector<5x5xf32>
    %cst_22 = arith.constant dense<0.000000e+00> : vector<5x800xf32>
    %37 = tpu.matmul %36, %35, %cst_22 {dimension_numbers = #tpu.dot_dimension_numbers<[1], [0], [0], [1], [0, 0, 1, 1], [], []>} : vector<5x5xf32>, vector<5x800xf32>, vector<5x800xf32> -> vector<5x800xf32>
    %38 = arith.addf %34, %37 : vector<5x800xf32>
    %c0_23 = arith.constant 0 : index
    %c1 = arith.constant 1 : index
    %39 = vector.load %arg7[%c0_23, %c1] : memref<5x896xf32, #tpu.memory_space<vmem>>, vector<5x800xf32>
    %c0_24 = arith.constant 0 : index
    %c5 = arith.constant 5 : index
    %40 = vector.load %arg5[%c0_24, %c5] : memref<5x125xf32, #tpu.memory_space<vmem>>, vector<5x5xf32>
    %cst_25 = arith.constant dense<0.000000e+00> : vector<5x800xf32>
    %41 = tpu.matmul %40, %39, %cst_25 {dimension_numbers = #tpu.dot_dimension_numbers<[1], [0], [0], [1], [0, 0, 1, 1], [], []>} : vector<5x5xf32>, vector<5x800xf32>, vector<5x800xf32> -> vector<5x800xf32>
    %42 = arith.addf %38, %41 : vector<5x800xf32>
    %c0_26 = arith.constant 0 : index
    %c2 = arith.constant 2 : index
    %43 = vector.load %arg7[%c0_26, %c2] : memref<5x896xf32, #tpu.memory_space<vmem>>, vector<5x800xf32>
    %c0_27 = arith.constant 0 : index
    %c10 = arith.constant 10 : index
    %44 = vector.load %arg5[%c0_27, %c10] : memref<5x125xf32, #tpu.memory_space<vmem>>, vector<5x5xf32>
    %cst_28 = arith.constant dense<0.000000e+00> : vector<5x800xf32>
    %45 = tpu.matmul %44, %43, %cst_28 {dimension_numbers = #tpu.dot_dimension_numbers<[1], [0], [0], [1], [0, 0, 1, 1], [], []>} : vector<5x5xf32>, vector<5x800xf32>, vector<5x800xf32> -> vector<5x800xf32>
    %46 = arith.addf %42, %45 : vector<5x800xf32>
    %c0_29 = arith.constant 0 : index
    %c3 = arith.constant 3 : index
    %47 = vector.load %arg7[%c0_29, %c3] : memref<5x896xf32, #tpu.memory_space<vmem>>, vector<5x800xf32>
    %c0_30 = arith.constant 0 : index
    %c15 = arith.constant 15 : index
    %48 = vector.load %arg5[%c0_30, %c15] : memref<5x125xf32, #tpu.memory_space<vmem>>, vector<5x5xf32>
    %cst_31 = arith.constant dense<0.000000e+00> : vector<5x800xf32>
    %49 = tpu.matmul %48, %47, %cst_31 {dimension_numbers = #tpu.dot_dimension_numbers<[1], [0], [0], [1], [0, 0, 1, 1], [], []>} : vector<5x5xf32>, vector<5x800xf32>, vector<5x800xf32> -> vector<5x800xf32>
    %50 = arith.addf %46, %49 : vector<5x800xf32>
    %c0_32 = arith.constant 0 : index
    %c4 = arith.constant 4 : index
    %51 = vector.load %arg7[%c0_32, %c4] : memref<5x896xf32, #tpu.memory_space<vmem>>, vector<5x800xf32>
    %c0_33 = arith.constant 0 : index
    %c20 = arith.constant 20 : index
    %52 = vector.load %arg5[%c0_33, %c20] : memref<5x125xf32, #tpu.memory_space<vmem>>, vector<5x5xf32>
    %cst_34 = arith.constant dense<0.000000e+00> : vector<5x800xf32>
    %53 = tpu.matmul %52, %51, %cst_34 {dimension_numbers = #tpu.dot_dimension_numbers<[1], [0], [0], [1], [0, 0, 1, 1], [], []>} : vector<5x5xf32>, vector<5x800xf32>, vector<5x800xf32> -> vector<5x800xf32>
    %54 = arith.addf %50, %53 : vector<5x800xf32>
    %c0_35 = arith.constant 0 : index
    %c20_36 = arith.constant 20 : index
    %55 = vector.load %arg7[%c0_35, %c20_36] : memref<5x896xf32, #tpu.memory_space<vmem>>, vector<5x800xf32>
    %c0_37 = arith.constant 0 : index
    %c25 = arith.constant 25 : index
    %56 = vector.load %arg5[%c0_37, %c25] : memref<5x125xf32, #tpu.memory_space<vmem>>, vector<5x5xf32>
    %cst_38 = arith.constant dense<0.000000e+00> : vector<5x800xf32>
    %57 = tpu.matmul %56, %55, %cst_38 {dimension_numbers = #tpu.dot_dimension_numbers<[1], [0], [0], [1], [0, 0, 1, 1], [], []>} : vector<5x5xf32>, vector<5x800xf32>, vector<5x800xf32> -> vector<5x800xf32>
    %58 = arith.addf %54, %57 : vector<5x800xf32>
    %c0_39 = arith.constant 0 : index
    %c21 = arith.constant 21 : index
    %59 = vector.load %arg7[%c0_39, %c21] : memref<5x896xf32, #tpu.memory_space<vmem>>, vector<5x800xf32>
    %c0_40 = arith.constant 0 : index
    %c30 = arith.constant 30 : index
    %60 = vector.load %arg5[%c0_40, %c30] : memref<5x125xf32, #tpu.memory_space<vmem>>, vector<5x5xf32>
    %cst_41 = arith.constant dense<0.000000e+00> : vector<5x800xf32>
    %61 = tpu.matmul %60, %59, %cst_41 {dimension_numbers = #tpu.dot_dimension_numbers<[1], [0], [0], [1], [0, 0, 1, 1], [], []>} : vector<5x5xf32>, vector<5x800xf32>, vector<5x800xf32> -> vector<5x800xf32>
    %62 = arith.addf %58, %61 : vector<5x800xf32>
    %c0_42 = arith.constant 0 : index
    %c22 = arith.constant 22 : index
    %63 = vector.load %arg7[%c0_42, %c22] : memref<5x896xf32, #tpu.memory_space<vmem>>, vector<5x800xf32>
    %c0_43 = arith.constant 0 : index
    %c35 = arith.constant 35 : index
    %64 = vector.load %arg5[%c0_43, %c35] : memref<5x125xf32, #tpu.memory_space<vmem>>, vector<5x5xf32>
    %cst_44 = arith.constant dense<0.000000e+00> : vector<5x800xf32>
    %65 = tpu.matmul %64, %63, %cst_44 {dimension_numbers = #tpu.dot_dimension_numbers<[1], [0], [0], [1], [0, 0, 1, 1], [], []>} : vector<5x5xf32>, vector<5x800xf32>, vector<5x800xf32> -> vector<5x800xf32>
    %66 = arith.addf %62, %65 : vector<5x800xf32>
    %c0_45 = arith.constant 0 : index
    %c23 = arith.constant 23 : index
    %67 = vector.load %arg7[%c0_45, %c23] : memref<5x896xf32, #tpu.memory_space<vmem>>, vector<5x800xf32>
    %c0_46 = arith.constant 0 : index
    %c40 = arith.constant 40 : index
    %68 = vector.load %arg5[%c0_46, %c40] : memref<5x125xf32, #tpu.memory_space<vmem>>, vector<5x5xf32>
    %cst_47 = arith.constant dense<0.000000e+00> : vector<5x800xf32>
    %69 = tpu.matmul %68, %67, %cst_47 {dimension_numbers = #tpu.dot_dimension_numbers<[1], [0], [0], [1], [0, 0, 1, 1], [], []>} : vector<5x5xf32>, vector<5x800xf32>, vector<5x800xf32> -> vector<5x800xf32>
    %70 = arith.addf %66, %69 : vector<5x800xf32>
    %c0_48 = arith.constant 0 : index
    %c24 = arith.constant 24 : index
    %71 = vector.load %arg7[%c0_48, %c24] : memref<5x896xf32, #tpu.memory_space<vmem>>, vector<5x800xf32>
    %c0_49 = arith.constant 0 : index
    %c45 = arith.constant 45 : index
    %72 = vector.load %arg5[%c0_49, %c45] : memref<5x125xf32, #tpu.memory_space<vmem>>, vector<5x5xf32>
    %cst_50 = arith.constant dense<0.000000e+00> : vector<5x800xf32>
    %73 = tpu.matmul %72, %71, %cst_50 {dimension_numbers = #tpu.dot_dimension_numbers<[1], [0], [0], [1], [0, 0, 1, 1], [], []>} : vector<5x5xf32>, vector<5x800xf32>, vector<5x800xf32> -> vector<5x800xf32>
    %74 = arith.addf %70, %73 : vector<5x800xf32>
    %c0_51 = arith.constant 0 : index
    %c40_52 = arith.constant 40 : index
    %75 = vector.load %arg7[%c0_51, %c40_52] : memref<5x896xf32, #tpu.memory_space<vmem>>, vector<5x800xf32>
    %c0_53 = arith.constant 0 : index
    %c50 = arith.constant 50 : index
    %76 = vector.load %arg5[%c0_53, %c50] : memref<5x125xf32, #tpu.memory_space<vmem>>, vector<5x5xf32>
    %cst_54 = arith.constant dense<0.000000e+00> : vector<5x800xf32>
    %77 = tpu.matmul %76, %75, %cst_54 {dimension_numbers = #tpu.dot_dimension_numbers<[1], [0], [0], [1], [0, 0, 1, 1], [], []>} : vector<5x5xf32>, vector<5x800xf32>, vector<5x800xf32> -> vector<5x800xf32>
    %78 = arith.addf %74, %77 : vector<5x800xf32>
    %c0_55 = arith.constant 0 : index
    %c41 = arith.constant 41 : index
    %79 = vector.load %arg7[%c0_55, %c41] : memref<5x896xf32, #tpu.memory_space<vmem>>, vector<5x800xf32>
    %c0_56 = arith.constant 0 : index
    %c55 = arith.constant 55 : index
    %80 = vector.load %arg5[%c0_56, %c55] : memref<5x125xf32, #tpu.memory_space<vmem>>, vector<5x5xf32>
    %cst_57 = arith.constant dense<0.000000e+00> : vector<5x800xf32>
    %81 = tpu.matmul %80, %79, %cst_57 {dimension_numbers = #tpu.dot_dimension_numbers<[1], [0], [0], [1], [0, 0, 1, 1], [], []>} : vector<5x5xf32>, vector<5x800xf32>, vector<5x800xf32> -> vector<5x800xf32>
    %82 = arith.addf %78, %81 : vector<5x800xf32>
    %c0_58 = arith.constant 0 : index
    %c42 = arith.constant 42 : index
    %83 = vector.load %arg7[%c0_58, %c42] : memref<5x896xf32, #tpu.memory_space<vmem>>, vector<5x800xf32>
    %c0_59 = arith.constant 0 : index
    %c60 = arith.constant 60 : index
    %84 = vector.load %arg5[%c0_59, %c60] : memref<5x125xf32, #tpu.memory_space<vmem>>, vector<5x5xf32>
    %cst_60 = arith.constant dense<0.000000e+00> : vector<5x800xf32>
    %85 = tpu.matmul %84, %83, %cst_60 {dimension_numbers = #tpu.dot_dimension_numbers<[1], [0], [0], [1], [0, 0, 1, 1], [], []>} : vector<5x5xf32>, vector<5x800xf32>, vector<5x800xf32> -> vector<5x800xf32>
    %86 = arith.addf %82, %85 : vector<5x800xf32>
    %c0_61 = arith.constant 0 : index
    %c43 = arith.constant 43 : index
    %87 = vector.load %arg7[%c0_61, %c43] : memref<5x896xf32, #tpu.memory_space<vmem>>, vector<5x800xf32>
    %c0_62 = arith.constant 0 : index
    %c65 = arith.constant 65 : index
    %88 = vector.load %arg5[%c0_62, %c65] : memref<5x125xf32, #tpu.memory_space<vmem>>, vector<5x5xf32>
    %cst_63 = arith.constant dense<0.000000e+00> : vector<5x800xf32>
    %89 = tpu.matmul %88, %87, %cst_63 {dimension_numbers = #tpu.dot_dimension_numbers<[1], [0], [0], [1], [0, 0, 1, 1], [], []>} : vector<5x5xf32>, vector<5x800xf32>, vector<5x800xf32> -> vector<5x800xf32>
    %90 = arith.addf %86, %89 : vector<5x800xf32>
    %c0_64 = arith.constant 0 : index
    %c44 = arith.constant 44 : index
    %91 = vector.load %arg7[%c0_64, %c44] : memref<5x896xf32, #tpu.memory_space<vmem>>, vector<5x800xf32>
    %c0_65 = arith.constant 0 : index
    %c70 = arith.constant 70 : index
    %92 = vector.load %arg5[%c0_65, %c70] : memref<5x125xf32, #tpu.memory_space<vmem>>, vector<5x5xf32>
    %cst_66 = arith.constant dense<0.000000e+00> : vector<5x800xf32>
    %93 = tpu.matmul %92, %91, %cst_66 {dimension_numbers = #tpu.dot_dimension_numbers<[1], [0], [0], [1], [0, 0, 1, 1], [], []>} : vector<5x5xf32>, vector<5x800xf32>, vector<5x800xf32> -> vector<5x800xf32>
    %94 = arith.addf %90, %93 : vector<5x800xf32>
    %c0_67 = arith.constant 0 : index
    %c60_68 = arith.constant 60 : index
    %95 = vector.load %arg7[%c0_67, %c60_68] : memref<5x896xf32, #tpu.memory_space<vmem>>, vector<5x800xf32>
    %c0_69 = arith.constant 0 : index
    %c75 = arith.constant 75 : index
    %96 = vector.load %arg5[%c0_69, %c75] : memref<5x125xf32, #tpu.memory_space<vmem>>, vector<5x5xf32>
    %cst_70 = arith.constant dense<0.000000e+00> : vector<5x800xf32>
    %97 = tpu.matmul %96, %95, %cst_70 {dimension_numbers = #tpu.dot_dimension_numbers<[1], [0], [0], [1], [0, 0, 1, 1], [], []>} : vector<5x5xf32>, vector<5x800xf32>, vector<5x800xf32> -> vector<5x800xf32>
    %98 = arith.addf %94, %97 : vector<5x800xf32>
    %c0_71 = arith.constant 0 : index
    %c61 = arith.constant 61 : index
    %99 = vector.load %arg7[%c0_71, %c61] : memref<5x896xf32, #tpu.memory_space<vmem>>, vector<5x800xf32>
    %c0_72 = arith.constant 0 : index
    %c80 = arith.constant 80 : index
    %100 = vector.load %arg5[%c0_72, %c80] : memref<5x125xf32, #tpu.memory_space<vmem>>, vector<5x5xf32>
    %cst_73 = arith.constant dense<0.000000e+00> : vector<5x800xf32>
    %101 = tpu.matmul %100, %99, %cst_73 {dimension_numbers = #tpu.dot_dimension_numbers<[1], [0], [0], [1], [0, 0, 1, 1], [], []>} : vector<5x5xf32>, vector<5x800xf32>, vector<5x800xf32> -> vector<5x800xf32>
    %102 = arith.addf %98, %101 : vector<5x800xf32>
    %c0_74 = arith.constant 0 : index
    %c62 = arith.constant 62 : index
    %103 = vector.load %arg7[%c0_74, %c62] : memref<5x896xf32, #tpu.memory_space<vmem>>, vector<5x800xf32>
    %c0_75 = arith.constant 0 : index
    %c85 = arith.constant 85 : index
    %104 = vector.load %arg5[%c0_75, %c85] : memref<5x125xf32, #tpu.memory_space<vmem>>, vector<5x5xf32>
    %cst_76 = arith.constant dense<0.000000e+00> : vector<5x800xf32>
    %105 = tpu.matmul %104, %103, %cst_76 {dimension_numbers = #tpu.dot_dimension_numbers<[1], [0], [0], [1], [0, 0, 1, 1], [], []>} : vector<5x5xf32>, vector<5x800xf32>, vector<5x800xf32> -> vector<5x800xf32>
    %106 = arith.addf %102, %105 : vector<5x800xf32>
    %c0_77 = arith.constant 0 : index
    %c63 = arith.constant 63 : index
    %107 = vector.load %arg7[%c0_77, %c63] : memref<5x896xf32, #tpu.memory_space<vmem>>, vector<5x800xf32>
    %c0_78 = arith.constant 0 : index
    %c90 = arith.constant 90 : index
    %108 = vector.load %arg5[%c0_78, %c90] : memref<5x125xf32, #tpu.memory_space<vmem>>, vector<5x5xf32>
    %cst_79 = arith.constant dense<0.000000e+00> : vector<5x800xf32>
    %109 = tpu.matmul %108, %107, %cst_79 {dimension_numbers = #tpu.dot_dimension_numbers<[1], [0], [0], [1], [0, 0, 1, 1], [], []>} : vector<5x5xf32>, vector<5x800xf32>, vector<5x800xf32> -> vector<5x800xf32>
    %110 = arith.addf %106, %109 : vector<5x800xf32>
    %c0_80 = arith.constant 0 : index
    %c64 = arith.constant 64 : index
    %111 = vector.load %arg7[%c0_80, %c64] : memref<5x896xf32, #tpu.memory_space<vmem>>, vector<5x800xf32>
    %c0_81 = arith.constant 0 : index
    %c95 = arith.constant 95 : index
    %112 = vector.load %arg5[%c0_81, %c95] : memref<5x125xf32, #tpu.memory_space<vmem>>, vector<5x5xf32>
    %cst_82 = arith.constant dense<0.000000e+00> : vector<5x800xf32>
    %113 = tpu.matmul %112, %111, %cst_82 {dimension_numbers = #tpu.dot_dimension_numbers<[1], [0], [0], [1], [0, 0, 1, 1], [], []>} : vector<5x5xf32>, vector<5x800xf32>, vector<5x800xf32> -> vector<5x800xf32>
    %114 = arith.addf %110, %113 : vector<5x800xf32>
    %c0_83 = arith.constant 0 : index
    %c80_84 = arith.constant 80 : index
    %115 = vector.load %arg7[%c0_83, %c80_84] : memref<5x896xf32, #tpu.memory_space<vmem>>, vector<5x800xf32>
    %c0_85 = arith.constant 0 : index
    %c100 = arith.constant 100 : index
    %116 = vector.load %arg5[%c0_85, %c100] : memref<5x125xf32, #tpu.memory_space<vmem>>, vector<5x5xf32>
    %cst_86 = arith.constant dense<0.000000e+00> : vector<5x800xf32>
    %117 = tpu.matmul %116, %115, %cst_86 {dimension_numbers = #tpu.dot_dimension_numbers<[1], [0], [0], [1], [0, 0, 1, 1], [], []>} : vector<5x5xf32>, vector<5x800xf32>, vector<5x800xf32> -> vector<5x800xf32>
    %118 = arith.addf %114, %117 : vector<5x800xf32>
    %c0_87 = arith.constant 0 : index
    %c81 = arith.constant 81 : index
    %119 = vector.load %arg7[%c0_87, %c81] : memref<5x896xf32, #tpu.memory_space<vmem>>, vector<5x800xf32>
    %c0_88 = arith.constant 0 : index
    %c105 = arith.constant 105 : index
    %120 = vector.load %arg5[%c0_88, %c105] : memref<5x125xf32, #tpu.memory_space<vmem>>, vector<5x5xf32>
    %cst_89 = arith.constant dense<0.000000e+00> : vector<5x800xf32>
    %121 = tpu.matmul %120, %119, %cst_89 {dimension_numbers = #tpu.dot_dimension_numbers<[1], [0], [0], [1], [0, 0, 1, 1], [], []>} : vector<5x5xf32>, vector<5x800xf32>, vector<5x800xf32> -> vector<5x800xf32>
    %122 = arith.addf %118, %121 : vector<5x800xf32>
    %c0_90 = arith.constant 0 : index
    %c82 = arith.constant 82 : index
    %123 = vector.load %arg7[%c0_90, %c82] : memref<5x896xf32, #tpu.memory_space<vmem>>, vector<5x800xf32>
    %c0_91 = arith.constant 0 : index
    %c110 = arith.constant 110 : index
    %124 = vector.load %arg5[%c0_91, %c110] : memref<5x125xf32, #tpu.memory_space<vmem>>, vector<5x5xf32>
    %cst_92 = arith.constant dense<0.000000e+00> : vector<5x800xf32>
    %125 = tpu.matmul %124, %123, %cst_92 {dimension_numbers = #tpu.dot_dimension_numbers<[1], [0], [0], [1], [0, 0, 1, 1], [], []>} : vector<5x5xf32>, vector<5x800xf32>, vector<5x800xf32> -> vector<5x800xf32>
    %126 = arith.addf %122, %125 : vector<5x800xf32>
    %c0_93 = arith.constant 0 : index
    %c83 = arith.constant 83 : index
    %127 = vector.load %arg7[%c0_93, %c83] : memref<5x896xf32, #tpu.memory_space<vmem>>, vector<5x800xf32>
    %c0_94 = arith.constant 0 : index
    %c115 = arith.constant 115 : index
    %128 = vector.load %arg5[%c0_94, %c115] : memref<5x125xf32, #tpu.memory_space<vmem>>, vector<5x5xf32>
    %cst_95 = arith.constant dense<0.000000e+00> : vector<5x800xf32>
    %129 = tpu.matmul %128, %127, %cst_95 {dimension_numbers = #tpu.dot_dimension_numbers<[1], [0], [0], [1], [0, 0, 1, 1], [], []>} : vector<5x5xf32>, vector<5x800xf32>, vector<5x800xf32> -> vector<5x800xf32>
    %130 = arith.addf %126, %129 : vector<5x800xf32>
    %c0_96 = arith.constant 0 : index
    %c84 = arith.constant 84 : index
    %131 = vector.load %arg7[%c0_96, %c84] : memref<5x896xf32, #tpu.memory_space<vmem>>, vector<5x800xf32>
    %c0_97 = arith.constant 0 : index
    %c120 = arith.constant 120 : index
    %132 = vector.load %arg5[%c0_97, %c120] : memref<5x125xf32, #tpu.memory_space<vmem>>, vector<5x5xf32>
    %cst_98 = arith.constant dense<0.000000e+00> : vector<5x800xf32>
    %133 = tpu.matmul %132, %131, %cst_98 {dimension_numbers = #tpu.dot_dimension_numbers<[1], [0], [0], [1], [0, 0, 1, 1], [], []>} : vector<5x5xf32>, vector<5x800xf32>, vector<5x800xf32> -> vector<5x800xf32>
    %134 = arith.addf %130, %133 : vector<5x800xf32>
    %cst_99 = arith.constant 0.000000e+00 : f32
    %135 = vector.broadcast %cst_99 : f32 to vector<5x800xf32>
    %136 = arith.maximumf %134, %135 : vector<5x800xf32>
    %c0_100 = arith.constant 0 : index
    %c0_101 = arith.constant 0 : index
    %137 = vector.load %arg6[%c0_100, %c0_101] : memref<5x800xf32, #tpu.memory_space<vmem>>, vector<5x800xf32>
    tpu.vector_store %arg6[%c0_100, %c0_101], %136 {strides = array<i32>} : memref<5x800xf32, #tpu.memory_space<vmem>>, vector<5x800xf32>,
    return
  }
}

</mosaic_0001>

<llo_original>
// kernel: memory_module_forward.1
$region0: #{memory_module_forward.1}
  #allocation0 [shape = 'u32[]', space=smem, size = 0x4, offset = 0x4, fixed_abs, tag = 'smem constant byte address 0x4 - core index']
  #allocation1 [shape = 'u32[144,128]{1,0:T(1,128)}', space=vmem, size = 0x12000, scoped, tag = 'internal scratch']
  #allocation2 [shape = 'f32[5,896]{1,0:T(8,128)}', space=vmem, size = 0x7000, scoped, tag = 'scratch operand']
  %s0 = inlined_call_operand.vmem [shape: f32[36,896], index: 0, kind: input, shape index: {}]
  %s1 = inlined_call_operand.vmem [shape: f32[1,896], index: 1, kind: input, shape index: {}]
  %s2 = inlined_call_operand.vmem [shape: f32[5,36], index: 2, kind: input, shape index: {}]
  %s3 = inlined_call_operand.vmem [shape: f32[5,1], index: 3, kind: input, shape index: {}]
  %s4 = inlined_call_operand.vmem [shape: f32[5,1], index: 4, kind: input, shape index: {}]
  %s5 = inlined_call_operand.vmem [shape: f32[5,125], index: 5, kind: input, shape index: {}]
  %s6 = inlined_call_operand.vmem [shape: f32[5,800], index: 6, kind: output, shape index: {}]
  %s7 = sld [smem:[#allocation0]]
  $region34: #{memory_module_forward.1} parent=0
    _
  %s9 = ssub.s32 1, %s7
  %s10 = scalar_select 0, %s9, %s7
  // Predicated region
  $region2: #{memory_module_forward.1} parent=0 // pred_check
    _
  $region3: #{memory_module_forward.1} parent=0 // pred_check_branch
    %12 = sbr.rel (0) target = $region5
  $region4: #{memory_module_forward.1} parent=0 // pred_region
    _
  $region5: #{memory_module_forward.1} parent=0 // pred_fallthru
    _
  // Predicated region
  $region6: #{memory_module_forward.1} parent=0 // pred_check
    _
  $region7: #{memory_module_forward.1} parent=0 // pred_check_branch
    %14 = sbr.rel (0) target = $region9
  $region8: #{memory_module_forward.1} parent=0 // pred_region
    _
  $region9: #{memory_module_forward.1} parent=0 // pred_fallthru
    _
  // Predicated region
  $region10: #{memory_module_forward.1} parent=0 // pred_check
    _
  $region11: #{memory_module_forward.1} parent=0 // pred_check_branch
    %16 = sbr.rel (0) target = $region13
  $region12: #{memory_module_forward.1} parent=0 // pred_region
    _
  $region13: #{memory_module_forward.1} parent=0 // pred_fallthru
    _
  // Predicated region
  $region14: #{memory_module_forward.1} parent=0 // pred_check
    _
  $region15: #{memory_module_forward.1} parent=0 // pred_check_branch
    %18 = sbr.rel (0) target = $region17
  $region16: #{memory_module_forward.1} parent=0 // pred_region
    _
  $region17: #{memory_module_forward.1} parent=0 // pred_fallthru
    _
  // Predicated region
  $region18: #{memory_module_forward.1} parent=0 // pred_check
    _
  $region19: #{memory_module_forward.1} parent=0 // pred_check_branch
    %20 = sbr.rel (0) target = $region21
  $region20: #{memory_module_forward.1} parent=0 // pred_region
    _
  $region21: #{memory_module_forward.1} parent=0 // pred_fallthru
    _
  // Predicated region
  $region22: #{memory_module_forward.1} parent=0 // pred_check
    _
  $region23: #{memory_module_forward.1} parent=0 // pred_check_branch
    %22 = sbr.rel (0) target = $region25
  $region24: #{memory_module_forward.1} parent=0 // pred_region
    _
  $region25: #{memory_module_forward.1} parent=0 // pred_fallthru
    _
  %v23 = vld [vmem:[%s2] sm:$0x1f]
  %v24 = vld [vmem:[%s0] sm:$0xff]
  %v25 = vld [vmem:[%s0 + $0x8] sm:$0xff]
  %v26 = vld [vmem:[%s0 + $0x10] sm:$0xff]
  %v27 = vld [vmem:[%s0 + $0x18] sm:$0xff]
  %v28 = vld [vmem:[%s0 + $0x20] sm:$0xff]
  %v29 = vld [vmem:[%s0 + $0x28] sm:$0xff]
  %v30 = vld [vmem:[%s0 + $0x30] sm:$0xff]
  %v31 = vld [vmem:[%s0 + $0x38] sm:$0xff]
  %v32 = vld [vmem:[%s0 + $0x40] sm:$0xff]
  %v33 = vld [vmem:[%s0 + $0x48] sm:$0xff]
  %v34 = vld [vmem:[%s0 + $0x50] sm:$0xff]
  %v35 = vld [vmem:[%s0 + $0x58] sm:$0xff]
  %v36 = vld [vmem:[%s0 + $0x60] sm:$0xff]
  %v37 = vld [vmem:[%s0 + $0x68] sm:$0xff]
  %v38 = vld [vmem:[%s0 + $0x70] sm:$0xff]
  %v39 = vld [vmem:[%s0 + $0x78] sm:$0xff]
  %v40 = vld [vmem:[%s0 + $0x80] sm:$0xff]
  %v41 = vld [vmem:[%s0 + $0x88] sm:$0xff]
  %v42 = vld [vmem:[%s0 + $0x90] sm:$0xff]
  %v43 = vld [vmem:[%s0 + $0x98] sm:$0xff]
  %v44 = vld [vmem:[%s0 + $0xa0] sm:$0xff]
  %v45 = vld [vmem:[%s0 + $0xa8] sm:$0xff]
  %v46 = vld [vmem:[%s0 + $0xb0] sm:$0xff]
  %v47 = vld [vmem:[%s0 + $0xb8] sm:$0xff]
  %v48 = vld [vmem:[%s0 + $0xc0] sm:$0xff]
  %v49 = vld [vmem:[%s0 + $0xc8] sm:$0xff]
  %v50 = vld [vmem:[%s0 + $0xd0] sm:$0xff]
  %v51 = vld [vmem:[%s0 + $0xd8] sm:$0xff]
  %v52 = vld [vmem:[%s0 + $0xe0] sm:$0xf]
  %v53 = vld [vmem:[%s0 + $0xe8] sm:$0xf]
  %v54 = vld [vmem:[%s0 + $0xf0] sm:$0xf]
  %v55 = vld [vmem:[%s0 + $0xf8] sm:$0xf]
  %v56 = vld [vmem:[%s0 + $0x100] sm:$0xf]
  %v57 = vld [vmem:[%s0 + $0x108] sm:$0xf]
  %v58 = vld [vmem:[%s0 + $0x110] sm:$0xf]
  %vm59 = vcmask 293888
  %v61 = vsel %vm59, %v23, 0
  %vm63 = vcmask 1043456
  %v65 = vsel %vm63, %v52, 0
  %v68 = vsel %vm63, %v53, 0
  %v71 = vsel %vm63, %v54, 0
  %v74 = vsel %vm63, %v55, 0
  %v77 = vsel %vm63, %v56, 0
  %v80 = vsel %vm63, %v57, 0
  %v83 = vsel %vm63, %v58, 0
  %85 = vmatprep.subr.mxu0 %v25
  %86 = vmatpush1.msra.mxu0 %v24
  %87 = vmatprep.subr.mxu0 %v32
  %88 = vmatpush1.msra.mxu0 %v31
  %89 = vmatprep.subr.mxu0 %v39
  %90 = vmatpush1.msra.mxu0 %v38
  %91 = vmatprep.subr.mxu0 %v46
  %92 = vmatpush1.msra.mxu0 %v45
  %93 = vmatprep.subr.mxu0 %v68
  %94 = vmatpush1.msra.mxu0 %v65
  %95 = vmatprep.subr.mxu0 0.0
  %96 = vmatpush1.msra.mxu0 0.0
  %97 = vmatprep.subr.mxu0 0.0
  %98 = vmatpush1.msra.mxu0 0.0
  %99 = vmatprep.subr.mxu0 0.0
  %100 = vmatpush1.msra.mxu0 0.0
  %101 = vmatprep.subr.mxu0 0.0
  %102 = vmatpush1.msra.mxu0 0.0
  %103 = vmatprep.subr.mxu0 0.0
  %104 = vmatpush1.msra.mxu0 0.0
  %105 = vmatprep.subr.mxu0 0.0
  %106 = vmatpush1.msra.mxu0 0.0
  %107 = vmatprep.subr.mxu0 0.0
  %108 = vmatpush1.msra.mxu0 0.0
  %109 = vmatprep.subr.mxu0 0.0
  %110 = vmatpush1.msra.mxu0 0.0
  %111 = vmatprep.subr.mxu0 0.0
  %112 = vmatpush1.msra.mxu0 0.0
  %113 = vmatprep.subr.mxu0 0.0
  %114 = vmatpush1.msra.mxu0 0.0
  %115 = vmatprep.subr.mxu0 0.0
  %116 = vmatpush1.msra.mxu0 0.0
  %117 = vmatprep.subr.mxu0 0.0
  %118 = vmatpush1.msra.mxu0 0.0
  %119 = vmatprep.subr.mxu0 0.0
  %120 = vmatpush1.msra.mxu0 0.0
  %121 = vmatprep.subr.mxu0 0.0
  %122 = vmatpush1.msra.mxu0 0.0
  %123 = vmatprep.subr.mxu0 0.0
  %124 = vmatpush1.msra.mxu0 0.0
  %125 = vmatprep.subr.mxu0 0.0
  %126 = vmatpush1.msra.mxu0 0.0
  %127 = vmatprep.subr.mxu0 0.0
  %128 = vmatpush1.msra.mxu0 0.0
  %129 = vmatprep.subr.mxu0 0.0
  %130 = vmatpush1.msra.mxu0 0.0
  %131 = vmatprep.subr.mxu0 0.0
  %132 = vmatpush1.msra.mxu0 0.0
  %133 = vmatprep.subr.mxu0 0.0
  %134 = vmatpush1.msra.mxu0 0.0
  %135 = vmatprep.subr.mxu0 0.0
  %136 = vmatpush1.msra.mxu0 0.0
  %137 = vmatprep.subr.mxu0 0.0
  %138 = vmatpush1.msra.mxu0 0.0
  %139 = vmatprep.subr.mxu0 0.0
  %140 = vmatpush1.msra.mxu0 0.0
  %141 = vmatprep.subr.mxu0 0.0
  %142 = vmatpush1.msra.mxu0 0.0
  %143 = vmatprep.subr.mxu0 0.0
  %144 = vmatpush1.msra.mxu0 0.0
  %145 = vmatprep.subr.mxu0 0.0
  %146 = vmatpush1.msra.mxu0 0.0
  %147 = vmatprep.subr.mxu0 0.0
  %148 = vmatpush1.msra.mxu0 0.0
  %149 = vmatprep.mubr.f32.mxu0 0.0
  %150 = vmatmul.mubr.f32.gmra.mrb[0].mxu0 %v61
  %v151 = vpop.f32.mrb[0].mxu0
  %v152 = vadd.f32 0.0, %v151
  %v153 = vpop.f32.mrb[0].mxu0
  %v154 = vadd.f32 0.0, %v153
  %155 = vdwg.mxu0
  %156 = vmatprep.subr.mxu0 %v27
  %157 = vmatpush1.msra.mxu0 %v26
  %158 = vmatprep.subr.mxu0 %v34
  %159 = vmatpush1.msra.mxu0 %v33
  %160 = vmatprep.subr.mxu0 %v41
  %161 = vmatpush1.msra.mxu0 %v40
  %162 = vmatprep.subr.mxu0 %v48
  %163 = vmatpush1.msra.mxu0 %v47
  %164 = vmatprep.subr.mxu0 %v74
  %165 = vmatpush1.msra.mxu0 %v71
  %166 = vmatprep.subr.mxu0 0.0
  %167 = vmatpush1.msra.mxu0 0.0
  %168 = vmatprep.subr.mxu0 0.0
  %169 = vmatpush1.msra.mxu0 0.0
  %170 = vmatprep.subr.mxu0 0.0
  %171 = vmatpush1.msra.mxu0 0.0
  %172 = vmatprep.subr.mxu0 0.0
  %173 = vmatpush1.msra.mxu0 0.0
  %174 = vmatprep.subr.mxu0 0.0
  %175 = vmatpush1.msra.mxu0 0.0
  %176 = vmatprep.subr.mxu0 0.0
  %177 = vmatpush1.msra.mxu0 0.0
  %178 = vmatprep.subr.mxu0 0.0
  %179 = vmatpush1.msra.mxu0 0.0
  %180 = vmatprep.subr.mxu0 0.0
  %181 = vmatpush1.msra.mxu0 0.0
  %182 = vmatprep.subr.mxu0 0.0
  %183 = vmatpush1.msra.mxu0 0.0
  %184 = vmatprep.subr.mxu0 0.0
  %185 = vmatpush1.msra.mxu0 0.0
  %186 = vmatprep.subr.mxu0 0.0
  %187 = vmatpush1.msra.mxu0 0.0
  %188 = vmatprep.subr.mxu0 0.0
  %189 = vmatpush1.msra.mxu0 0.0
  %190 = vmatprep.subr.mxu0 0.0
  %191 = vmatpush1.msra.mxu0 0.0
  %192 = vmatprep.subr.mxu0 0.0
  %193 = vmatpush1.msra.mxu0 0.0
  %194 = vmatprep.subr.mxu0 0.0
  %195 = vmatpush1.msra.mxu0 0.0
  %196 = vmatprep.subr.mxu0 0.0
  %197 = vmatpush1.msra.mxu0 0.0
  %198 = vmatprep.subr.mxu0 0.0
  %199 = vmatpush1.msra.mxu0 0.0
  %200 = vmatprep.subr.mxu0 0.0
  %201 = vmatpush1.msra.mxu0 0.0
  %202 = vmatprep.subr.mxu0 0.0
  %203 = vmatpush1.msra.mxu0 0.0
  %204 = vmatprep.subr.mxu0 0.0
  %205 = vmatpush1.msra.mxu0 0.0
  %206 = vmatprep.subr.mxu0 0.0
  %207 = vmatpush1.msra.mxu0 0.0
  %208 = vmatprep.subr.mxu0 0.0
  %209 = vmatpush1.msra.mxu0 0.0
  %210 = vmatprep.subr.mxu0 0.0
  %211 = vmatpush1.msra.mxu0 0.0
  %212 = vmatprep.subr.mxu0 0.0
  %213 = vmatpush1.msra.mxu0 0.0
  %214 = vmatprep.subr.mxu0 0.0
  %215 = vmatpush1.msra.mxu0 0.0
  %216 = vmatprep.subr.mxu0 0.0
  %217 = vmatpush1.msra.mxu0 0.0
  %218 = vmatprep.subr.mxu0 0.0
  %219 = vmatpush1.msra.mxu0 0.0
  %220 = vmatprep.mubr.f32.mxu0 0.0
  %221 = vmatmul.mubr.f32.gmra.mrb[0].mxu0 %v61
  %v222 = vpop.f32.mrb[0].mxu0
  %v223 = vadd.f32 0.0, %v222
  %v224 = vpop.f32.mrb[0].mxu0
  %v225 = vadd.f32 0.0, %v224
  %226 = vdwg.mxu0
  %227 = vmatprep.subr.mxu0 %v29
  %228 = vmatpush1.msra.mxu0 %v28
  %229 = vmatprep.subr.mxu0 %v36
  %230 = vmatpush1.msra.mxu0 %v35
  %231 = vmatprep.subr.mxu0 %v43
  %232 = vmatpush1.msra.mxu0 %v42
  %233 = vmatprep.subr.mxu0 %v50
  %234 = vmatpush1.msra.mxu0 %v49
  %235 = vmatprep.subr.mxu0 %v80
  %236 = vmatpush1.msra.mxu0 %v77
  %237 = vmatprep.subr.mxu0 0.0
  %238 = vmatpush1.msra.mxu0 0.0
  %239 = vmatprep.subr.mxu0 0.0
  %240 = vmatpush1.msra.mxu0 0.0
  %241 = vmatprep.subr.mxu0 0.0
  %242 = vmatpush1.msra.mxu0 0.0
  %243 = vmatprep.subr.mxu0 0.0
  %244 = vmatpush1.msra.mxu0 0.0
  %245 = vmatprep.subr.mxu0 0.0
  %246 = vmatpush1.msra.mxu0 0.0
  %247 = vmatprep.subr.mxu0 0.0
  %248 = vmatpush1.msra.mxu0 0.0
  %249 = vmatprep.subr.mxu0 0.0
  %250 = vmatpush1.msra.mxu0 0.0
  %251 = vmatprep.subr.mxu0 0.0
  %252 = vmatpush1.msra.mxu0 0.0
  %253 = vmatprep.subr.mxu0 0.0
  %254 = vmatpush1.msra.mxu0 0.0
  %255 = vmatprep.subr.mxu0 0.0
  %256 = vmatpush1.msra.mxu0 0.0
  %257 = vmatprep.subr.mxu0 0.0
  %258 = vmatpush1.msra.mxu0 0.0
  %259 = vmatprep.subr.mxu0 0.0
  %260 = vmatpush1.msra.mxu0 0.0
  %261 = vmatprep.subr.mxu0 0.0
  %262 = vmatpush1.msra.mxu0 0.0
  %263 = vmatprep.subr.mxu0 0.0
  %264 = vmatpush1.msra.mxu0 0.0
  %265 = vmatprep.subr.mxu0 0.0
  %266 = vmatpush1.msra.mxu0 0.0
  %267 = vmatprep.subr.mxu0 0.0
  %268 = vmatpush1.msra.mxu0 0.0
  %269 = vmatprep.subr.mxu0 0.0
  %270 = vmatpush1.msra.mxu0 0.0
  %271 = vmatprep.subr.mxu0 0.0
  %272 = vmatpush1.msra.mxu0 0.0
  %273 = vmatprep.subr.mxu0 0.0
  %274 = vmatpush1.msra.mxu0 0.0
  %275 = vmatprep.subr.mxu0 0.0
  %276 = vmatpush1.msra.mxu0 0.0
  %277 = vmatprep.subr.mxu0 0.0
  %278 = vmatpush1.msra.mxu0 0.0
  %279 = vmatprep.subr.mxu0 0.0
  %280 = vmatpush1.msra.mxu0 0.0
  %281 = vmatprep.subr.mxu0 0.0
  %282 = vmatpush1.msra.mxu0 0.0
  %283 = vmatprep.subr.mxu0 0.0
  %284 = vmatpush1.msra.mxu0 0.0
  %285 = vmatprep.subr.mxu0 0.0
  %286 = vmatpush1.msra.mxu0 0.0
  %287 = vmatprep.subr.mxu0 0.0
  %288 = vmatpush1.msra.mxu0 0.0
  %289 = vmatprep.subr.mxu0 0.0
  %290 = vmatpush1.msra.mxu0 0.0
  %291 = vmatprep.mubr.f32.mxu0 0.0
  %292 = vmatmul.mubr.f32.gmra.mrb[0].mxu0 %v61
  %v293 = vpop.f32.mrb[0].mxu0
  %v294 = vadd.f32 0.0, %v293
  %v295 = vpop.f32.mrb[0].mxu0
  %v296 = vadd.f32 0.0, %v295
  %297 = vdwg.mxu0
  %298 = vmatprep.subr.mxu0 0.0
  %299 = vmatpush1.msra.mxu0 %v30
  %300 = vmatprep.subr.mxu0 0.0
  %301 = vmatpush1.msra.mxu0 %v37
  %302 = vmatprep.subr.mxu0 0.0
  %303 = vmatpush1.msra.mxu0 %v44
  %304 = vmatprep.subr.mxu0 0.0
  %305 = vmatpush1.msra.mxu0 %v51
  %306 = vmatprep.subr.mxu0 0.0
  %307 = vmatpush1.msra.mxu0 %v83
  %308 = vmatprep.subr.mxu0 0.0
  %309 = vmatpush1.msra.mxu0 0.0
  %310 = vmatprep.subr.mxu0 0.0
  %311 = vmatpush1.msra.mxu0 0.0
  %312 = vmatprep.subr.mxu0 0.0
  %313 = vmatpush1.msra.mxu0 0.0
  %314 = vmatprep.subr.mxu0 0.0
  %315 = vmatpush1.msra.mxu0 0.0
  %316 = vmatprep.subr.mxu0 0.0
  %317 = vmatpush1.msra.mxu0 0.0
  %318 = vmatprep.subr.mxu0 0.0
  %319 = vmatpush1.msra.mxu0 0.0
  %320 = vmatprep.subr.mxu0 0.0
  %321 = vmatpush1.msra.mxu0 0.0
  %322 = vmatprep.subr.mxu0 0.0
  %323 = vmatpush1.msra.mxu0 0.0
  %324 = vmatprep.subr.mxu0 0.0
  %325 = vmatpush1.msra.mxu0 0.0
  %326 = vmatprep.subr.mxu0 0.0
  %327 = vmatpush1.msra.mxu0 0.0
  %328 = vmatprep.subr.mxu0 0.0
  %329 = vmatpush1.msra.mxu0 0.0
  %330 = vmatprep.subr.mxu0 0.0
  %331 = vmatpush1.msra.mxu0 0.0
  %332 = vmatprep.subr.mxu0 0.0
  %333 = vmatpush1.msra.mxu0 0.0
  %334 = vmatprep.subr.mxu0 0.0
  %335 = vmatpush1.msra.mxu0 0.0
  %336 = vmatprep.subr.mxu0 0.0
  %337 = vmatpush1.msra.mxu0 0.0
  %338 = vmatprep.subr.mxu0 0.0
  %339 = vmatpush1.msra.mxu0 0.0
  %340 = vmatprep.subr.mxu0 0.0
  %341 = vmatpush1.msra.mxu0 0.0
  %342 = vmatprep.subr.mxu0 0.0
  %343 = vmatpush1.msra.mxu0 0.0
  %344 = vmatprep.subr.mxu0 0.0
  %345 = vmatpush1.msra.mxu0 0.0
  %346 = vmatprep.subr.mxu0 0.0
  %347 = vmatpush1.msra.mxu0 0.0
  %348 = vmatprep.subr.mxu0 0.0
  %349 = vmatpush1.msra.mxu0 0.0
  %350 = vmatprep.subr.mxu0 0.0
  %351 = vmatpush1.msra.mxu0 0.0
  %352 = vmatprep.subr.mxu0 0.0
  %353 = vmatpush1.msra.mxu0 0.0
  %354 = vmatprep.subr.mxu0 0.0
  %355 = vmatpush1.msra.mxu0 0.0
  %356 = vmatprep.subr.mxu0 0.0
  %357 = vmatpush1.msra.mxu0 0.0
  %358 = vmatprep.subr.mxu0 0.0
  %359 = vmatpush1.msra.mxu0 0.0
  %360 = vmatprep.subr.mxu0 0.0
  %361 = vmatpush1.msra.mxu0 0.0
  %362 = vmatprep.mubr.f32.mxu0 0.0
  %363 = vmatmul.mubr.f32.gmra.mrb[0].mxu0 %v61
  %v364 = vpop.f32.mrb[0].mxu0
  %v365 = vadd.f32 0.0, %v364
  %v366 = vpop.f32.mrb[0].mxu0
  %367 = vdwg.mxu0
  %v368 = vld [vmem:[%s1] sm:$0xff]
  %v370 = vlaneseq
  %v371 = vshrl.u32 %v370, 7
  %v372 = vsub.s32 0, %v371
  %v373 = vrot.slane %v368, %v372
  %v374 = vlaneseq
  %v375 = vshrl.u32 %v374, 7
  %v376 = vsub.s32 1, %v375
  %v377 = vrot.slane %v368, %v376
  %v378 = vlaneseq
  %v379 = vshrl.u32 %v378, 7
  %v380 = vsub.s32 2, %v379
  %v381 = vrot.slane %v368, %v380
  %v382 = vlaneseq
  %v383 = vshrl.u32 %v382, 7
  %v384 = vsub.s32 3, %v383
  %v385 = vrot.slane %v368, %v384
  %v386 = vlaneseq
  %v387 = vshrl.u32 %v386, 7
  %v388 = vsub.s32 4, %v387
  %v389 = vrot.slane %v368, %v388
  %v390 = vlaneseq
  %v391 = vshrl.u32 %v390, 7
  %v392 = vsub.s32 5, %v391
  %v393 = vrot.slane %v368, %v392
  %v394 = vlaneseq
  %v395 = vshrl.u32 %v394, 7
  %v396 = vsub.s32 6, %v395
  %v397 = vrot.slane %v368, %v396
  %v405 = vmul.f32 %v152, %v373
  %v406 = vmul.f32 %v154, %v377
  %v407 = vmul.f32 %v223, %v381
  %v408 = vmul.f32 %v225, %v385
  %v409 = vmul.f32 %v294, %v389
  %v410 = vmul.f32 %v296, %v393
  %v411 = vmul.f32 %v365, %v397
  %vm412 = vcmask 1044480
  %v413 = vsel %vm412, %v405, 0.0
  %v414 = vsel %vm412, %v406, 0.0
  %v415 = vadd.f32 %v413, %v414
  %v416 = vsel %vm412, %v407, 0.0
  %v417 = vadd.f32 %v415, %v416
  %v418 = vsel %vm412, %v408, 0.0
  %v419 = vadd.f32 %v417, %v418
  %v420 = vsel %vm412, %v409, 0.0
  %v421 = vadd.f32 %v419, %v420
  %v422 = vsel %vm412, %v410, 0.0
  %v423 = vadd.f32 %v421, %v422
  %v424 = vsel %vm412, %v411, 0.0
  %v425 = vadd.f32 %v423, %v424
  %426 = vadd.xlane.f32.xlu0 %v425
  %v427 = vpop.xlane.xlu0 %426
  %v428 = vmul.f32 %v152, %v152
  %v429 = vmul.f32 %v154, %v154
  %v430 = vmul.f32 %v223, %v223
  %v431 = vmul.f32 %v225, %v225
  %v432 = vmul.f32 %v294, %v294
  %v433 = vmul.f32 %v296, %v296
  %v434 = vmul.f32 %v365, %v365
  %v435 = vmul.f32 %v428, %v373
  %v436 = vmul.f32 %v429, %v377
  %v437 = vmul.f32 %v430, %v381
  %v438 = vmul.f32 %v431, %v385
  %v439 = vmul.f32 %v432, %v389
  %v440 = vmul.f32 %v433, %v393
  %v441 = vmul.f32 %v434, %v397
  %v442 = vsel %vm412, %v435, 0.0
  %v443 = vsel %vm412, %v436, 0.0
  %v444 = vadd.f32 %v442, %v443
  %v445 = vsel %vm412, %v437, 0.0
  %v446 = vadd.f32 %v444, %v445
  %v447 = vsel %vm412, %v438, 0.0
  %v448 = vadd.f32 %v446, %v447
  %v449 = vsel %vm412, %v439, 0.0
  %v450 = vadd.f32 %v448, %v449
  %v451 = vsel %vm412, %v440, 0.0
  %v452 = vadd.f32 %v450, %v451
  %v453 = vsel %vm412, %v441, 0.0
  %v454 = vadd.f32 %v452, %v453
  %455 = vadd.xlane.f32.xlu0 %v454
  %v456 = vpop.xlane.xlu0 %455
  %v457 = vmul.f32 %v427, 0.001953125
  %v458 = vmul.f32 %v456, 0.001953125
  %v459 = vmul.f32 %v457, %v457
  %v460 = vsub.f32 %v458, %v459
  %v461 = vld [vmem:[%s3] sm:$0x1f]
  %v462 = vadd.f32 %v460, 1e-05
  %v463 = vrsqrt.pop %v462
  %v464 = vmul.f32 %v461, %v463
  %v465 = vld [vmem:[%s4] sm:$0x1f]
  %v466 = vmul.f32 %v457, %v464
  %v467 = vsub.f32 %v465, %v466
  %469 = vset.pattern.permute.xlu0 0
  %470 = vperm.xlu0 %469, %v464
  %v471 = vpop.permute.xlu0 %470
  %v473 = vmul.f32 %v152, %v471
  %v474 = vmul.f32 %v154, %v471
  %v475 = vmul.f32 %v223, %v471
  %v476 = vmul.f32 %v225, %v471
  %v477 = vmul.f32 %v294, %v471
  %v478 = vmul.f32 %v296, %v471
  %v479 = vmul.f32 %v365, %v471
  %481 = vset.pattern.permute.xlu0 0
  %482 = vperm.xlu0 %481, %v467
  %v483 = vpop.permute.xlu0 %482
  %v485 = vadd.f32 %v473, %v483
  %v486 = vadd.f32 %v474, %v483
  %v487 = vadd.f32 %v475, %v483
  %v488 = vadd.f32 %v476, %v483
  %v489 = vadd.f32 %v477, %v483
  %v490 = vadd.f32 %v478, %v483
  %v491 = vadd.f32 %v479, %v483
  %v492 = vmax.f32 %v485, 0.0
  %v493 = vmax.f32 %v486, 0.0
  %v494 = vmax.f32 %v487, 0.0
  %v495 = vmax.f32 %v488, 0.0
  %v496 = vmax.f32 %v489, 0.0
  %v497 = vmax.f32 %v490, 0.0
  %v498 = vmax.f32 %v491, 0.0
  %499 = vst [vmem:[#allocation2] sm:$0x1f] %v492
  %500 = vst [vmem:[#allocation2 + $0x8] sm:$0x1f] %v493
  %501 = vst [vmem:[#allocation2 + $0x10] sm:$0x1f] %v494
  %502 = vst [vmem:[#allocation2 + $0x18] sm:$0x1f] %v495
  %503 = vst [vmem:[#allocation2 + $0x20] sm:$0x1f] %v496
  %504 = vst [vmem:[#allocation2 + $0x28] sm:$0x1f] %v497
  %505 = vst [vmem:[#allocation2 + $0x30] sm:$0x1f] %v498
  %v506 = vld [vmem:[#allocation2] sm:$0x1f]
  %v507 = vld [vmem:[#allocation2 + $0x8] sm:$0x1f]
  %v508 = vld [vmem:[#allocation2 + $0x10] sm:$0x1f]
  %v509 = vld [vmem:[#allocation2 + $0x18] sm:$0x1f]
  %v510 = vld [vmem:[#allocation2 + $0x20] sm:$0x1f]
  %v511 = vld [vmem:[#allocation2 + $0x28] sm:$0x1f]
  %v512 = vld [vmem:[#allocation2 + $0x30] sm:$0x1f]
  %v513 = vld [vmem:[%s5] sm:$0x1f]
  %515 = vrot.lane.b32.xlu0 %v513, 123
  %v516 = vpop.permute.xlu0 %515
  %524 = vrot.lane.b32.xlu0 %v506, 127
  %v525 = vpop.permute.xlu0 %524
  %526 = vrot.lane.b32.xlu0 %v507, 127
  %v527 = vpop.permute.xlu0 %526
  %528 = vrot.lane.b32.xlu0 %v508, 127
  %v529 = vpop.permute.xlu0 %528
  %530 = vrot.lane.b32.xlu0 %v509, 127
  %v531 = vpop.permute.xlu0 %530
  %532 = vrot.lane.b32.xlu0 %v510, 127
  %v533 = vpop.permute.xlu0 %532
  %534 = vrot.lane.b32.xlu0 %v511, 127
  %v535 = vpop.permute.xlu0 %534
  %536 = vrot.lane.b32.xlu0 %v512, 127
  %v537 = vpop.permute.xlu0 %536
  %vm538 = vcmask 1039360
  %v539 = vsel %vm538, %v525, %v527
  %v540 = vsel %vm538, %v527, %v529
  %v541 = vsel %vm538, %v529, %v531
  %v542 = vsel %vm538, %v531, %v533
  %v543 = vsel %vm538, %v533, %v535
  %v544 = vsel %vm538, %v535, %v537
  %vm545 = vcmask 39936
  %v546 = vsel %vm545, %v516, 0
  %v548 = vsel %vm412, %v539, 0
  %v550 = vsel %vm412, %v540, 0
  %v552 = vsel %vm412, %v541, 0
  %v554 = vsel %vm412, %v542, 0
  %v556 = vsel %vm412, %v543, 0
  %v558 = vsel %vm412, %v544, 0
  %v560 = vsel %vm412, %v537, 0
  %562 = vmatprep.subr.mxu0 %v550
  %563 = vmatpush1.msra.mxu0 %v548
  %564 = vmatprep.subr.mxu0 0.0
  %565 = vmatpush1.msra.mxu0 0.0
  %566 = vmatprep.subr.mxu0 0.0
  %567 = vmatpush1.msra.mxu0 0.0
  %568 = vmatprep.subr.mxu0 0.0
  %569 = vmatpush1.msra.mxu0 0.0
  %570 = vmatprep.subr.mxu0 0.0
  %571 = vmatpush1.msra.mxu0 0.0
  %572 = vmatprep.subr.mxu0 0.0
  %573 = vmatpush1.msra.mxu0 0.0
  %574 = vmatprep.subr.mxu0 0.0
  %575 = vmatpush1.msra.mxu0 0.0
  %576 = vmatprep.subr.mxu0 0.0
  %577 = vmatpush1.msra.mxu0 0.0
  %578 = vmatprep.subr.mxu0 0.0
  %579 = vmatpush1.msra.mxu0 0.0
  %580 = vmatprep.subr.mxu0 0.0
  %581 = vmatpush1.msra.mxu0 0.0
  %582 = vmatprep.subr.mxu0 0.0
  %583 = vmatpush1.msra.mxu0 0.0
  %584 = vmatprep.subr.mxu0 0.0
  %585 = vmatpush1.msra.mxu0 0.0
  %586 = vmatprep.subr.mxu0 0.0
  %587 = vmatpush1.msra.mxu0 0.0
  %588 = vmatprep.subr.mxu0 0.0
  %589 = vmatpush1.msra.mxu0 0.0
  %590 = vmatprep.subr.mxu0 0.0
  %591 = vmatpush1.msra.mxu0 0.0
  %592 = vmatprep.subr.mxu0 0.0
  %593 = vmatpush1.msra.mxu0 0.0
  %594 = vmatprep.subr.mxu0 0.0
  %595 = vmatpush1.msra.mxu0 0.0
  %596 = vmatprep.subr.mxu0 0.0
  %597 = vmatpush1.msra.mxu0 0.0
  %598 = vmatprep.subr.mxu0 0.0
  %599 = vmatpush1.msra.mxu0 0.0
  %600 = vmatprep.subr.mxu0 0.0
  %601 = vmatpush1.msra.mxu0 0.0
  %602 = vmatprep.subr.mxu0 0.0
  %603 = vmatpush1.msra.mxu0 0.0
  %604 = vmatprep.subr.mxu0 0.0
  %605 = vmatpush1.msra.mxu0 0.0
  %606 = vmatprep.subr.mxu0 0.0
  %607 = vmatpush1.msra.mxu0 0.0
  %608 = vmatprep.subr.mxu0 0.0
  %609 = vmatpush1.msra.mxu0 0.0
  %610 = vmatprep.subr.mxu0 0.0
  %611 = vmatpush1.msra.mxu0 0.0
  %612 = vmatprep.subr.mxu0 0.0
  %613 = vmatpush1.msra.mxu0 0.0
  %614 = vmatprep.subr.mxu0 0.0
  %615 = vmatpush1.msra.mxu0 0.0
  %616 = vmatprep.subr.mxu0 0.0
  %617 = vmatpush1.msra.mxu0 0.0
  %618 = vmatprep.subr.mxu0 0.0
  %619 = vmatpush1.msra.mxu0 0.0
  %620 = vmatprep.subr.mxu0 0.0
  %621 = vmatpush1.msra.mxu0 0.0
  %622 = vmatprep.subr.mxu0 0.0
  %623 = vmatpush1.msra.mxu0 0.0
  %624 = vmatprep.subr.mxu0 0.0
  %625 = vmatpush1.msra.mxu0 0.0
  %626 = vmatprep.mubr.f32.mxu0 0.0
  %627 = vmatmul.mubr.f32.gmra.mrb[0].mxu0 %v546
  %v628 = vpop.f32.mrb[0].mxu0
  %v629 = vadd.f32 0.0, %v628
  %v630 = vpop.f32.mrb[0].mxu0
  %v631 = vadd.f32 0.0, %v630
  %632 = vdwg.mxu0
  %633 = vmatprep.subr.mxu0 %v554
  %634 = vmatpush1.msra.mxu0 %v552
  %635 = vmatprep.subr.mxu0 0.0
  %636 = vmatpush1.msra.mxu0 0.0
  %637 = vmatprep.subr.mxu0 0.0
  %638 = vmatpush1.msra.mxu0 0.0
  %639 = vmatprep.subr.mxu0 0.0
  %640 = vmatpush1.msra.mxu0 0.0
  %641 = vmatprep.subr.mxu0 0.0
  %642 = vmatpush1.msra.mxu0 0.0
  %643 = vmatprep.subr.mxu0 0.0
  %644 = vmatpush1.msra.mxu0 0.0
  %645 = vmatprep.subr.mxu0 0.0
  %646 = vmatpush1.msra.mxu0 0.0
  %647 = vmatprep.subr.mxu0 0.0
  %648 = vmatpush1.msra.mxu0 0.0
  %649 = vmatprep.subr.mxu0 0.0
  %650 = vmatpush1.msra.mxu0 0.0
  %651 = vmatprep.subr.mxu0 0.0
  %652 = vmatpush1.msra.mxu0 0.0
  %653 = vmatprep.subr.mxu0 0.0
  %654 = vmatpush1.msra.mxu0 0.0
  %655 = vmatprep.subr.mxu0 0.0
  %656 = vmatpush1.msra.mxu0 0.0
  %657 = vmatprep.subr.mxu0 0.0
  %658 = vmatpush1.msra.mxu0 0.0
  %659 = vmatprep.subr.mxu0 0.0
  %660 = vmatpush1.msra.mxu0 0.0
  %661 = vmatprep.subr.mxu0 0.0
  %662 = vmatpush1.msra.mxu0 0.0
  %663 = vmatprep.subr.mxu0 0.0
  %664 = vmatpush1.msra.mxu0 0.0
  %665 = vmatprep.subr.mxu0 0.0
  %666 = vmatpush1.msra.mxu0 0.0
  %667 = vmatprep.subr.mxu0 0.0
  %668 = vmatpush1.msra.mxu0 0.0
  %669 = vmatprep.subr.mxu0 0.0
  %670 = vmatpush1.msra.mxu0 0.0
  %671 = vmatprep.subr.mxu0 0.0
  %672 = vmatpush1.msra.mxu0 0.0
  %673 = vmatprep.subr.mxu0 0.0
  %674 = vmatpush1.msra.mxu0 0.0
  %675 = vmatprep.subr.mxu0 0.0
  %676 = vmatpush1.msra.mxu0 0.0
  %677 = vmatprep.subr.mxu0 0.0
  %678 = vmatpush1.msra.mxu0 0.0
  %679 = vmatprep.subr.mxu0 0.0
  %680 = vmatpush1.msra.mxu0 0.0
  %681 = vmatprep.subr.mxu0 0.0
  %682 = vmatpush1.msra.mxu0 0.0
  %683 = vmatprep.subr.mxu0 0.0
  %684 = vmatpush1.msra.mxu0 0.0
  %685 = vmatprep.subr.mxu0 0.0
  %686 = vmatpush1.msra.mxu0 0.0
  %687 = vmatprep.subr.mxu0 0.0
  %688 = vmatpush1.msra.mxu0 0.0
  %689 = vmatprep.subr.mxu0 0.0
  %690 = vmatpush1.msra.mxu0 0.0
  %691 = vmatprep.subr.mxu0 0.0
  %692 = vmatpush1.msra.mxu0 0.0
  %693 = vmatprep.subr.mxu0 0.0
  %694 = vmatpush1.msra.mxu0 0.0
  %695 = vmatprep.subr.mxu0 0.0
  %696 = vmatpush1.msra.mxu0 0.0
  %697 = vmatprep.mubr.f32.mxu0 0.0
  %698 = vmatmul.mubr.f32.gmra.mrb[0].mxu0 %v546
  %v699 = vpop.f32.mrb[0].mxu0
  %v700 = vadd.f32 0.0, %v699
  %v701 = vpop.f32.mrb[0].mxu0
  %v702 = vadd.f32 0.0, %v701
  %703 = vdwg.mxu0
  %704 = vmatprep.subr.mxu0 %v558
  %705 = vmatpush1.msra.mxu0 %v556
  %706 = vmatprep.subr.mxu0 0.0
  %707 = vmatpush1.msra.mxu0 0.0
  %708 = vmatprep.subr.mxu0 0.0
  %709 = vmatpush1.msra.mxu0 0.0
  %710 = vmatprep.subr.mxu0 0.0
  %711 = vmatpush1.msra.mxu0 0.0
  %712 = vmatprep.subr.mxu0 0.0
  %713 = vmatpush1.msra.mxu0 0.0
  %714 = vmatprep.subr.mxu0 0.0
  %715 = vmatpush1.msra.mxu0 0.0
  %716 = vmatprep.subr.mxu0 0.0
  %717 = vmatpush1.msra.mxu0 0.0
  %718 = vmatprep.subr.mxu0 0.0
  %719 = vmatpush1.msra.mxu0 0.0
  %720 = vmatprep.subr.mxu0 0.0
  %721 = vmatpush1.msra.mxu0 0.0
  %722 = vmatprep.subr.mxu0 0.0
  %723 = vmatpush1.msra.mxu0 0.0
  %724 = vmatprep.subr.mxu0 0.0
  %725 = vmatpush1.msra.mxu0 0.0
  %726 = vmatprep.subr.mxu0 0.0
  %727 = vmatpush1.msra.mxu0 0.0
  %728 = vmatprep.subr.mxu0 0.0
  %729 = vmatpush1.msra.mxu0 0.0
  %730 = vmatprep.subr.mxu0 0.0
  %731 = vmatpush1.msra.mxu0 0.0
  %732 = vmatprep.subr.mxu0 0.0
  %733 = vmatpush1.msra.mxu0 0.0
  %734 = vmatprep.subr.mxu0 0.0
  %735 = vmatpush1.msra.mxu0 0.0
  %736 = vmatprep.subr.mxu0 0.0
  %737 = vmatpush1.msra.mxu0 0.0
  %738 = vmatprep.subr.mxu0 0.0
  %739 = vmatpush1.msra.mxu0 0.0
  %740 = vmatprep.subr.mxu0 0.0
  %741 = vmatpush1.msra.mxu0 0.0
  %742 = vmatprep.subr.mxu0 0.0
  %743 = vmatpush1.msra.mxu0 0.0
  %744 = vmatprep.subr.mxu0 0.0
  %745 = vmatpush1.msra.mxu0 0.0
  %746 = vmatprep.subr.mxu0 0.0
  %747 = vmatpush1.msra.mxu0 0.0
  %748 = vmatprep.subr.mxu0 0.0
  %749 = vmatpush1.msra.mxu0 0.0
  %750 = vmatprep.subr.mxu0 0.0
  %751 = vmatpush1.msra.mxu0 0.0
  %752 = vmatprep.subr.mxu0 0.0
  %753 = vmatpush1.msra.mxu0 0.0
  %754 = vmatprep.subr.mxu0 0.0
  %755 = vmatpush1.msra.mxu0 0.0
  %756 = vmatprep.subr.mxu0 0.0
  %757 = vmatpush1.msra.mxu0 0.0
  %758 = vmatprep.subr.mxu0 0.0
  %759 = vmatpush1.msra.mxu0 0.0
  %760 = vmatprep.subr.mxu0 0.0
  %761 = vmatpush1.msra.mxu0 0.0
  %762 = vmatprep.subr.mxu0 0.0
  %763 = vmatpush1.msra.mxu0 0.0
  %764 = vmatprep.subr.mxu0 0.0
  %765 = vmatpush1.msra.mxu0 0.0
  %766 = vmatprep.subr.mxu0 0.0
  %767 = vmatpush1.msra.mxu0 0.0
  %768 = vmatprep.mubr.f32.mxu0 0.0
  %769 = vmatmul.mubr.f32.gmra.mrb[0].mxu0 %v546
  %v770 = vpop.f32.mrb[0].mxu0
  %v771 = vadd.f32 0.0, %v770
  %v772 = vpop.f32.mrb[0].mxu0
  %v773 = vadd.f32 0.0, %v772
  %774 = vdwg.mxu0
  %775 = vmatprep.subr.mxu0 0.0
  %776 = vmatpush1.msra.mxu0 %v560
  %777 = vmatprep.subr.mxu0 0.0
  %778 = vmatpush1.msra.mxu0 0.0
  %779 = vmatprep.subr.mxu0 0.0
  %780 = vmatpush1.msra.mxu0 0.0
  %781 = vmatprep.subr.mxu0 0.0
  %782 = vmatpush1.msra.mxu0 0.0
  %783 = vmatprep.subr.mxu0 0.0
  %784 = vmatpush1.msra.mxu0 0.0
  %785 = vmatprep.subr.mxu0 0.0
  %786 = vmatpush1.msra.mxu0 0.0
  %787 = vmatprep.subr.mxu0 0.0
  %788 = vmatpush1.msra.mxu0 0.0
  %789 = vmatprep.subr.mxu0 0.0
  %790 = vmatpush1.msra.mxu0 0.0
  %791 = vmatprep.subr.mxu0 0.0
  %792 = vmatpush1.msra.mxu0 0.0
  %793 = vmatprep.subr.mxu0 0.0
  %794 = vmatpush1.msra.mxu0 0.0
  %795 = vmatprep.subr.mxu0 0.0
  %796 = vmatpush1.msra.mxu0 0.0
  %797 = vmatprep.subr.mxu0 0.0
  %798 = vmatpush1.msra.mxu0 0.0
  %799 = vmatprep.subr.mxu0 0.0
  %800 = vmatpush1.msra.mxu0 0.0
  %801 = vmatprep.subr.mxu0 0.0
  %802 = vmatpush1.msra.mxu0 0.0
  %803 = vmatprep.subr.mxu0 0.0
  %804 = vmatpush1.msra.mxu0 0.0
  %805 = vmatprep.subr.mxu0 0.0
  %806 = vmatpush1.msra.mxu0 0.0
  %807 = vmatprep.subr.mxu0 0.0
  %808 = vmatpush1.msra.mxu0 0.0
  %809 = vmatprep.subr.mxu0 0.0
  %810 = vmatpush1.msra.mxu0 0.0
  %811 = vmatprep.subr.mxu0 0.0
  %812 = vmatpush1.msra.mxu0 0.0
  %813 = vmatprep.subr.mxu0 0.0
  %814 = vmatpush1.msra.mxu0 0.0
  %815 = vmatprep.subr.mxu0 0.0
  %816 = vmatpush1.msra.mxu0 0.0
  %817 = vmatprep.subr.mxu0 0.0
  %818 = vmatpush1.msra.mxu0 0.0
  %819 = vmatprep.subr.mxu0 0.0
  %820 = vmatpush1.msra.mxu0 0.0
  %821 = vmatprep.subr.mxu0 0.0
  %822 = vmatpush1.msra.mxu0 0.0
  %823 = vmatprep.subr.mxu0 0.0
  %824 = vmatpush1.msra.mxu0 0.0
  %825 = vmatprep.subr.mxu0 0.0
  %826 = vmatpush1.msra.mxu0 0.0
  %827 = vmatprep.subr.mxu0 0.0
  %828 = vmatpush1.msra.mxu0 0.0
  %829 = vmatprep.subr.mxu0 0.0
  %830 = vmatpush1.msra.mxu0 0.0
  %831 = vmatprep.subr.mxu0 0.0
  %832 = vmatpush1.msra.mxu0 0.0
  %833 = vmatprep.subr.mxu0 0.0
  %834 = vmatpush1.msra.mxu0 0.0
  %835 = vmatprep.subr.mxu0 0.0
  %836 = vmatpush1.msra.mxu0 0.0
  %837 = vmatprep.subr.mxu0 0.0
  %838 = vmatpush1.msra.mxu0 0.0
  %839 = vmatprep.mubr.f32.mxu0 0.0
  %840 = vmatmul.mubr.f32.gmra.mrb[0].mxu0 %v546
  %v841 = vpop.f32.mrb[0].mxu0
  %v842 = vadd.f32 0.0, %v841
  %v843 = vpop.f32.mrb[0].mxu0
  %844 = vdwg.mxu0
  %v845 = vsel %vm545, %v513, 0
  %v847 = vsel %vm412, %v506, 0
  %v849 = vsel %vm412, %v507, 0
  %v851 = vsel %vm412, %v508, 0
  %v853 = vsel %vm412, %v509, 0
  %v855 = vsel %vm412, %v510, 0
  %v857 = vsel %vm412, %v511, 0
  %v859 = vsel %vm412, %v512, 0
  %861 = vmatprep.subr.mxu0 %v849
  %862 = vmatpush1.msra.mxu0 %v847
  %863 = vmatprep.subr.mxu0 0.0
  %864 = vmatpush1.msra.mxu0 0.0
  %865 = vmatprep.subr.mxu0 0.0
  %866 = vmatpush1.msra.mxu0 0.0
  %867 = vmatprep.subr.mxu0 0.0
  %868 = vmatpush1.msra.mxu0 0.0
  %869 = vmatprep.subr.mxu0 0.0
  %870 = vmatpush1.msra.mxu0 0.0
  %871 = vmatprep.subr.mxu0 0.0
  %872 = vmatpush1.msra.mxu0 0.0
  %873 = vmatprep.subr.mxu0 0.0
  %874 = vmatpush1.msra.mxu0 0.0
  %875 = vmatprep.subr.mxu0 0.0
  %876 = vmatpush1.msra.mxu0 0.0
  %877 = vmatprep.subr.mxu0 0.0
  %878 = vmatpush1.msra.mxu0 0.0
  %879 = vmatprep.subr.mxu0 0.0
  %880 = vmatpush1.msra.mxu0 0.0
  %881 = vmatprep.subr.mxu0 0.0
  %882 = vmatpush1.msra.mxu0 0.0
  %883 = vmatprep.subr.mxu0 0.0
  %884 = vmatpush1.msra.mxu0 0.0
  %885 = vmatprep.subr.mxu0 0.0
  %886 = vmatpush1.msra.mxu0 0.0
  %887 = vmatprep.subr.mxu0 0.0
  %888 = vmatpush1.msra.mxu0 0.0
  %889 = vmatprep.subr.mxu0 0.0
  %890 = vmatpush1.msra.mxu0 0.0
  %891 = vmatprep.subr.mxu0 0.0
  %892 = vmatpush1.msra.mxu0 0.0
  %893 = vmatprep.subr.mxu0 0.0
  %894 = vmatpush1.msra.mxu0 0.0
  %895 = vmatprep.subr.mxu0 0.0
  %896 = vmatpush1.msra.mxu0 0.0
  %897 = vmatprep.subr.mxu0 0.0
  %898 = vmatpush1.msra.mxu0 0.0
  %899 = vmatprep.subr.mxu0 0.0
  %900 = vmatpush1.msra.mxu0 0.0
  %901 = vmatprep.subr.mxu0 0.0
  %902 = vmatpush1.msra.mxu0 0.0
  %903 = vmatprep.subr.mxu0 0.0
  %904 = vmatpush1.msra.mxu0 0.0
  %905 = vmatprep.subr.mxu0 0.0
  %906 = vmatpush1.msra.mxu0 0.0
  %907 = vmatprep.subr.mxu0 0.0
  %908 = vmatpush1.msra.mxu0 0.0
  %909 = vmatprep.subr.mxu0 0.0
  %910 = vmatpush1.msra.mxu0 0.0
  %911 = vmatprep.subr.mxu0 0.0
  %912 = vmatpush1.msra.mxu0 0.0
  %913 = vmatprep.subr.mxu0 0.0
  %914 = vmatpush1.msra.mxu0 0.0
  %915 = vmatprep.subr.mxu0 0.0
  %916 = vmatpush1.msra.mxu0 0.0
  %917 = vmatprep.subr.mxu0 0.0
  %918 = vmatpush1.msra.mxu0 0.0
  %919 = vmatprep.subr.mxu0 0.0
  %920 = vmatpush1.msra.mxu0 0.0
  %921 = vmatprep.subr.mxu0 0.0
  %922 = vmatpush1.msra.mxu0 0.0
  %923 = vmatprep.subr.mxu0 0.0
  %924 = vmatpush1.msra.mxu0 0.0
  %925 = vmatprep.mubr.f32.mxu0 0.0
  %926 = vmatmul.mubr.f32.gmra.mrb[0].mxu0 %v845
  %v927 = vpop.f32.mrb[0].mxu0
  %v928 = vadd.f32 %v629, %v927
  %v929 = vpop.f32.mrb[0].mxu0
  %v930 = vadd.f32 %v631, %v929
  %931 = vdwg.mxu0
  %932 = vmatprep.subr.mxu0 %v853
  %933 = vmatpush1.msra.mxu0 %v851
  %934 = vmatprep.subr.mxu0 0.0
  %935 = vmatpush1.msra.mxu0 0.0
  %936 = vmatprep.subr.mxu0 0.0
  %937 = vmatpush1.msra.mxu0 0.0
  %938 = vmatprep.subr.mxu0 0.0
  %939 = vmatpush1.msra.mxu0 0.0
  %940 = vmatprep.subr.mxu0 0.0
  %941 = vmatpush1.msra.mxu0 0.0
  %942 = vmatprep.subr.mxu0 0.0
  %943 = vmatpush1.msra.mxu0 0.0
  %944 = vmatprep.subr.mxu0 0.0
  %945 = vmatpush1.msra.mxu0 0.0
  %946 = vmatprep.subr.mxu0 0.0
  %947 = vmatpush1.msra.mxu0 0.0
  %948 = vmatprep.subr.mxu0 0.0
  %949 = vmatpush1.msra.mxu0 0.0
  %950 = vmatprep.subr.mxu0 0.0
  %951 = vmatpush1.msra.mxu0 0.0
  %952 = vmatprep.subr.mxu0 0.0
  %953 = vmatpush1.msra.mxu0 0.0
  %954 = vmatprep.subr.mxu0 0.0
  %955 = vmatpush1.msra.mxu0 0.0
  %956 = vmatprep.subr.mxu0 0.0
  %957 = vmatpush1.msra.mxu0 0.0
  %958 = vmatprep.subr.mxu0 0.0
  %959 = vmatpush1.msra.mxu0 0.0
  %960 = vmatprep.subr.mxu0 0.0
  %961 = vmatpush1.msra.mxu0 0.0
  %962 = vmatprep.subr.mxu0 0.0
  %963 = vmatpush1.msra.mxu0 0.0
  %964 = vmatprep.subr.mxu0 0.0
  %965 = vmatpush1.msra.mxu0 0.0
  %966 = vmatprep.subr.mxu0 0.0
  %967 = vmatpush1.msra.mxu0 0.0
  %968 = vmatprep.subr.mxu0 0.0
  %969 = vmatpush1.msra.mxu0 0.0
  %970 = vmatprep.subr.mxu0 0.0
  %971 = vmatpush1.msra.mxu0 0.0
  %972 = vmatprep.subr.mxu0 0.0
  %973 = vmatpush1.msra.mxu0 0.0
  %974 = vmatprep.subr.mxu0 0.0
  %975 = vmatpush1.msra.mxu0 0.0
  %976 = vmatprep.subr.mxu0 0.0
  %977 = vmatpush1.msra.mxu0 0.0
  %978 = vmatprep.subr.mxu0 0.0
  %979 = vmatpush1.msra.mxu0 0.0
  %980 = vmatprep.subr.mxu0 0.0
  %981 = vmatpush1.msra.mxu0 0.0
  %982 = vmatprep.subr.mxu0 0.0
  %983 = vmatpush1.msra.mxu0 0.0
  %984 = vmatprep.subr.mxu0 0.0
  %985 = vmatpush1.msra.mxu0 0.0
  %986 = vmatprep.subr.mxu0 0.0
  %987 = vmatpush1.msra.mxu0 0.0
  %988 = vmatprep.subr.mxu0 0.0
  %989 = vmatpush1.msra.mxu0 0.0
  %990 = vmatprep.subr.mxu0 0.0
  %991 = vmatpush1.msra.mxu0 0.0
  %992 = vmatprep.subr.mxu0 0.0
  %993 = vmatpush1.msra.mxu0 0.0
  %994 = vmatprep.subr.mxu0 0.0
  %995 = vmatpush1.msra.mxu0 0.0
  %996 = vmatprep.mubr.f32.mxu0 0.0
  %997 = vmatmul.mubr.f32.gmra.mrb[0].mxu0 %v845
  %v998 = vpop.f32.mrb[0].mxu0
  %v999 = vadd.f32 %v700, %v998
  %v1000 = vpop.f32.mrb[0].mxu0
  %v1001 = vadd.f32 %v702, %v1000
  %1002 = vdwg.mxu0
  %1003 = vmatprep.subr.mxu0 %v857
  %1004 = vmatpush1.msra.mxu0 %v855
  %1005 = vmatprep.subr.mxu0 0.0
  %1006 = vmatpush1.msra.mxu0 0.0
  %1007 = vmatprep.subr.mxu0 0.0
  %1008 = vmatpush1.msra.mxu0 0.0
  %1009 = vmatprep.subr.mxu0 0.0
  %1010 = vmatpush1.msra.mxu0 0.0
  %1011 = vmatprep.subr.mxu0 0.0
  %1012 = vmatpush1.msra.mxu0 0.0
  %1013 = vmatprep.subr.mxu0 0.0
  %1014 = vmatpush1.msra.mxu0 0.0
  %1015 = vmatprep.subr.mxu0 0.0
  %1016 = vmatpush1.msra.mxu0 0.0
  %1017 = vmatprep.subr.mxu0 0.0
  %1018 = vmatpush1.msra.mxu0 0.0
  %1019 = vmatprep.subr.mxu0 0.0
  %1020 = vmatpush1.msra.mxu0 0.0
  %1021 = vmatprep.subr.mxu0 0.0
  %1022 = vmatpush1.msra.mxu0 0.0
  %1023 = vmatprep.subr.mxu0 0.0
  %1024 = vmatpush1.msra.mxu0 0.0
  %1025 = vmatprep.subr.mxu0 0.0
  %1026 = vmatpush1.msra.mxu0 0.0
  %1027 = vmatprep.subr.mxu0 0.0
  %1028 = vmatpush1.msra.mxu0 0.0
  %1029 = vmatprep.subr.mxu0 0.0
  %1030 = vmatpush1.msra.mxu0 0.0
  %1031 = vmatprep.subr.mxu0 0.0
  %1032 = vmatpush1.msra.mxu0 0.0
  %1033 = vmatprep.subr.mxu0 0.0
  %1034 = vmatpush1.msra.mxu0 0.0
  %1035 = vmatprep.subr.mxu0 0.0
  %1036 = vmatpush1.msra.mxu0 0.0
  %1037 = vmatprep.subr.mxu0 0.0
  %1038 = vmatpush1.msra.mxu0 0.0
  %1039 = vmatprep.subr.mxu0 0.0
  %1040 = vmatpush1.msra.mxu0 0.0
  %1041 = vmatprep.subr.mxu0 0.0
  %1042 = vmatpush1.msra.mxu0 0.0
  %1043 = vmatprep.subr.mxu0 0.0
  %1044 = vmatpush1.msra.mxu0 0.0
  %1045 = vmatprep.subr.mxu0 0.0
  %1046 = vmatpush1.msra.mxu0 0.0
  %1047 = vmatprep.subr.mxu0 0.0
  %1048 = vmatpush1.msra.mxu0 0.0
  %1049 = vmatprep.subr.mxu0 0.0
  %1050 = vmatpush1.msra.mxu0 0.0
  %1051 = vmatprep.subr.mxu0 0.0
  %1052 = vmatpush1.msra.mxu0 0.0
  %1053 = vmatprep.subr.mxu0 0.0
  %1054 = vmatpush1.msra.mxu0 0.0
  %1055 = vmatprep.subr.mxu0 0.0
  %1056 = vmatpush1.msra.mxu0 0.0
  %1057 = vmatprep.subr.mxu0 0.0
  %1058 = vmatpush1.msra.mxu0 0.0
  %1059 = vmatprep.subr.mxu0 0.0
  %1060 = vmatpush1.msra.mxu0 0.0
  %1061 = vmatprep.subr.mxu0 0.0
  %1062 = vmatpush1.msra.mxu0 0.0
  %1063 = vmatprep.subr.mxu0 0.0
  %1064 = vmatpush1.msra.mxu0 0.0
  %1065 = vmatprep.subr.mxu0 0.0
  %1066 = vmatpush1.msra.mxu0 0.0
  %1067 = vmatprep.mubr.f32.mxu0 0.0
  %1068 = vmatmul.mubr.f32.gmra.mrb[0].mxu0 %v845
  %v1069 = vpop.f32.mrb[0].mxu0
  %v1070 = vadd.f32 %v771, %v1069
  %v1071 = vpop.f32.mrb[0].mxu0
  %v1072 = vadd.f32 %v773, %v1071
  %1073 = vdwg.mxu0
  %1074 = vmatprep.subr.mxu0 0.0
  %1075 = vmatpush1.msra.mxu0 %v859
  %1076 = vmatprep.subr.mxu0 0.0
  %1077 = vmatpush1.msra.mxu0 0.0
  %1078 = vmatprep.subr.mxu0 0.0
  %1079 = vmatpush1.msra.mxu0 0.0
  %1080 = vmatprep.subr.mxu0 0.0
  %1081 = vmatpush1.msra.mxu0 0.0
  %1082 = vmatprep.subr.mxu0 0.0
  %1083 = vmatpush1.msra.mxu0 0.0
  %1084 = vmatprep.subr.mxu0 0.0
  %1085 = vmatpush1.msra.mxu0 0.0
  %1086 = vmatprep.subr.mxu0 0.0
  %1087 = vmatpush1.msra.mxu0 0.0
  %1088 = vmatprep.subr.mxu0 0.0
  %1089 = vmatpush1.msra.mxu0 0.0
  %1090 = vmatprep.subr.mxu0 0.0
  %1091 = vmatpush1.msra.mxu0 0.0
  %1092 = vmatprep.subr.mxu0 0.0
  %1093 = vmatpush1.msra.mxu0 0.0
  %1094 = vmatprep.subr.mxu0 0.0
  %1095 = vmatpush1.msra.mxu0 0.0
  %1096 = vmatprep.subr.mxu0 0.0
  %1097 = vmatpush1.msra.mxu0 0.0
  %1098 = vmatprep.subr.mxu0 0.0
  %1099 = vmatpush1.msra.mxu0 0.0
  %1100 = vmatprep.subr.mxu0 0.0
  %1101 = vmatpush1.msra.mxu0 0.0
  %1102 = vmatprep.subr.mxu0 0.0
  %1103 = vmatpush1.msra.mxu0 0.0
  %1104 = vmatprep.subr.mxu0 0.0
  %1105 = vmatpush1.msra.mxu0 0.0
  %1106 = vmatprep.subr.mxu0 0.0
  %1107 = vmatpush1.msra.mxu0 0.0
  %1108 = vmatprep.subr.mxu0 0.0
  %1109 = vmatpush1.msra.mxu0 0.0
  %1110 = vmatprep.subr.mxu0 0.0
  %1111 = vmatpush1.msra.mxu0 0.0
  %1112 = vmatprep.subr.mxu0 0.0
  %1113 = vmatpush1.msra.mxu0 0.0
  %1114 = vmatprep.subr.mxu0 0.0
  %1115 = vmatpush1.msra.mxu0 0.0
  %1116 = vmatprep.subr.mxu0 0.0
  %1117 = vmatpush1.msra.mxu0 0.0
  %1118 = vmatprep.subr.mxu0 0.0
  %1119 = vmatpush1.msra.mxu0 0.0
  %1120 = vmatprep.subr.mxu0 0.0
  %1121 = vmatpush1.msra.mxu0 0.0
  %1122 = vmatprep.subr.mxu0 0.0
  %1123 = vmatpush1.msra.mxu0 0.0
  %1124 = vmatprep.subr.mxu0 0.0
  %1125 = vmatpush1.msra.mxu0 0.0
  %1126 = vmatprep.subr.mxu0 0.0
  %1127 = vmatpush1.msra.mxu0 0.0
  %1128 = vmatprep.subr.mxu0 0.0
  %1129 = vmatpush1.msra.mxu0 0.0
  %1130 = vmatprep.subr.mxu0 0.0
  %1131 = vmatpush1.msra.mxu0 0.0
  %1132 = vmatprep.subr.mxu0 0.0
  %1133 = vmatpush1.msra.mxu0 0.0
  %1134 = vmatprep.subr.mxu0 0.0
  %1135 = vmatpush1.msra.mxu0 0.0
  %1136 = vmatprep.subr.mxu0 0.0
  %1137 = vmatpush1.msra.mxu0 0.0
  %1138 = vmatprep.mubr.f32.mxu0 0.0
  %1139 = vmatmul.mubr.f32.gmra.mrb[0].mxu0 %v845
  %v1140 = vpop.f32.mrb[0].mxu0
  %v1141 = vadd.f32 %v842, %v1140
  %v1142 = vpop.f32.mrb[0].mxu0
  %1143 = vdwg.mxu0
  %1144 = vrot.lane.b32.xlu0 %v513, 118
  %v1145 = vpop.permute.xlu0 %1144
  %1146 = vrot.lane.b32.xlu0 %v506, 126
  %v1147 = vpop.permute.xlu0 %1146
  %1148 = vrot.lane.b32.xlu0 %v507, 126
  %v1149 = vpop.permute.xlu0 %1148
  %1150 = vrot.lane.b32.xlu0 %v508, 126
  %v1151 = vpop.permute.xlu0 %1150
  %1152 = vrot.lane.b32.xlu0 %v509, 126
  %v1153 = vpop.permute.xlu0 %1152
  %1154 = vrot.lane.b32.xlu0 %v510, 126
  %v1155 = vpop.permute.xlu0 %1154
  %1156 = vrot.lane.b32.xlu0 %v511, 126
  %v1157 = vpop.permute.xlu0 %1156
  %1158 = vrot.lane.b32.xlu0 %v512, 126
  %v1159 = vpop.permute.xlu0 %1158
  %vm1160 = vcmask 1031168
  %v1161 = vsel %vm1160, %v1147, %v1149
  %v1162 = vsel %vm1160, %v1149, %v1151
  %v1163 = vsel %vm1160, %v1151, %v1153
  %v1164 = vsel %vm1160, %v1153, %v1155
  %v1165 = vsel %vm1160, %v1155, %v1157
  %v1166 = vsel %vm1160, %v1157, %v1159
  %v1167 = vsel %vm545, %v1145, 0
  %v1169 = vsel %vm412, %v1161, 0
  %v1171 = vsel %vm412, %v1162, 0
  %v1173 = vsel %vm412, %v1163, 0
  %v1175 = vsel %vm412, %v1164, 0
  %v1177 = vsel %vm412, %v1165, 0
  %v1179 = vsel %vm412, %v1166, 0
  %v1181 = vsel %vm412, %v1159, 0
  %1183 = vmatprep.subr.mxu0 %v1171
  %1184 = vmatpush1.msra.mxu0 %v1169
  %1185 = vmatprep.subr.mxu0 0.0
  %1186 = vmatpush1.msra.mxu0 0.0
  %1187 = vmatprep.subr.mxu0 0.0
  %1188 = vmatpush1.msra.mxu0 0.0
  %1189 = vmatprep.subr.mxu0 0.0
  %1190 = vmatpush1.msra.mxu0 0.0
  %1191 = vmatprep.subr.mxu0 0.0
  %1192 = vmatpush1.msra.mxu0 0.0
  %1193 = vmatprep.subr.mxu0 0.0
  %1194 = vmatpush1.msra.mxu0 0.0
  %1195 = vmatprep.subr.mxu0 0.0
  %1196 = vmatpush1.msra.mxu0 0.0
  %1197 = vmatprep.subr.mxu0 0.0
  %1198 = vmatpush1.msra.mxu0 0.0
  %1199 = vmatprep.subr.mxu0 0.0
  %1200 = vmatpush1.msra.mxu0 0.0
  %1201 = vmatprep.subr.mxu0 0.0
  %1202 = vmatpush1.msra.mxu0 0.0
  %1203 = vmatprep.subr.mxu0 0.0
  %1204 = vmatpush1.msra.mxu0 0.0
  %1205 = vmatprep.subr.mxu0 0.0
  %1206 = vmatpush1.msra.mxu0 0.0
  %1207 = vmatprep.subr.mxu0 0.0
  %1208 = vmatpush1.msra.mxu0 0.0
  %1209 = vmatprep.subr.mxu0 0.0
  %1210 = vmatpush1.msra.mxu0 0.0
  %1211 = vmatprep.subr.mxu0 0.0
  %1212 = vmatpush1.msra.mxu0 0.0
  %1213 = vmatprep.subr.mxu0 0.0
  %1214 = vmatpush1.msra.mxu0 0.0
  %1215 = vmatprep.subr.mxu0 0.0
  %1216 = vmatpush1.msra.mxu0 0.0
  %1217 = vmatprep.subr.mxu0 0.0
  %1218 = vmatpush1.msra.mxu0 0.0
  %1219 = vmatprep.subr.mxu0 0.0
  %1220 = vmatpush1.msra.mxu0 0.0
  %1221 = vmatprep.subr.mxu0 0.0
  %1222 = vmatpush1.msra.mxu0 0.0
  %1223 = vmatprep.subr.mxu0 0.0
  %1224 = vmatpush1.msra.mxu0 0.0
  %1225 = vmatprep.subr.mxu0 0.0
  %1226 = vmatpush1.msra.mxu0 0.0
  %1227 = vmatprep.subr.mxu0 0.0
  %1228 = vmatpush1.msra.mxu0 0.0
  %1229 = vmatprep.subr.mxu0 0.0
  %1230 = vmatpush1.msra.mxu0 0.0
  %1231 = vmatprep.subr.mxu0 0.0
  %1232 = vmatpush1.msra.mxu0 0.0
  %1233 = vmatprep.subr.mxu0 0.0
  %1234 = vmatpush1.msra.mxu0 0.0
  %1235 = vmatprep.subr.mxu0 0.0
  %1236 = vmatpush1.msra.mxu0 0.0
  %1237 = vmatprep.subr.mxu0 0.0
  %1238 = vmatpush1.msra.mxu0 0.0
  %1239 = vmatprep.subr.mxu0 0.0
  %1240 = vmatpush1.msra.mxu0 0.0
  %1241 = vmatprep.subr.mxu0 0.0
  %1242 = vmatpush1.msra.mxu0 0.0
  %1243 = vmatprep.subr.mxu0 0.0
  %1244 = vmatpush1.msra.mxu0 0.0
  %1245 = vmatprep.subr.mxu0 0.0
  %1246 = vmatpush1.msra.mxu0 0.0
  %1247 = vmatprep.mubr.f32.mxu0 0.0
  %1248 = vmatmul.mubr.f32.gmra.mrb[0].mxu0 %v1167
  %v1249 = vpop.f32.mrb[0].mxu0
  %v1250 = vadd.f32 0.0, %v1249
  %v1251 = vpop.f32.mrb[0].mxu0
  %v1252 = vadd.f32 0.0, %v1251
  %1253 = vdwg.mxu0
  %1254 = vmatprep.subr.mxu0 %v1175
  %1255 = vmatpush1.msra.mxu0 %v1173
  %1256 = vmatprep.subr.mxu0 0.0
  %1257 = vmatpush1.msra.mxu0 0.0
  %1258 = vmatprep.subr.mxu0 0.0
  %1259 = vmatpush1.msra.mxu0 0.0
  %1260 = vmatprep.subr.mxu0 0.0
  %1261 = vmatpush1.msra.mxu0 0.0
  %1262 = vmatprep.subr.mxu0 0.0
  %1263 = vmatpush1.msra.mxu0 0.0
  %1264 = vmatprep.subr.mxu0 0.0
  %1265 = vmatpush1.msra.mxu0 0.0
  %1266 = vmatprep.subr.mxu0 0.0
  %1267 = vmatpush1.msra.mxu0 0.0
  %1268 = vmatprep.subr.mxu0 0.0
  %1269 = vmatpush1.msra.mxu0 0.0
  %1270 = vmatprep.subr.mxu0 0.0
  %1271 = vmatpush1.msra.mxu0 0.0
  %1272 = vmatprep.subr.mxu0 0.0
  %1273 = vmatpush1.msra.mxu0 0.0
  %1274 = vmatprep.subr.mxu0 0.0
  %1275 = vmatpush1.msra.mxu0 0.0
  %1276 = vmatprep.subr.mxu0 0.0
  %1277 = vmatpush1.msra.mxu0 0.0
  %1278 = vmatprep.subr.mxu0 0.0
  %1279 = vmatpush1.msra.mxu0 0.0
  %1280 = vmatprep.subr.mxu0 0.0
  %1281 = vmatpush1.msra.mxu0 0.0
  %1282 = vmatprep.subr.mxu0 0.0
  %1283 = vmatpush1.msra.mxu0 0.0
  %1284 = vmatprep.subr.mxu0 0.0
  %1285 = vmatpush1.msra.mxu0 0.0
  %1286 = vmatprep.subr.mxu0 0.0
  %1287 = vmatpush1.msra.mxu0 0.0
  %1288 = vmatprep.subr.mxu0 0.0
  %1289 = vmatpush1.msra.mxu0 0.0
  %1290 = vmatprep.subr.mxu0 0.0
  %1291 = vmatpush1.msra.mxu0 0.0
  %1292 = vmatprep.subr.mxu0 0.0
  %1293 = vmatpush1.msra.mxu0 0.0
  %1294 = vmatprep.subr.mxu0 0.0
  %1295 = vmatpush1.msra.mxu0 0.0
  %1296 = vmatprep.subr.mxu0 0.0
  %1297 = vmatpush1.msra.mxu0 0.0
  %1298 = vmatprep.subr.mxu0 0.0
  %1299 = vmatpush1.msra.mxu0 0.0
  %1300 = vmatprep.subr.mxu0 0.0
  %1301 = vmatpush1.msra.mxu0 0.0
  %1302 = vmatprep.subr.mxu0 0.0
  %1303 = vmatpush1.msra.mxu0 0.0
  %1304 = vmatprep.subr.mxu0 0.0
  %1305 = vmatpush1.msra.mxu0 0.0
  %1306 = vmatprep.subr.mxu0 0.0
  %1307 = vmatpush1.msra.mxu0 0.0
  %1308 = vmatprep.subr.mxu0 0.0
  %1309 = vmatpush1.msra.mxu0 0.0
  %1310 = vmatprep.subr.mxu0 0.0
  %1311 = vmatpush1.msra.mxu0 0.0
  %1312 = vmatprep.subr.mxu0 0.0
  %1313 = vmatpush1.msra.mxu0 0.0
  %1314 = vmatprep.subr.mxu0 0.0
  %1315 = vmatpush1.msra.mxu0 0.0
  %1316 = vmatprep.subr.mxu0 0.0
  %1317 = vmatpush1.msra.mxu0 0.0
  %1318 = vmatprep.mubr.f32.mxu0 0.0
  %1319 = vmatmul.mubr.f32.gmra.mrb[0].mxu0 %v1167
  %v1320 = vpop.f32.mrb[0].mxu0
  %v1321 = vadd.f32 0.0, %v1320
  %v1322 = vpop.f32.mrb[0].mxu0
  %v1323 = vadd.f32 0.0, %v1322
  %1324 = vdwg.mxu0
  %1325 = vmatprep.subr.mxu0 %v1179
  %1326 = vmatpush1.msra.mxu0 %v1177
  %1327 = vmatprep.subr.mxu0 0.0
  %1328 = vmatpush1.msra.mxu0 0.0
  %1329 = vmatprep.subr.mxu0 0.0
  %1330 = vmatpush1.msra.mxu0 0.0
  %1331 = vmatprep.subr.mxu0 0.0
  %1332 = vmatpush1.msra.mxu0 0.0
  %1333 = vmatprep.subr.mxu0 0.0
  %1334 = vmatpush1.msra.mxu0 0.0
  %1335 = vmatprep.subr.mxu0 0.0
  %1336 = vmatpush1.msra.mxu0 0.0
  %1337 = vmatprep.subr.mxu0 0.0
  %1338 = vmatpush1.msra.mxu0 0.0
  %1339 = vmatprep.subr.mxu0 0.0
  %1340 = vmatpush1.msra.mxu0 0.0
  %1341 = vmatprep.subr.mxu0 0.0
  %1342 = vmatpush1.msra.mxu0 0.0
  %1343 = vmatprep.subr.mxu0 0.0
  %1344 = vmatpush1.msra.mxu0 0.0
  %1345 = vmatprep.subr.mxu0 0.0
  %1346 = vmatpush1.msra.mxu0 0.0
  %1347 = vmatprep.subr.mxu0 0.0
  %1348 = vmatpush1.msra.mxu0 0.0
  %1349 = vmatprep.subr.mxu0 0.0
  %1350 = vmatpush1.msra.mxu0 0.0
  %1351 = vmatprep.subr.mxu0 0.0
  %1352 = vmatpush1.msra.mxu0 0.0
  %1353 = vmatprep.subr.mxu0 0.0
  %1354 = vmatpush1.msra.mxu0 0.0
  %1355 = vmatprep.subr.mxu0 0.0
  %1356 = vmatpush1.msra.mxu0 0.0
  %1357 = vmatprep.subr.mxu0 0.0
  %1358 = vmatpush1.msra.mxu0 0.0
  %1359 = vmatprep.subr.mxu0 0.0
  %1360 = vmatpush1.msra.mxu0 0.0
  %1361 = vmatprep.subr.mxu0 0.0
  %1362 = vmatpush1.msra.mxu0 0.0
  %1363 = vmatprep.subr.mxu0 0.0
  %1364 = vmatpush1.msra.mxu0 0.0
  %1365 = vmatprep.subr.mxu0 0.0
  %1366 = vmatpush1.msra.mxu0 0.0
  %1367 = vmatprep.subr.mxu0 0.0
  %1368 = vmatpush1.msra.mxu0 0.0
  %1369 = vmatprep.subr.mxu0 0.0
  %1370 = vmatpush1.msra.mxu0 0.0
  %1371 = vmatprep.subr.mxu0 0.0
  %1372 = vmatpush1.msra.mxu0 0.0
  %1373 = vmatprep.subr.mxu0 0.0
  %1374 = vmatpush1.msra.mxu0 0.0
  %1375 = vmatprep.subr.mxu0 0.0
  %1376 = vmatpush1.msra.mxu0 0.0
  %1377 = vmatprep.subr.mxu0 0.0
  %1378 = vmatpush1.msra.mxu0 0.0
  %1379 = vmatprep.subr.mxu0 0.0
  %1380 = vmatpush1.msra.mxu0 0.0
  %1381 = vmatprep.subr.mxu0 0.0
  %1382 = vmatpush1.msra.mxu0 0.0
  %1383 = vmatprep.subr.mxu0 0.0
  %1384 = vmatpush1.msra.mxu0 0.0
  %1385 = vmatprep.subr.mxu0 0.0
  %1386 = vmatpush1.msra.mxu0 0.0
  %1387 = vmatprep.subr.mxu0 0.0
  %1388 = vmatpush1.msra.mxu0 0.0
  %1389 = vmatprep.mubr.f32.mxu0 0.0
  %1390 = vmatmul.mubr.f32.gmra.mrb[0].mxu0 %v1167
  %v1391 = vpop.f32.mrb[0].mxu0
  %v1392 = vadd.f32 0.0, %v1391
  %v1393 = vpop.f32.mrb[0].mxu0
  %v1394 = vadd.f32 0.0, %v1393
  %1395 = vdwg.mxu0
  %1396 = vmatprep.subr.mxu0 0.0
  %1397 = vmatpush1.msra.mxu0 %v1181
  %1398 = vmatprep.subr.mxu0 0.0
  %1399 = vmatpush1.msra.mxu0 0.0
  %1400 = vmatprep.subr.mxu0 0.0
  %1401 = vmatpush1.msra.mxu0 0.0
  %1402 = vmatprep.subr.mxu0 0.0
  %1403 = vmatpush1.msra.mxu0 0.0
  %1404 = vmatprep.subr.mxu0 0.0
  %1405 = vmatpush1.msra.mxu0 0.0
  %1406 = vmatprep.subr.mxu0 0.0
  %1407 = vmatpush1.msra.mxu0 0.0
  %1408 = vmatprep.subr.mxu0 0.0
  %1409 = vmatpush1.msra.mxu0 0.0
  %1410 = vmatprep.subr.mxu0 0.0
  %1411 = vmatpush1.msra.mxu0 0.0
  %1412 = vmatprep.subr.mxu0 0.0
  %1413 = vmatpush1.msra.mxu0 0.0
  %1414 = vmatprep.subr.mxu0 0.0
  %1415 = vmatpush1.msra.mxu0 0.0
  %1416 = vmatprep.subr.mxu0 0.0
  %1417 = vmatpush1.msra.mxu0 0.0
  %1418 = vmatprep.subr.mxu0 0.0
  %1419 = vmatpush1.msra.mxu0 0.0
  %1420 = vmatprep.subr.mxu0 0.0
  %1421 = vmatpush1.msra.mxu0 0.0
  %1422 = vmatprep.subr.mxu0 0.0
  %1423 = vmatpush1.msra.mxu0 0.0
  %1424 = vmatprep.subr.mxu0 0.0
  %1425 = vmatpush1.msra.mxu0 0.0
  %1426 = vmatprep.subr.mxu0 0.0
  %1427 = vmatpush1.msra.mxu0 0.0
  %1428 = vmatprep.subr.mxu0 0.0
  %1429 = vmatpush1.msra.mxu0 0.0
  %1430 = vmatprep.subr.mxu0 0.0
  %1431 = vmatpush1.msra.mxu0 0.0
  %1432 = vmatprep.subr.mxu0 0.0
  %1433 = vmatpush1.msra.mxu0 0.0
  %1434 = vmatprep.subr.mxu0 0.0
  %1435 = vmatpush1.msra.mxu0 0.0
  %1436 = vmatprep.subr.mxu0 0.0
  %1437 = vmatpush1.msra.mxu0 0.0
  %1438 = vmatprep.subr.mxu0 0.0
  %1439 = vmatpush1.msra.mxu0 0.0
  %1440 = vmatprep.subr.mxu0 0.0
  %1441 = vmatpush1.msra.mxu0 0.0
  %1442 = vmatprep.subr.mxu0 0.0
  %1443 = vmatpush1.msra.mxu0 0.0
  %1444 = vmatprep.subr.mxu0 0.0
  %1445 = vmatpush1.msra.mxu0 0.0
  %1446 = vmatprep.subr.mxu0 0.0
  %1447 = vmatpush1.msra.mxu0 0.0
  %1448 = vmatprep.subr.mxu0 0.0
  %1449 = vmatpush1.msra.mxu0 0.0
  %1450 = vmatprep.subr.mxu0 0.0
  %1451 = vmatpush1.msra.mxu0 0.0
  %1452 = vmatprep.subr.mxu0 0.0
  %1453 = vmatpush1.msra.mxu0 0.0
  %1454 = vmatprep.subr.mxu0 0.0
  %1455 = vmatpush1.msra.mxu0 0.0
  %1456 = vmatprep.subr.mxu0 0.0
  %1457 = vmatpush1.msra.mxu0 0.0
  %1458 = vmatprep.subr.mxu0 0.0
  %1459 = vmatpush1.msra.mxu0 0.0
  %1460 = vmatprep.mubr.f32.mxu0 0.0
  %1461 = vmatmul.mubr.f32.gmra.mrb[0].mxu0 %v1167
  %v1462 = vpop.f32.mrb[0].mxu0
  %v1463 = vadd.f32 0.0, %v1462
  %v1464 = vpop.f32.mrb[0].mxu0
  %1465 = vdwg.mxu0
  %v1466 = vadd.f32 %v928, %v1250
  %v1467 = vadd.f32 %v930, %v1252
  %v1468 = vadd.f32 %v999, %v1321
  %v1469 = vadd.f32 %v1001, %v1323
  %v1470 = vadd.f32 %v1070, %v1392
  %v1471 = vadd.f32 %v1072, %v1394
  %v1472 = vadd.f32 %v1141, %v1463
  %1473 = vrot.lane.b32.xlu0 %v513, 113
  %v1474 = vpop.permute.xlu0 %1473
  %1475 = vrot.lane.b32.xlu0 %v506, 125
  %v1476 = vpop.permute.xlu0 %1475
  %1477 = vrot.lane.b32.xlu0 %v507, 125
  %v1478 = vpop.permute.xlu0 %1477
  %1479 = vrot.lane.b32.xlu0 %v508, 125
  %v1480 = vpop.permute.xlu0 %1479
  %1481 = vrot.lane.b32.xlu0 %v509, 125
  %v1482 = vpop.permute.xlu0 %1481
  %1483 = vrot.lane.b32.xlu0 %v510, 125
  %v1484 = vpop.permute.xlu0 %1483
  %1485 = vrot.lane.b32.xlu0 %v511, 125
  %v1486 = vpop.permute.xlu0 %1485
  %1487 = vrot.lane.b32.xlu0 %v512, 125
  %v1488 = vpop.permute.xlu0 %1487
  %vm1489 = vcmask 1022976
  %v1490 = vsel %vm1489, %v1476, %v1478
  %v1491 = vsel %vm1489, %v1478, %v1480
  %v1492 = vsel %vm1489, %v1480, %v1482
  %v1493 = vsel %vm1489, %v1482, %v1484
  %v1494 = vsel %vm1489, %v1484, %v1486
  %v1495 = vsel %vm1489, %v1486, %v1488
  %v1496 = vsel %vm545, %v1474, 0
  %v1498 = vsel %vm412, %v1490, 0
  %v1500 = vsel %vm412, %v1491, 0
  %v1502 = vsel %vm412, %v1492, 0
  %v1504 = vsel %vm412, %v1493, 0
  %v1506 = vsel %vm412, %v1494, 0
  %v1508 = vsel %vm412, %v1495, 0
  %v1510 = vsel %vm412, %v1488, 0
  %1512 = vmatprep.subr.mxu0 %v1500
  %1513 = vmatpush1.msra.mxu0 %v1498
  %1514 = vmatprep.subr.mxu0 0.0
  %1515 = vmatpush1.msra.mxu0 0.0
  %1516 = vmatprep.subr.mxu0 0.0
  %1517 = vmatpush1.msra.mxu0 0.0
  %1518 = vmatprep.subr.mxu0 0.0
  %1519 = vmatpush1.msra.mxu0 0.0
  %1520 = vmatprep.subr.mxu0 0.0
  %1521 = vmatpush1.msra.mxu0 0.0
  %1522 = vmatprep.subr.mxu0 0.0
  %1523 = vmatpush1.msra.mxu0 0.0
  %1524 = vmatprep.subr.mxu0 0.0
  %1525 = vmatpush1.msra.mxu0 0.0
  %1526 = vmatprep.subr.mxu0 0.0
  %1527 = vmatpush1.msra.mxu0 0.0
  %1528 = vmatprep.subr.mxu0 0.0
  %1529 = vmatpush1.msra.mxu0 0.0
  %1530 = vmatprep.subr.mxu0 0.0
  %1531 = vmatpush1.msra.mxu0 0.0
  %1532 = vmatprep.subr.mxu0 0.0
  %1533 = vmatpush1.msra.mxu0 0.0
  %1534 = vmatprep.subr.mxu0 0.0
  %1535 = vmatpush1.msra.mxu0 0.0
  %1536 = vmatprep.subr.mxu0 0.0
  %1537 = vmatpush1.msra.mxu0 0.0
  %1538 = vmatprep.subr.mxu0 0.0
  %1539 = vmatpush1.msra.mxu0 0.0
  %1540 = vmatprep.subr.mxu0 0.0
  %1541 = vmatpush1.msra.mxu0 0.0
  %1542 = vmatprep.subr.mxu0 0.0
  %1543 = vmatpush1.msra.mxu0 0.0
  %1544 = vmatprep.subr.mxu0 0.0
  %1545 = vmatpush1.msra.mxu0 0.0
  %1546 = vmatprep.subr.mxu0 0.0
  %1547 = vmatpush1.msra.mxu0 0.0
  %1548 = vmatprep.subr.mxu0 0.0
  %1549 = vmatpush1.msra.mxu0 0.0
  %1550 = vmatprep.subr.mxu0 0.0
  %1551 = vmatpush1.msra.mxu0 0.0
  %1552 = vmatprep.subr.mxu0 0.0
  %1553 = vmatpush1.msra.mxu0 0.0
  %1554 = vmatprep.subr.mxu0 0.0
  %1555 = vmatpush1.msra.mxu0 0.0
  %1556 = vmatprep.subr.mxu0 0.0
  %1557 = vmatpush1.msra.mxu0 0.0
  %1558 = vmatprep.subr.mxu0 0.0
  %1559 = vmatpush1.msra.mxu0 0.0
  %1560 = vmatprep.subr.mxu0 0.0
  %1561 = vmatpush1.msra.mxu0 0.0
  %1562 = vmatprep.subr.mxu0 0.0
  %1563 = vmatpush1.msra.mxu0 0.0
  %1564 = vmatprep.subr.mxu0 0.0
  %1565 = vmatpush1.msra.mxu0 0.0
  %1566 = vmatprep.subr.mxu0 0.0
  %1567 = vmatpush1.msra.mxu0 0.0
  %1568 = vmatprep.subr.mxu0 0.0
  %1569 = vmatpush1.msra.mxu0 0.0
  %1570 = vmatprep.subr.mxu0 0.0
  %1571 = vmatpush1.msra.mxu0 0.0
  %1572 = vmatprep.subr.mxu0 0.0
  %1573 = vmatpush1.msra.mxu0 0.0
  %1574 = vmatprep.subr.mxu0 0.0
  %1575 = vmatpush1.msra.mxu0 0.0
  %1576 = vmatprep.mubr.f32.mxu0 0.0
  %1577 = vmatmul.mubr.f32.gmra.mrb[0].mxu0 %v1496
  %v1578 = vpop.f32.mrb[0].mxu0
  %v1579 = vadd.f32 0.0, %v1578
  %v1580 = vpop.f32.mrb[0].mxu0
  %v1581 = vadd.f32 0.0, %v1580
  %1582 = vdwg.mxu0
  %1583 = vmatprep.subr.mxu0 %v1504
  %1584 = vmatpush1.msra.mxu0 %v1502
  %1585 = vmatprep.subr.mxu0 0.0
  %1586 = vmatpush1.msra.mxu0 0.0
  %1587 = vmatprep.subr.mxu0 0.0
  %1588 = vmatpush1.msra.mxu0 0.0
  %1589 = vmatprep.subr.mxu0 0.0
  %1590 = vmatpush1.msra.mxu0 0.0
  %1591 = vmatprep.subr.mxu0 0.0
  %1592 = vmatpush1.msra.mxu0 0.0
  %1593 = vmatprep.subr.mxu0 0.0
  %1594 = vmatpush1.msra.mxu0 0.0
  %1595 = vmatprep.subr.mxu0 0.0
  %1596 = vmatpush1.msra.mxu0 0.0
  %1597 = vmatprep.subr.mxu0 0.0
  %1598 = vmatpush1.msra.mxu0 0.0
  %1599 = vmatprep.subr.mxu0 0.0
  %1600 = vmatpush1.msra.mxu0 0.0
  %1601 = vmatprep.subr.mxu0 0.0
  %1602 = vmatpush1.msra.mxu0 0.0
  %1603 = vmatprep.subr.mxu0 0.0
  %1604 = vmatpush1.msra.mxu0 0.0
  %1605 = vmatprep.subr.mxu0 0.0
  %1606 = vmatpush1.msra.mxu0 0.0
  %1607 = vmatprep.subr.mxu0 0.0
  %1608 = vmatpush1.msra.mxu0 0.0
  %1609 = vmatprep.subr.mxu0 0.0
  %1610 = vmatpush1.msra.mxu0 0.0
  %1611 = vmatprep.subr.mxu0 0.0
  %1612 = vmatpush1.msra.mxu0 0.0
  %1613 = vmatprep.subr.mxu0 0.0
  %1614 = vmatpush1.msra.mxu0 0.0
  %1615 = vmatprep.subr.mxu0 0.0
  %1616 = vmatpush1.msra.mxu0 0.0
  %1617 = vmatprep.subr.mxu0 0.0
  %1618 = vmatpush1.msra.mxu0 0.0
  %1619 = vmatprep.subr.mxu0 0.0
  %1620 = vmatpush1.msra.mxu0 0.0
  %1621 = vmatprep.subr.mxu0 0.0
  %1622 = vmatpush1.msra.mxu0 0.0
  %1623 = vmatprep.subr.mxu0 0.0
  %1624 = vmatpush1.msra.mxu0 0.0
  %1625 = vmatprep.subr.mxu0 0.0
  %1626 = vmatpush1.msra.mxu0 0.0
  %1627 = vmatprep.subr.mxu0 0.0
  %1628 = vmatpush1.msra.mxu0 0.0
  %1629 = vmatprep.subr.mxu0 0.0
  %1630 = vmatpush1.msra.mxu0 0.0
  %1631 = vmatprep.subr.mxu0 0.0
  %1632 = vmatpush1.msra.mxu0 0.0
  %1633 = vmatprep.subr.mxu0 0.0
  %1634 = vmatpush1.msra.mxu0 0.0
  %1635 = vmatprep.subr.mxu0 0.0
  %1636 = vmatpush1.msra.mxu0 0.0
  %1637 = vmatprep.subr.mxu0 0.0
  %1638 = vmatpush1.msra.mxu0 0.0
  %1639 = vmatprep.subr.mxu0 0.0
  %1640 = vmatpush1.msra.mxu0 0.0
  %1641 = vmatprep.subr.mxu0 0.0
  %1642 = vmatpush1.msra.mxu0 0.0
  %1643 = vmatprep.subr.mxu0 0.0
  %1644 = vmatpush1.msra.mxu0 0.0
  %1645 = vmatprep.subr.mxu0 0.0
  %1646 = vmatpush1.msra.mxu0 0.0
  %1647 = vmatprep.mubr.f32.mxu0 0.0
  %1648 = vmatmul.mubr.f32.gmra.mrb[0].mxu0 %v1496
  %v1649 = vpop.f32.mrb[0].mxu0
  %v1650 = vadd.f32 0.0, %v1649
  %v1651 = vpop.f32.mrb[0].mxu0
  %v1652 = vadd.f32 0.0, %v1651
  %1653 = vdwg.mxu0
  %1654 = vmatprep.subr.mxu0 %v1508
  %1655 = vmatpush1.msra.mxu0 %v1506
  %1656 = vmatprep.subr.mxu0 0.0
  %1657 = vmatpush1.msra.mxu0 0.0
  %1658 = vmatprep.subr.mxu0 0.0
  %1659 = vmatpush1.msra.mxu0 0.0
  %1660 = vmatprep.subr.mxu0 0.0
  %1661 = vmatpush1.msra.mxu0 0.0
  %1662 = vmatprep.subr.mxu0 0.0
  %1663 = vmatpush1.msra.mxu0 0.0
  %1664 = vmatprep.subr.mxu0 0.0
  %1665 = vmatpush1.msra.mxu0 0.0
  %1666 = vmatprep.subr.mxu0 0.0
  %1667 = vmatpush1.msra.mxu0 0.0
  %1668 = vmatprep.subr.mxu0 0.0
  %1669 = vmatpush1.msra.mxu0 0.0
  %1670 = vmatprep.subr.mxu0 0.0
  %1671 = vmatpush1.msra.mxu0 0.0
  %1672 = vmatprep.subr.mxu0 0.0
  %1673 = vmatpush1.msra.mxu0 0.0
  %1674 = vmatprep.subr.mxu0 0.0
  %1675 = vmatpush1.msra.mxu0 0.0
  %1676 = vmatprep.subr.mxu0 0.0
  %1677 = vmatpush1.msra.mxu0 0.0
  %1678 = vmatprep.subr.mxu0 0.0
  %1679 = vmatpush1.msra.mxu0 0.0
  %1680 = vmatprep.subr.mxu0 0.0
  %1681 = vmatpush1.msra.mxu0 0.0
  %1682 = vmatprep.subr.mxu0 0.0
  %1683 = vmatpush1.msra.mxu0 0.0
  %1684 = vmatprep.subr.mxu0 0.0
  %1685 = vmatpush1.msra.mxu0 0.0
  %1686 = vmatprep.subr.mxu0 0.0
  %1687 = vmatpush1.msra.mxu0 0.0
  %1688 = vmatprep.subr.mxu0 0.0
  %1689 = vmatpush1.msra.mxu0 0.0
  %1690 = vmatprep.subr.mxu0 0.0
  %1691 = vmatpush1.msra.mxu0 0.0
  %1692 = vmatprep.subr.mxu0 0.0
  %1693 = vmatpush1.msra.mxu0 0.0
  %1694 = vmatprep.subr.mxu0 0.0
  %1695 = vmatpush1.msra.mxu0 0.0
  %1696 = vmatprep.subr.mxu0 0.0
  %1697 = vmatpush1.msra.mxu0 0.0
  %1698 = vmatprep.subr.mxu0 0.0
  %1699 = vmatpush1.msra.mxu0 0.0
  %1700 = vmatprep.subr.mxu0 0.0
  %1701 = vmatpush1.msra.mxu0 0.0
  %1702 = vmatprep.subr.mxu0 0.0
  %1703 = vmatpush1.msra.mxu0 0.0
  %1704 = vmatprep.subr.mxu0 0.0
  %1705 = vmatpush1.msra.mxu0 0.0
  %1706 = vmatprep.subr.mxu0 0.0
  %1707 = vmatpush1.msra.mxu0 0.0
  %1708 = vmatprep.subr.mxu0 0.0
  %1709 = vmatpush1.msra.mxu0 0.0
  %1710 = vmatprep.subr.mxu0 0.0
  %1711 = vmatpush1.msra.mxu0 0.0
  %1712 = vmatprep.subr.mxu0 0.0
  %1713 = vmatpush1.msra.mxu0 0.0
  %1714 = vmatprep.subr.mxu0 0.0
  %1715 = vmatpush1.msra.mxu0 0.0
  %1716 = vmatprep.subr.mxu0 0.0
  %1717 = vmatpush1.msra.mxu0 0.0
  %1718 = vmatprep.mubr.f32.mxu0 0.0
  %1719 = vmatmul.mubr.f32.gmra.mrb[0].mxu0 %v1496
  %v1720 = vpop.f32.mrb[0].mxu0
  %v1721 = vadd.f32 0.0, %v1720
  %v1722 = vpop.f32.mrb[0].mxu0
  %v1723 = vadd.f32 0.0, %v1722
  %1724 = vdwg.mxu0
  %1725 = vmatprep.subr.mxu0 0.0
  %1726 = vmatpush1.msra.mxu0 %v1510
  %1727 = vmatprep.subr.mxu0 0.0
  %1728 = vmatpush1.msra.mxu0 0.0
  %1729 = vmatprep.subr.mxu0 0.0
  %1730 = vmatpush1.msra.mxu0 0.0
  %1731 = vmatprep.subr.mxu0 0.0
  %1732 = vmatpush1.msra.mxu0 0.0
  %1733 = vmatprep.subr.mxu0 0.0
  %1734 = vmatpush1.msra.mxu0 0.0
  %1735 = vmatprep.subr.mxu0 0.0
  %1736 = vmatpush1.msra.mxu0 0.0
  %1737 = vmatprep.subr.mxu0 0.0
  %1738 = vmatpush1.msra.mxu0 0.0
  %1739 = vmatprep.subr.mxu0 0.0
  %1740 = vmatpush1.msra.mxu0 0.0
  %1741 = vmatprep.subr.mxu0 0.0
  %1742 = vmatpush1.msra.mxu0 0.0
  %1743 = vmatprep.subr.mxu0 0.0
  %1744 = vmatpush1.msra.mxu0 0.0
  %1745 = vmatprep.subr.mxu0 0.0
  %1746 = vmatpush1.msra.mxu0 0.0
  %1747 = vmatprep.subr.mxu0 0.0
  %1748 = vmatpush1.msra.mxu0 0.0
  %1749 = vmatprep.subr.mxu0 0.0
  %1750 = vmatpush1.msra.mxu0 0.0
  %1751 = vmatprep.subr.mxu0 0.0
  %1752 = vmatpush1.msra.mxu0 0.0
  %1753 = vmatprep.subr.mxu0 0.0
  %1754 = vmatpush1.msra.mxu0 0.0
  %1755 = vmatprep.subr.mxu0 0.0
  %1756 = vmatpush1.msra.mxu0 0.0
  %1757 = vmatprep.subr.mxu0 0.0
  %1758 = vmatpush1.msra.mxu0 0.0
  %1759 = vmatprep.subr.mxu0 0.0
  %1760 = vmatpush1.msra.mxu0 0.0
  %1761 = vmatprep.subr.mxu0 0.0
  %1762 = vmatpush1.msra.mxu0 0.0
  %1763 = vmatprep.subr.mxu0 0.0
  %1764 = vmatpush1.msra.mxu0 0.0
  %1765 = vmatprep.subr.mxu0 0.0
  %1766 = vmatpush1.msra.mxu0 0.0
  %1767 = vmatprep.subr.mxu0 0.0
  %1768 = vmatpush1.msra.mxu0 0.0
  %1769 = vmatprep.subr.mxu0 0.0
  %1770 = vmatpush1.msra.mxu0 0.0
  %1771 = vmatprep.subr.mxu0 0.0
  %1772 = vmatpush1.msra.mxu0 0.0
  %1773 = vmatprep.subr.mxu0 0.0
  %1774 = vmatpush1.msra.mxu0 0.0
  %1775 = vmatprep.subr.mxu0 0.0
  %1776 = vmatpush1.msra.mxu0 0.0
  %1777 = vmatprep.subr.mxu0 0.0
  %1778 = vmatpush1.msra.mxu0 0.0
  %1779 = vmatprep.subr.mxu0 0.0
  %1780 = vmatpush1.msra.mxu0 0.0
  %1781 = vmatprep.subr.mxu0 0.0
  %1782 = vmatpush1.msra.mxu0 0.0
  %1783 = vmatprep.subr.mxu0 0.0
  %1784 = vmatpush1.msra.mxu0 0.0
  %1785 = vmatprep.subr.mxu0 0.0
  %1786 = vmatpush1.msra.mxu0 0.0
  %1787 = vmatprep.subr.mxu0 0.0
  %1788 = vmatpush1.msra.mxu0 0.0
  %1789 = vmatprep.mubr.f32.mxu0 0.0
  %1790 = vmatmul.mubr.f32.gmra.mrb[0].mxu0 %v1496
  %v1791 = vpop.f32.mrb[0].mxu0
  %v1792 = vadd.f32 0.0, %v1791
  %v1793 = vpop.f32.mrb[0].mxu0
  %1794 = vdwg.mxu0
  %v1795 = vadd.f32 %v1466, %v1579
  %v1796 = vadd.f32 %v1467, %v1581
  %v1797 = vadd.f32 %v1468, %v1650
  %v1798 = vadd.f32 %v1469, %v1652
  %v1799 = vadd.f32 %v1470, %v1721
  %v1800 = vadd.f32 %v1471, %v1723
  %v1801 = vadd.f32 %v1472, %v1792
  %1802 = vrot.lane.b32.xlu0 %v513, 108
  %v1803 = vpop.permute.xlu0 %1802
  %1804 = vrot.lane.b32.xlu0 %v506, 124
  %v1805 = vpop.permute.xlu0 %1804
  %1806 = vrot.lane.b32.xlu0 %v507, 124
  %v1807 = vpop.permute.xlu0 %1806
  %1808 = vrot.lane.b32.xlu0 %v508, 124
  %v1809 = vpop.permute.xlu0 %1808
  %1810 = vrot.lane.b32.xlu0 %v509, 124
  %v1811 = vpop.permute.xlu0 %1810
  %1812 = vrot.lane.b32.xlu0 %v510, 124
  %v1813 = vpop.permute.xlu0 %1812
  %1814 = vrot.lane.b32.xlu0 %v511, 124
  %v1815 = vpop.permute.xlu0 %1814
  %1816 = vrot.lane.b32.xlu0 %v512, 124
  %v1817 = vpop.permute.xlu0 %1816
  %vm1818 = vcmask 1014784
  %v1819 = vsel %vm1818, %v1805, %v1807
  %v1820 = vsel %vm1818, %v1807, %v1809
  %v1821 = vsel %vm1818, %v1809, %v1811
  %v1822 = vsel %vm1818, %v1811, %v1813
  %v1823 = vsel %vm1818, %v1813, %v1815
  %v1824 = vsel %vm1818, %v1815, %v1817
  %v1825 = vsel %vm545, %v1803, 0
  %v1827 = vsel %vm412, %v1819, 0
  %v1829 = vsel %vm412, %v1820, 0
  %v1831 = vsel %vm412, %v1821, 0
  %v1833 = vsel %vm412, %v1822, 0
  %v1835 = vsel %vm412, %v1823, 0
  %v1837 = vsel %vm412, %v1824, 0
  %v1839 = vsel %vm412, %v1817, 0
  %1841 = vmatprep.subr.mxu0 %v1829
  %1842 = vmatpush1.msra.mxu0 %v1827
  %1843 = vmatprep.subr.mxu0 0.0
  %1844 = vmatpush1.msra.mxu0 0.0
  %1845 = vmatprep.subr.mxu0 0.0
  %1846 = vmatpush1.msra.mxu0 0.0
  %1847 = vmatprep.subr.mxu0 0.0
  %1848 = vmatpush1.msra.mxu0 0.0
  %1849 = vmatprep.subr.mxu0 0.0
  %1850 = vmatpush1.msra.mxu0 0.0
  %1851 = vmatprep.subr.mxu0 0.0
  %1852 = vmatpush1.msra.mxu0 0.0
  %1853 = vmatprep.subr.mxu0 0.0
  %1854 = vmatpush1.msra.mxu0 0.0
  %1855 = vmatprep.subr.mxu0 0.0
  %1856 = vmatpush1.msra.mxu0 0.0
  %1857 = vmatprep.subr.mxu0 0.0
  %1858 = vmatpush1.msra.mxu0 0.0
  %1859 = vmatprep.subr.mxu0 0.0
  %1860 = vmatpush1.msra.mxu0 0.0
  %1861 = vmatprep.subr.mxu0 0.0
  %1862 = vmatpush1.msra.mxu0 0.0
  %1863 = vmatprep.subr.mxu0 0.0
  %1864 = vmatpush1.msra.mxu0 0.0
  %1865 = vmatprep.subr.mxu0 0.0
  %1866 = vmatpush1.msra.mxu0 0.0
  %1867 = vmatprep.subr.mxu0 0.0
  %1868 = vmatpush1.msra.mxu0 0.0
  %1869 = vmatprep.subr.mxu0 0.0
  %1870 = vmatpush1.msra.mxu0 0.0
  %1871 = vmatprep.subr.mxu0 0.0
  %1872 = vmatpush1.msra.mxu0 0.0
  %1873 = vmatprep.subr.mxu0 0.0
  %1874 = vmatpush1.msra.mxu0 0.0
  %1875 = vmatprep.subr.mxu0 0.0
  %1876 = vmatpush1.msra.mxu0 0.0
  %1877 = vmatprep.subr.mxu0 0.0
  %1878 = vmatpush1.msra.mxu0 0.0
  %1879 = vmatprep.subr.mxu0 0.0
  %1880 = vmatpush1.msra.mxu0 0.0
  %1881 = vmatprep.subr.mxu0 0.0
  %1882 = vmatpush1.msra.mxu0 0.0
  %1883 = vmatprep.subr.mxu0 0.0
  %1884 = vmatpush1.msra.mxu0 0.0
  %1885 = vmatprep.subr.mxu0 0.0
  %1886 = vmatpush1.msra.mxu0 0.0
  %1887 = vmatprep.subr.mxu0 0.0
  %1888 = vmatpush1.msra.mxu0 0.0
  %1889 = vmatprep.subr.mxu0 0.0
  %1890 = vmatpush1.msra.mxu0 0.0
  %1891 = vmatprep.subr.mxu0 0.0
  %1892 = vmatpush1.msra.mxu0 0.0
  %1893 = vmatprep.subr.mxu0 0.0
  %1894 = vmatpush1.msra.mxu0 0.0
  %1895 = vmatprep.subr.mxu0 0.0
  %1896 = vmatpush1.msra.mxu0 0.0
  %1897 = vmatprep.subr.mxu0 0.0
  %1898 = vmatpush1.msra.mxu0 0.0
  %1899 = vmatprep.subr.mxu0 0.0
  %1900 = vmatpush1.msra.mxu0 0.0
  %1901 = vmatprep.subr.mxu0 0.0
  %1902 = vmatpush1.msra.mxu0 0.0
  %1903 = vmatprep.subr.mxu0 0.0
  %1904 = vmatpush1.msra.mxu0 0.0
  %1905 = vmatprep.mubr.f32.mxu0 0.0
  %1906 = vmatmul.mubr.f32.gmra.mrb[0].mxu0 %v1825
  %v1907 = vpop.f32.mrb[0].mxu0
  %v1908 = vadd.f32 0.0, %v1907
  %v1909 = vpop.f32.mrb[0].mxu0
  %v1910 = vadd.f32 0.0, %v1909
  %1911 = vdwg.mxu0
  %1912 = vmatprep.subr.mxu0 %v1833
  %1913 = vmatpush1.msra.mxu0 %v1831
  %1914 = vmatprep.subr.mxu0 0.0
  %1915 = vmatpush1.msra.mxu0 0.0
  %1916 = vmatprep.subr.mxu0 0.0
  %1917 = vmatpush1.msra.mxu0 0.0
  %1918 = vmatprep.subr.mxu0 0.0
  %1919 = vmatpush1.msra.mxu0 0.0
  %1920 = vmatprep.subr.mxu0 0.0
  %1921 = vmatpush1.msra.mxu0 0.0
  %1922 = vmatprep.subr.mxu0 0.0
  %1923 = vmatpush1.msra.mxu0 0.0
  %1924 = vmatprep.subr.mxu0 0.0
  %1925 = vmatpush1.msra.mxu0 0.0
  %1926 = vmatprep.subr.mxu0 0.0
  %1927 = vmatpush1.msra.mxu0 0.0
  %1928 = vmatprep.subr.mxu0 0.0
  %1929 = vmatpush1.msra.mxu0 0.0
  %1930 = vmatprep.subr.mxu0 0.0
  %1931 = vmatpush1.msra.mxu0 0.0
  %1932 = vmatprep.subr.mxu0 0.0
  %1933 = vmatpush1.msra.mxu0 0.0
  %1934 = vmatprep.subr.mxu0 0.0
  %1935 = vmatpush1.msra.mxu0 0.0
  %1936 = vmatprep.subr.mxu0 0.0
  %1937 = vmatpush1.msra.mxu0 0.0
  %1938 = vmatprep.subr.mxu0 0.0
  %1939 = vmatpush1.msra.mxu0 0.0
  %1940 = vmatprep.subr.mxu0 0.0
  %1941 = vmatpush1.msra.mxu0 0.0
  %1942 = vmatprep.subr.mxu0 0.0
  %1943 = vmatpush1.msra.mxu0 0.0
  %1944 = vmatprep.subr.mxu0 0.0
  %1945 = vmatpush1.msra.mxu0 0.0
  %1946 = vmatprep.subr.mxu0 0.0
  %1947 = vmatpush1.msra.mxu0 0.0
  %1948 = vmatprep.subr.mxu0 0.0
  %1949 = vmatpush1.msra.mxu0 0.0
  %1950 = vmatprep.subr.mxu0 0.0
  %1951 = vmatpush1.msra.mxu0 0.0
  %1952 = vmatprep.subr.mxu0 0.0
  %1953 = vmatpush1.msra.mxu0 0.0
  %1954 = vmatprep.subr.mxu0 0.0
  %1955 = vmatpush1.msra.mxu0 0.0
  %1956 = vmatprep.subr.mxu0 0.0
  %1957 = vmatpush1.msra.mxu0 0.0
  %1958 = vmatprep.subr.mxu0 0.0
  %1959 = vmatpush1.msra.mxu0 0.0
  %1960 = vmatprep.subr.mxu0 0.0
  %1961 = vmatpush1.msra.mxu0 0.0
  %1962 = vmatprep.subr.mxu0 0.0
  %1963 = vmatpush1.msra.mxu0 0.0
  %1964 = vmatprep.subr.mxu0 0.0
  %1965 = vmatpush1.msra.mxu0 0.0
  %1966 = vmatprep.subr.mxu0 0.0
  %1967 = vmatpush1.msra.mxu0 0.0
  %1968 = vmatprep.subr.mxu0 0.0
  %1969 = vmatpush1.msra.mxu0 0.0
  %1970 = vmatprep.subr.mxu0 0.0
  %1971 = vmatpush1.msra.mxu0 0.0
  %1972 = vmatprep.subr.mxu0 0.0
  %1973 = vmatpush1.msra.mxu0 0.0
  %1974 = vmatprep.subr.mxu0 0.0
  %1975 = vmatpush1.msra.mxu0 0.0
  %1976 = vmatprep.mubr.f32.mxu0 0.0
  %1977 = vmatmul.mubr.f32.gmra.mrb[0].mxu0 %v1825
  %v1978 = vpop.f32.mrb[0].mxu0
  %v1979 = vadd.f32 0.0, %v1978
  %v1980 = vpop.f32.mrb[0].mxu0
  %v1981 = vadd.f32 0.0, %v1980
  %1982 = vdwg.mxu0
  %1983 = vmatprep.subr.mxu0 %v1837
  %1984 = vmatpush1.msra.mxu0 %v1835
  %1985 = vmatprep.subr.mxu0 0.0
  %1986 = vmatpush1.msra.mxu0 0.0
  %1987 = vmatprep.subr.mxu0 0.0
  %1988 = vmatpush1.msra.mxu0 0.0
  %1989 = vmatprep.subr.mxu0 0.0
  %1990 = vmatpush1.msra.mxu0 0.0
  %1991 = vmatprep.subr.mxu0 0.0
  %1992 = vmatpush1.msra.mxu0 0.0
  %1993 = vmatprep.subr.mxu0 0.0
  %1994 = vmatpush1.msra.mxu0 0.0
  %1995 = vmatprep.subr.mxu0 0.0
  %1996 = vmatpush1.msra.mxu0 0.0
  %1997 = vmatprep.subr.mxu0 0.0
  %1998 = vmatpush1.msra.mxu0 0.0
  %1999 = vmatprep.subr.mxu0 0.0
  %2000 = vmatpush1.msra.mxu0 0.0
  %2001 = vmatprep.subr.mxu0 0.0
  %2002 = vmatpush1.msra.mxu0 0.0
  %2003 = vmatprep.subr.mxu0 0.0
  %2004 = vmatpush1.msra.mxu0 0.0
  %2005 = vmatprep.subr.mxu0 0.0
  %2006 = vmatpush1.msra.mxu0 0.0
  %2007 = vmatprep.subr.mxu0 0.0
  %2008 = vmatpush1.msra.mxu0 0.0
  %2009 = vmatprep.subr.mxu0 0.0
  %2010 = vmatpush1.msra.mxu0 0.0
  %2011 = vmatprep.subr.mxu0 0.0
  %2012 = vmatpush1.msra.mxu0 0.0
  %2013 = vmatprep.subr.mxu0 0.0
  %2014 = vmatpush1.msra.mxu0 0.0
  %2015 = vmatprep.subr.mxu0 0.0
  %2016 = vmatpush1.msra.mxu0 0.0
  %2017 = vmatprep.subr.mxu0 0.0
  %2018 = vmatpush1.msra.mxu0 0.0
  %2019 = vmatprep.subr.mxu0 0.0
  %2020 = vmatpush1.msra.mxu0 0.0
  %2021 = vmatprep.subr.mxu0 0.0
  %2022 = vmatpush1.msra.mxu0 0.0
  %2023 = vmatprep.subr.mxu0 0.0
  %2024 = vmatpush1.msra.mxu0 0.0
  %2025 = vmatprep.subr.mxu0 0.0
  %2026 = vmatpush1.msra.mxu0 0.0
  %2027 = vmatprep.subr.mxu0 0.0
  %2028 = vmatpush1.msra.mxu0 0.0
  %2029 = vmatprep.subr.mxu0 0.0
  %2030 = vmatpush1.msra.mxu0 0.0
  %2031 = vmatprep.subr.mxu0 0.0
  %2032 = vmatpush1.msra.mxu0 0.0
  %2033 = vmatprep.subr.mxu0 0.0
  %2034 = vmatpush1.msra.mxu0 0.0
  %2035 = vmatprep.subr.mxu0 0.0
  %2036 = vmatpush1.msra.mxu0 0.0
  %2037 = vmatprep.subr.mxu0 0.0
  %2038 = vmatpush1.msra.mxu0 0.0
  %2039 = vmatprep.subr.mxu0 0.0
  %2040 = vmatpush1.msra.mxu0 0.0
  %2041 = vmatprep.subr.mxu0 0.0
  %2042 = vmatpush1.msra.mxu0 0.0
  %2043 = vmatprep.subr.mxu0 0.0
  %2044 = vmatpush1.msra.mxu0 0.0
  %2045 = vmatprep.subr.mxu0 0.0
  %2046 = vmatpush1.msra.mxu0 0.0
  %2047 = vmatprep.mubr.f32.mxu0 0.0
  %2048 = vmatmul.mubr.f32.gmra.mrb[0].mxu0 %v1825
  %v2049 = vpop.f32.mrb[0].mxu0
  %v2050 = vadd.f32 0.0, %v2049
  %v2051 = vpop.f32.mrb[0].mxu0
  %v2052 = vadd.f32 0.0, %v2051
  %2053 = vdwg.mxu0
  %2054 = vmatprep.subr.mxu0 0.0
  %2055 = vmatpush1.msra.mxu0 %v1839
  %2056 = vmatprep.subr.mxu0 0.0
  %2057 = vmatpush1.msra.mxu0 0.0
  %2058 = vmatprep.subr.mxu0 0.0
  %2059 = vmatpush1.msra.mxu0 0.0
  %2060 = vmatprep.subr.mxu0 0.0
  %2061 = vmatpush1.msra.mxu0 0.0
  %2062 = vmatprep.subr.mxu0 0.0
  %2063 = vmatpush1.msra.mxu0 0.0
  %2064 = vmatprep.subr.mxu0 0.0
  %2065 = vmatpush1.msra.mxu0 0.0
  %2066 = vmatprep.subr.mxu0 0.0
  %2067 = vmatpush1.msra.mxu0 0.0
  %2068 = vmatprep.subr.mxu0 0.0
  %2069 = vmatpush1.msra.mxu0 0.0
  %2070 = vmatprep.subr.mxu0 0.0
  %2071 = vmatpush1.msra.mxu0 0.0
  %2072 = vmatprep.subr.mxu0 0.0
  %2073 = vmatpush1.msra.mxu0 0.0
  %2074 = vmatprep.subr.mxu0 0.0
  %2075 = vmatpush1.msra.mxu0 0.0
  %2076 = vmatprep.subr.mxu0 0.0
  %2077 = vmatpush1.msra.mxu0 0.0
  %2078 = vmatprep.subr.mxu0 0.0
  %2079 = vmatpush1.msra.mxu0 0.0
  %2080 = vmatprep.subr.mxu0 0.0
  %2081 = vmatpush1.msra.mxu0 0.0
  %2082 = vmatprep.subr.mxu0 0.0
  %2083 = vmatpush1.msra.mxu0 0.0
  %2084 = vmatprep.subr.mxu0 0.0
  %2085 = vmatpush1.msra.mxu0 0.0
  %2086 = vmatprep.subr.mxu0 0.0
  %2087 = vmatpush1.msra.mxu0 0.0
  %2088 = vmatprep.subr.mxu0 0.0
  %2089 = vmatpush1.msra.mxu0 0.0
  %2090 = vmatprep.subr.mxu0 0.0
  %2091 = vmatpush1.msra.mxu0 0.0
  %2092 = vmatprep.subr.mxu0 0.0
  %2093 = vmatpush1.msra.mxu0 0.0
  %2094 = vmatprep.subr.mxu0 0.0
  %2095 = vmatpush1.msra.mxu0 0.0
  %2096 = vmatprep.subr.mxu0 0.0
  %2097 = vmatpush1.msra.mxu0 0.0
  %2098 = vmatprep.subr.mxu0 0.0
  %2099 = vmatpush1.msra.mxu0 0.0
  %2100 = vmatprep.subr.mxu0 0.0
  %2101 = vmatpush1.msra.mxu0 0.0
  %2102 = vmatprep.subr.mxu0 0.0
  %2103 = vmatpush1.msra.mxu0 0.0
  %2104 = vmatprep.subr.mxu0 0.0
  %2105 = vmatpush1.msra.mxu0 0.0
  %2106 = vmatprep.subr.mxu0 0.0
  %2107 = vmatpush1.msra.mxu0 0.0
  %2108 = vmatprep.subr.mxu0 0.0
  %2109 = vmatpush1.msra.mxu0 0.0
  %2110 = vmatprep.subr.mxu0 0.0
  %2111 = vmatpush1.msra.mxu0 0.0
  %2112 = vmatprep.subr.mxu0 0.0
  %2113 = vmatpush1.msra.mxu0 0.0
  %2114 = vmatprep.subr.mxu0 0.0
  %2115 = vmatpush1.msra.mxu0 0.0
  %2116 = vmatprep.subr.mxu0 0.0
  %2117 = vmatpush1.msra.mxu0 0.0
  %2118 = vmatprep.mubr.f32.mxu0 0.0
  %2119 = vmatmul.mubr.f32.gmra.mrb[0].mxu0 %v1825
  %v2120 = vpop.f32.mrb[0].mxu0
  %v2121 = vadd.f32 0.0, %v2120
  %v2122 = vpop.f32.mrb[0].mxu0
  %2123 = vdwg.mxu0
  %v2124 = vadd.f32 %v1795, %v1908
  %v2125 = vadd.f32 %v1796, %v1910
  %v2126 = vadd.f32 %v1797, %v1979
  %v2127 = vadd.f32 %v1798, %v1981
  %v2128 = vadd.f32 %v1799, %v2050
  %v2129 = vadd.f32 %v1800, %v2052
  %v2130 = vadd.f32 %v1801, %v2121
  %2131 = vrot.lane.b32.xlu0 %v513, 103
  %v2132 = vpop.permute.xlu0 %2131
  %2133 = vrot.lane.b32.xlu0 %v506, 108
  %v2134 = vpop.permute.xlu0 %2133
  %2135 = vrot.lane.b32.xlu0 %v507, 108
  %v2136 = vpop.permute.xlu0 %2135
  %2137 = vrot.lane.b32.xlu0 %v508, 108
  %v2138 = vpop.permute.xlu0 %2137
  %2139 = vrot.lane.b32.xlu0 %v509, 108
  %v2140 = vpop.permute.xlu0 %2139
  %2141 = vrot.lane.b32.xlu0 %v510, 108
  %v2142 = vpop.permute.xlu0 %2141
  %2143 = vrot.lane.b32.xlu0 %v511, 108
  %v2144 = vpop.permute.xlu0 %2143
  %2145 = vrot.lane.b32.xlu0 %v512, 108
  %v2146 = vpop.permute.xlu0 %2145
  %vm2147 = vcmask 883712
  %v2148 = vsel %vm2147, %v2134, %v2136
  %v2149 = vsel %vm2147, %v2136, %v2138
  %v2150 = vsel %vm2147, %v2138, %v2140
  %v2151 = vsel %vm2147, %v2140, %v2142
  %v2152 = vsel %vm2147, %v2142, %v2144
  %v2153 = vsel %vm2147, %v2144, %v2146
  %v2154 = vsel %vm545, %v2132, 0
  %v2156 = vsel %vm412, %v2148, 0
  %v2158 = vsel %vm412, %v2149, 0
  %v2160 = vsel %vm412, %v2150, 0
  %v2162 = vsel %vm412, %v2151, 0
  %v2164 = vsel %vm412, %v2152, 0
  %v2166 = vsel %vm412, %v2153, 0
  %v2168 = vsel %vm412, %v2146, 0
  %2170 = vmatprep.subr.mxu0 %v2158
  %2171 = vmatpush1.msra.mxu0 %v2156
  %2172 = vmatprep.subr.mxu0 0.0
  %2173 = vmatpush1.msra.mxu0 0.0
  %2174 = vmatprep.subr.mxu0 0.0
  %2175 = vmatpush1.msra.mxu0 0.0
  %2176 = vmatprep.subr.mxu0 0.0
  %2177 = vmatpush1.msra.mxu0 0.0
  %2178 = vmatprep.subr.mxu0 0.0
  %2179 = vmatpush1.msra.mxu0 0.0
  %2180 = vmatprep.subr.mxu0 0.0
  %2181 = vmatpush1.msra.mxu0 0.0
  %2182 = vmatprep.subr.mxu0 0.0
  %2183 = vmatpush1.msra.mxu0 0.0
  %2184 = vmatprep.subr.mxu0 0.0
  %2185 = vmatpush1.msra.mxu0 0.0
  %2186 = vmatprep.subr.mxu0 0.0
  %2187 = vmatpush1.msra.mxu0 0.0
  %2188 = vmatprep.subr.mxu0 0.0
  %2189 = vmatpush1.msra.mxu0 0.0
  %2190 = vmatprep.subr.mxu0 0.0
  %2191 = vmatpush1.msra.mxu0 0.0
  %2192 = vmatprep.subr.mxu0 0.0
  %2193 = vmatpush1.msra.mxu0 0.0
  %2194 = vmatprep.subr.mxu0 0.0
  %2195 = vmatpush1.msra.mxu0 0.0
  %2196 = vmatprep.subr.mxu0 0.0
  %2197 = vmatpush1.msra.mxu0 0.0
  %2198 = vmatprep.subr.mxu0 0.0
  %2199 = vmatpush1.msra.mxu0 0.0
  %2200 = vmatprep.subr.mxu0 0.0
  %2201 = vmatpush1.msra.mxu0 0.0
  %2202 = vmatprep.subr.mxu0 0.0
  %2203 = vmatpush1.msra.mxu0 0.0
  %2204 = vmatprep.subr.mxu0 0.0
  %2205 = vmatpush1.msra.mxu0 0.0
  %2206 = vmatprep.subr.mxu0 0.0
  %2207 = vmatpush1.msra.mxu0 0.0
  %2208 = vmatprep.subr.mxu0 0.0
  %2209 = vmatpush1.msra.mxu0 0.0
  %2210 = vmatprep.subr.mxu0 0.0
  %2211 = vmatpush1.msra.mxu0 0.0
  %2212 = vmatprep.subr.mxu0 0.0
  %2213 = vmatpush1.msra.mxu0 0.0
  %2214 = vmatprep.subr.mxu0 0.0
  %2215 = vmatpush1.msra.mxu0 0.0
  %2216 = vmatprep.subr.mxu0 0.0
  %2217 = vmatpush1.msra.mxu0 0.0
  %2218 = vmatprep.subr.mxu0 0.0
  %2219 = vmatpush1.msra.mxu0 0.0
  %2220 = vmatprep.subr.mxu0 0.0
  %2221 = vmatpush1.msra.mxu0 0.0
  %2222 = vmatprep.subr.mxu0 0.0
  %2223 = vmatpush1.msra.mxu0 0.0
  %2224 = vmatprep.subr.mxu0 0.0
  %2225 = vmatpush1.msra.mxu0 0.0
  %2226 = vmatprep.subr.mxu0 0.0
  %2227 = vmatpush1.msra.mxu0 0.0
  %2228 = vmatprep.subr.mxu0 0.0
  %2229 = vmatpush1.msra.mxu0 0.0
  %2230 = vmatprep.subr.mxu0 0.0
  %2231 = vmatpush1.msra.mxu0 0.0
  %2232 = vmatprep.subr.mxu0 0.0
  %2233 = vmatpush1.msra.mxu0 0.0
  %2234 = vmatprep.mubr.f32.mxu0 0.0
  %2235 = vmatmul.mubr.f32.gmra.mrb[0].mxu0 %v2154
  %v2236 = vpop.f32.mrb[0].mxu0
  %v2237 = vadd.f32 0.0, %v2236
  %v2238 = vpop.f32.mrb[0].mxu0
  %v2239 = vadd.f32 0.0, %v2238
  %2240 = vdwg.mxu0
  %2241 = vmatprep.subr.mxu0 %v2162
  %2242 = vmatpush1.msra.mxu0 %v2160
  %2243 = vmatprep.subr.mxu0 0.0
  %2244 = vmatpush1.msra.mxu0 0.0
  %2245 = vmatprep.subr.mxu0 0.0
  %2246 = vmatpush1.msra.mxu0 0.0
  %2247 = vmatprep.subr.mxu0 0.0
  %2248 = vmatpush1.msra.mxu0 0.0
  %2249 = vmatprep.subr.mxu0 0.0
  %2250 = vmatpush1.msra.mxu0 0.0
  %2251 = vmatprep.subr.mxu0 0.0
  %2252 = vmatpush1.msra.mxu0 0.0
  %2253 = vmatprep.subr.mxu0 0.0
  %2254 = vmatpush1.msra.mxu0 0.0
  %2255 = vmatprep.subr.mxu0 0.0
  %2256 = vmatpush1.msra.mxu0 0.0
  %2257 = vmatprep.subr.mxu0 0.0
  %2258 = vmatpush1.msra.mxu0 0.0
  %2259 = vmatprep.subr.mxu0 0.0
  %2260 = vmatpush1.msra.mxu0 0.0
  %2261 = vmatprep.subr.mxu0 0.0
  %2262 = vmatpush1.msra.mxu0 0.0
  %2263 = vmatprep.subr.mxu0 0.0
  %2264 = vmatpush1.msra.mxu0 0.0
  %2265 = vmatprep.subr.mxu0 0.0
  %2266 = vmatpush1.msra.mxu0 0.0
  %2267 = vmatprep.subr.mxu0 0.0
  %2268 = vmatpush1.msra.mxu0 0.0
  %2269 = vmatprep.subr.mxu0 0.0
  %2270 = vmatpush1.msra.mxu0 0.0
  %2271 = vmatprep.subr.mxu0 0.0
  %2272 = vmatpush1.msra.mxu0 0.0
  %2273 = vmatprep.subr.mxu0 0.0
  %2274 = vmatpush1.msra.mxu0 0.0
  %2275 = vmatprep.subr.mxu0 0.0
  %2276 = vmatpush1.msra.mxu0 0.0
  %2277 = vmatprep.subr.mxu0 0.0
  %2278 = vmatpush1.msra.mxu0 0.0
  %2279 = vmatprep.subr.mxu0 0.0
  %2280 = vmatpush1.msra.mxu0 0.0
  %2281 = vmatprep.subr.mxu0 0.0
  %2282 = vmatpush1.msra.mxu0 0.0
  %2283 = vmatprep.subr.mxu0 0.0
  %2284 = vmatpush1.msra.mxu0 0.0
  %2285 = vmatprep.subr.mxu0 0.0
  %2286 = vmatpush1.msra.mxu0 0.0
  %2287 = vmatprep.subr.mxu0 0.0
  %2288 = vmatpush1.msra.mxu0 0.0
  %2289 = vmatprep.subr.mxu0 0.0
  %2290 = vmatpush1.msra.mxu0 0.0
  %2291 = vmatprep.subr.mxu0 0.0
  %2292 = vmatpush1.msra.mxu0 0.0
  %2293 = vmatprep.subr.mxu0 0.0
  %2294 = vmatpush1.msra.mxu0 0.0
  %2295 = vmatprep.subr.mxu0 0.0
  %2296 = vmatpush1.msra.mxu0 0.0
  %2297 = vmatprep.subr.mxu0 0.0
  %2298 = vmatpush1.msra.mxu0 0.0
  %2299 = vmatprep.subr.mxu0 0.0
  %2300 = vmatpush1.msra.mxu0 0.0
  %2301 = vmatprep.subr.mxu0 0.0
  %2302 = vmatpush1.msra.mxu0 0.0
  %2303 = vmatprep.subr.mxu0 0.0
  %2304 = vmatpush1.msra.mxu0 0.0
  %2305 = vmatprep.mubr.f32.mxu0 0.0
  %2306 = vmatmul.mubr.f32.gmra.mrb[0].mxu0 %v2154
  %v2307 = vpop.f32.mrb[0].mxu0
  %v2308 = vadd.f32 0.0, %v2307
  %v2309 = vpop.f32.mrb[0].mxu0
  %v2310 = vadd.f32 0.0, %v2309
  %2311 = vdwg.mxu0
  %2312 = vmatprep.subr.mxu0 %v2166
  %2313 = vmatpush1.msra.mxu0 %v2164
  %2314 = vmatprep.subr.mxu0 0.0
  %2315 = vmatpush1.msra.mxu0 0.0
  %2316 = vmatprep.subr.mxu0 0.0
  %2317 = vmatpush1.msra.mxu0 0.0
  %2318 = vmatprep.subr.mxu0 0.0
  %2319 = vmatpush1.msra.mxu0 0.0
  %2320 = vmatprep.subr.mxu0 0.0
  %2321 = vmatpush1.msra.mxu0 0.0
  %2322 = vmatprep.subr.mxu0 0.0
  %2323 = vmatpush1.msra.mxu0 0.0
  %2324 = vmatprep.subr.mxu0 0.0
  %2325 = vmatpush1.msra.mxu0 0.0
  %2326 = vmatprep.subr.mxu0 0.0
  %2327 = vmatpush1.msra.mxu0 0.0
  %2328 = vmatprep.subr.mxu0 0.0
  %2329 = vmatpush1.msra.mxu0 0.0
  %2330 = vmatprep.subr.mxu0 0.0
  %2331 = vmatpush1.msra.mxu0 0.0
  %2332 = vmatprep.subr.mxu0 0.0
  %2333 = vmatpush1.msra.mxu0 0.0
  %2334 = vmatprep.subr.mxu0 0.0
  %2335 = vmatpush1.msra.mxu0 0.0
  %2336 = vmatprep.subr.mxu0 0.0
  %2337 = vmatpush1.msra.mxu0 0.0
  %2338 = vmatprep.subr.mxu0 0.0
  %2339 = vmatpush1.msra.mxu0 0.0
  %2340 = vmatprep.subr.mxu0 0.0
  %2341 = vmatpush1.msra.mxu0 0.0
  %2342 = vmatprep.subr.mxu0 0.0
  %2343 = vmatpush1.msra.mxu0 0.0
  %2344 = vmatprep.subr.mxu0 0.0
  %2345 = vmatpush1.msra.mxu0 0.0
  %2346 = vmatprep.subr.mxu0 0.0
  %2347 = vmatpush1.msra.mxu0 0.0
  %2348 = vmatprep.subr.mxu0 0.0
  %2349 = vmatpush1.msra.mxu0 0.0
  %2350 = vmatprep.subr.mxu0 0.0
  %2351 = vmatpush1.msra.mxu0 0.0
  %2352 = vmatprep.subr.mxu0 0.0
  %2353 = vmatpush1.msra.mxu0 0.0
  %2354 = vmatprep.subr.mxu0 0.0
  %2355 = vmatpush1.msra.mxu0 0.0
  %2356 = vmatprep.subr.mxu0 0.0
  %2357 = vmatpush1.msra.mxu0 0.0
  %2358 = vmatprep.subr.mxu0 0.0
  %2359 = vmatpush1.msra.mxu0 0.0
  %2360 = vmatprep.subr.mxu0 0.0
  %2361 = vmatpush1.msra.mxu0 0.0
  %2362 = vmatprep.subr.mxu0 0.0
  %2363 = vmatpush1.msra.mxu0 0.0
  %2364 = vmatprep.subr.mxu0 0.0
  %2365 = vmatpush1.msra.mxu0 0.0
  %2366 = vmatprep.subr.mxu0 0.0
  %2367 = vmatpush1.msra.mxu0 0.0
  %2368 = vmatprep.subr.mxu0 0.0
  %2369 = vmatpush1.msra.mxu0 0.0
  %2370 = vmatprep.subr.mxu0 0.0
  %2371 = vmatpush1.msra.mxu0 0.0
  %2372 = vmatprep.subr.mxu0 0.0
  %2373 = vmatpush1.msra.mxu0 0.0
  %2374 = vmatprep.subr.mxu0 0.0
  %2375 = vmatpush1.msra.mxu0 0.0
  %2376 = vmatprep.mubr.f32.mxu0 0.0
  %2377 = vmatmul.mubr.f32.gmra.mrb[0].mxu0 %v2154
  %v2378 = vpop.f32.mrb[0].mxu0
  %v2379 = vadd.f32 0.0, %v2378
  %v2380 = vpop.f32.mrb[0].mxu0
  %v2381 = vadd.f32 0.0, %v2380
  %2382 = vdwg.mxu0
  %2383 = vmatprep.subr.mxu0 0.0
  %2384 = vmatpush1.msra.mxu0 %v2168
  %2385 = vmatprep.subr.mxu0 0.0
  %2386 = vmatpush1.msra.mxu0 0.0
  %2387 = vmatprep.subr.mxu0 0.0
  %2388 = vmatpush1.msra.mxu0 0.0
  %2389 = vmatprep.subr.mxu0 0.0
  %2390 = vmatpush1.msra.mxu0 0.0
  %2391 = vmatprep.subr.mxu0 0.0
  %2392 = vmatpush1.msra.mxu0 0.0
  %2393 = vmatprep.subr.mxu0 0.0
  %2394 = vmatpush1.msra.mxu0 0.0
  %2395 = vmatprep.subr.mxu0 0.0
  %2396 = vmatpush1.msra.mxu0 0.0
  %2397 = vmatprep.subr.mxu0 0.0
  %2398 = vmatpush1.msra.mxu0 0.0
  %2399 = vmatprep.subr.mxu0 0.0
  %2400 = vmatpush1.msra.mxu0 0.0
  %2401 = vmatprep.subr.mxu0 0.0
  %2402 = vmatpush1.msra.mxu0 0.0
  %2403 = vmatprep.subr.mxu0 0.0
  %2404 = vmatpush1.msra.mxu0 0.0
  %2405 = vmatprep.subr.mxu0 0.0
  %2406 = vmatpush1.msra.mxu0 0.0
  %2407 = vmatprep.subr.mxu0 0.0
  %2408 = vmatpush1.msra.mxu0 0.0
  %2409 = vmatprep.subr.mxu0 0.0
  %2410 = vmatpush1.msra.mxu0 0.0
  %2411 = vmatprep.subr.mxu0 0.0
  %2412 = vmatpush1.msra.mxu0 0.0
  %2413 = vmatprep.subr.mxu0 0.0
  %2414 = vmatpush1.msra.mxu0 0.0
  %2415 = vmatprep.subr.mxu0 0.0
  %2416 = vmatpush1.msra.mxu0 0.0
  %2417 = vmatprep.subr.mxu0 0.0
  %2418 = vmatpush1.msra.mxu0 0.0
  %2419 = vmatprep.subr.mxu0 0.0
  %2420 = vmatpush1.msra.mxu0 0.0
  %2421 = vmatprep.subr.mxu0 0.0
  %2422 = vmatpush1.msra.mxu0 0.0
  %2423 = vmatprep.subr.mxu0 0.0
  %2424 = vmatpush1.msra.mxu0 0.0
  %2425 = vmatprep.subr.mxu0 0.0
  %2426 = vmatpush1.msra.mxu0 0.0
  %2427 = vmatprep.subr.mxu0 0.0
  %2428 = vmatpush1.msra.mxu0 0.0
  %2429 = vmatprep.subr.mxu0 0.0
  %2430 = vmatpush1.msra.mxu0 0.0
  %2431 = vmatprep.subr.mxu0 0.0
  %2432 = vmatpush1.msra.mxu0 0.0
  %2433 = vmatprep.subr.mxu0 0.0
  %2434 = vmatpush1.msra.mxu0 0.0
  %2435 = vmatprep.subr.mxu0 0.0
  %2436 = vmatpush1.msra.mxu0 0.0
  %2437 = vmatprep.subr.mxu0 0.0
  %2438 = vmatpush1.msra.mxu0 0.0
  %2439 = vmatprep.subr.mxu0 0.0
  %2440 = vmatpush1.msra.mxu0 0.0
  %2441 = vmatprep.subr.mxu0 0.0
  %2442 = vmatpush1.msra.mxu0 0.0
  %2443 = vmatprep.subr.mxu0 0.0
  %2444 = vmatpush1.msra.mxu0 0.0
  %2445 = vmatprep.subr.mxu0 0.0
  %2446 = vmatpush1.msra.mxu0 0.0
  %2447 = vmatprep.mubr.f32.mxu0 0.0
  %2448 = vmatmul.mubr.f32.gmra.mrb[0].mxu0 %v2154
  %v2449 = vpop.f32.mrb[0].mxu0
  %v2450 = vadd.f32 0.0, %v2449
  %v2451 = vpop.f32.mrb[0].mxu0
  %2452 = vdwg.mxu0
  %v2453 = vadd.f32 %v2124, %v2237
  %v2454 = vadd.f32 %v2125, %v2239
  %v2455 = vadd.f32 %v2126, %v2308
  %v2456 = vadd.f32 %v2127, %v2310
  %v2457 = vadd.f32 %v2128, %v2379
  %v2458 = vadd.f32 %v2129, %v2381
  %v2459 = vadd.f32 %v2130, %v2450
  %2460 = vrot.lane.b32.xlu0 %v513, 98
  %v2461 = vpop.permute.xlu0 %2460
  %2462 = vrot.lane.b32.xlu0 %v506, 107
  %v2463 = vpop.permute.xlu0 %2462
  %2464 = vrot.lane.b32.xlu0 %v507, 107
  %v2465 = vpop.permute.xlu0 %2464
  %2466 = vrot.lane.b32.xlu0 %v508, 107
  %v2467 = vpop.permute.xlu0 %2466
  %2468 = vrot.lane.b32.xlu0 %v509, 107
  %v2469 = vpop.permute.xlu0 %2468
  %2470 = vrot.lane.b32.xlu0 %v510, 107
  %v2471 = vpop.permute.xlu0 %2470
  %2472 = vrot.lane.b32.xlu0 %v511, 107
  %v2473 = vpop.permute.xlu0 %2472
  %2474 = vrot.lane.b32.xlu0 %v512, 107
  %v2475 = vpop.permute.xlu0 %2474
  %vm2476 = vcmask 875520
  %v2477 = vsel %vm2476, %v2463, %v2465
  %v2478 = vsel %vm2476, %v2465, %v2467
  %v2479 = vsel %vm2476, %v2467, %v2469
  %v2480 = vsel %vm2476, %v2469, %v2471
  %v2481 = vsel %vm2476, %v2471, %v2473
  %v2482 = vsel %vm2476, %v2473, %v2475
  %v2483 = vsel %vm545, %v2461, 0
  %v2485 = vsel %vm412, %v2477, 0
  %v2487 = vsel %vm412, %v2478, 0
  %v2489 = vsel %vm412, %v2479, 0
  %v2491 = vsel %vm412, %v2480, 0
  %v2493 = vsel %vm412, %v2481, 0
  %v2495 = vsel %vm412, %v2482, 0
  %v2497 = vsel %vm412, %v2475, 0
  %2499 = vmatprep.subr.mxu0 %v2487
  %2500 = vmatpush1.msra.mxu0 %v2485
  %2501 = vmatprep.subr.mxu0 0.0
  %2502 = vmatpush1.msra.mxu0 0.0
  %2503 = vmatprep.subr.mxu0 0.0
  %2504 = vmatpush1.msra.mxu0 0.0
  %2505 = vmatprep.subr.mxu0 0.0
  %2506 = vmatpush1.msra.mxu0 0.0
  %2507 = vmatprep.subr.mxu0 0.0
  %2508 = vmatpush1.msra.mxu0 0.0
  %2509 = vmatprep.subr.mxu0 0.0
  %2510 = vmatpush1.msra.mxu0 0.0
  %2511 = vmatprep.subr.mxu0 0.0
  %2512 = vmatpush1.msra.mxu0 0.0
  %2513 = vmatprep.subr.mxu0 0.0
  %2514 = vmatpush1.msra.mxu0 0.0
  %2515 = vmatprep.subr.mxu0 0.0
  %2516 = vmatpush1.msra.mxu0 0.0
  %2517 = vmatprep.subr.mxu0 0.0
  %2518 = vmatpush1.msra.mxu0 0.0
  %2519 = vmatprep.subr.mxu0 0.0
  %2520 = vmatpush1.msra.mxu0 0.0
  %2521 = vmatprep.subr.mxu0 0.0
  %2522 = vmatpush1.msra.mxu0 0.0
  %2523 = vmatprep.subr.mxu0 0.0
  %2524 = vmatpush1.msra.mxu0 0.0
  %2525 = vmatprep.subr.mxu0 0.0
  %2526 = vmatpush1.msra.mxu0 0.0
  %2527 = vmatprep.subr.mxu0 0.0
  %2528 = vmatpush1.msra.mxu0 0.0
  %2529 = vmatprep.subr.mxu0 0.0
  %2530 = vmatpush1.msra.mxu0 0.0
  %2531 = vmatprep.subr.mxu0 0.0
  %2532 = vmatpush1.msra.mxu0 0.0
  %2533 = vmatprep.subr.mxu0 0.0
  %2534 = vmatpush1.msra.mxu0 0.0
  %2535 = vmatprep.subr.mxu0 0.0
  %2536 = vmatpush1.msra.mxu0 0.0
  %2537 = vmatprep.subr.mxu0 0.0
  %2538 = vmatpush1.msra.mxu0 0.0
  %2539 = vmatprep.subr.mxu0 0.0
  %2540 = vmatpush1.msra.mxu0 0.0
  %2541 = vmatprep.subr.mxu0 0.0
  %2542 = vmatpush1.msra.mxu0 0.0
  %2543 = vmatprep.subr.mxu0 0.0
  %2544 = vmatpush1.msra.mxu0 0.0
  %2545 = vmatprep.subr.mxu0 0.0
  %2546 = vmatpush1.msra.mxu0 0.0
  %2547 = vmatprep.subr.mxu0 0.0
  %2548 = vmatpush1.msra.mxu0 0.0
  %2549 = vmatprep.subr.mxu0 0.0
  %2550 = vmatpush1.msra.mxu0 0.0
  %2551 = vmatprep.subr.mxu0 0.0
  %2552 = vmatpush1.msra.mxu0 0.0
  %2553 = vmatprep.subr.mxu0 0.0
  %2554 = vmatpush1.msra.mxu0 0.0
  %2555 = vmatprep.subr.mxu0 0.0
  %2556 = vmatpush1.msra.mxu0 0.0
  %2557 = vmatprep.subr.mxu0 0.0
  %2558 = vmatpush1.msra.mxu0 0.0
  %2559 = vmatprep.subr.mxu0 0.0
  %2560 = vmatpush1.msra.mxu0 0.0
  %2561 = vmatprep.subr.mxu0 0.0
  %2562 = vmatpush1.msra.mxu0 0.0
  %2563 = vmatprep.mubr.f32.mxu0 0.0
  %2564 = vmatmul.mubr.f32.gmra.mrb[0].mxu0 %v2483
  %v2565 = vpop.f32.mrb[0].mxu0
  %v2566 = vadd.f32 0.0, %v2565
  %v2567 = vpop.f32.mrb[0].mxu0
  %v2568 = vadd.f32 0.0, %v2567
  %2569 = vdwg.mxu0
  %2570 = vmatprep.subr.mxu0 %v2491
  %2571 = vmatpush1.msra.mxu0 %v2489
  %2572 = vmatprep.subr.mxu0 0.0
  %2573 = vmatpush1.msra.mxu0 0.0
  %2574 = vmatprep.subr.mxu0 0.0
  %2575 = vmatpush1.msra.mxu0 0.0
  %2576 = vmatprep.subr.mxu0 0.0
  %2577 = vmatpush1.msra.mxu0 0.0
  %2578 = vmatprep.subr.mxu0 0.0
  %2579 = vmatpush1.msra.mxu0 0.0
  %2580 = vmatprep.subr.mxu0 0.0
  %2581 = vmatpush1.msra.mxu0 0.0
  %2582 = vmatprep.subr.mxu0 0.0
  %2583 = vmatpush1.msra.mxu0 0.0
  %2584 = vmatprep.subr.mxu0 0.0
  %2585 = vmatpush1.msra.mxu0 0.0
  %2586 = vmatprep.subr.mxu0 0.0
  %2587 = vmatpush1.msra.mxu0 0.0
  %2588 = vmatprep.subr.mxu0 0.0
  %2589 = vmatpush1.msra.mxu0 0.0
  %2590 = vmatprep.subr.mxu0 0.0
  %2591 = vmatpush1.msra.mxu0 0.0
  %2592 = vmatprep.subr.mxu0 0.0
  %2593 = vmatpush1.msra.mxu0 0.0
  %2594 = vmatprep.subr.mxu0 0.0
  %2595 = vmatpush1.msra.mxu0 0.0
  %2596 = vmatprep.subr.mxu0 0.0
  %2597 = vmatpush1.msra.mxu0 0.0
  %2598 = vmatprep.subr.mxu0 0.0
  %2599 = vmatpush1.msra.mxu0 0.0
  %2600 = vmatprep.subr.mxu0 0.0
  %2601 = vmatpush1.msra.mxu0 0.0
  %2602 = vmatprep.subr.mxu0 0.0
  %2603 = vmatpush1.msra.mxu0 0.0
  %2604 = vmatprep.subr.mxu0 0.0
  %2605 = vmatpush1.msra.mxu0 0.0
  %2606 = vmatprep.subr.mxu0 0.0
  %2607 = vmatpush1.msra.mxu0 0.0
  %2608 = vmatprep.subr.mxu0 0.0
  %2609 = vmatpush1.msra.mxu0 0.0
  %2610 = vmatprep.subr.mxu0 0.0
  %2611 = vmatpush1.msra.mxu0 0.0
  %2612 = vmatprep.subr.mxu0 0.0
  %2613 = vmatpush1.msra.mxu0 0.0
  %2614 = vmatprep.subr.mxu0 0.0
  %2615 = vmatpush1.msra.mxu0 0.0
  %2616 = vmatprep.subr.mxu0 0.0
  %2617 = vmatpush1.msra.mxu0 0.0
  %2618 = vmatprep.subr.mxu0 0.0
  %2619 = vmatpush1.msra.mxu0 0.0
  %2620 = vmatprep.subr.mxu0 0.0
  %2621 = vmatpush1.msra.mxu0 0.0
  %2622 = vmatprep.subr.mxu0 0.0
  %2623 = vmatpush1.msra.mxu0 0.0
  %2624 = vmatprep.subr.mxu0 0.0
  %2625 = vmatpush1.msra.mxu0 0.0
  %2626 = vmatprep.subr.mxu0 0.0
  %2627 = vmatpush1.msra.mxu0 0.0
  %2628 = vmatprep.subr.mxu0 0.0
  %2629 = vmatpush1.msra.mxu0 0.0
  %2630 = vmatprep.subr.mxu0 0.0
  %2631 = vmatpush1.msra.mxu0 0.0
  %2632 = vmatprep.subr.mxu0 0.0
  %2633 = vmatpush1.msra.mxu0 0.0
  %2634 = vmatprep.mubr.f32.mxu0 0.0
  %2635 = vmatmul.mubr.f32.gmra.mrb[0].mxu0 %v2483
  %v2636 = vpop.f32.mrb[0].mxu0
  %v2637 = vadd.f32 0.0, %v2636
  %v2638 = vpop.f32.mrb[0].mxu0
  %v2639 = vadd.f32 0.0, %v2638
  %2640 = vdwg.mxu0
  %2641 = vmatprep.subr.mxu0 %v2495
  %2642 = vmatpush1.msra.mxu0 %v2493
  %2643 = vmatprep.subr.mxu0 0.0
  %2644 = vmatpush1.msra.mxu0 0.0
  %2645 = vmatprep.subr.mxu0 0.0
  %2646 = vmatpush1.msra.mxu0 0.0
  %2647 = vmatprep.subr.mxu0 0.0
  %2648 = vmatpush1.msra.mxu0 0.0
  %2649 = vmatprep.subr.mxu0 0.0
  %2650 = vmatpush1.msra.mxu0 0.0
  %2651 = vmatprep.subr.mxu0 0.0
  %2652 = vmatpush1.msra.mxu0 0.0
  %2653 = vmatprep.subr.mxu0 0.0
  %2654 = vmatpush1.msra.mxu0 0.0
  %2655 = vmatprep.subr.mxu0 0.0
  %2656 = vmatpush1.msra.mxu0 0.0
  %2657 = vmatprep.subr.mxu0 0.0
  %2658 = vmatpush1.msra.mxu0 0.0
  %2659 = vmatprep.subr.mxu0 0.0
  %2660 = vmatpush1.msra.mxu0 0.0
  %2661 = vmatprep.subr.mxu0 0.0
  %2662 = vmatpush1.msra.mxu0 0.0
  %2663 = vmatprep.subr.mxu0 0.0
  %2664 = vmatpush1.msra.mxu0 0.0
  %2665 = vmatprep.subr.mxu0 0.0
  %2666 = vmatpush1.msra.mxu0 0.0
  %2667 = vmatprep.subr.mxu0 0.0
  %2668 = vmatpush1.msra.mxu0 0.0
  %2669 = vmatprep.subr.mxu0 0.0
  %2670 = vmatpush1.msra.mxu0 0.0
  %2671 = vmatprep.subr.mxu0 0.0
  %2672 = vmatpush1.msra.mxu0 0.0
  %2673 = vmatprep.subr.mxu0 0.0
  %2674 = vmatpush1.msra.mxu0 0.0
  %2675 = vmatprep.subr.mxu0 0.0
  %2676 = vmatpush1.msra.mxu0 0.0
  %2677 = vmatprep.subr.mxu0 0.0
  %2678 = vmatpush1.msra.mxu0 0.0
  %2679 = vmatprep.subr.mxu0 0.0
  %2680 = vmatpush1.msra.mxu0 0.0
  %2681 = vmatprep.subr.mxu0 0.0
  %2682 = vmatpush1.msra.mxu0 0.0
  %2683 = vmatprep.subr.mxu0 0.0
  %2684 = vmatpush1.msra.mxu0 0.0
  %2685 = vmatprep.subr.mxu0 0.0
  %2686 = vmatpush1.msra.mxu0 0.0
  %2687 = vmatprep.subr.mxu0 0.0
  %2688 = vmatpush1.msra.mxu0 0.0
  %2689 = vmatprep.subr.mxu0 0.0
  %2690 = vmatpush1.msra.mxu0 0.0
  %2691 = vmatprep.subr.mxu0 0.0
  %2692 = vmatpush1.msra.mxu0 0.0
  %2693 = vmatprep.subr.mxu0 0.0
  %2694 = vmatpush1.msra.mxu0 0.0
  %2695 = vmatprep.subr.mxu0 0.0
  %2696 = vmatpush1.msra.mxu0 0.0
  %2697 = vmatprep.subr.mxu0 0.0
  %2698 = vmatpush1.msra.mxu0 0.0
  %2699 = vmatprep.subr.mxu0 0.0
  %2700 = vmatpush1.msra.mxu0 0.0
  %2701 = vmatprep.subr.mxu0 0.0
  %2702 = vmatpush1.msra.mxu0 0.0
  %2703 = vmatprep.subr.mxu0 0.0
  %2704 = vmatpush1.msra.mxu0 0.0
  %2705 = vmatprep.mubr.f32.mxu0 0.0
  %2706 = vmatmul.mubr.f32.gmra.mrb[0].mxu0 %v2483
  %v2707 = vpop.f32.mrb[0].mxu0
  %v2708 = vadd.f32 0.0, %v2707
  %v2709 = vpop.f32.mrb[0].mxu0
  %v2710 = vadd.f32 0.0, %v2709
  %2711 = vdwg.mxu0
  %2712 = vmatprep.subr.mxu0 0.0
  %2713 = vmatpush1.msra.mxu0 %v2497
  %2714 = vmatprep.subr.mxu0 0.0
  %2715 = vmatpush1.msra.mxu0 0.0
  %2716 = vmatprep.subr.mxu0 0.0
  %2717 = vmatpush1.msra.mxu0 0.0
  %2718 = vmatprep.subr.mxu0 0.0
  %2719 = vmatpush1.msra.mxu0 0.0
  %2720 = vmatprep.subr.mxu0 0.0
  %2721 = vmatpush1.msra.mxu0 0.0
  %2722 = vmatprep.subr.mxu0 0.0
  %2723 = vmatpush1.msra.mxu0 0.0
  %2724 = vmatprep.subr.mxu0 0.0
  %2725 = vmatpush1.msra.mxu0 0.0
  %2726 = vmatprep.subr.mxu0 0.0
  %2727 = vmatpush1.msra.mxu0 0.0
  %2728 = vmatprep.subr.mxu0 0.0
  %2729 = vmatpush1.msra.mxu0 0.0
  %2730 = vmatprep.subr.mxu0 0.0
  %2731 = vmatpush1.msra.mxu0 0.0
  %2732 = vmatprep.subr.mxu0 0.0
  %2733 = vmatpush1.msra.mxu0 0.0
  %2734 = vmatprep.subr.mxu0 0.0
  %2735 = vmatpush1.msra.mxu0 0.0
  %2736 = vmatprep.subr.mxu0 0.0
  %2737 = vmatpush1.msra.mxu0 0.0
  %2738 = vmatprep.subr.mxu0 0.0
  %2739 = vmatpush1.msra.mxu0 0.0
  %2740 = vmatprep.subr.mxu0 0.0
  %2741 = vmatpush1.msra.mxu0 0.0
  %2742 = vmatprep.subr.mxu0 0.0
  %2743 = vmatpush1.msra.mxu0 0.0
  %2744 = vmatprep.subr.mxu0 0.0
  %2745 = vmatpush1.msra.mxu0 0.0
  %2746 = vmatprep.subr.mxu0 0.0
  %2747 = vmatpush1.msra.mxu0 0.0
  %2748 = vmatprep.subr.mxu0 0.0
  %2749 = vmatpush1.msra.mxu0 0.0
  %2750 = vmatprep.subr.mxu0 0.0
  %2751 = vmatpush1.msra.mxu0 0.0
  %2752 = vmatprep.subr.mxu0 0.0
  %2753 = vmatpush1.msra.mxu0 0.0
  %2754 = vmatprep.subr.mxu0 0.0
  %2755 = vmatpush1.msra.mxu0 0.0
  %2756 = vmatprep.subr.mxu0 0.0
  %2757 = vmatpush1.msra.mxu0 0.0
  %2758 = vmatprep.subr.mxu0 0.0
  %2759 = vmatpush1.msra.mxu0 0.0
  %2760 = vmatprep.subr.mxu0 0.0
  %2761 = vmatpush1.msra.mxu0 0.0
  %2762 = vmatprep.subr.mxu0 0.0
  %2763 = vmatpush1.msra.mxu0 0.0
  %2764 = vmatprep.subr.mxu0 0.0
  %2765 = vmatpush1.msra.mxu0 0.0
  %2766 = vmatprep.subr.mxu0 0.0
  %2767 = vmatpush1.msra.mxu0 0.0
  %2768 = vmatprep.subr.mxu0 0.0
  %2769 = vmatpush1.msra.mxu0 0.0
  %2770 = vmatprep.subr.mxu0 0.0
  %2771 = vmatpush1.msra.mxu0 0.0
  %2772 = vmatprep.subr.mxu0 0.0
  %2773 = vmatpush1.msra.mxu0 0.0
  %2774 = vmatprep.subr.mxu0 0.0
  %2775 = vmatpush1.msra.mxu0 0.0
  %2776 = vmatprep.mubr.f32.mxu0 0.0
  %2777 = vmatmul.mubr.f32.gmra.mrb[0].mxu0 %v2483
  %v2778 = vpop.f32.mrb[0].mxu0
  %v2779 = vadd.f32 0.0, %v2778
  %v2780 = vpop.f32.mrb[0].mxu0
  %2781 = vdwg.mxu0
  %v2782 = vadd.f32 %v2453, %v2566
  %v2783 = vadd.f32 %v2454, %v2568
  %v2784 = vadd.f32 %v2455, %v2637
  %v2785 = vadd.f32 %v2456, %v2639
  %v2786 = vadd.f32 %v2457, %v2708
  %v2787 = vadd.f32 %v2458, %v2710
  %v2788 = vadd.f32 %v2459, %v2779
  %2789 = vrot.lane.b32.xlu0 %v513, 93
  %v2790 = vpop.permute.xlu0 %2789
  %2791 = vrot.lane.b32.xlu0 %v506, 106
  %v2792 = vpop.permute.xlu0 %2791
  %2793 = vrot.lane.b32.xlu0 %v507, 106
  %v2794 = vpop.permute.xlu0 %2793
  %2795 = vrot.lane.b32.xlu0 %v508, 106
  %v2796 = vpop.permute.xlu0 %2795
  %2797 = vrot.lane.b32.xlu0 %v509, 106
  %v2798 = vpop.permute.xlu0 %2797
  %2799 = vrot.lane.b32.xlu0 %v510, 106
  %v2800 = vpop.permute.xlu0 %2799
  %2801 = vrot.lane.b32.xlu0 %v511, 106
  %v2802 = vpop.permute.xlu0 %2801
  %2803 = vrot.lane.b32.xlu0 %v512, 106
  %v2804 = vpop.permute.xlu0 %2803
  %vm2805 = vcmask 867328
  %v2806 = vsel %vm2805, %v2792, %v2794
  %v2807 = vsel %vm2805, %v2794, %v2796
  %v2808 = vsel %vm2805, %v2796, %v2798
  %v2809 = vsel %vm2805, %v2798, %v2800
  %v2810 = vsel %vm2805, %v2800, %v2802
  %v2811 = vsel %vm2805, %v2802, %v2804
  %v2812 = vsel %vm545, %v2790, 0
  %v2814 = vsel %vm412, %v2806, 0
  %v2816 = vsel %vm412, %v2807, 0
  %v2818 = vsel %vm412, %v2808, 0
  %v2820 = vsel %vm412, %v2809, 0
  %v2822 = vsel %vm412, %v2810, 0
  %v2824 = vsel %vm412, %v2811, 0
  %v2826 = vsel %vm412, %v2804, 0
  %2828 = vmatprep.subr.mxu0 %v2816
  %2829 = vmatpush1.msra.mxu0 %v2814
  %2830 = vmatprep.subr.mxu0 0.0
  %2831 = vmatpush1.msra.mxu0 0.0
  %2832 = vmatprep.subr.mxu0 0.0
  %2833 = vmatpush1.msra.mxu0 0.0
  %2834 = vmatprep.subr.mxu0 0.0
  %2835 = vmatpush1.msra.mxu0 0.0
  %2836 = vmatprep.subr.mxu0 0.0
  %2837 = vmatpush1.msra.mxu0 0.0
  %2838 = vmatprep.subr.mxu0 0.0
  %2839 = vmatpush1.msra.mxu0 0.0
  %2840 = vmatprep.subr.mxu0 0.0
  %2841 = vmatpush1.msra.mxu0 0.0
  %2842 = vmatprep.subr.mxu0 0.0
  %2843 = vmatpush1.msra.mxu0 0.0
  %2844 = vmatprep.subr.mxu0 0.0
  %2845 = vmatpush1.msra.mxu0 0.0
  %2846 = vmatprep.subr.mxu0 0.0
  %2847 = vmatpush1.msra.mxu0 0.0
  %2848 = vmatprep.subr.mxu0 0.0
  %2849 = vmatpush1.msra.mxu0 0.0
  %2850 = vmatprep.subr.mxu0 0.0
  %2851 = vmatpush1.msra.mxu0 0.0
  %2852 = vmatprep.subr.mxu0 0.0
  %2853 = vmatpush1.msra.mxu0 0.0
  %2854 = vmatprep.subr.mxu0 0.0
  %2855 = vmatpush1.msra.mxu0 0.0
  %2856 = vmatprep.subr.mxu0 0.0
  %2857 = vmatpush1.msra.mxu0 0.0
  %2858 = vmatprep.subr.mxu0 0.0
  %2859 = vmatpush1.msra.mxu0 0.0
  %2860 = vmatprep.subr.mxu0 0.0
  %2861 = vmatpush1.msra.mxu0 0.0
  %2862 = vmatprep.subr.mxu0 0.0
  %2863 = vmatpush1.msra.mxu0 0.0
  %2864 = vmatprep.subr.mxu0 0.0
  %2865 = vmatpush1.msra.mxu0 0.0
  %2866 = vmatprep.subr.mxu0 0.0
  %2867 = vmatpush1.msra.mxu0 0.0
  %2868 = vmatprep.subr.mxu0 0.0
  %2869 = vmatpush1.msra.mxu0 0.0
  %2870 = vmatprep.subr.mxu0 0.0
  %2871 = vmatpush1.msra.mxu0 0.0
  %2872 = vmatprep.subr.mxu0 0.0
  %2873 = vmatpush1.msra.mxu0 0.0
  %2874 = vmatprep.subr.mxu0 0.0
  %2875 = vmatpush1.msra.mxu0 0.0
  %2876 = vmatprep.subr.mxu0 0.0
  %2877 = vmatpush1.msra.mxu0 0.0
  %2878 = vmatprep.subr.mxu0 0.0
  %2879 = vmatpush1.msra.mxu0 0.0
  %2880 = vmatprep.subr.mxu0 0.0
  %2881 = vmatpush1.msra.mxu0 0.0
  %2882 = vmatprep.subr.mxu0 0.0
  %2883 = vmatpush1.msra.mxu0 0.0
  %2884 = vmatprep.subr.mxu0 0.0
  %2885 = vmatpush1.msra.mxu0 0.0
  %2886 = vmatprep.subr.mxu0 0.0
  %2887 = vmatpush1.msra.mxu0 0.0
  %2888 = vmatprep.subr.mxu0 0.0
  %2889 = vmatpush1.msra.mxu0 0.0
  %2890 = vmatprep.subr.mxu0 0.0
  %2891 = vmatpush1.msra.mxu0 0.0
  %2892 = vmatprep.mubr.f32.mxu0 0.0
  %2893 = vmatmul.mubr.f32.gmra.mrb[0].mxu0 %v2812
  %v2894 = vpop.f32.mrb[0].mxu0
  %v2895 = vadd.f32 0.0, %v2894
  %v2896 = vpop.f32.mrb[0].mxu0
  %v2897 = vadd.f32 0.0, %v2896
  %2898 = vdwg.mxu0
  %2899 = vmatprep.subr.mxu0 %v2820
  %2900 = vmatpush1.msra.mxu0 %v2818
  %2901 = vmatprep.subr.mxu0 0.0
  %2902 = vmatpush1.msra.mxu0 0.0
  %2903 = vmatprep.subr.mxu0 0.0
  %2904 = vmatpush1.msra.mxu0 0.0
  %2905 = vmatprep.subr.mxu0 0.0
  %2906 = vmatpush1.msra.mxu0 0.0
  %2907 = vmatprep.subr.mxu0 0.0
  %2908 = vmatpush1.msra.mxu0 0.0
  %2909 = vmatprep.subr.mxu0 0.0
  %2910 = vmatpush1.msra.mxu0 0.0
  %2911 = vmatprep.subr.mxu0 0.0
  %2912 = vmatpush1.msra.mxu0 0.0
  %2913 = vmatprep.subr.mxu0 0.0
  %2914 = vmatpush1.msra.mxu0 0.0
  %2915 = vmatprep.subr.mxu0 0.0
  %2916 = vmatpush1.msra.mxu0 0.0
  %2917 = vmatprep.subr.mxu0 0.0
  %2918 = vmatpush1.msra.mxu0 0.0
  %2919 = vmatprep.subr.mxu0 0.0
  %2920 = vmatpush1.msra.mxu0 0.0
  %2921 = vmatprep.subr.mxu0 0.0
  %2922 = vmatpush1.msra.mxu0 0.0
  %2923 = vmatprep.subr.mxu0 0.0
  %2924 = vmatpush1.msra.mxu0 0.0
  %2925 = vmatprep.subr.mxu0 0.0
  %2926 = vmatpush1.msra.mxu0 0.0
  %2927 = vmatprep.subr.mxu0 0.0
  %2928 = vmatpush1.msra.mxu0 0.0
  %2929 = vmatprep.subr.mxu0 0.0
  %2930 = vmatpush1.msra.mxu0 0.0
  %2931 = vmatprep.subr.mxu0 0.0
  %2932 = vmatpush1.msra.mxu0 0.0
  %2933 = vmatprep.subr.mxu0 0.0
  %2934 = vmatpush1.msra.mxu0 0.0
  %2935 = vmatprep.subr.mxu0 0.0
  %2936 = vmatpush1.msra.mxu0 0.0
  %2937 = vmatprep.subr.mxu0 0.0
  %2938 = vmatpush1.msra.mxu0 0.0
  %2939 = vmatprep.subr.mxu0 0.0
  %2940 = vmatpush1.msra.mxu0 0.0
  %2941 = vmatprep.subr.mxu0 0.0
  %2942 = vmatpush1.msra.mxu0 0.0
  %2943 = vmatprep.subr.mxu0 0.0
  %2944 = vmatpush1.msra.mxu0 0.0
  %2945 = vmatprep.subr.mxu0 0.0
  %2946 = vmatpush1.msra.mxu0 0.0
  %2947 = vmatprep.subr.mxu0 0.0
  %2948 = vmatpush1.msra.mxu0 0.0
  %2949 = vmatprep.subr.mxu0 0.0
  %2950 = vmatpush1.msra.mxu0 0.0
  %2951 = vmatprep.subr.mxu0 0.0
  %2952 = vmatpush1.msra.mxu0 0.0
  %2953 = vmatprep.subr.mxu0 0.0
  %2954 = vmatpush1.msra.mxu0 0.0
  %2955 = vmatprep.subr.mxu0 0.0
  %2956 = vmatpush1.msra.mxu0 0.0
  %2957 = vmatprep.subr.mxu0 0.0
  %2958 = vmatpush1.msra.mxu0 0.0
  %2959 = vmatprep.subr.mxu0 0.0
  %2960 = vmatpush1.msra.mxu0 0.0
  %2961 = vmatprep.subr.mxu0 0.0
  %2962 = vmatpush1.msra.mxu0 0.0
  %2963 = vmatprep.mubr.f32.mxu0 0.0
  %2964 = vmatmul.mubr.f32.gmra.mrb[0].mxu0 %v2812
  %v2965 = vpop.f32.mrb[0].mxu0
  %v2966 = vadd.f32 0.0, %v2965
  %v2967 = vpop.f32.mrb[0].mxu0
  %v2968 = vadd.f32 0.0, %v2967
  %2969 = vdwg.mxu0
  %2970 = vmatprep.subr.mxu0 %v2824
  %2971 = vmatpush1.msra.mxu0 %v2822
  %2972 = vmatprep.subr.mxu0 0.0
  %2973 = vmatpush1.msra.mxu0 0.0
  %2974 = vmatprep.subr.mxu0 0.0
  %2975 = vmatpush1.msra.mxu0 0.0
  %2976 = vmatprep.subr.mxu0 0.0
  %2977 = vmatpush1.msra.mxu0 0.0
  %2978 = vmatprep.subr.mxu0 0.0
  %2979 = vmatpush1.msra.mxu0 0.0
  %2980 = vmatprep.subr.mxu0 0.0
  %2981 = vmatpush1.msra.mxu0 0.0
  %2982 = vmatprep.subr.mxu0 0.0
  %2983 = vmatpush1.msra.mxu0 0.0
  %2984 = vmatprep.subr.mxu0 0.0
  %2985 = vmatpush1.msra.mxu0 0.0
  %2986 = vmatprep.subr.mxu0 0.0
  %2987 = vmatpush1.msra.mxu0 0.0
  %2988 = vmatprep.subr.mxu0 0.0
  %2989 = vmatpush1.msra.mxu0 0.0
  %2990 = vmatprep.subr.mxu0 0.0
  %2991 = vmatpush1.msra.mxu0 0.0
  %2992 = vmatprep.subr.mxu0 0.0
  %2993 = vmatpush1.msra.mxu0 0.0
  %2994 = vmatprep.subr.mxu0 0.0
  %2995 = vmatpush1.msra.mxu0 0.0
  %2996 = vmatprep.subr.mxu0 0.0
  %2997 = vmatpush1.msra.mxu0 0.0
  %2998 = vmatprep.subr.mxu0 0.0
  %2999 = vmatpush1.msra.mxu0 0.0
  %3000 = vmatprep.subr.mxu0 0.0
  %3001 = vmatpush1.msra.mxu0 0.0
  %3002 = vmatprep.subr.mxu0 0.0
  %3003 = vmatpush1.msra.mxu0 0.0
  %3004 = vmatprep.subr.mxu0 0.0
  %3005 = vmatpush1.msra.mxu0 0.0
  %3006 = vmatprep.subr.mxu0 0.0
  %3007 = vmatpush1.msra.mxu0 0.0
  %3008 = vmatprep.subr.mxu0 0.0
  %3009 = vmatpush1.msra.mxu0 0.0
  %3010 = vmatprep.subr.mxu0 0.0
  %3011 = vmatpush1.msra.mxu0 0.0
  %3012 = vmatprep.subr.mxu0 0.0
  %3013 = vmatpush1.msra.mxu0 0.0
  %3014 = vmatprep.subr.mxu0 0.0
  %3015 = vmatpush1.msra.mxu0 0.0
  %3016 = vmatprep.subr.mxu0 0.0
  %3017 = vmatpush1.msra.mxu0 0.0
  %3018 = vmatprep.subr.mxu0 0.0
  %3019 = vmatpush1.msra.mxu0 0.0
  %3020 = vmatprep.subr.mxu0 0.0
  %3021 = vmatpush1.msra.mxu0 0.0
  %3022 = vmatprep.subr.mxu0 0.0
  %3023 = vmatpush1.msra.mxu0 0.0
  %3024 = vmatprep.subr.mxu0 0.0
  %3025 = vmatpush1.msra.mxu0 0.0
  %3026 = vmatprep.subr.mxu0 0.0
  %3027 = vmatpush1.msra.mxu0 0.0
  %3028 = vmatprep.subr.mxu0 0.0
  %3029 = vmatpush1.msra.mxu0 0.0
  %3030 = vmatprep.subr.mxu0 0.0
  %3031 = vmatpush1.msra.mxu0 0.0
  %3032 = vmatprep.subr.mxu0 0.0
  %3033 = vmatpush1.msra.mxu0 0.0
  %3034 = vmatprep.mubr.f32.mxu0 0.0
  %3035 = vmatmul.mubr.f32.gmra.mrb[0].mxu0 %v2812
  %v3036 = vpop.f32.mrb[0].mxu0
  %v3037 = vadd.f32 0.0, %v3036
  %v3038 = vpop.f32.mrb[0].mxu0
  %v3039 = vadd.f32 0.0, %v3038
  %3040 = vdwg.mxu0
  %3041 = vmatprep.subr.mxu0 0.0
  %3042 = vmatpush1.msra.mxu0 %v2826
  %3043 = vmatprep.subr.mxu0 0.0
  %3044 = vmatpush1.msra.mxu0 0.0
  %3045 = vmatprep.subr.mxu0 0.0
  %3046 = vmatpush1.msra.mxu0 0.0
  %3047 = vmatprep.subr.mxu0 0.0
  %3048 = vmatpush1.msra.mxu0 0.0
  %3049 = vmatprep.subr.mxu0 0.0
  %3050 = vmatpush1.msra.mxu0 0.0
  %3051 = vmatprep.subr.mxu0 0.0
  %3052 = vmatpush1.msra.mxu0 0.0
  %3053 = vmatprep.subr.mxu0 0.0
  %3054 = vmatpush1.msra.mxu0 0.0
  %3055 = vmatprep.subr.mxu0 0.0
  %3056 = vmatpush1.msra.mxu0 0.0
  %3057 = vmatprep.subr.mxu0 0.0
  %3058 = vmatpush1.msra.mxu0 0.0
  %3059 = vmatprep.subr.mxu0 0.0
  %3060 = vmatpush1.msra.mxu0 0.0
  %3061 = vmatprep.subr.mxu0 0.0
  %3062 = vmatpush1.msra.mxu0 0.0
  %3063 = vmatprep.subr.mxu0 0.0
  %3064 = vmatpush1.msra.mxu0 0.0
  %3065 = vmatprep.subr.mxu0 0.0
  %3066 = vmatpush1.msra.mxu0 0.0
  %3067 = vmatprep.subr.mxu0 0.0
  %3068 = vmatpush1.msra.mxu0 0.0
  %3069 = vmatprep.subr.mxu0 0.0
  %3070 = vmatpush1.msra.mxu0 0.0
  %3071 = vmatprep.subr.mxu0 0.0
  %3072 = vmatpush1.msra.mxu0 0.0
  %3073 = vmatprep.subr.mxu0 0.0
  %3074 = vmatpush1.msra.mxu0 0.0
  %3075 = vmatprep.subr.mxu0 0.0
  %3076 = vmatpush1.msra.mxu0 0.0
  %3077 = vmatprep.subr.mxu0 0.0
  %3078 = vmatpush1.msra.mxu0 0.0
  %3079 = vmatprep.subr.mxu0 0.0
  %3080 = vmatpush1.msra.mxu0 0.0
  %3081 = vmatprep.subr.mxu0 0.0
  %3082 = vmatpush1.msra.mxu0 0.0
  %3083 = vmatprep.subr.mxu0 0.0
  %3084 = vmatpush1.msra.mxu0 0.0
  %3085 = vmatprep.subr.mxu0 0.0
  %3086 = vmatpush1.msra.mxu0 0.0
  %3087 = vmatprep.subr.mxu0 0.0
  %3088 = vmatpush1.msra.mxu0 0.0
  %3089 = vmatprep.subr.mxu0 0.0
  %3090 = vmatpush1.msra.mxu0 0.0
  %3091 = vmatprep.subr.mxu0 0.0
  %3092 = vmatpush1.msra.mxu0 0.0
  %3093 = vmatprep.subr.mxu0 0.0
  %3094 = vmatpush1.msra.mxu0 0.0
  %3095 = vmatprep.subr.mxu0 0.0
  %3096 = vmatpush1.msra.mxu0 0.0
  %3097 = vmatprep.subr.mxu0 0.0
  %3098 = vmatpush1.msra.mxu0 0.0
  %3099 = vmatprep.subr.mxu0 0.0
  %3100 = vmatpush1.msra.mxu0 0.0
  %3101 = vmatprep.subr.mxu0 0.0
  %3102 = vmatpush1.msra.mxu0 0.0
  %3103 = vmatprep.subr.mxu0 0.0
  %3104 = vmatpush1.msra.mxu0 0.0
  %3105 = vmatprep.mubr.f32.mxu0 0.0
  %3106 = vmatmul.mubr.f32.gmra.mrb[0].mxu0 %v2812
  %v3107 = vpop.f32.mrb[0].mxu0
  %v3108 = vadd.f32 0.0, %v3107
  %v3109 = vpop.f32.mrb[0].mxu0
  %3110 = vdwg.mxu0
  %v3111 = vadd.f32 %v2782, %v2895
  %v3112 = vadd.f32 %v2783, %v2897
  %v3113 = vadd.f32 %v2784, %v2966
  %v3114 = vadd.f32 %v2785, %v2968
  %v3115 = vadd.f32 %v2786, %v3037
  %v3116 = vadd.f32 %v2787, %v3039
  %v3117 = vadd.f32 %v2788, %v3108
  %3118 = vrot.lane.b32.xlu0 %v513, 88
  %v3119 = vpop.permute.xlu0 %3118
  %3120 = vrot.lane.b32.xlu0 %v506, 105
  %v3121 = vpop.permute.xlu0 %3120
  %3122 = vrot.lane.b32.xlu0 %v507, 105
  %v3123 = vpop.permute.xlu0 %3122
  %3124 = vrot.lane.b32.xlu0 %v508, 105
  %v3125 = vpop.permute.xlu0 %3124
  %3126 = vrot.lane.b32.xlu0 %v509, 105
  %v3127 = vpop.permute.xlu0 %3126
  %3128 = vrot.lane.b32.xlu0 %v510, 105
  %v3129 = vpop.permute.xlu0 %3128
  %3130 = vrot.lane.b32.xlu0 %v511, 105
  %v3131 = vpop.permute.xlu0 %3130
  %3132 = vrot.lane.b32.xlu0 %v512, 105
  %v3133 = vpop.permute.xlu0 %3132
  %vm3134 = vcmask 859136
  %v3135 = vsel %vm3134, %v3121, %v3123
  %v3136 = vsel %vm3134, %v3123, %v3125
  %v3137 = vsel %vm3134, %v3125, %v3127
  %v3138 = vsel %vm3134, %v3127, %v3129
  %v3139 = vsel %vm3134, %v3129, %v3131
  %v3140 = vsel %vm3134, %v3131, %v3133
  %v3141 = vsel %vm545, %v3119, 0
  %v3143 = vsel %vm412, %v3135, 0
  %v3145 = vsel %vm412, %v3136, 0
  %v3147 = vsel %vm412, %v3137, 0
  %v3149 = vsel %vm412, %v3138, 0
  %v3151 = vsel %vm412, %v3139, 0
  %v3153 = vsel %vm412, %v3140, 0
  %v3155 = vsel %vm412, %v3133, 0
  %3157 = vmatprep.subr.mxu0 %v3145
  %3158 = vmatpush1.msra.mxu0 %v3143
  %3159 = vmatprep.subr.mxu0 0.0
  %3160 = vmatpush1.msra.mxu0 0.0
  %3161 = vmatprep.subr.mxu0 0.0
  %3162 = vmatpush1.msra.mxu0 0.0
  %3163 = vmatprep.subr.mxu0 0.0
  %3164 = vmatpush1.msra.mxu0 0.0
  %3165 = vmatprep.subr.mxu0 0.0
  %3166 = vmatpush1.msra.mxu0 0.0
  %3167 = vmatprep.subr.mxu0 0.0
  %3168 = vmatpush1.msra.mxu0 0.0
  %3169 = vmatprep.subr.mxu0 0.0
  %3170 = vmatpush1.msra.mxu0 0.0
  %3171 = vmatprep.subr.mxu0 0.0
  %3172 = vmatpush1.msra.mxu0 0.0
  %3173 = vmatprep.subr.mxu0 0.0
  %3174 = vmatpush1.msra.mxu0 0.0
  %3175 = vmatprep.subr.mxu0 0.0
  %3176 = vmatpush1.msra.mxu0 0.0
  %3177 = vmatprep.subr.mxu0 0.0
  %3178 = vmatpush1.msra.mxu0 0.0
  %3179 = vmatprep.subr.mxu0 0.0
  %3180 = vmatpush1.msra.mxu0 0.0
  %3181 = vmatprep.subr.mxu0 0.0
  %3182 = vmatpush1.msra.mxu0 0.0
  %3183 = vmatprep.subr.mxu0 0.0
  %3184 = vmatpush1.msra.mxu0 0.0
  %3185 = vmatprep.subr.mxu0 0.0
  %3186 = vmatpush1.msra.mxu0 0.0
  %3187 = vmatprep.subr.mxu0 0.0
  %3188 = vmatpush1.msra.mxu0 0.0
  %3189 = vmatprep.subr.mxu0 0.0
  %3190 = vmatpush1.msra.mxu0 0.0
  %3191 = vmatprep.subr.mxu0 0.0
  %3192 = vmatpush1.msra.mxu0 0.0
  %3193 = vmatprep.subr.mxu0 0.0
  %3194 = vmatpush1.msra.mxu0 0.0
  %3195 = vmatprep.subr.mxu0 0.0
  %3196 = vmatpush1.msra.mxu0 0.0
  %3197 = vmatprep.subr.mxu0 0.0
  %3198 = vmatpush1.msra.mxu0 0.0
  %3199 = vmatprep.subr.mxu0 0.0
  %3200 = vmatpush1.msra.mxu0 0.0
  %3201 = vmatprep.subr.mxu0 0.0
  %3202 = vmatpush1.msra.mxu0 0.0
  %3203 = vmatprep.subr.mxu0 0.0
  %3204 = vmatpush1.msra.mxu0 0.0
  %3205 = vmatprep.subr.mxu0 0.0
  %3206 = vmatpush1.msra.mxu0 0.0
  %3207 = vmatprep.subr.mxu0 0.0
  %3208 = vmatpush1.msra.mxu0 0.0
  %3209 = vmatprep.subr.mxu0 0.0
  %3210 = vmatpush1.msra.mxu0 0.0
  %3211 = vmatprep.subr.mxu0 0.0
  %3212 = vmatpush1.msra.mxu0 0.0
  %3213 = vmatprep.subr.mxu0 0.0
  %3214 = vmatpush1.msra.mxu0 0.0
  %3215 = vmatprep.subr.mxu0 0.0
  %3216 = vmatpush1.msra.mxu0 0.0
  %3217 = vmatprep.subr.mxu0 0.0
  %3218 = vmatpush1.msra.mxu0 0.0
  %3219 = vmatprep.subr.mxu0 0.0
  %3220 = vmatpush1.msra.mxu0 0.0
  %3221 = vmatprep.mubr.f32.mxu0 0.0
  %3222 = vmatmul.mubr.f32.gmra.mrb[0].mxu0 %v3141
  %v3223 = vpop.f32.mrb[0].mxu0
  %v3224 = vadd.f32 0.0, %v3223
  %v3225 = vpop.f32.mrb[0].mxu0
  %v3226 = vadd.f32 0.0, %v3225
  %3227 = vdwg.mxu0
  %3228 = vmatprep.subr.mxu0 %v3149
  %3229 = vmatpush1.msra.mxu0 %v3147
  %3230 = vmatprep.subr.mxu0 0.0
  %3231 = vmatpush1.msra.mxu0 0.0
  %3232 = vmatprep.subr.mxu0 0.0
  %3233 = vmatpush1.msra.mxu0 0.0
  %3234 = vmatprep.subr.mxu0 0.0
  %3235 = vmatpush1.msra.mxu0 0.0
  %3236 = vmatprep.subr.mxu0 0.0
  %3237 = vmatpush1.msra.mxu0 0.0
  %3238 = vmatprep.subr.mxu0 0.0
  %3239 = vmatpush1.msra.mxu0 0.0
  %3240 = vmatprep.subr.mxu0 0.0
  %3241 = vmatpush1.msra.mxu0 0.0
  %3242 = vmatprep.subr.mxu0 0.0
  %3243 = vmatpush1.msra.mxu0 0.0
  %3244 = vmatprep.subr.mxu0 0.0
  %3245 = vmatpush1.msra.mxu0 0.0
  %3246 = vmatprep.subr.mxu0 0.0
  %3247 = vmatpush1.msra.mxu0 0.0
  %3248 = vmatprep.subr.mxu0 0.0
  %3249 = vmatpush1.msra.mxu0 0.0
  %3250 = vmatprep.subr.mxu0 0.0
  %3251 = vmatpush1.msra.mxu0 0.0
  %3252 = vmatprep.subr.mxu0 0.0
  %3253 = vmatpush1.msra.mxu0 0.0
  %3254 = vmatprep.subr.mxu0 0.0
  %3255 = vmatpush1.msra.mxu0 0.0
  %3256 = vmatprep.subr.mxu0 0.0
  %3257 = vmatpush1.msra.mxu0 0.0
  %3258 = vmatprep.subr.mxu0 0.0
  %3259 = vmatpush1.msra.mxu0 0.0
  %3260 = vmatprep.subr.mxu0 0.0
  %3261 = vmatpush1.msra.mxu0 0.0
  %3262 = vmatprep.subr.mxu0 0.0
  %3263 = vmatpush1.msra.mxu0 0.0
  %3264 = vmatprep.subr.mxu0 0.0
  %3265 = vmatpush1.msra.mxu0 0.0
  %3266 = vmatprep.subr.mxu0 0.0
  %3267 = vmatpush1.msra.mxu0 0.0
  %3268 = vmatprep.subr.mxu0 0.0
  %3269 = vmatpush1.msra.mxu0 0.0
  %3270 = vmatprep.subr.mxu0 0.0
  %3271 = vmatpush1.msra.mxu0 0.0
  %3272 = vmatprep.subr.mxu0 0.0
  %3273 = vmatpush1.msra.mxu0 0.0
  %3274 = vmatprep.subr.mxu0 0.0
  %3275 = vmatpush1.msra.mxu0 0.0
  %3276 = vmatprep.subr.mxu0 0.0
  %3277 = vmatpush1.msra.mxu0 0.0
  %3278 = vmatprep.subr.mxu0 0.0
  %3279 = vmatpush1.msra.mxu0 0.0
  %3280 = vmatprep.subr.mxu0 0.0
  %3281 = vmatpush1.msra.mxu0 0.0
  %3282 = vmatprep.subr.mxu0 0.0
  %3283 = vmatpush1.msra.mxu0 0.0
  %3284 = vmatprep.subr.mxu0 0.0
  %3285 = vmatpush1.msra.mxu0 0.0
  %3286 = vmatprep.subr.mxu0 0.0
  %3287 = vmatpush1.msra.mxu0 0.0
  %3288 = vmatprep.subr.mxu0 0.0
  %3289 = vmatpush1.msra.mxu0 0.0
  %3290 = vmatprep.subr.mxu0 0.0
  %3291 = vmatpush1.msra.mxu0 0.0
  %3292 = vmatprep.mubr.f32.mxu0 0.0
  %3293 = vmatmul.mubr.f32.gmra.mrb[0].mxu0 %v3141
  %v3294 = vpop.f32.mrb[0].mxu0
  %v3295 = vadd.f32 0.0, %v3294
  %v3296 = vpop.f32.mrb[0].mxu0
  %v3297 = vadd.f32 0.0, %v3296
  %3298 = vdwg.mxu0
  %3299 = vmatprep.subr.mxu0 %v3153
  %3300 = vmatpush1.msra.mxu0 %v3151
  %3301 = vmatprep.subr.mxu0 0.0
  %3302 = vmatpush1.msra.mxu0 0.0
  %3303 = vmatprep.subr.mxu0 0.0
  %3304 = vmatpush1.msra.mxu0 0.0
  %3305 = vmatprep.subr.mxu0 0.0
  %3306 = vmatpush1.msra.mxu0 0.0
  %3307 = vmatprep.subr.mxu0 0.0
  %3308 = vmatpush1.msra.mxu0 0.0
  %3309 = vmatprep.subr.mxu0 0.0
  %3310 = vmatpush1.msra.mxu0 0.0
  %3311 = vmatprep.subr.mxu0 0.0
  %3312 = vmatpush1.msra.mxu0 0.0
  %3313 = vmatprep.subr.mxu0 0.0
  %3314 = vmatpush1.msra.mxu0 0.0
  %3315 = vmatprep.subr.mxu0 0.0
  %3316 = vmatpush1.msra.mxu0 0.0
  %3317 = vmatprep.subr.mxu0 0.0
  %3318 = vmatpush1.msra.mxu0 0.0
  %3319 = vmatprep.subr.mxu0 0.0
  %3320 = vmatpush1.msra.mxu0 0.0
  %3321 = vmatprep.subr.mxu0 0.0
  %3322 = vmatpush1.msra.mxu0 0.0
  %3323 = vmatprep.subr.mxu0 0.0
  %3324 = vmatpush1.msra.mxu0 0.0
  %3325 = vmatprep.subr.mxu0 0.0
  %3326 = vmatpush1.msra.mxu0 0.0
  %3327 = vmatprep.subr.mxu0 0.0
  %3328 = vmatpush1.msra.mxu0 0.0
  %3329 = vmatprep.subr.mxu0 0.0
  %3330 = vmatpush1.msra.mxu0 0.0
  %3331 = vmatprep.subr.mxu0 0.0
  %3332 = vmatpush1.msra.mxu0 0.0
  %3333 = vmatprep.subr.mxu0 0.0
  %3334 = vmatpush1.msra.mxu0 0.0
  %3335 = vmatprep.subr.mxu0 0.0
  %3336 = vmatpush1.msra.mxu0 0.0
  %3337 = vmatprep.subr.mxu0 0.0
  %3338 = vmatpush1.msra.mxu0 0.0
  %3339 = vmatprep.subr.mxu0 0.0
  %3340 = vmatpush1.msra.mxu0 0.0
  %3341 = vmatprep.subr.mxu0 0.0
  %3342 = vmatpush1.msra.mxu0 0.0
  %3343 = vmatprep.subr.mxu0 0.0
  %3344 = vmatpush1.msra.mxu0 0.0
  %3345 = vmatprep.subr.mxu0 0.0
  %3346 = vmatpush1.msra.mxu0 0.0
  %3347 = vmatprep.subr.mxu0 0.0
  %3348 = vmatpush1.msra.mxu0 0.0
  %3349 = vmatprep.subr.mxu0 0.0
  %3350 = vmatpush1.msra.mxu0 0.0
  %3351 = vmatprep.subr.mxu0 0.0
  %3352 = vmatpush1.msra.mxu0 0.0
  %3353 = vmatprep.subr.mxu0 0.0
  %3354 = vmatpush1.msra.mxu0 0.0
  %3355 = vmatprep.subr.mxu0 0.0
  %3356 = vmatpush1.msra.mxu0 0.0
  %3357 = vmatprep.subr.mxu0 0.0
  %3358 = vmatpush1.msra.mxu0 0.0
  %3359 = vmatprep.subr.mxu0 0.0
  %3360 = vmatpush1.msra.mxu0 0.0
  %3361 = vmatprep.subr.mxu0 0.0
  %3362 = vmatpush1.msra.mxu0 0.0
  %3363 = vmatprep.mubr.f32.mxu0 0.0
  %3364 = vmatmul.mubr.f32.gmra.mrb[0].mxu0 %v3141
  %v3365 = vpop.f32.mrb[0].mxu0
  %v3366 = vadd.f32 0.0, %v3365
  %v3367 = vpop.f32.mrb[0].mxu0
  %v3368 = vadd.f32 0.0, %v3367
  %3369 = vdwg.mxu0
  %3370 = vmatprep.subr.mxu0 0.0
  %3371 = vmatpush1.msra.mxu0 %v3155
  %3372 = vmatprep.subr.mxu0 0.0
  %3373 = vmatpush1.msra.mxu0 0.0
  %3374 = vmatprep.subr.mxu0 0.0
  %3375 = vmatpush1.msra.mxu0 0.0
  %3376 = vmatprep.subr.mxu0 0.0
  %3377 = vmatpush1.msra.mxu0 0.0
  %3378 = vmatprep.subr.mxu0 0.0
  %3379 = vmatpush1.msra.mxu0 0.0
  %3380 = vmatprep.subr.mxu0 0.0
  %3381 = vmatpush1.msra.mxu0 0.0
  %3382 = vmatprep.subr.mxu0 0.0
  %3383 = vmatpush1.msra.mxu0 0.0
  %3384 = vmatprep.subr.mxu0 0.0
  %3385 = vmatpush1.msra.mxu0 0.0
  %3386 = vmatprep.subr.mxu0 0.0
  %3387 = vmatpush1.msra.mxu0 0.0
  %3388 = vmatprep.subr.mxu0 0.0
  %3389 = vmatpush1.msra.mxu0 0.0
  %3390 = vmatprep.subr.mxu0 0.0
  %3391 = vmatpush1.msra.mxu0 0.0
  %3392 = vmatprep.subr.mxu0 0.0
  %3393 = vmatpush1.msra.mxu0 0.0
  %3394 = vmatprep.subr.mxu0 0.0
  %3395 = vmatpush1.msra.mxu0 0.0
  %3396 = vmatprep.subr.mxu0 0.0
  %3397 = vmatpush1.msra.mxu0 0.0
  %3398 = vmatprep.subr.mxu0 0.0
  %3399 = vmatpush1.msra.mxu0 0.0
  %3400 = vmatprep.subr.mxu0 0.0
  %3401 = vmatpush1.msra.mxu0 0.0
  %3402 = vmatprep.subr.mxu0 0.0
  %3403 = vmatpush1.msra.mxu0 0.0
  %3404 = vmatprep.subr.mxu0 0.0
  %3405 = vmatpush1.msra.mxu0 0.0
  %3406 = vmatprep.subr.mxu0 0.0
  %3407 = vmatpush1.msra.mxu0 0.0
  %3408 = vmatprep.subr.mxu0 0.0
  %3409 = vmatpush1.msra.mxu0 0.0
  %3410 = vmatprep.subr.mxu0 0.0
  %3411 = vmatpush1.msra.mxu0 0.0
  %3412 = vmatprep.subr.mxu0 0.0
  %3413 = vmatpush1.msra.mxu0 0.0
  %3414 = vmatprep.subr.mxu0 0.0
  %3415 = vmatpush1.msra.mxu0 0.0
  %3416 = vmatprep.subr.mxu0 0.0
  %3417 = vmatpush1.msra.mxu0 0.0
  %3418 = vmatprep.subr.mxu0 0.0
  %3419 = vmatpush1.msra.mxu0 0.0
  %3420 = vmatprep.subr.mxu0 0.0
  %3421 = vmatpush1.msra.mxu0 0.0
  %3422 = vmatprep.subr.mxu0 0.0
  %3423 = vmatpush1.msra.mxu0 0.0
  %3424 = vmatprep.subr.mxu0 0.0
  %3425 = vmatpush1.msra.mxu0 0.0
  %3426 = vmatprep.subr.mxu0 0.0
  %3427 = vmatpush1.msra.mxu0 0.0
  %3428 = vmatprep.subr.mxu0 0.0
  %3429 = vmatpush1.msra.mxu0 0.0
  %3430 = vmatprep.subr.mxu0 0.0
  %3431 = vmatpush1.msra.mxu0 0.0
  %3432 = vmatprep.subr.mxu0 0.0
  %3433 = vmatpush1.msra.mxu0 0.0
  %3434 = vmatprep.mubr.f32.mxu0 0.0
  %3435 = vmatmul.mubr.f32.gmra.mrb[0].mxu0 %v3141
  %v3436 = vpop.f32.mrb[0].mxu0
  %v3437 = vadd.f32 0.0, %v3436
  %v3438 = vpop.f32.mrb[0].mxu0
  %3439 = vdwg.mxu0
  %v3440 = vadd.f32 %v3111, %v3224
  %v3441 = vadd.f32 %v3112, %v3226
  %v3442 = vadd.f32 %v3113, %v3295
  %v3443 = vadd.f32 %v3114, %v3297
  %v3444 = vadd.f32 %v3115, %v3366
  %v3445 = vadd.f32 %v3116, %v3368
  %v3446 = vadd.f32 %v3117, %v3437
  %3447 = vrot.lane.b32.xlu0 %v513, 83
  %v3448 = vpop.permute.xlu0 %3447
  %3449 = vrot.lane.b32.xlu0 %v506, 104
  %v3450 = vpop.permute.xlu0 %3449
  %3451 = vrot.lane.b32.xlu0 %v507, 104
  %v3452 = vpop.permute.xlu0 %3451
  %3453 = vrot.lane.b32.xlu0 %v508, 104
  %v3454 = vpop.permute.xlu0 %3453
  %3455 = vrot.lane.b32.xlu0 %v509, 104
  %v3456 = vpop.permute.xlu0 %3455
  %3457 = vrot.lane.b32.xlu0 %v510, 104
  %v3458 = vpop.permute.xlu0 %3457
  %3459 = vrot.lane.b32.xlu0 %v511, 104
  %v3460 = vpop.permute.xlu0 %3459
  %3461 = vrot.lane.b32.xlu0 %v512, 104
  %v3462 = vpop.permute.xlu0 %3461
  %vm3463 = vcmask 850944
  %v3464 = vsel %vm3463, %v3450, %v3452
  %v3465 = vsel %vm3463, %v3452, %v3454
  %v3466 = vsel %vm3463, %v3454, %v3456
  %v3467 = vsel %vm3463, %v3456, %v3458
  %v3468 = vsel %vm3463, %v3458, %v3460
  %v3469 = vsel %vm3463, %v3460, %v3462
  %v3470 = vsel %vm545, %v3448, 0
  %v3472 = vsel %vm412, %v3464, 0
  %v3474 = vsel %vm412, %v3465, 0
  %v3476 = vsel %vm412, %v3466, 0
  %v3478 = vsel %vm412, %v3467, 0
  %v3480 = vsel %vm412, %v3468, 0
  %v3482 = vsel %vm412, %v3469, 0
  %v3484 = vsel %vm412, %v3462, 0
  %3486 = vmatprep.subr.mxu0 %v3474
  %3487 = vmatpush1.msra.mxu0 %v3472
  %3488 = vmatprep.subr.mxu0 0.0
  %3489 = vmatpush1.msra.mxu0 0.0
  %3490 = vmatprep.subr.mxu0 0.0
  %3491 = vmatpush1.msra.mxu0 0.0
  %3492 = vmatprep.subr.mxu0 0.0
  %3493 = vmatpush1.msra.mxu0 0.0
  %3494 = vmatprep.subr.mxu0 0.0
  %3495 = vmatpush1.msra.mxu0 0.0
  %3496 = vmatprep.subr.mxu0 0.0
  %3497 = vmatpush1.msra.mxu0 0.0
  %3498 = vmatprep.subr.mxu0 0.0
  %3499 = vmatpush1.msra.mxu0 0.0
  %3500 = vmatprep.subr.mxu0 0.0
  %3501 = vmatpush1.msra.mxu0 0.0
  %3502 = vmatprep.subr.mxu0 0.0
  %3503 = vmatpush1.msra.mxu0 0.0
  %3504 = vmatprep.subr.mxu0 0.0
  %3505 = vmatpush1.msra.mxu0 0.0
  %3506 = vmatprep.subr.mxu0 0.0
  %3507 = vmatpush1.msra.mxu0 0.0
  %3508 = vmatprep.subr.mxu0 0.0
  %3509 = vmatpush1.msra.mxu0 0.0
  %3510 = vmatprep.subr.mxu0 0.0
  %3511 = vmatpush1.msra.mxu0 0.0
  %3512 = vmatprep.subr.mxu0 0.0
  %3513 = vmatpush1.msra.mxu0 0.0
  %3514 = vmatprep.subr.mxu0 0.0
  %3515 = vmatpush1.msra.mxu0 0.0
  %3516 = vmatprep.subr.mxu0 0.0
  %3517 = vmatpush1.msra.mxu0 0.0
  %3518 = vmatprep.subr.mxu0 0.0
  %3519 = vmatpush1.msra.mxu0 0.0
  %3520 = vmatprep.subr.mxu0 0.0
  %3521 = vmatpush1.msra.mxu0 0.0
  %3522 = vmatprep.subr.mxu0 0.0
  %3523 = vmatpush1.msra.mxu0 0.0
  %3524 = vmatprep.subr.mxu0 0.0
  %3525 = vmatpush1.msra.mxu0 0.0
  %3526 = vmatprep.subr.mxu0 0.0
  %3527 = vmatpush1.msra.mxu0 0.0
  %3528 = vmatprep.subr.mxu0 0.0
  %3529 = vmatpush1.msra.mxu0 0.0
  %3530 = vmatprep.subr.mxu0 0.0
  %3531 = vmatpush1.msra.mxu0 0.0
  %3532 = vmatprep.subr.mxu0 0.0
  %3533 = vmatpush1.msra.mxu0 0.0
  %3534 = vmatprep.subr.mxu0 0.0
  %3535 = vmatpush1.msra.mxu0 0.0
  %3536 = vmatprep.subr.mxu0 0.0
  %3537 = vmatpush1.msra.mxu0 0.0
  %3538 = vmatprep.subr.mxu0 0.0
  %3539 = vmatpush1.msra.mxu0 0.0
  %3540 = vmatprep.subr.mxu0 0.0
  %3541 = vmatpush1.msra.mxu0 0.0
  %3542 = vmatprep.subr.mxu0 0.0
  %3543 = vmatpush1.msra.mxu0 0.0
  %3544 = vmatprep.subr.mxu0 0.0
  %3545 = vmatpush1.msra.mxu0 0.0
  %3546 = vmatprep.subr.mxu0 0.0
  %3547 = vmatpush1.msra.mxu0 0.0
  %3548 = vmatprep.subr.mxu0 0.0
  %3549 = vmatpush1.msra.mxu0 0.0
  %3550 = vmatprep.mubr.f32.mxu0 0.0
  %3551 = vmatmul.mubr.f32.gmra.mrb[0].mxu0 %v3470
  %v3552 = vpop.f32.mrb[0].mxu0
  %v3553 = vadd.f32 0.0, %v3552
  %v3554 = vpop.f32.mrb[0].mxu0
  %v3555 = vadd.f32 0.0, %v3554
  %3556 = vdwg.mxu0
  %3557 = vmatprep.subr.mxu0 %v3478
  %3558 = vmatpush1.msra.mxu0 %v3476
  %3559 = vmatprep.subr.mxu0 0.0
  %3560 = vmatpush1.msra.mxu0 0.0
  %3561 = vmatprep.subr.mxu0 0.0
  %3562 = vmatpush1.msra.mxu0 0.0
  %3563 = vmatprep.subr.mxu0 0.0
  %3564 = vmatpush1.msra.mxu0 0.0
  %3565 = vmatprep.subr.mxu0 0.0
  %3566 = vmatpush1.msra.mxu0 0.0
  %3567 = vmatprep.subr.mxu0 0.0
  %3568 = vmatpush1.msra.mxu0 0.0
  %3569 = vmatprep.subr.mxu0 0.0
  %3570 = vmatpush1.msra.mxu0 0.0
  %3571 = vmatprep.subr.mxu0 0.0
  %3572 = vmatpush1.msra.mxu0 0.0
  %3573 = vmatprep.subr.mxu0 0.0
  %3574 = vmatpush1.msra.mxu0 0.0
  %3575 = vmatprep.subr.mxu0 0.0
  %3576 = vmatpush1.msra.mxu0 0.0
  %3577 = vmatprep.subr.mxu0 0.0
  %3578 = vmatpush1.msra.mxu0 0.0
  %3579 = vmatprep.subr.mxu0 0.0
  %3580 = vmatpush1.msra.mxu0 0.0
  %3581 = vmatprep.subr.mxu0 0.0
  %3582 = vmatpush1.msra.mxu0 0.0
  %3583 = vmatprep.subr.mxu0 0.0
  %3584 = vmatpush1.msra.mxu0 0.0
  %3585 = vmatprep.subr.mxu0 0.0
  %3586 = vmatpush1.msra.mxu0 0.0
  %3587 = vmatprep.subr.mxu0 0.0
  %3588 = vmatpush1.msra.mxu0 0.0
  %3589 = vmatprep.subr.mxu0 0.0
  %3590 = vmatpush1.msra.mxu0 0.0
  %3591 = vmatprep.subr.mxu0 0.0
  %3592 = vmatpush1.msra.mxu0 0.0
  %3593 = vmatprep.subr.mxu0 0.0
  %3594 = vmatpush1.msra.mxu0 0.0
  %3595 = vmatprep.subr.mxu0 0.0
  %3596 = vmatpush1.msra.mxu0 0.0
  %3597 = vmatprep.subr.mxu0 0.0
  %3598 = vmatpush1.msra.mxu0 0.0
  %3599 = vmatprep.subr.mxu0 0.0
  %3600 = vmatpush1.msra.mxu0 0.0
  %3601 = vmatprep.subr.mxu0 0.0
  %3602 = vmatpush1.msra.mxu0 0.0
  %3603 = vmatprep.subr.mxu0 0.0
  %3604 = vmatpush1.msra.mxu0 0.0
  %3605 = vmatprep.subr.mxu0 0.0
  %3606 = vmatpush1.msra.mxu0 0.0
  %3607 = vmatprep.subr.mxu0 0.0
  %3608 = vmatpush1.msra.mxu0 0.0
  %3609 = vmatprep.subr.mxu0 0.0
  %3610 = vmatpush1.msra.mxu0 0.0
  %3611 = vmatprep.subr.mxu0 0.0
  %3612 = vmatpush1.msra.mxu0 0.0
  %3613 = vmatprep.subr.mxu0 0.0
  %3614 = vmatpush1.msra.mxu0 0.0
  %3615 = vmatprep.subr.mxu0 0.0
  %3616 = vmatpush1.msra.mxu0 0.0
  %3617 = vmatprep.subr.mxu0 0.0
  %3618 = vmatpush1.msra.mxu0 0.0
  %3619 = vmatprep.subr.mxu0 0.0
  %3620 = vmatpush1.msra.mxu0 0.0
  %3621 = vmatprep.mubr.f32.mxu0 0.0
  %3622 = vmatmul.mubr.f32.gmra.mrb[0].mxu0 %v3470
  %v3623 = vpop.f32.mrb[0].mxu0
  %v3624 = vadd.f32 0.0, %v3623
  %v3625 = vpop.f32.mrb[0].mxu0
  %v3626 = vadd.f32 0.0, %v3625
  %3627 = vdwg.mxu0
  %3628 = vmatprep.subr.mxu0 %v3482
  %3629 = vmatpush1.msra.mxu0 %v3480
  %3630 = vmatprep.subr.mxu0 0.0
  %3631 = vmatpush1.msra.mxu0 0.0
  %3632 = vmatprep.subr.mxu0 0.0
  %3633 = vmatpush1.msra.mxu0 0.0
  %3634 = vmatprep.subr.mxu0 0.0
  %3635 = vmatpush1.msra.mxu0 0.0
  %3636 = vmatprep.subr.mxu0 0.0
  %3637 = vmatpush1.msra.mxu0 0.0
  %3638 = vmatprep.subr.mxu0 0.0
  %3639 = vmatpush1.msra.mxu0 0.0
  %3640 = vmatprep.subr.mxu0 0.0
  %3641 = vmatpush1.msra.mxu0 0.0
  %3642 = vmatprep.subr.mxu0 0.0
  %3643 = vmatpush1.msra.mxu0 0.0
  %3644 = vmatprep.subr.mxu0 0.0
  %3645 = vmatpush1.msra.mxu0 0.0
  %3646 = vmatprep.subr.mxu0 0.0
  %3647 = vmatpush1.msra.mxu0 0.0
  %3648 = vmatprep.subr.mxu0 0.0
  %3649 = vmatpush1.msra.mxu0 0.0
  %3650 = vmatprep.subr.mxu0 0.0
  %3651 = vmatpush1.msra.mxu0 0.0
  %3652 = vmatprep.subr.mxu0 0.0
  %3653 = vmatpush1.msra.mxu0 0.0
  %3654 = vmatprep.subr.mxu0 0.0
  %3655 = vmatpush1.msra.mxu0 0.0
  %3656 = vmatprep.subr.mxu0 0.0
  %3657 = vmatpush1.msra.mxu0 0.0
  %3658 = vmatprep.subr.mxu0 0.0
  %3659 = vmatpush1.msra.mxu0 0.0
  %3660 = vmatprep.subr.mxu0 0.0
  %3661 = vmatpush1.msra.mxu0 0.0
  %3662 = vmatprep.subr.mxu0 0.0
  %3663 = vmatpush1.msra.mxu0 0.0
  %3664 = vmatprep.subr.mxu0 0.0
  %3665 = vmatpush1.msra.mxu0 0.0
  %3666 = vmatprep.subr.mxu0 0.0
  %3667 = vmatpush1.msra.mxu0 0.0
  %3668 = vmatprep.subr.mxu0 0.0
  %3669 = vmatpush1.msra.mxu0 0.0
  %3670 = vmatprep.subr.mxu0 0.0
  %3671 = vmatpush1.msra.mxu0 0.0
  %3672 = vmatprep.subr.mxu0 0.0
  %3673 = vmatpush1.msra.mxu0 0.0
  %3674 = vmatprep.subr.mxu0 0.0
  %3675 = vmatpush1.msra.mxu0 0.0
  %3676 = vmatprep.subr.mxu0 0.0
  %3677 = vmatpush1.msra.mxu0 0.0
  %3678 = vmatprep.subr.mxu0 0.0
  %3679 = vmatpush1.msra.mxu0 0.0
  %3680 = vmatprep.subr.mxu0 0.0
  %3681 = vmatpush1.msra.mxu0 0.0
  %3682 = vmatprep.subr.mxu0 0.0
  %3683 = vmatpush1.msra.mxu0 0.0
  %3684 = vmatprep.subr.mxu0 0.0
  %3685 = vmatpush1.msra.mxu0 0.0
  %3686 = vmatprep.subr.mxu0 0.0
  %3687 = vmatpush1.msra.mxu0 0.0
  %3688 = vmatprep.subr.mxu0 0.0
  %3689 = vmatpush1.msra.mxu0 0.0
  %3690 = vmatprep.subr.mxu0 0.0
  %3691 = vmatpush1.msra.mxu0 0.0
  %3692 = vmatprep.mubr.f32.mxu0 0.0
  %3693 = vmatmul.mubr.f32.gmra.mrb[0].mxu0 %v3470
  %v3694 = vpop.f32.mrb[0].mxu0
  %v3695 = vadd.f32 0.0, %v3694
  %v3696 = vpop.f32.mrb[0].mxu0
  %v3697 = vadd.f32 0.0, %v3696
  %3698 = vdwg.mxu0
  %3699 = vmatprep.subr.mxu0 0.0
  %3700 = vmatpush1.msra.mxu0 %v3484
  %3701 = vmatprep.subr.mxu0 0.0
  %3702 = vmatpush1.msra.mxu0 0.0
  %3703 = vmatprep.subr.mxu0 0.0
  %3704 = vmatpush1.msra.mxu0 0.0
  %3705 = vmatprep.subr.mxu0 0.0
  %3706 = vmatpush1.msra.mxu0 0.0
  %3707 = vmatprep.subr.mxu0 0.0
  %3708 = vmatpush1.msra.mxu0 0.0
  %3709 = vmatprep.subr.mxu0 0.0
  %3710 = vmatpush1.msra.mxu0 0.0
  %3711 = vmatprep.subr.mxu0 0.0
  %3712 = vmatpush1.msra.mxu0 0.0
  %3713 = vmatprep.subr.mxu0 0.0
  %3714 = vmatpush1.msra.mxu0 0.0
  %3715 = vmatprep.subr.mxu0 0.0
  %3716 = vmatpush1.msra.mxu0 0.0
  %3717 = vmatprep.subr.mxu0 0.0
  %3718 = vmatpush1.msra.mxu0 0.0
  %3719 = vmatprep.subr.mxu0 0.0
  %3720 = vmatpush1.msra.mxu0 0.0
  %3721 = vmatprep.subr.mxu0 0.0
  %3722 = vmatpush1.msra.mxu0 0.0
  %3723 = vmatprep.subr.mxu0 0.0
  %3724 = vmatpush1.msra.mxu0 0.0
  %3725 = vmatprep.subr.mxu0 0.0
  %3726 = vmatpush1.msra.mxu0 0.0
  %3727 = vmatprep.subr.mxu0 0.0
  %3728 = vmatpush1.msra.mxu0 0.0
  %3729 = vmatprep.subr.mxu0 0.0
  %3730 = vmatpush1.msra.mxu0 0.0
  %3731 = vmatprep.subr.mxu0 0.0
  %3732 = vmatpush1.msra.mxu0 0.0
  %3733 = vmatprep.subr.mxu0 0.0
  %3734 = vmatpush1.msra.mxu0 0.0
  %3735 = vmatprep.subr.mxu0 0.0
  %3736 = vmatpush1.msra.mxu0 0.0
  %3737 = vmatprep.subr.mxu0 0.0
  %3738 = vmatpush1.msra.mxu0 0.0
  %3739 = vmatprep.subr.mxu0 0.0
  %3740 = vmatpush1.msra.mxu0 0.0
  %3741 = vmatprep.subr.mxu0 0.0
  %3742 = vmatpush1.msra.mxu0 0.0
  %3743 = vmatprep.subr.mxu0 0.0
  %3744 = vmatpush1.msra.mxu0 0.0
  %3745 = vmatprep.subr.mxu0 0.0
  %3746 = vmatpush1.msra.mxu0 0.0
  %3747 = vmatprep.subr.mxu0 0.0
  %3748 = vmatpush1.msra.mxu0 0.0
  %3749 = vmatprep.subr.mxu0 0.0
  %3750 = vmatpush1.msra.mxu0 0.0
  %3751 = vmatprep.subr.mxu0 0.0
  %3752 = vmatpush1.msra.mxu0 0.0
  %3753 = vmatprep.subr.mxu0 0.0
  %3754 = vmatpush1.msra.mxu0 0.0
  %3755 = vmatprep.subr.mxu0 0.0
  %3756 = vmatpush1.msra.mxu0 0.0
  %3757 = vmatprep.subr.mxu0 0.0
  %3758 = vmatpush1.msra.mxu0 0.0
  %3759 = vmatprep.subr.mxu0 0.0
  %3760 = vmatpush1.msra.mxu0 0.0
  %3761 = vmatprep.subr.mxu0 0.0
  %3762 = vmatpush1.msra.mxu0 0.0
  %3763 = vmatprep.mubr.f32.mxu0 0.0
  %3764 = vmatmul.mubr.f32.gmra.mrb[0].mxu0 %v3470
  %v3765 = vpop.f32.mrb[0].mxu0
  %v3766 = vadd.f32 0.0, %v3765
  %v3767 = vpop.f32.mrb[0].mxu0
  %3768 = vdwg.mxu0
  %v3769 = vadd.f32 %v3440, %v3553
  %v3770 = vadd.f32 %v3441, %v3555
  %v3771 = vadd.f32 %v3442, %v3624
  %v3772 = vadd.f32 %v3443, %v3626
  %v3773 = vadd.f32 %v3444, %v3695
  %v3774 = vadd.f32 %v3445, %v3697
  %v3775 = vadd.f32 %v3446, %v3766
  %3776 = vrot.lane.b32.xlu0 %v513, 78
  %v3777 = vpop.permute.xlu0 %3776
  %3778 = vrot.lane.b32.xlu0 %v506, 88
  %v3779 = vpop.permute.xlu0 %3778
  %3780 = vrot.lane.b32.xlu0 %v507, 88
  %v3781 = vpop.permute.xlu0 %3780
  %3782 = vrot.lane.b32.xlu0 %v508, 88
  %v3783 = vpop.permute.xlu0 %3782
  %3784 = vrot.lane.b32.xlu0 %v509, 88
  %v3785 = vpop.permute.xlu0 %3784
  %3786 = vrot.lane.b32.xlu0 %v510, 88
  %v3787 = vpop.permute.xlu0 %3786
  %3788 = vrot.lane.b32.xlu0 %v511, 88
  %v3789 = vpop.permute.xlu0 %3788
  %3790 = vrot.lane.b32.xlu0 %v512, 88
  %v3791 = vpop.permute.xlu0 %3790
  %vm3792 = vcmask 719872
  %v3793 = vsel %vm3792, %v3779, %v3781
  %v3794 = vsel %vm3792, %v3781, %v3783
  %v3795 = vsel %vm3792, %v3783, %v3785
  %v3796 = vsel %vm3792, %v3785, %v3787
  %v3797 = vsel %vm3792, %v3787, %v3789
  %v3798 = vsel %vm3792, %v3789, %v3791
  %v3799 = vsel %vm545, %v3777, 0
  %v3801 = vsel %vm412, %v3793, 0
  %v3803 = vsel %vm412, %v3794, 0
  %v3805 = vsel %vm412, %v3795, 0
  %v3807 = vsel %vm412, %v3796, 0
  %v3809 = vsel %vm412, %v3797, 0
  %v3811 = vsel %vm412, %v3798, 0
  %v3813 = vsel %vm412, %v3791, 0
  %3815 = vmatprep.subr.mxu0 %v3803
  %3816 = vmatpush1.msra.mxu0 %v3801
  %3817 = vmatprep.subr.mxu0 0.0
  %3818 = vmatpush1.msra.mxu0 0.0
  %3819 = vmatprep.subr.mxu0 0.0
  %3820 = vmatpush1.msra.mxu0 0.0
  %3821 = vmatprep.subr.mxu0 0.0
  %3822 = vmatpush1.msra.mxu0 0.0
  %3823 = vmatprep.subr.mxu0 0.0
  %3824 = vmatpush1.msra.mxu0 0.0
  %3825 = vmatprep.subr.mxu0 0.0
  %3826 = vmatpush1.msra.mxu0 0.0
  %3827 = vmatprep.subr.mxu0 0.0
  %3828 = vmatpush1.msra.mxu0 0.0
  %3829 = vmatprep.subr.mxu0 0.0
  %3830 = vmatpush1.msra.mxu0 0.0
  %3831 = vmatprep.subr.mxu0 0.0
  %3832 = vmatpush1.msra.mxu0 0.0
  %3833 = vmatprep.subr.mxu0 0.0
  %3834 = vmatpush1.msra.mxu0 0.0
  %3835 = vmatprep.subr.mxu0 0.0
  %3836 = vmatpush1.msra.mxu0 0.0
  %3837 = vmatprep.subr.mxu0 0.0
  %3838 = vmatpush1.msra.mxu0 0.0
  %3839 = vmatprep.subr.mxu0 0.0
  %3840 = vmatpush1.msra.mxu0 0.0
  %3841 = vmatprep.subr.mxu0 0.0
  %3842 = vmatpush1.msra.mxu0 0.0
  %3843 = vmatprep.subr.mxu0 0.0
  %3844 = vmatpush1.msra.mxu0 0.0
  %3845 = vmatprep.subr.mxu0 0.0
  %3846 = vmatpush1.msra.mxu0 0.0
  %3847 = vmatprep.subr.mxu0 0.0
  %3848 = vmatpush1.msra.mxu0 0.0
  %3849 = vmatprep.subr.mxu0 0.0
  %3850 = vmatpush1.msra.mxu0 0.0
  %3851 = vmatprep.subr.mxu0 0.0
  %3852 = vmatpush1.msra.mxu0 0.0
  %3853 = vmatprep.subr.mxu0 0.0
  %3854 = vmatpush1.msra.mxu0 0.0
  %3855 = vmatprep.subr.mxu0 0.0
  %3856 = vmatpush1.msra.mxu0 0.0
  %3857 = vmatprep.subr.mxu0 0.0
  %3858 = vmatpush1.msra.mxu0 0.0
  %3859 = vmatprep.subr.mxu0 0.0
  %3860 = vmatpush1.msra.mxu0 0.0
  %3861 = vmatprep.subr.mxu0 0.0
  %3862 = vmatpush1.msra.mxu0 0.0
  %3863 = vmatprep.subr.mxu0 0.0
  %3864 = vmatpush1.msra.mxu0 0.0
  %3865 = vmatprep.subr.mxu0 0.0
  %3866 = vmatpush1.msra.mxu0 0.0
  %3867 = vmatprep.subr.mxu0 0.0
  %3868 = vmatpush1.msra.mxu0 0.0
  %3869 = vmatprep.subr.mxu0 0.0
  %3870 = vmatpush1.msra.mxu0 0.0
  %3871 = vmatprep.subr.mxu0 0.0
  %3872 = vmatpush1.msra.mxu0 0.0
  %3873 = vmatprep.subr.mxu0 0.0
  %3874 = vmatpush1.msra.mxu0 0.0
  %3875 = vmatprep.subr.mxu0 0.0
  %3876 = vmatpush1.msra.mxu0 0.0
  %3877 = vmatprep.subr.mxu0 0.0
  %3878 = vmatpush1.msra.mxu0 0.0
  %3879 = vmatprep.mubr.f32.mxu0 0.0
  %3880 = vmatmul.mubr.f32.gmra.mrb[0].mxu0 %v3799
  %v3881 = vpop.f32.mrb[0].mxu0
  %v3882 = vadd.f32 0.0, %v3881
  %v3883 = vpop.f32.mrb[0].mxu0
  %v3884 = vadd.f32 0.0, %v3883
  %3885 = vdwg.mxu0
  %3886 = vmatprep.subr.mxu0 %v3807
  %3887 = vmatpush1.msra.mxu0 %v3805
  %3888 = vmatprep.subr.mxu0 0.0
  %3889 = vmatpush1.msra.mxu0 0.0
  %3890 = vmatprep.subr.mxu0 0.0
  %3891 = vmatpush1.msra.mxu0 0.0
  %3892 = vmatprep.subr.mxu0 0.0
  %3893 = vmatpush1.msra.mxu0 0.0
  %3894 = vmatprep.subr.mxu0 0.0
  %3895 = vmatpush1.msra.mxu0 0.0
  %3896 = vmatprep.subr.mxu0 0.0
  %3897 = vmatpush1.msra.mxu0 0.0
  %3898 = vmatprep.subr.mxu0 0.0
  %3899 = vmatpush1.msra.mxu0 0.0
  %3900 = vmatprep.subr.mxu0 0.0
  %3901 = vmatpush1.msra.mxu0 0.0
  %3902 = vmatprep.subr.mxu0 0.0
  %3903 = vmatpush1.msra.mxu0 0.0
  %3904 = vmatprep.subr.mxu0 0.0
  %3905 = vmatpush1.msra.mxu0 0.0
  %3906 = vmatprep.subr.mxu0 0.0
  %3907 = vmatpush1.msra.mxu0 0.0
  %3908 = vmatprep.subr.mxu0 0.0
  %3909 = vmatpush1.msra.mxu0 0.0
  %3910 = vmatprep.subr.mxu0 0.0
  %3911 = vmatpush1.msra.mxu0 0.0
  %3912 = vmatprep.subr.mxu0 0.0
  %3913 = vmatpush1.msra.mxu0 0.0
  %3914 = vmatprep.subr.mxu0 0.0
  %3915 = vmatpush1.msra.mxu0 0.0
  %3916 = vmatprep.subr.mxu0 0.0
  %3917 = vmatpush1.msra.mxu0 0.0
  %3918 = vmatprep.subr.mxu0 0.0
  %3919 = vmatpush1.msra.mxu0 0.0
  %3920 = vmatprep.subr.mxu0 0.0
  %3921 = vmatpush1.msra.mxu0 0.0
  %3922 = vmatprep.subr.mxu0 0.0
  %3923 = vmatpush1.msra.mxu0 0.0
  %3924 = vmatprep.subr.mxu0 0.0
  %3925 = vmatpush1.msra.mxu0 0.0
  %3926 = vmatprep.subr.mxu0 0.0
  %3927 = vmatpush1.msra.mxu0 0.0
  %3928 = vmatprep.subr.mxu0 0.0
  %3929 = vmatpush1.msra.mxu0 0.0
  %3930 = vmatprep.subr.mxu0 0.0
  %3931 = vmatpush1.msra.mxu0 0.0
  %3932 = vmatprep.subr.mxu0 0.0
  %3933 = vmatpush1.msra.mxu0 0.0
  %3934 = vmatprep.subr.mxu0 0.0
  %3935 = vmatpush1.msra.mxu0 0.0
  %3936 = vmatprep.subr.mxu0 0.0
  %3937 = vmatpush1.msra.mxu0 0.0
  %3938 = vmatprep.subr.mxu0 0.0
  %3939 = vmatpush1.msra.mxu0 0.0
  %3940 = vmatprep.subr.mxu0 0.0
  %3941 = vmatpush1.msra.mxu0 0.0
  %3942 = vmatprep.subr.mxu0 0.0
  %3943 = vmatpush1.msra.mxu0 0.0
  %3944 = vmatprep.subr.mxu0 0.0
  %3945 = vmatpush1.msra.mxu0 0.0
  %3946 = vmatprep.subr.mxu0 0.0
  %3947 = vmatpush1.msra.mxu0 0.0
  %3948 = vmatprep.subr.mxu0 0.0
  %3949 = vmatpush1.msra.mxu0 0.0
  %3950 = vmatprep.mubr.f32.mxu0 0.0
  %3951 = vmatmul.mubr.f32.gmra.mrb[0].mxu0 %v3799
  %v3952 = vpop.f32.mrb[0].mxu0
  %v3953 = vadd.f32 0.0, %v3952
  %v3954 = vpop.f32.mrb[0].mxu0
  %v3955 = vadd.f32 0.0, %v3954
  %3956 = vdwg.mxu0
  %3957 = vmatprep.subr.mxu0 %v3811
  %3958 = vmatpush1.msra.mxu0 %v3809
  %3959 = vmatprep.subr.mxu0 0.0
  %3960 = vmatpush1.msra.mxu0 0.0
  %3961 = vmatprep.subr.mxu0 0.0
  %3962 = vmatpush1.msra.mxu0 0.0
  %3963 = vmatprep.subr.mxu0 0.0
  %3964 = vmatpush1.msra.mxu0 0.0
  %3965 = vmatprep.subr.mxu0 0.0
  %3966 = vmatpush1.msra.mxu0 0.0
  %3967 = vmatprep.subr.mxu0 0.0
  %3968 = vmatpush1.msra.mxu0 0.0
  %3969 = vmatprep.subr.mxu0 0.0
  %3970 = vmatpush1.msra.mxu0 0.0
  %3971 = vmatprep.subr.mxu0 0.0
  %3972 = vmatpush1.msra.mxu0 0.0
  %3973 = vmatprep.subr.mxu0 0.0
  %3974 = vmatpush1.msra.mxu0 0.0
  %3975 = vmatprep.subr.mxu0 0.0
  %3976 = vmatpush1.msra.mxu0 0.0
  %3977 = vmatprep.subr.mxu0 0.0
  %3978 = vmatpush1.msra.mxu0 0.0
  %3979 = vmatprep.subr.mxu0 0.0
  %3980 = vmatpush1.msra.mxu0 0.0
  %3981 = vmatprep.subr.mxu0 0.0
  %3982 = vmatpush1.msra.mxu0 0.0
  %3983 = vmatprep.subr.mxu0 0.0
  %3984 = vmatpush1.msra.mxu0 0.0
  %3985 = vmatprep.subr.mxu0 0.0
  %3986 = vmatpush1.msra.mxu0 0.0
  %3987 = vmatprep.subr.mxu0 0.0
  %3988 = vmatpush1.msra.mxu0 0.0
  %3989 = vmatprep.subr.mxu0 0.0
  %3990 = vmatpush1.msra.mxu0 0.0
  %3991 = vmatprep.subr.mxu0 0.0
  %3992 = vmatpush1.msra.mxu0 0.0
  %3993 = vmatprep.subr.mxu0 0.0
  %3994 = vmatpush1.msra.mxu0 0.0
  %3995 = vmatprep.subr.mxu0 0.0
  %3996 = vmatpush1.msra.mxu0 0.0
  %3997 = vmatprep.subr.mxu0 0.0
  %3998 = vmatpush1.msra.mxu0 0.0
  %3999 = vmatprep.subr.mxu0 0.0
  %4000 = vmatpush1.msra.mxu0 0.0
  %4001 = vmatprep.subr.mxu0 0.0
  %4002 = vmatpush1.msra.mxu0 0.0
  %4003 = vmatprep.subr.mxu0 0.0
  %4004 = vmatpush1.msra.mxu0 0.0
  %4005 = vmatprep.subr.mxu0 0.0
  %4006 = vmatpush1.msra.mxu0 0.0
  %4007 = vmatprep.subr.mxu0 0.0
  %4008 = vmatpush1.msra.mxu0 0.0
  %4009 = vmatprep.subr.mxu0 0.0
  %4010 = vmatpush1.msra.mxu0 0.0
  %4011 = vmatprep.subr.mxu0 0.0
  %4012 = vmatpush1.msra.mxu0 0.0
  %4013 = vmatprep.subr.mxu0 0.0
  %4014 = vmatpush1.msra.mxu0 0.0
  %4015 = vmatprep.subr.mxu0 0.0
  %4016 = vmatpush1.msra.mxu0 0.0
  %4017 = vmatprep.subr.mxu0 0.0
  %4018 = vmatpush1.msra.mxu0 0.0
  %4019 = vmatprep.subr.mxu0 0.0
  %4020 = vmatpush1.msra.mxu0 0.0
  %4021 = vmatprep.mubr.f32.mxu0 0.0
  %4022 = vmatmul.mubr.f32.gmra.mrb[0].mxu0 %v3799
  %v4023 = vpop.f32.mrb[0].mxu0
  %v4024 = vadd.f32 0.0, %v4023
  %v4025 = vpop.f32.mrb[0].mxu0
  %v4026 = vadd.f32 0.0, %v4025
  %4027 = vdwg.mxu0
  %4028 = vmatprep.subr.mxu0 0.0
  %4029 = vmatpush1.msra.mxu0 %v3813
  %4030 = vmatprep.subr.mxu0 0.0
  %4031 = vmatpush1.msra.mxu0 0.0
  %4032 = vmatprep.subr.mxu0 0.0
  %4033 = vmatpush1.msra.mxu0 0.0
  %4034 = vmatprep.subr.mxu0 0.0
  %4035 = vmatpush1.msra.mxu0 0.0
  %4036 = vmatprep.subr.mxu0 0.0
  %4037 = vmatpush1.msra.mxu0 0.0
  %4038 = vmatprep.subr.mxu0 0.0
  %4039 = vmatpush1.msra.mxu0 0.0
  %4040 = vmatprep.subr.mxu0 0.0
  %4041 = vmatpush1.msra.mxu0 0.0
  %4042 = vmatprep.subr.mxu0 0.0
  %4043 = vmatpush1.msra.mxu0 0.0
  %4044 = vmatprep.subr.mxu0 0.0
  %4045 = vmatpush1.msra.mxu0 0.0
  %4046 = vmatprep.subr.mxu0 0.0
  %4047 = vmatpush1.msra.mxu0 0.0
  %4048 = vmatprep.subr.mxu0 0.0
  %4049 = vmatpush1.msra.mxu0 0.0
  %4050 = vmatprep.subr.mxu0 0.0
  %4051 = vmatpush1.msra.mxu0 0.0
  %4052 = vmatprep.subr.mxu0 0.0
  %4053 = vmatpush1.msra.mxu0 0.0
  %4054 = vmatprep.subr.mxu0 0.0
  %4055 = vmatpush1.msra.mxu0 0.0
  %4056 = vmatprep.subr.mxu0 0.0
  %4057 = vmatpush1.msra.mxu0 0.0
  %4058 = vmatprep.subr.mxu0 0.0
  %4059 = vmatpush1.msra.mxu0 0.0
  %4060 = vmatprep.subr.mxu0 0.0
  %4061 = vmatpush1.msra.mxu0 0.0
  %4062 = vmatprep.subr.mxu0 0.0
  %4063 = vmatpush1.msra.mxu0 0.0
  %4064 = vmatprep.subr.mxu0 0.0
  %4065 = vmatpush1.msra.mxu0 0.0
  %4066 = vmatprep.subr.mxu0 0.0
  %4067 = vmatpush1.msra.mxu0 0.0
  %4068 = vmatprep.subr.mxu0 0.0
  %4069 = vmatpush1.msra.mxu0 0.0
  %4070 = vmatprep.subr.mxu0 0.0
  %4071 = vmatpush1.msra.mxu0 0.0
  %4072 = vmatprep.subr.mxu0 0.0
  %4073 = vmatpush1.msra.mxu0 0.0
  %4074 = vmatprep.subr.mxu0 0.0
  %4075 = vmatpush1.msra.mxu0 0.0
  %4076 = vmatprep.subr.mxu0 0.0
  %4077 = vmatpush1.msra.mxu0 0.0
  %4078 = vmatprep.subr.mxu0 0.0
  %4079 = vmatpush1.msra.mxu0 0.0
  %4080 = vmatprep.subr.mxu0 0.0
  %4081 = vmatpush1.msra.mxu0 0.0
  %4082 = vmatprep.subr.mxu0 0.0
  %4083 = vmatpush1.msra.mxu0 0.0
  %4084 = vmatprep.subr.mxu0 0.0
  %4085 = vmatpush1.msra.mxu0 0.0
  %4086 = vmatprep.subr.mxu0 0.0
  %4087 = vmatpush1.msra.mxu0 0.0
  %4088 = vmatprep.subr.mxu0 0.0
  %4089 = vmatpush1.msra.mxu0 0.0
  %4090 = vmatprep.subr.mxu0 0.0
  %4091 = vmatpush1.msra.mxu0 0.0
  %4092 = vmatprep.mubr.f32.mxu0 0.0
  %4093 = vmatmul.mubr.f32.gmra.mrb[0].mxu0 %v3799
  %v4094 = vpop.f32.mrb[0].mxu0
  %v4095 = vadd.f32 0.0, %v4094
  %v4096 = vpop.f32.mrb[0].mxu0
  %4097 = vdwg.mxu0
  %v4098 = vadd.f32 %v3769, %v3882
  %v4099 = vadd.f32 %v3770, %v3884
  %v4100 = vadd.f32 %v3771, %v3953
  %v4101 = vadd.f32 %v3772, %v3955
  %v4102 = vadd.f32 %v3773, %v4024
  %v4103 = vadd.f32 %v3774, %v4026
  %v4104 = vadd.f32 %v3775, %v4095
  %4105 = vrot.lane.b32.xlu0 %v513, 73
  %v4106 = vpop.permute.xlu0 %4105
  %4107 = vrot.lane.b32.xlu0 %v506, 87
  %v4108 = vpop.permute.xlu0 %4107
  %4109 = vrot.lane.b32.xlu0 %v507, 87
  %v4110 = vpop.permute.xlu0 %4109
  %4111 = vrot.lane.b32.xlu0 %v508, 87
  %v4112 = vpop.permute.xlu0 %4111
  %4113 = vrot.lane.b32.xlu0 %v509, 87
  %v4114 = vpop.permute.xlu0 %4113
  %4115 = vrot.lane.b32.xlu0 %v510, 87
  %v4116 = vpop.permute.xlu0 %4115
  %4117 = vrot.lane.b32.xlu0 %v511, 87
  %v4118 = vpop.permute.xlu0 %4117
  %4119 = vrot.lane.b32.xlu0 %v512, 87
  %v4120 = vpop.permute.xlu0 %4119
  %vm4121 = vcmask 711680
  %v4122 = vsel %vm4121, %v4108, %v4110
  %v4123 = vsel %vm4121, %v4110, %v4112
  %v4124 = vsel %vm4121, %v4112, %v4114
  %v4125 = vsel %vm4121, %v4114, %v4116
  %v4126 = vsel %vm4121, %v4116, %v4118
  %v4127 = vsel %vm4121, %v4118, %v4120
  %v4128 = vsel %vm545, %v4106, 0
  %v4130 = vsel %vm412, %v4122, 0
  %v4132 = vsel %vm412, %v4123, 0
  %v4134 = vsel %vm412, %v4124, 0
  %v4136 = vsel %vm412, %v4125, 0
  %v4138 = vsel %vm412, %v4126, 0
  %v4140 = vsel %vm412, %v4127, 0
  %v4142 = vsel %vm412, %v4120, 0
  %4144 = vmatprep.subr.mxu0 %v4132
  %4145 = vmatpush1.msra.mxu0 %v4130
  %4146 = vmatprep.subr.mxu0 0.0
  %4147 = vmatpush1.msra.mxu0 0.0
  %4148 = vmatprep.subr.mxu0 0.0
  %4149 = vmatpush1.msra.mxu0 0.0
  %4150 = vmatprep.subr.mxu0 0.0
  %4151 = vmatpush1.msra.mxu0 0.0
  %4152 = vmatprep.subr.mxu0 0.0
  %4153 = vmatpush1.msra.mxu0 0.0
  %4154 = vmatprep.subr.mxu0 0.0
  %4155 = vmatpush1.msra.mxu0 0.0
  %4156 = vmatprep.subr.mxu0 0.0
  %4157 = vmatpush1.msra.mxu0 0.0
  %4158 = vmatprep.subr.mxu0 0.0
  %4159 = vmatpush1.msra.mxu0 0.0
  %4160 = vmatprep.subr.mxu0 0.0
  %4161 = vmatpush1.msra.mxu0 0.0
  %4162 = vmatprep.subr.mxu0 0.0
  %4163 = vmatpush1.msra.mxu0 0.0
  %4164 = vmatprep.subr.mxu0 0.0
  %4165 = vmatpush1.msra.mxu0 0.0
  %4166 = vmatprep.subr.mxu0 0.0
  %4167 = vmatpush1.msra.mxu0 0.0
  %4168 = vmatprep.subr.mxu0 0.0
  %4169 = vmatpush1.msra.mxu0 0.0
  %4170 = vmatprep.subr.mxu0 0.0
  %4171 = vmatpush1.msra.mxu0 0.0
  %4172 = vmatprep.subr.mxu0 0.0
  %4173 = vmatpush1.msra.mxu0 0.0
  %4174 = vmatprep.subr.mxu0 0.0
  %4175 = vmatpush1.msra.mxu0 0.0
  %4176 = vmatprep.subr.mxu0 0.0
  %4177 = vmatpush1.msra.mxu0 0.0
  %4178 = vmatprep.subr.mxu0 0.0
  %4179 = vmatpush1.msra.mxu0 0.0
  %4180 = vmatprep.subr.mxu0 0.0
  %4181 = vmatpush1.msra.mxu0 0.0
  %4182 = vmatprep.subr.mxu0 0.0
  %4183 = vmatpush1.msra.mxu0 0.0
  %4184 = vmatprep.subr.mxu0 0.0
  %4185 = vmatpush1.msra.mxu0 0.0
  %4186 = vmatprep.subr.mxu0 0.0
  %4187 = vmatpush1.msra.mxu0 0.0
  %4188 = vmatprep.subr.mxu0 0.0
  %4189 = vmatpush1.msra.mxu0 0.0
  %4190 = vmatprep.subr.mxu0 0.0
  %4191 = vmatpush1.msra.mxu0 0.0
  %4192 = vmatprep.subr.mxu0 0.0
  %4193 = vmatpush1.msra.mxu0 0.0
  %4194 = vmatprep.subr.mxu0 0.0
  %4195 = vmatpush1.msra.mxu0 0.0
  %4196 = vmatprep.subr.mxu0 0.0
  %4197 = vmatpush1.msra.mxu0 0.0
  %4198 = vmatprep.subr.mxu0 0.0
  %4199 = vmatpush1.msra.mxu0 0.0
  %4200 = vmatprep.subr.mxu0 0.0
  %4201 = vmatpush1.msra.mxu0 0.0
  %4202 = vmatprep.subr.mxu0 0.0
  %4203 = vmatpush1.msra.mxu0 0.0
  %4204 = vmatprep.subr.mxu0 0.0
  %4205 = vmatpush1.msra.mxu0 0.0
  %4206 = vmatprep.subr.mxu0 0.0
  %4207 = vmatpush1.msra.mxu0 0.0
  %4208 = vmatprep.mubr.f32.mxu0 0.0
  %4209 = vmatmul.mubr.f32.gmra.mrb[0].mxu0 %v4128
  %v4210 = vpop.f32.mrb[0].mxu0
  %v4211 = vadd.f32 0.0, %v4210
  %v4212 = vpop.f32.mrb[0].mxu0
  %v4213 = vadd.f32 0.0, %v4212
  %4214 = vdwg.mxu0
  %4215 = vmatprep.subr.mxu0 %v4136
  %4216 = vmatpush1.msra.mxu0 %v4134
  %4217 = vmatprep.subr.mxu0 0.0
  %4218 = vmatpush1.msra.mxu0 0.0
  %4219 = vmatprep.subr.mxu0 0.0
  %4220 = vmatpush1.msra.mxu0 0.0
  %4221 = vmatprep.subr.mxu0 0.0
  %4222 = vmatpush1.msra.mxu0 0.0
  %4223 = vmatprep.subr.mxu0 0.0
  %4224 = vmatpush1.msra.mxu0 0.0
  %4225 = vmatprep.subr.mxu0 0.0
  %4226 = vmatpush1.msra.mxu0 0.0
  %4227 = vmatprep.subr.mxu0 0.0
  %4228 = vmatpush1.msra.mxu0 0.0
  %4229 = vmatprep.subr.mxu0 0.0
  %4230 = vmatpush1.msra.mxu0 0.0
  %4231 = vmatprep.subr.mxu0 0.0
  %4232 = vmatpush1.msra.mxu0 0.0
  %4233 = vmatprep.subr.mxu0 0.0
  %4234 = vmatpush1.msra.mxu0 0.0
  %4235 = vmatprep.subr.mxu0 0.0
  %4236 = vmatpush1.msra.mxu0 0.0
  %4237 = vmatprep.subr.mxu0 0.0
  %4238 = vmatpush1.msra.mxu0 0.0
  %4239 = vmatprep.subr.mxu0 0.0
  %4240 = vmatpush1.msra.mxu0 0.0
  %4241 = vmatprep.subr.mxu0 0.0
  %4242 = vmatpush1.msra.mxu0 0.0
  %4243 = vmatprep.subr.mxu0 0.0
  %4244 = vmatpush1.msra.mxu0 0.0
  %4245 = vmatprep.subr.mxu0 0.0
  %4246 = vmatpush1.msra.mxu0 0.0
  %4247 = vmatprep.subr.mxu0 0.0
  %4248 = vmatpush1.msra.mxu0 0.0
  %4249 = vmatprep.subr.mxu0 0.0
  %4250 = vmatpush1.msra.mxu0 0.0
  %4251 = vmatprep.subr.mxu0 0.0
  %4252 = vmatpush1.msra.mxu0 0.0
  %4253 = vmatprep.subr.mxu0 0.0
  %4254 = vmatpush1.msra.mxu0 0.0
  %4255 = vmatprep.subr.mxu0 0.0
  %4256 = vmatpush1.msra.mxu0 0.0
  %4257 = vmatprep.subr.mxu0 0.0
  %4258 = vmatpush1.msra.mxu0 0.0
  %4259 = vmatprep.subr.mxu0 0.0
  %4260 = vmatpush1.msra.mxu0 0.0
  %4261 = vmatprep.subr.mxu0 0.0
  %4262 = vmatpush1.msra.mxu0 0.0
  %4263 = vmatprep.subr.mxu0 0.0
  %4264 = vmatpush1.msra.mxu0 0.0
  %4265 = vmatprep.subr.mxu0 0.0
  %4266 = vmatpush1.msra.mxu0 0.0
  %4267 = vmatprep.subr.mxu0 0.0
  %4268 = vmatpush1.msra.mxu0 0.0
  %4269 = vmatprep.subr.mxu0 0.0
  %4270 = vmatpush1.msra.mxu0 0.0
  %4271 = vmatprep.subr.mxu0 0.0
  %4272 = vmatpush1.msra.mxu0 0.0
  %4273 = vmatprep.subr.mxu0 0.0
  %4274 = vmatpush1.msra.mxu0 0.0
  %4275 = vmatprep.subr.mxu0 0.0
  %4276 = vmatpush1.msra.mxu0 0.0
  %4277 = vmatprep.subr.mxu0 0.0
  %4278 = vmatpush1.msra.mxu0 0.0
  %4279 = vmatprep.mubr.f32.mxu0 0.0
  %4280 = vmatmul.mubr.f32.gmra.mrb[0].mxu0 %v4128
  %v4281 = vpop.f32.mrb[0].mxu0
  %v4282 = vadd.f32 0.0, %v4281
  %v4283 = vpop.f32.mrb[0].mxu0
  %v4284 = vadd.f32 0.0, %v4283
  %4285 = vdwg.mxu0
  %4286 = vmatprep.subr.mxu0 %v4140
  %4287 = vmatpush1.msra.mxu0 %v4138
  %4288 = vmatprep.subr.mxu0 0.0
  %4289 = vmatpush1.msra.mxu0 0.0
  %4290 = vmatprep.subr.mxu0 0.0
  %4291 = vmatpush1.msra.mxu0 0.0
  %4292 = vmatprep.subr.mxu0 0.0
  %4293 = vmatpush1.msra.mxu0 0.0
  %4294 = vmatprep.subr.mxu0 0.0
  %4295 = vmatpush1.msra.mxu0 0.0
  %4296 = vmatprep.subr.mxu0 0.0
  %4297 = vmatpush1.msra.mxu0 0.0
  %4298 = vmatprep.subr.mxu0 0.0
  %4299 = vmatpush1.msra.mxu0 0.0
  %4300 = vmatprep.subr.mxu0 0.0
  %4301 = vmatpush1.msra.mxu0 0.0
  %4302 = vmatprep.subr.mxu0 0.0
  %4303 = vmatpush1.msra.mxu0 0.0
  %4304 = vmatprep.subr.mxu0 0.0
  %4305 = vmatpush1.msra.mxu0 0.0
  %4306 = vmatprep.subr.mxu0 0.0
  %4307 = vmatpush1.msra.mxu0 0.0
  %4308 = vmatprep.subr.mxu0 0.0
  %4309 = vmatpush1.msra.mxu0 0.0
  %4310 = vmatprep.subr.mxu0 0.0
  %4311 = vmatpush1.msra.mxu0 0.0
  %4312 = vmatprep.subr.mxu0 0.0
  %4313 = vmatpush1.msra.mxu0 0.0
  %4314 = vmatprep.subr.mxu0 0.0
  %4315 = vmatpush1.msra.mxu0 0.0
  %4316 = vmatprep.subr.mxu0 0.0
  %4317 = vmatpush1.msra.mxu0 0.0
  %4318 = vmatprep.subr.mxu0 0.0
  %4319 = vmatpush1.msra.mxu0 0.0
  %4320 = vmatprep.subr.mxu0 0.0
  %4321 = vmatpush1.msra.mxu0 0.0
  %4322 = vmatprep.subr.mxu0 0.0
  %4323 = vmatpush1.msra.mxu0 0.0
  %4324 = vmatprep.subr.mxu0 0.0
  %4325 = vmatpush1.msra.mxu0 0.0
  %4326 = vmatprep.subr.mxu0 0.0
  %4327 = vmatpush1.msra.mxu0 0.0
  %4328 = vmatprep.subr.mxu0 0.0
  %4329 = vmatpush1.msra.mxu0 0.0
  %4330 = vmatprep.subr.mxu0 0.0
  %4331 = vmatpush1.msra.mxu0 0.0
  %4332 = vmatprep.subr.mxu0 0.0
  %4333 = vmatpush1.msra.mxu0 0.0
  %4334 = vmatprep.subr.mxu0 0.0
  %4335 = vmatpush1.msra.mxu0 0.0
  %4336 = vmatprep.subr.mxu0 0.0
  %4337 = vmatpush1.msra.mxu0 0.0
  %4338 = vmatprep.subr.mxu0 0.0
  %4339 = vmatpush1.msra.mxu0 0.0
  %4340 = vmatprep.subr.mxu0 0.0
  %4341 = vmatpush1.msra.mxu0 0.0
  %4342 = vmatprep.subr.mxu0 0.0
  %4343 = vmatpush1.msra.mxu0 0.0
  %4344 = vmatprep.subr.mxu0 0.0
  %4345 = vmatpush1.msra.mxu0 0.0
  %4346 = vmatprep.subr.mxu0 0.0
  %4347 = vmatpush1.msra.mxu0 0.0
  %4348 = vmatprep.subr.mxu0 0.0
  %4349 = vmatpush1.msra.mxu0 0.0
  %4350 = vmatprep.mubr.f32.mxu0 0.0
  %4351 = vmatmul.mubr.f32.gmra.mrb[0].mxu0 %v4128
  %v4352 = vpop.f32.mrb[0].mxu0
  %v4353 = vadd.f32 0.0, %v4352
  %v4354 = vpop.f32.mrb[0].mxu0
  %v4355 = vadd.f32 0.0, %v4354
  %4356 = vdwg.mxu0
  %4357 = vmatprep.subr.mxu0 0.0
  %4358 = vmatpush1.msra.mxu0 %v4142
  %4359 = vmatprep.subr.mxu0 0.0
  %4360 = vmatpush1.msra.mxu0 0.0
  %4361 = vmatprep.subr.mxu0 0.0
  %4362 = vmatpush1.msra.mxu0 0.0
  %4363 = vmatprep.subr.mxu0 0.0
  %4364 = vmatpush1.msra.mxu0 0.0
  %4365 = vmatprep.subr.mxu0 0.0
  %4366 = vmatpush1.msra.mxu0 0.0
  %4367 = vmatprep.subr.mxu0 0.0
  %4368 = vmatpush1.msra.mxu0 0.0
  %4369 = vmatprep.subr.mxu0 0.0
  %4370 = vmatpush1.msra.mxu0 0.0
  %4371 = vmatprep.subr.mxu0 0.0
  %4372 = vmatpush1.msra.mxu0 0.0
  %4373 = vmatprep.subr.mxu0 0.0
  %4374 = vmatpush1.msra.mxu0 0.0
  %4375 = vmatprep.subr.mxu0 0.0
  %4376 = vmatpush1.msra.mxu0 0.0
  %4377 = vmatprep.subr.mxu0 0.0
  %4378 = vmatpush1.msra.mxu0 0.0
  %4379 = vmatprep.subr.mxu0 0.0
  %4380 = vmatpush1.msra.mxu0 0.0
  %4381 = vmatprep.subr.mxu0 0.0
  %4382 = vmatpush1.msra.mxu0 0.0
  %4383 = vmatprep.subr.mxu0 0.0
  %4384 = vmatpush1.msra.mxu0 0.0
  %4385 = vmatprep.subr.mxu0 0.0
  %4386 = vmatpush1.msra.mxu0 0.0
  %4387 = vmatprep.subr.mxu0 0.0
  %4388 = vmatpush1.msra.mxu0 0.0
  %4389 = vmatprep.subr.mxu0 0.0
  %4390 = vmatpush1.msra.mxu0 0.0
  %4391 = vmatprep.subr.mxu0 0.0
  %4392 = vmatpush1.msra.mxu0 0.0
  %4393 = vmatprep.subr.mxu0 0.0
  %4394 = vmatpush1.msra.mxu0 0.0
  %4395 = vmatprep.subr.mxu0 0.0
  %4396 = vmatpush1.msra.mxu0 0.0
  %4397 = vmatprep.subr.mxu0 0.0
  %4398 = vmatpush1.msra.mxu0 0.0
  %4399 = vmatprep.subr.mxu0 0.0
  %4400 = vmatpush1.msra.mxu0 0.0
  %4401 = vmatprep.subr.mxu0 0.0
  %4402 = vmatpush1.msra.mxu0 0.0
  %4403 = vmatprep.subr.mxu0 0.0
  %4404 = vmatpush1.msra.mxu0 0.0
  %4405 = vmatprep.subr.mxu0 0.0
  %4406 = vmatpush1.msra.mxu0 0.0
  %4407 = vmatprep.subr.mxu0 0.0
  %4408 = vmatpush1.msra.mxu0 0.0
  %4409 = vmatprep.subr.mxu0 0.0
  %4410 = vmatpush1.msra.mxu0 0.0
  %4411 = vmatprep.subr.mxu0 0.0
  %4412 = vmatpush1.msra.mxu0 0.0
  %4413 = vmatprep.subr.mxu0 0.0
  %4414 = vmatpush1.msra.mxu0 0.0
  %4415 = vmatprep.subr.mxu0 0.0
  %4416 = vmatpush1.msra.mxu0 0.0
  %4417 = vmatprep.subr.mxu0 0.0
  %4418 = vmatpush1.msra.mxu0 0.0
  %4419 = vmatprep.subr.mxu0 0.0
  %4420 = vmatpush1.msra.mxu0 0.0
  %4421 = vmatprep.mubr.f32.mxu0 0.0
  %4422 = vmatmul.mubr.f32.gmra.mrb[0].mxu0 %v4128
  %v4423 = vpop.f32.mrb[0].mxu0
  %v4424 = vadd.f32 0.0, %v4423
  %v4425 = vpop.f32.mrb[0].mxu0
  %4426 = vdwg.mxu0
  %v4427 = vadd.f32 %v4098, %v4211
  %v4428 = vadd.f32 %v4099, %v4213
  %v4429 = vadd.f32 %v4100, %v4282
  %v4430 = vadd.f32 %v4101, %v4284
  %v4431 = vadd.f32 %v4102, %v4353
  %v4432 = vadd.f32 %v4103, %v4355
  %v4433 = vadd.f32 %v4104, %v4424
  %4434 = vrot.lane.b32.xlu0 %v513, 68
  %v4435 = vpop.permute.xlu0 %4434
  %4436 = vrot.lane.b32.xlu0 %v506, 86
  %v4437 = vpop.permute.xlu0 %4436
  %4438 = vrot.lane.b32.xlu0 %v507, 86
  %v4439 = vpop.permute.xlu0 %4438
  %4440 = vrot.lane.b32.xlu0 %v508, 86
  %v4441 = vpop.permute.xlu0 %4440
  %4442 = vrot.lane.b32.xlu0 %v509, 86
  %v4443 = vpop.permute.xlu0 %4442
  %4444 = vrot.lane.b32.xlu0 %v510, 86
  %v4445 = vpop.permute.xlu0 %4444
  %4446 = vrot.lane.b32.xlu0 %v511, 86
  %v4447 = vpop.permute.xlu0 %4446
  %4448 = vrot.lane.b32.xlu0 %v512, 86
  %v4449 = vpop.permute.xlu0 %4448
  %vm4450 = vcmask 703488
  %v4451 = vsel %vm4450, %v4437, %v4439
  %v4452 = vsel %vm4450, %v4439, %v4441
  %v4453 = vsel %vm4450, %v4441, %v4443
  %v4454 = vsel %vm4450, %v4443, %v4445
  %v4455 = vsel %vm4450, %v4445, %v4447
  %v4456 = vsel %vm4450, %v4447, %v4449
  %v4457 = vsel %vm545, %v4435, 0
  %v4459 = vsel %vm412, %v4451, 0
  %v4461 = vsel %vm412, %v4452, 0
  %v4463 = vsel %vm412, %v4453, 0
  %v4465 = vsel %vm412, %v4454, 0
  %v4467 = vsel %vm412, %v4455, 0
  %v4469 = vsel %vm412, %v4456, 0
  %v4471 = vsel %vm412, %v4449, 0
  %4473 = vmatprep.subr.mxu0 %v4461
  %4474 = vmatpush1.msra.mxu0 %v4459
  %4475 = vmatprep.subr.mxu0 0.0
  %4476 = vmatpush1.msra.mxu0 0.0
  %4477 = vmatprep.subr.mxu0 0.0
  %4478 = vmatpush1.msra.mxu0 0.0
  %4479 = vmatprep.subr.mxu0 0.0
  %4480 = vmatpush1.msra.mxu0 0.0
  %4481 = vmatprep.subr.mxu0 0.0
  %4482 = vmatpush1.msra.mxu0 0.0
  %4483 = vmatprep.subr.mxu0 0.0
  %4484 = vmatpush1.msra.mxu0 0.0
  %4485 = vmatprep.subr.mxu0 0.0
  %4486 = vmatpush1.msra.mxu0 0.0
  %4487 = vmatprep.subr.mxu0 0.0
  %4488 = vmatpush1.msra.mxu0 0.0
  %4489 = vmatprep.subr.mxu0 0.0
  %4490 = vmatpush1.msra.mxu0 0.0
  %4491 = vmatprep.subr.mxu0 0.0
  %4492 = vmatpush1.msra.mxu0 0.0
  %4493 = vmatprep.subr.mxu0 0.0
  %4494 = vmatpush1.msra.mxu0 0.0
  %4495 = vmatprep.subr.mxu0 0.0
  %4496 = vmatpush1.msra.mxu0 0.0
  %4497 = vmatprep.subr.mxu0 0.0
  %4498 = vmatpush1.msra.mxu0 0.0
  %4499 = vmatprep.subr.mxu0 0.0
  %4500 = vmatpush1.msra.mxu0 0.0
  %4501 = vmatprep.subr.mxu0 0.0
  %4502 = vmatpush1.msra.mxu0 0.0
  %4503 = vmatprep.subr.mxu0 0.0
  %4504 = vmatpush1.msra.mxu0 0.0
  %4505 = vmatprep.subr.mxu0 0.0
  %4506 = vmatpush1.msra.mxu0 0.0
  %4507 = vmatprep.subr.mxu0 0.0
  %4508 = vmatpush1.msra.mxu0 0.0
  %4509 = vmatprep.subr.mxu0 0.0
  %4510 = vmatpush1.msra.mxu0 0.0
  %4511 = vmatprep.subr.mxu0 0.0
  %4512 = vmatpush1.msra.mxu0 0.0
  %4513 = vmatprep.subr.mxu0 0.0
  %4514 = vmatpush1.msra.mxu0 0.0
  %4515 = vmatprep.subr.mxu0 0.0
  %4516 = vmatpush1.msra.mxu0 0.0
  %4517 = vmatprep.subr.mxu0 0.0
  %4518 = vmatpush1.msra.mxu0 0.0
  %4519 = vmatprep.subr.mxu0 0.0
  %4520 = vmatpush1.msra.mxu0 0.0
  %4521 = vmatprep.subr.mxu0 0.0
  %4522 = vmatpush1.msra.mxu0 0.0
  %4523 = vmatprep.subr.mxu0 0.0
  %4524 = vmatpush1.msra.mxu0 0.0
  %4525 = vmatprep.subr.mxu0 0.0
  %4526 = vmatpush1.msra.mxu0 0.0
  %4527 = vmatprep.subr.mxu0 0.0
  %4528 = vmatpush1.msra.mxu0 0.0
  %4529 = vmatprep.subr.mxu0 0.0
  %4530 = vmatpush1.msra.mxu0 0.0
  %4531 = vmatprep.subr.mxu0 0.0
  %4532 = vmatpush1.msra.mxu0 0.0
  %4533 = vmatprep.subr.mxu0 0.0
  %4534 = vmatpush1.msra.mxu0 0.0
  %4535 = vmatprep.subr.mxu0 0.0
  %4536 = vmatpush1.msra.mxu0 0.0
  %4537 = vmatprep.mubr.f32.mxu0 0.0
  %4538 = vmatmul.mubr.f32.gmra.mrb[0].mxu0 %v4457
  %v4539 = vpop.f32.mrb[0].mxu0
  %v4540 = vadd.f32 0.0, %v4539
  %v4541 = vpop.f32.mrb[0].mxu0
  %v4542 = vadd.f32 0.0, %v4541
  %4543 = vdwg.mxu0
  %4544 = vmatprep.subr.mxu0 %v4465
  %4545 = vmatpush1.msra.mxu0 %v4463
  %4546 = vmatprep.subr.mxu0 0.0
  %4547 = vmatpush1.msra.mxu0 0.0
  %4548 = vmatprep.subr.mxu0 0.0
  %4549 = vmatpush1.msra.mxu0 0.0
  %4550 = vmatprep.subr.mxu0 0.0
  %4551 = vmatpush1.msra.mxu0 0.0
  %4552 = vmatprep.subr.mxu0 0.0
  %4553 = vmatpush1.msra.mxu0 0.0
  %4554 = vmatprep.subr.mxu0 0.0
  %4555 = vmatpush1.msra.mxu0 0.0
  %4556 = vmatprep.subr.mxu0 0.0
  %4557 = vmatpush1.msra.mxu0 0.0
  %4558 = vmatprep.subr.mxu0 0.0
  %4559 = vmatpush1.msra.mxu0 0.0
  %4560 = vmatprep.subr.mxu0 0.0
  %4561 = vmatpush1.msra.mxu0 0.0
  %4562 = vmatprep.subr.mxu0 0.0
  %4563 = vmatpush1.msra.mxu0 0.0
  %4564 = vmatprep.subr.mxu0 0.0
  %4565 = vmatpush1.msra.mxu0 0.0
  %4566 = vmatprep.subr.mxu0 0.0
  %4567 = vmatpush1.msra.mxu0 0.0
  %4568 = vmatprep.subr.mxu0 0.0
  %4569 = vmatpush1.msra.mxu0 0.0
  %4570 = vmatprep.subr.mxu0 0.0
  %4571 = vmatpush1.msra.mxu0 0.0
  %4572 = vmatprep.subr.mxu0 0.0
  %4573 = vmatpush1.msra.mxu0 0.0
  %4574 = vmatprep.subr.mxu0 0.0
  %4575 = vmatpush1.msra.mxu0 0.0
  %4576 = vmatprep.subr.mxu0 0.0
  %4577 = vmatpush1.msra.mxu0 0.0
  %4578 = vmatprep.subr.mxu0 0.0
  %4579 = vmatpush1.msra.mxu0 0.0
  %4580 = vmatprep.subr.mxu0 0.0
  %4581 = vmatpush1.msra.mxu0 0.0
  %4582 = vmatprep.subr.mxu0 0.0
  %4583 = vmatpush1.msra.mxu0 0.0
  %4584 = vmatprep.subr.mxu0 0.0
  %4585 = vmatpush1.msra.mxu0 0.0
  %4586 = vmatprep.subr.mxu0 0.0
  %4587 = vmatpush1.msra.mxu0 0.0
  %4588 = vmatprep.subr.mxu0 0.0
  %4589 = vmatpush1.msra.mxu0 0.0
  %4590 = vmatprep.subr.mxu0 0.0
  %4591 = vmatpush1.msra.mxu0 0.0
  %4592 = vmatprep.subr.mxu0 0.0
  %4593 = vmatpush1.msra.mxu0 0.0
  %4594 = vmatprep.subr.mxu0 0.0
  %4595 = vmatpush1.msra.mxu0 0.0
  %4596 = vmatprep.subr.mxu0 0.0
  %4597 = vmatpush1.msra.mxu0 0.0
  %4598 = vmatprep.subr.mxu0 0.0
  %4599 = vmatpush1.msra.mxu0 0.0
  %4600 = vmatprep.subr.mxu0 0.0
  %4601 = vmatpush1.msra.mxu0 0.0
  %4602 = vmatprep.subr.mxu0 0.0
  %4603 = vmatpush1.msra.mxu0 0.0
  %4604 = vmatprep.subr.mxu0 0.0
  %4605 = vmatpush1.msra.mxu0 0.0
  %4606 = vmatprep.subr.mxu0 0.0
  %4607 = vmatpush1.msra.mxu0 0.0
  %4608 = vmatprep.mubr.f32.mxu0 0.0
  %4609 = vmatmul.mubr.f32.gmra.mrb[0].mxu0 %v4457
  %v4610 = vpop.f32.mrb[0].mxu0
  %v4611 = vadd.f32 0.0, %v4610
  %v4612 = vpop.f32.mrb[0].mxu0
  %v4613 = vadd.f32 0.0, %v4612
  %4614 = vdwg.mxu0
  %4615 = vmatprep.subr.mxu0 %v4469
  %4616 = vmatpush1.msra.mxu0 %v4467
  %4617 = vmatprep.subr.mxu0 0.0
  %4618 = vmatpush1.msra.mxu0 0.0
  %4619 = vmatprep.subr.mxu0 0.0
  %4620 = vmatpush1.msra.mxu0 0.0
  %4621 = vmatprep.subr.mxu0 0.0
  %4622 = vmatpush1.msra.mxu0 0.0
  %4623 = vmatprep.subr.mxu0 0.0
  %4624 = vmatpush1.msra.mxu0 0.0
  %4625 = vmatprep.subr.mxu0 0.0
  %4626 = vmatpush1.msra.mxu0 0.0
  %4627 = vmatprep.subr.mxu0 0.0
  %4628 = vmatpush1.msra.mxu0 0.0
  %4629 = vmatprep.subr.mxu0 0.0
  %4630 = vmatpush1.msra.mxu0 0.0
  %4631 = vmatprep.subr.mxu0 0.0
  %4632 = vmatpush1.msra.mxu0 0.0
  %4633 = vmatprep.subr.mxu0 0.0
  %4634 = vmatpush1.msra.mxu0 0.0
  %4635 = vmatprep.subr.mxu0 0.0
  %4636 = vmatpush1.msra.mxu0 0.0
  %4637 = vmatprep.subr.mxu0 0.0
  %4638 = vmatpush1.msra.mxu0 0.0
  %4639 = vmatprep.subr.mxu0 0.0
  %4640 = vmatpush1.msra.mxu0 0.0
  %4641 = vmatprep.subr.mxu0 0.0
  %4642 = vmatpush1.msra.mxu0 0.0
  %4643 = vmatprep.subr.mxu0 0.0
  %4644 = vmatpush1.msra.mxu0 0.0
  %4645 = vmatprep.subr.mxu0 0.0
  %4646 = vmatpush1.msra.mxu0 0.0
  %4647 = vmatprep.subr.mxu0 0.0
  %4648 = vmatpush1.msra.mxu0 0.0
  %4649 = vmatprep.subr.mxu0 0.0
  %4650 = vmatpush1.msra.mxu0 0.0
  %4651 = vmatprep.subr.mxu0 0.0
  %4652 = vmatpush1.msra.mxu0 0.0
  %4653 = vmatprep.subr.mxu0 0.0
  %4654 = vmatpush1.msra.mxu0 0.0
  %4655 = vmatprep.subr.mxu0 0.0
  %4656 = vmatpush1.msra.mxu0 0.0
  %4657 = vmatprep.subr.mxu0 0.0
  %4658 = vmatpush1.msra.mxu0 0.0
  %4659 = vmatprep.subr.mxu0 0.0
  %4660 = vmatpush1.msra.mxu0 0.0
  %4661 = vmatprep.subr.mxu0 0.0
  %4662 = vmatpush1.msra.mxu0 0.0
  %4663 = vmatprep.subr.mxu0 0.0
  %4664 = vmatpush1.msra.mxu0 0.0
  %4665 = vmatprep.subr.mxu0 0.0
  %4666 = vmatpush1.msra.mxu0 0.0
  %4667 = vmatprep.subr.mxu0 0.0
  %4668 = vmatpush1.msra.mxu0 0.0
  %4669 = vmatprep.subr.mxu0 0.0
  %4670 = vmatpush1.msra.mxu0 0.0
  %4671 = vmatprep.subr.mxu0 0.0
  %4672 = vmatpush1.msra.mxu0 0.0
  %4673 = vmatprep.subr.mxu0 0.0
  %4674 = vmatpush1.msra.mxu0 0.0
  %4675 = vmatprep.subr.mxu0 0.0
  %4676 = vmatpush1.msra.mxu0 0.0
  %4677 = vmatprep.subr.mxu0 0.0
  %4678 = vmatpush1.msra.mxu0 0.0
  %4679 = vmatprep.mubr.f32.mxu0 0.0
  %4680 = vmatmul.mubr.f32.gmra.mrb[0].mxu0 %v4457
  %v4681 = vpop.f32.mrb[0].mxu0
  %v4682 = vadd.f32 0.0, %v4681
  %v4683 = vpop.f32.mrb[0].mxu0
  %v4684 = vadd.f32 0.0, %v4683
  %4685 = vdwg.mxu0
  %4686 = vmatprep.subr.mxu0 0.0
  %4687 = vmatpush1.msra.mxu0 %v4471
  %4688 = vmatprep.subr.mxu0 0.0
  %4689 = vmatpush1.msra.mxu0 0.0
  %4690 = vmatprep.subr.mxu0 0.0
  %4691 = vmatpush1.msra.mxu0 0.0
  %4692 = vmatprep.subr.mxu0 0.0
  %4693 = vmatpush1.msra.mxu0 0.0
  %4694 = vmatprep.subr.mxu0 0.0
  %4695 = vmatpush1.msra.mxu0 0.0
  %4696 = vmatprep.subr.mxu0 0.0
  %4697 = vmatpush1.msra.mxu0 0.0
  %4698 = vmatprep.subr.mxu0 0.0
  %4699 = vmatpush1.msra.mxu0 0.0
  %4700 = vmatprep.subr.mxu0 0.0
  %4701 = vmatpush1.msra.mxu0 0.0
  %4702 = vmatprep.subr.mxu0 0.0
  %4703 = vmatpush1.msra.mxu0 0.0
  %4704 = vmatprep.subr.mxu0 0.0
  %4705 = vmatpush1.msra.mxu0 0.0
  %4706 = vmatprep.subr.mxu0 0.0
  %4707 = vmatpush1.msra.mxu0 0.0
  %4708 = vmatprep.subr.mxu0 0.0
  %4709 = vmatpush1.msra.mxu0 0.0
  %4710 = vmatprep.subr.mxu0 0.0
  %4711 = vmatpush1.msra.mxu0 0.0
  %4712 = vmatprep.subr.mxu0 0.0
  %4713 = vmatpush1.msra.mxu0 0.0
  %4714 = vmatprep.subr.mxu0 0.0
  %4715 = vmatpush1.msra.mxu0 0.0
  %4716 = vmatprep.subr.mxu0 0.0
  %4717 = vmatpush1.msra.mxu0 0.0
  %4718 = vmatprep.subr.mxu0 0.0
  %4719 = vmatpush1.msra.mxu0 0.0
  %4720 = vmatprep.subr.mxu0 0.0
  %4721 = vmatpush1.msra.mxu0 0.0
  %4722 = vmatprep.subr.mxu0 0.0
  %4723 = vmatpush1.msra.mxu0 0.0
  %4724 = vmatprep.subr.mxu0 0.0
  %4725 = vmatpush1.msra.mxu0 0.0
  %4726 = vmatprep.subr.mxu0 0.0
  %4727 = vmatpush1.msra.mxu0 0.0
  %4728 = vmatprep.subr.mxu0 0.0
  %4729 = vmatpush1.msra.mxu0 0.0
  %4730 = vmatprep.subr.mxu0 0.0
  %4731 = vmatpush1.msra.mxu0 0.0
  %4732 = vmatprep.subr.mxu0 0.0
  %4733 = vmatpush1.msra.mxu0 0.0
  %4734 = vmatprep.subr.mxu0 0.0
  %4735 = vmatpush1.msra.mxu0 0.0
  %4736 = vmatprep.subr.mxu0 0.0
  %4737 = vmatpush1.msra.mxu0 0.0
  %4738 = vmatprep.subr.mxu0 0.0
  %4739 = vmatpush1.msra.mxu0 0.0
  %4740 = vmatprep.subr.mxu0 0.0
  %4741 = vmatpush1.msra.mxu0 0.0
  %4742 = vmatprep.subr.mxu0 0.0
  %4743 = vmatpush1.msra.mxu0 0.0
  %4744 = vmatprep.subr.mxu0 0.0
  %4745 = vmatpush1.msra.mxu0 0.0
  %4746 = vmatprep.subr.mxu0 0.0
  %4747 = vmatpush1.msra.mxu0 0.0
  %4748 = vmatprep.subr.mxu0 0.0
  %4749 = vmatpush1.msra.mxu0 0.0
  %4750 = vmatprep.mubr.f32.mxu0 0.0
  %4751 = vmatmul.mubr.f32.gmra.mrb[0].mxu0 %v4457
  %v4752 = vpop.f32.mrb[0].mxu0
  %v4753 = vadd.f32 0.0, %v4752
  %v4754 = vpop.f32.mrb[0].mxu0
  %4755 = vdwg.mxu0
  %v4756 = vadd.f32 %v4427, %v4540
  %v4757 = vadd.f32 %v4428, %v4542
  %v4758 = vadd.f32 %v4429, %v4611
  %v4759 = vadd.f32 %v4430, %v4613
  %v4760 = vadd.f32 %v4431, %v4682
  %v4761 = vadd.f32 %v4432, %v4684
  %v4762 = vadd.f32 %v4433, %v4753
  %4763 = vrot.lane.b32.xlu0 %v513, 63
  %v4764 = vpop.permute.xlu0 %4763
  %4765 = vrot.lane.b32.xlu0 %v506, 85
  %v4766 = vpop.permute.xlu0 %4765
  %4767 = vrot.lane.b32.xlu0 %v507, 85
  %v4768 = vpop.permute.xlu0 %4767
  %4769 = vrot.lane.b32.xlu0 %v508, 85
  %v4770 = vpop.permute.xlu0 %4769
  %4771 = vrot.lane.b32.xlu0 %v509, 85
  %v4772 = vpop.permute.xlu0 %4771
  %4773 = vrot.lane.b32.xlu0 %v510, 85
  %v4774 = vpop.permute.xlu0 %4773
  %4775 = vrot.lane.b32.xlu0 %v511, 85
  %v4776 = vpop.permute.xlu0 %4775
  %4777 = vrot.lane.b32.xlu0 %v512, 85
  %v4778 = vpop.permute.xlu0 %4777
  %vm4779 = vcmask 695296
  %v4780 = vsel %vm4779, %v4766, %v4768
  %v4781 = vsel %vm4779, %v4768, %v4770
  %v4782 = vsel %vm4779, %v4770, %v4772
  %v4783 = vsel %vm4779, %v4772, %v4774
  %v4784 = vsel %vm4779, %v4774, %v4776
  %v4785 = vsel %vm4779, %v4776, %v4778
  %v4786 = vsel %vm545, %v4764, 0
  %v4788 = vsel %vm412, %v4780, 0
  %v4790 = vsel %vm412, %v4781, 0
  %v4792 = vsel %vm412, %v4782, 0
  %v4794 = vsel %vm412, %v4783, 0
  %v4796 = vsel %vm412, %v4784, 0
  %v4798 = vsel %vm412, %v4785, 0
  %v4800 = vsel %vm412, %v4778, 0
  %4802 = vmatprep.subr.mxu0 %v4790
  %4803 = vmatpush1.msra.mxu0 %v4788
  %4804 = vmatprep.subr.mxu0 0.0
  %4805 = vmatpush1.msra.mxu0 0.0
  %4806 = vmatprep.subr.mxu0 0.0
  %4807 = vmatpush1.msra.mxu0 0.0
  %4808 = vmatprep.subr.mxu0 0.0
  %4809 = vmatpush1.msra.mxu0 0.0
  %4810 = vmatprep.subr.mxu0 0.0
  %4811 = vmatpush1.msra.mxu0 0.0
  %4812 = vmatprep.subr.mxu0 0.0
  %4813 = vmatpush1.msra.mxu0 0.0
  %4814 = vmatprep.subr.mxu0 0.0
  %4815 = vmatpush1.msra.mxu0 0.0
  %4816 = vmatprep.subr.mxu0 0.0
  %4817 = vmatpush1.msra.mxu0 0.0
  %4818 = vmatprep.subr.mxu0 0.0
  %4819 = vmatpush1.msra.mxu0 0.0
  %4820 = vmatprep.subr.mxu0 0.0
  %4821 = vmatpush1.msra.mxu0 0.0
  %4822 = vmatprep.subr.mxu0 0.0
  %4823 = vmatpush1.msra.mxu0 0.0
  %4824 = vmatprep.subr.mxu0 0.0
  %4825 = vmatpush1.msra.mxu0 0.0
  %4826 = vmatprep.subr.mxu0 0.0
  %4827 = vmatpush1.msra.mxu0 0.0
  %4828 = vmatprep.subr.mxu0 0.0
  %4829 = vmatpush1.msra.mxu0 0.0
  %4830 = vmatprep.subr.mxu0 0.0
  %4831 = vmatpush1.msra.mxu0 0.0
  %4832 = vmatprep.subr.mxu0 0.0
  %4833 = vmatpush1.msra.mxu0 0.0
  %4834 = vmatprep.subr.mxu0 0.0
  %4835 = vmatpush1.msra.mxu0 0.0
  %4836 = vmatprep.subr.mxu0 0.0
  %4837 = vmatpush1.msra.mxu0 0.0
  %4838 = vmatprep.subr.mxu0 0.0
  %4839 = vmatpush1.msra.mxu0 0.0
  %4840 = vmatprep.subr.mxu0 0.0
  %4841 = vmatpush1.msra.mxu0 0.0
  %4842 = vmatprep.subr.mxu0 0.0
  %4843 = vmatpush1.msra.mxu0 0.0
  %4844 = vmatprep.subr.mxu0 0.0
  %4845 = vmatpush1.msra.mxu0 0.0
  %4846 = vmatprep.subr.mxu0 0.0
  %4847 = vmatpush1.msra.mxu0 0.0
  %4848 = vmatprep.subr.mxu0 0.0
  %4849 = vmatpush1.msra.mxu0 0.0
  %4850 = vmatprep.subr.mxu0 0.0
  %4851 = vmatpush1.msra.mxu0 0.0
  %4852 = vmatprep.subr.mxu0 0.0
  %4853 = vmatpush1.msra.mxu0 0.0
  %4854 = vmatprep.subr.mxu0 0.0
  %4855 = vmatpush1.msra.mxu0 0.0
  %4856 = vmatprep.subr.mxu0 0.0
  %4857 = vmatpush1.msra.mxu0 0.0
  %4858 = vmatprep.subr.mxu0 0.0
  %4859 = vmatpush1.msra.mxu0 0.0
  %4860 = vmatprep.subr.mxu0 0.0
  %4861 = vmatpush1.msra.mxu0 0.0
  %4862 = vmatprep.subr.mxu0 0.0
  %4863 = vmatpush1.msra.mxu0 0.0
  %4864 = vmatprep.subr.mxu0 0.0
  %4865 = vmatpush1.msra.mxu0 0.0
  %4866 = vmatprep.mubr.f32.mxu0 0.0
  %4867 = vmatmul.mubr.f32.gmra.mrb[0].mxu0 %v4786
  %v4868 = vpop.f32.mrb[0].mxu0
  %v4869 = vadd.f32 0.0, %v4868
  %v4870 = vpop.f32.mrb[0].mxu0
  %v4871 = vadd.f32 0.0, %v4870
  %4872 = vdwg.mxu0
  %4873 = vmatprep.subr.mxu0 %v4794
  %4874 = vmatpush1.msra.mxu0 %v4792
  %4875 = vmatprep.subr.mxu0 0.0
  %4876 = vmatpush1.msra.mxu0 0.0
  %4877 = vmatprep.subr.mxu0 0.0
  %4878 = vmatpush1.msra.mxu0 0.0
  %4879 = vmatprep.subr.mxu0 0.0
  %4880 = vmatpush1.msra.mxu0 0.0
  %4881 = vmatprep.subr.mxu0 0.0
  %4882 = vmatpush1.msra.mxu0 0.0
  %4883 = vmatprep.subr.mxu0 0.0
  %4884 = vmatpush1.msra.mxu0 0.0
  %4885 = vmatprep.subr.mxu0 0.0
  %4886 = vmatpush1.msra.mxu0 0.0
  %4887 = vmatprep.subr.mxu0 0.0
  %4888 = vmatpush1.msra.mxu0 0.0
  %4889 = vmatprep.subr.mxu0 0.0
  %4890 = vmatpush1.msra.mxu0 0.0
  %4891 = vmatprep.subr.mxu0 0.0
  %4892 = vmatpush1.msra.mxu0 0.0
  %4893 = vmatprep.subr.mxu0 0.0
  %4894 = vmatpush1.msra.mxu0 0.0
  %4895 = vmatprep.subr.mxu0 0.0
  %4896 = vmatpush1.msra.mxu0 0.0
  %4897 = vmatprep.subr.mxu0 0.0
  %4898 = vmatpush1.msra.mxu0 0.0
  %4899 = vmatprep.subr.mxu0 0.0
  %4900 = vmatpush1.msra.mxu0 0.0
  %4901 = vmatprep.subr.mxu0 0.0
  %4902 = vmatpush1.msra.mxu0 0.0
  %4903 = vmatprep.subr.mxu0 0.0
  %4904 = vmatpush1.msra.mxu0 0.0
  %4905 = vmatprep.subr.mxu0 0.0
  %4906 = vmatpush1.msra.mxu0 0.0
  %4907 = vmatprep.subr.mxu0 0.0
  %4908 = vmatpush1.msra.mxu0 0.0
  %4909 = vmatprep.subr.mxu0 0.0
  %4910 = vmatpush1.msra.mxu0 0.0
  %4911 = vmatprep.subr.mxu0 0.0
  %4912 = vmatpush1.msra.mxu0 0.0
  %4913 = vmatprep.subr.mxu0 0.0
  %4914 = vmatpush1.msra.mxu0 0.0
  %4915 = vmatprep.subr.mxu0 0.0
  %4916 = vmatpush1.msra.mxu0 0.0
  %4917 = vmatprep.subr.mxu0 0.0
  %4918 = vmatpush1.msra.mxu0 0.0
  %4919 = vmatprep.subr.mxu0 0.0
  %4920 = vmatpush1.msra.mxu0 0.0
  %4921 = vmatprep.subr.mxu0 0.0
  %4922 = vmatpush1.msra.mxu0 0.0
  %4923 = vmatprep.subr.mxu0 0.0
  %4924 = vmatpush1.msra.mxu0 0.0
  %4925 = vmatprep.subr.mxu0 0.0
  %4926 = vmatpush1.msra.mxu0 0.0
  %4927 = vmatprep.subr.mxu0 0.0
  %4928 = vmatpush1.msra.mxu0 0.0
  %4929 = vmatprep.subr.mxu0 0.0
  %4930 = vmatpush1.msra.mxu0 0.0
  %4931 = vmatprep.subr.mxu0 0.0
  %4932 = vmatpush1.msra.mxu0 0.0
  %4933 = vmatprep.subr.mxu0 0.0
  %4934 = vmatpush1.msra.mxu0 0.0
  %4935 = vmatprep.subr.mxu0 0.0
  %4936 = vmatpush1.msra.mxu0 0.0
  %4937 = vmatprep.mubr.f32.mxu0 0.0
  %4938 = vmatmul.mubr.f32.gmra.mrb[0].mxu0 %v4786
  %v4939 = vpop.f32.mrb[0].mxu0
  %v4940 = vadd.f32 0.0, %v4939
  %v4941 = vpop.f32.mrb[0].mxu0
  %v4942 = vadd.f32 0.0, %v4941
  %4943 = vdwg.mxu0
  %4944 = vmatprep.subr.mxu0 %v4798
  %4945 = vmatpush1.msra.mxu0 %v4796
  %4946 = vmatprep.subr.mxu0 0.0
  %4947 = vmatpush1.msra.mxu0 0.0
  %4948 = vmatprep.subr.mxu0 0.0
  %4949 = vmatpush1.msra.mxu0 0.0
  %4950 = vmatprep.subr.mxu0 0.0
  %4951 = vmatpush1.msra.mxu0 0.0
  %4952 = vmatprep.subr.mxu0 0.0
  %4953 = vmatpush1.msra.mxu0 0.0
  %4954 = vmatprep.subr.mxu0 0.0
  %4955 = vmatpush1.msra.mxu0 0.0
  %4956 = vmatprep.subr.mxu0 0.0
  %4957 = vmatpush1.msra.mxu0 0.0
  %4958 = vmatprep.subr.mxu0 0.0
  %4959 = vmatpush1.msra.mxu0 0.0
  %4960 = vmatprep.subr.mxu0 0.0
  %4961 = vmatpush1.msra.mxu0 0.0
  %4962 = vmatprep.subr.mxu0 0.0
  %4963 = vmatpush1.msra.mxu0 0.0
  %4964 = vmatprep.subr.mxu0 0.0
  %4965 = vmatpush1.msra.mxu0 0.0
  %4966 = vmatprep.subr.mxu0 0.0
  %4967 = vmatpush1.msra.mxu0 0.0
  %4968 = vmatprep.subr.mxu0 0.0
  %4969 = vmatpush1.msra.mxu0 0.0
  %4970 = vmatprep.subr.mxu0 0.0
  %4971 = vmatpush1.msra.mxu0 0.0
  %4972 = vmatprep.subr.mxu0 0.0
  %4973 = vmatpush1.msra.mxu0 0.0
  %4974 = vmatprep.subr.mxu0 0.0
  %4975 = vmatpush1.msra.mxu0 0.0
  %4976 = vmatprep.subr.mxu0 0.0
  %4977 = vmatpush1.msra.mxu0 0.0
  %4978 = vmatprep.subr.mxu0 0.0
  %4979 = vmatpush1.msra.mxu0 0.0
  %4980 = vmatprep.subr.mxu0 0.0
  %4981 = vmatpush1.msra.mxu0 0.0
  %4982 = vmatprep.subr.mxu0 0.0
  %4983 = vmatpush1.msra.mxu0 0.0
  %4984 = vmatprep.subr.mxu0 0.0
  %4985 = vmatpush1.msra.mxu0 0.0
  %4986 = vmatprep.subr.mxu0 0.0
  %4987 = vmatpush1.msra.mxu0 0.0
  %4988 = vmatprep.subr.mxu0 0.0
  %4989 = vmatpush1.msra.mxu0 0.0
  %4990 = vmatprep.subr.mxu0 0.0
  %4991 = vmatpush1.msra.mxu0 0.0
  %4992 = vmatprep.subr.mxu0 0.0
  %4993 = vmatpush1.msra.mxu0 0.0
  %4994 = vmatprep.subr.mxu0 0.0
  %4995 = vmatpush1.msra.mxu0 0.0
  %4996 = vmatprep.subr.mxu0 0.0
  %4997 = vmatpush1.msra.mxu0 0.0
  %4998 = vmatprep.subr.mxu0 0.0
  %4999 = vmatpush1.msra.mxu0 0.0
  %5000 = vmatprep.subr.mxu0 0.0
  %5001 = vmatpush1.msra.mxu0 0.0
  %5002 = vmatprep.subr.mxu0 0.0
  %5003 = vmatpush1.msra.mxu0 0.0
  %5004 = vmatprep.subr.mxu0 0.0
  %5005 = vmatpush1.msra.mxu0 0.0
  %5006 = vmatprep.subr.mxu0 0.0
  %5007 = vmatpush1.msra.mxu0 0.0
  %5008 = vmatprep.mubr.f32.mxu0 0.0
  %5009 = vmatmul.mubr.f32.gmra.mrb[0].mxu0 %v4786
  %v5010 = vpop.f32.mrb[0].mxu0
  %v5011 = vadd.f32 0.0, %v5010
  %v5012 = vpop.f32.mrb[0].mxu0
  %v5013 = vadd.f32 0.0, %v5012
  %5014 = vdwg.mxu0
  %5015 = vmatprep.subr.mxu0 0.0
  %5016 = vmatpush1.msra.mxu0 %v4800
  %5017 = vmatprep.subr.mxu0 0.0
  %5018 = vmatpush1.msra.mxu0 0.0
  %5019 = vmatprep.subr.mxu0 0.0
  %5020 = vmatpush1.msra.mxu0 0.0
  %5021 = vmatprep.subr.mxu0 0.0
  %5022 = vmatpush1.msra.mxu0 0.0
  %5023 = vmatprep.subr.mxu0 0.0
  %5024 = vmatpush1.msra.mxu0 0.0
  %5025 = vmatprep.subr.mxu0 0.0
  %5026 = vmatpush1.msra.mxu0 0.0
  %5027 = vmatprep.subr.mxu0 0.0
  %5028 = vmatpush1.msra.mxu0 0.0
  %5029 = vmatprep.subr.mxu0 0.0
  %5030 = vmatpush1.msra.mxu0 0.0
  %5031 = vmatprep.subr.mxu0 0.0
  %5032 = vmatpush1.msra.mxu0 0.0
  %5033 = vmatprep.subr.mxu0 0.0
  %5034 = vmatpush1.msra.mxu0 0.0
  %5035 = vmatprep.subr.mxu0 0.0
  %5036 = vmatpush1.msra.mxu0 0.0
  %5037 = vmatprep.subr.mxu0 0.0
  %5038 = vmatpush1.msra.mxu0 0.0
  %5039 = vmatprep.subr.mxu0 0.0
  %5040 = vmatpush1.msra.mxu0 0.0
  %5041 = vmatprep.subr.mxu0 0.0
  %5042 = vmatpush1.msra.mxu0 0.0
  %5043 = vmatprep.subr.mxu0 0.0
  %5044 = vmatpush1.msra.mxu0 0.0
  %5045 = vmatprep.subr.mxu0 0.0
  %5046 = vmatpush1.msra.mxu0 0.0
  %5047 = vmatprep.subr.mxu0 0.0
  %5048 = vmatpush1.msra.mxu0 0.0
  %5049 = vmatprep.subr.mxu0 0.0
  %5050 = vmatpush1.msra.mxu0 0.0
  %5051 = vmatprep.subr.mxu0 0.0
  %5052 = vmatpush1.msra.mxu0 0.0
  %5053 = vmatprep.subr.mxu0 0.0
  %5054 = vmatpush1.msra.mxu0 0.0
  %5055 = vmatprep.subr.mxu0 0.0
  %5056 = vmatpush1.msra.mxu0 0.0
  %5057 = vmatprep.subr.mxu0 0.0
  %5058 = vmatpush1.msra.mxu0 0.0
  %5059 = vmatprep.subr.mxu0 0.0
  %5060 = vmatpush1.msra.mxu0 0.0
  %5061 = vmatprep.subr.mxu0 0.0
  %5062 = vmatpush1.msra.mxu0 0.0
  %5063 = vmatprep.subr.mxu0 0.0
  %5064 = vmatpush1.msra.mxu0 0.0
  %5065 = vmatprep.subr.mxu0 0.0
  %5066 = vmatpush1.msra.mxu0 0.0
  %5067 = vmatprep.subr.mxu0 0.0
  %5068 = vmatpush1.msra.mxu0 0.0
  %5069 = vmatprep.subr.mxu0 0.0
  %5070 = vmatpush1.msra.mxu0 0.0
  %5071 = vmatprep.subr.mxu0 0.0
  %5072 = vmatpush1.msra.mxu0 0.0
  %5073 = vmatprep.subr.mxu0 0.0
  %5074 = vmatpush1.msra.mxu0 0.0
  %5075 = vmatprep.subr.mxu0 0.0
  %5076 = vmatpush1.msra.mxu0 0.0
  %5077 = vmatprep.subr.mxu0 0.0
  %5078 = vmatpush1.msra.mxu0 0.0
  %5079 = vmatprep.mubr.f32.mxu0 0.0
  %5080 = vmatmul.mubr.f32.gmra.mrb[0].mxu0 %v4786
  %v5081 = vpop.f32.mrb[0].mxu0
  %v5082 = vadd.f32 0.0, %v5081
  %v5083 = vpop.f32.mrb[0].mxu0
  %5084 = vdwg.mxu0
  %v5085 = vadd.f32 %v4756, %v4869
  %v5086 = vadd.f32 %v4757, %v4871
  %v5087 = vadd.f32 %v4758, %v4940
  %v5088 = vadd.f32 %v4759, %v4942
  %v5089 = vadd.f32 %v4760, %v5011
  %v5090 = vadd.f32 %v4761, %v5013
  %v5091 = vadd.f32 %v4762, %v5082
  %5092 = vrot.lane.b32.xlu0 %v513, 58
  %v5093 = vpop.permute.xlu0 %5092
  %5094 = vrot.lane.b32.xlu0 %v506, 84
  %v5095 = vpop.permute.xlu0 %5094
  %5096 = vrot.lane.b32.xlu0 %v507, 84
  %v5097 = vpop.permute.xlu0 %5096
  %5098 = vrot.lane.b32.xlu0 %v508, 84
  %v5099 = vpop.permute.xlu0 %5098
  %5100 = vrot.lane.b32.xlu0 %v509, 84
  %v5101 = vpop.permute.xlu0 %5100
  %5102 = vrot.lane.b32.xlu0 %v510, 84
  %v5103 = vpop.permute.xlu0 %5102
  %5104 = vrot.lane.b32.xlu0 %v511, 84
  %v5105 = vpop.permute.xlu0 %5104
  %5106 = vrot.lane.b32.xlu0 %v512, 84
  %v5107 = vpop.permute.xlu0 %5106
  %vm5108 = vcmask 687104
  %v5109 = vsel %vm5108, %v5095, %v5097
  %v5110 = vsel %vm5108, %v5097, %v5099
  %v5111 = vsel %vm5108, %v5099, %v5101
  %v5112 = vsel %vm5108, %v5101, %v5103
  %v5113 = vsel %vm5108, %v5103, %v5105
  %v5114 = vsel %vm5108, %v5105, %v5107
  %v5115 = vsel %vm545, %v5093, 0
  %v5117 = vsel %vm412, %v5109, 0
  %v5119 = vsel %vm412, %v5110, 0
  %v5121 = vsel %vm412, %v5111, 0
  %v5123 = vsel %vm412, %v5112, 0
  %v5125 = vsel %vm412, %v5113, 0
  %v5127 = vsel %vm412, %v5114, 0
  %v5129 = vsel %vm412, %v5107, 0
  %5131 = vmatprep.subr.mxu0 %v5119
  %5132 = vmatpush1.msra.mxu0 %v5117
  %5133 = vmatprep.subr.mxu0 0.0
  %5134 = vmatpush1.msra.mxu0 0.0
  %5135 = vmatprep.subr.mxu0 0.0
  %5136 = vmatpush1.msra.mxu0 0.0
  %5137 = vmatprep.subr.mxu0 0.0
  %5138 = vmatpush1.msra.mxu0 0.0
  %5139 = vmatprep.subr.mxu0 0.0
  %5140 = vmatpush1.msra.mxu0 0.0
  %5141 = vmatprep.subr.mxu0 0.0
  %5142 = vmatpush1.msra.mxu0 0.0
  %5143 = vmatprep.subr.mxu0 0.0
  %5144 = vmatpush1.msra.mxu0 0.0
  %5145 = vmatprep.subr.mxu0 0.0
  %5146 = vmatpush1.msra.mxu0 0.0
  %5147 = vmatprep.subr.mxu0 0.0
  %5148 = vmatpush1.msra.mxu0 0.0
  %5149 = vmatprep.subr.mxu0 0.0
  %5150 = vmatpush1.msra.mxu0 0.0
  %5151 = vmatprep.subr.mxu0 0.0
  %5152 = vmatpush1.msra.mxu0 0.0
  %5153 = vmatprep.subr.mxu0 0.0
  %5154 = vmatpush1.msra.mxu0 0.0
  %5155 = vmatprep.subr.mxu0 0.0
  %5156 = vmatpush1.msra.mxu0 0.0
  %5157 = vmatprep.subr.mxu0 0.0
  %5158 = vmatpush1.msra.mxu0 0.0
  %5159 = vmatprep.subr.mxu0 0.0
  %5160 = vmatpush1.msra.mxu0 0.0
  %5161 = vmatprep.subr.mxu0 0.0
  %5162 = vmatpush1.msra.mxu0 0.0
  %5163 = vmatprep.subr.mxu0 0.0
  %5164 = vmatpush1.msra.mxu0 0.0
  %5165 = vmatprep.subr.mxu0 0.0
  %5166 = vmatpush1.msra.mxu0 0.0
  %5167 = vmatprep.subr.mxu0 0.0
  %5168 = vmatpush1.msra.mxu0 0.0
  %5169 = vmatprep.subr.mxu0 0.0
  %5170 = vmatpush1.msra.mxu0 0.0
  %5171 = vmatprep.subr.mxu0 0.0
  %5172 = vmatpush1.msra.mxu0 0.0
  %5173 = vmatprep.subr.mxu0 0.0
  %5174 = vmatpush1.msra.mxu0 0.0
  %5175 = vmatprep.subr.mxu0 0.0
  %5176 = vmatpush1.msra.mxu0 0.0
  %5177 = vmatprep.subr.mxu0 0.0
  %5178 = vmatpush1.msra.mxu0 0.0
  %5179 = vmatprep.subr.mxu0 0.0
  %5180 = vmatpush1.msra.mxu0 0.0
  %5181 = vmatprep.subr.mxu0 0.0
  %5182 = vmatpush1.msra.mxu0 0.0
  %5183 = vmatprep.subr.mxu0 0.0
  %5184 = vmatpush1.msra.mxu0 0.0
  %5185 = vmatprep.subr.mxu0 0.0
  %5186 = vmatpush1.msra.mxu0 0.0
  %5187 = vmatprep.subr.mxu0 0.0
  %5188 = vmatpush1.msra.mxu0 0.0
  %5189 = vmatprep.subr.mxu0 0.0
  %5190 = vmatpush1.msra.mxu0 0.0
  %5191 = vmatprep.subr.mxu0 0.0
  %5192 = vmatpush1.msra.mxu0 0.0
  %5193 = vmatprep.subr.mxu0 0.0
  %5194 = vmatpush1.msra.mxu0 0.0
  %5195 = vmatprep.mubr.f32.mxu0 0.0
  %5196 = vmatmul.mubr.f32.gmra.mrb[0].mxu0 %v5115
  %v5197 = vpop.f32.mrb[0].mxu0
  %v5198 = vadd.f32 0.0, %v5197
  %v5199 = vpop.f32.mrb[0].mxu0
  %v5200 = vadd.f32 0.0, %v5199
  %5201 = vdwg.mxu0
  %5202 = vmatprep.subr.mxu0 %v5123
  %5203 = vmatpush1.msra.mxu0 %v5121
  %5204 = vmatprep.subr.mxu0 0.0
  %5205 = vmatpush1.msra.mxu0 0.0
  %5206 = vmatprep.subr.mxu0 0.0
  %5207 = vmatpush1.msra.mxu0 0.0
  %5208 = vmatprep.subr.mxu0 0.0
  %5209 = vmatpush1.msra.mxu0 0.0
  %5210 = vmatprep.subr.mxu0 0.0
  %5211 = vmatpush1.msra.mxu0 0.0
  %5212 = vmatprep.subr.mxu0 0.0
  %5213 = vmatpush1.msra.mxu0 0.0
  %5214 = vmatprep.subr.mxu0 0.0
  %5215 = vmatpush1.msra.mxu0 0.0
  %5216 = vmatprep.subr.mxu0 0.0
  %5217 = vmatpush1.msra.mxu0 0.0
  %5218 = vmatprep.subr.mxu0 0.0
  %5219 = vmatpush1.msra.mxu0 0.0
  %5220 = vmatprep.subr.mxu0 0.0
  %5221 = vmatpush1.msra.mxu0 0.0
  %5222 = vmatprep.subr.mxu0 0.0
  %5223 = vmatpush1.msra.mxu0 0.0
  %5224 = vmatprep.subr.mxu0 0.0
  %5225 = vmatpush1.msra.mxu0 0.0
  %5226 = vmatprep.subr.mxu0 0.0
  %5227 = vmatpush1.msra.mxu0 0.0
  %5228 = vmatprep.subr.mxu0 0.0
  %5229 = vmatpush1.msra.mxu0 0.0
  %5230 = vmatprep.subr.mxu0 0.0
  %5231 = vmatpush1.msra.mxu0 0.0
  %5232 = vmatprep.subr.mxu0 0.0
  %5233 = vmatpush1.msra.mxu0 0.0
  %5234 = vmatprep.subr.mxu0 0.0
  %5235 = vmatpush1.msra.mxu0 0.0
  %5236 = vmatprep.subr.mxu0 0.0
  %5237 = vmatpush1.msra.mxu0 0.0
  %5238 = vmatprep.subr.mxu0 0.0
  %5239 = vmatpush1.msra.mxu0 0.0
  %5240 = vmatprep.subr.mxu0 0.0
  %5241 = vmatpush1.msra.mxu0 0.0
  %5242 = vmatprep.subr.mxu0 0.0
  %5243 = vmatpush1.msra.mxu0 0.0
  %5244 = vmatprep.subr.mxu0 0.0
  %5245 = vmatpush1.msra.mxu0 0.0
  %5246 = vmatprep.subr.mxu0 0.0
  %5247 = vmatpush1.msra.mxu0 0.0
  %5248 = vmatprep.subr.mxu0 0.0
  %5249 = vmatpush1.msra.mxu0 0.0
  %5250 = vmatprep.subr.mxu0 0.0
  %5251 = vmatpush1.msra.mxu0 0.0
  %5252 = vmatprep.subr.mxu0 0.0
  %5253 = vmatpush1.msra.mxu0 0.0
  %5254 = vmatprep.subr.mxu0 0.0
  %5255 = vmatpush1.msra.mxu0 0.0
  %5256 = vmatprep.subr.mxu0 0.0
  %5257 = vmatpush1.msra.mxu0 0.0
  %5258 = vmatprep.subr.mxu0 0.0
  %5259 = vmatpush1.msra.mxu0 0.0
  %5260 = vmatprep.subr.mxu0 0.0
  %5261 = vmatpush1.msra.mxu0 0.0
  %5262 = vmatprep.subr.mxu0 0.0
  %5263 = vmatpush1.msra.mxu0 0.0
  %5264 = vmatprep.subr.mxu0 0.0
  %5265 = vmatpush1.msra.mxu0 0.0
  %5266 = vmatprep.mubr.f32.mxu0 0.0
  %5267 = vmatmul.mubr.f32.gmra.mrb[0].mxu0 %v5115
  %v5268 = vpop.f32.mrb[0].mxu0
  %v5269 = vadd.f32 0.0, %v5268
  %v5270 = vpop.f32.mrb[0].mxu0
  %v5271 = vadd.f32 0.0, %v5270
  %5272 = vdwg.mxu0
  %5273 = vmatprep.subr.mxu0 %v5127
  %5274 = vmatpush1.msra.mxu0 %v5125
  %5275 = vmatprep.subr.mxu0 0.0
  %5276 = vmatpush1.msra.mxu0 0.0
  %5277 = vmatprep.subr.mxu0 0.0
  %5278 = vmatpush1.msra.mxu0 0.0
  %5279 = vmatprep.subr.mxu0 0.0
  %5280 = vmatpush1.msra.mxu0 0.0
  %5281 = vmatprep.subr.mxu0 0.0
  %5282 = vmatpush1.msra.mxu0 0.0
  %5283 = vmatprep.subr.mxu0 0.0
  %5284 = vmatpush1.msra.mxu0 0.0
  %5285 = vmatprep.subr.mxu0 0.0
  %5286 = vmatpush1.msra.mxu0 0.0
  %5287 = vmatprep.subr.mxu0 0.0
  %5288 = vmatpush1.msra.mxu0 0.0
  %5289 = vmatprep.subr.mxu0 0.0
  %5290 = vmatpush1.msra.mxu0 0.0
  %5291 = vmatprep.subr.mxu0 0.0
  %5292 = vmatpush1.msra.mxu0 0.0
  %5293 = vmatprep.subr.mxu0 0.0
  %5294 = vmatpush1.msra.mxu0 0.0
  %5295 = vmatprep.subr.mxu0 0.0
  %5296 = vmatpush1.msra.mxu0 0.0
  %5297 = vmatprep.subr.mxu0 0.0
  %5298 = vmatpush1.msra.mxu0 0.0
  %5299 = vmatprep.subr.mxu0 0.0
  %5300 = vmatpush1.msra.mxu0 0.0
  %5301 = vmatprep.subr.mxu0 0.0
  %5302 = vmatpush1.msra.mxu0 0.0
  %5303 = vmatprep.subr.mxu0 0.0
  %5304 = vmatpush1.msra.mxu0 0.0
  %5305 = vmatprep.subr.mxu0 0.0
  %5306 = vmatpush1.msra.mxu0 0.0
  %5307 = vmatprep.subr.mxu0 0.0
  %5308 = vmatpush1.msra.mxu0 0.0
  %5309 = vmatprep.subr.mxu0 0.0
  %5310 = vmatpush1.msra.mxu0 0.0
  %5311 = vmatprep.subr.mxu0 0.0
  %5312 = vmatpush1.msra.mxu0 0.0
  %5313 = vmatprep.subr.mxu0 0.0
  %5314 = vmatpush1.msra.mxu0 0.0
  %5315 = vmatprep.subr.mxu0 0.0
  %5316 = vmatpush1.msra.mxu0 0.0
  %5317 = vmatprep.subr.mxu0 0.0
  %5318 = vmatpush1.msra.mxu0 0.0
  %5319 = vmatprep.subr.mxu0 0.0
  %5320 = vmatpush1.msra.mxu0 0.0
  %5321 = vmatprep.subr.mxu0 0.0
  %5322 = vmatpush1.msra.mxu0 0.0
  %5323 = vmatprep.subr.mxu0 0.0
  %5324 = vmatpush1.msra.mxu0 0.0
  %5325 = vmatprep.subr.mxu0 0.0
  %5326 = vmatpush1.msra.mxu0 0.0
  %5327 = vmatprep.subr.mxu0 0.0
  %5328 = vmatpush1.msra.mxu0 0.0
  %5329 = vmatprep.subr.mxu0 0.0
  %5330 = vmatpush1.msra.mxu0 0.0
  %5331 = vmatprep.subr.mxu0 0.0
  %5332 = vmatpush1.msra.mxu0 0.0
  %5333 = vmatprep.subr.mxu0 0.0
  %5334 = vmatpush1.msra.mxu0 0.0
  %5335 = vmatprep.subr.mxu0 0.0
  %5336 = vmatpush1.msra.mxu0 0.0
  %5337 = vmatprep.mubr.f32.mxu0 0.0
  %5338 = vmatmul.mubr.f32.gmra.mrb[0].mxu0 %v5115
  %v5339 = vpop.f32.mrb[0].mxu0
  %v5340 = vadd.f32 0.0, %v5339
  %v5341 = vpop.f32.mrb[0].mxu0
  %v5342 = vadd.f32 0.0, %v5341
  %5343 = vdwg.mxu0
  %5344 = vmatprep.subr.mxu0 0.0
  %5345 = vmatpush1.msra.mxu0 %v5129
  %5346 = vmatprep.subr.mxu0 0.0
  %5347 = vmatpush1.msra.mxu0 0.0
  %5348 = vmatprep.subr.mxu0 0.0
  %5349 = vmatpush1.msra.mxu0 0.0
  %5350 = vmatprep.subr.mxu0 0.0
  %5351 = vmatpush1.msra.mxu0 0.0
  %5352 = vmatprep.subr.mxu0 0.0
  %5353 = vmatpush1.msra.mxu0 0.0
  %5354 = vmatprep.subr.mxu0 0.0
  %5355 = vmatpush1.msra.mxu0 0.0
  %5356 = vmatprep.subr.mxu0 0.0
  %5357 = vmatpush1.msra.mxu0 0.0
  %5358 = vmatprep.subr.mxu0 0.0
  %5359 = vmatpush1.msra.mxu0 0.0
  %5360 = vmatprep.subr.mxu0 0.0
  %5361 = vmatpush1.msra.mxu0 0.0
  %5362 = vmatprep.subr.mxu0 0.0
  %5363 = vmatpush1.msra.mxu0 0.0
  %5364 = vmatprep.subr.mxu0 0.0
  %5365 = vmatpush1.msra.mxu0 0.0
  %5366 = vmatprep.subr.mxu0 0.0
  %5367 = vmatpush1.msra.mxu0 0.0
  %5368 = vmatprep.subr.mxu0 0.0
  %5369 = vmatpush1.msra.mxu0 0.0
  %5370 = vmatprep.subr.mxu0 0.0
  %5371 = vmatpush1.msra.mxu0 0.0
  %5372 = vmatprep.subr.mxu0 0.0
  %5373 = vmatpush1.msra.mxu0 0.0
  %5374 = vmatprep.subr.mxu0 0.0
  %5375 = vmatpush1.msra.mxu0 0.0
  %5376 = vmatprep.subr.mxu0 0.0
  %5377 = vmatpush1.msra.mxu0 0.0
  %5378 = vmatprep.subr.mxu0 0.0
  %5379 = vmatpush1.msra.mxu0 0.0
  %5380 = vmatprep.subr.mxu0 0.0
  %5381 = vmatpush1.msra.mxu0 0.0
  %5382 = vmatprep.subr.mxu0 0.0
  %5383 = vmatpush1.msra.mxu0 0.0
  %5384 = vmatprep.subr.mxu0 0.0
  %5385 = vmatpush1.msra.mxu0 0.0
  %5386 = vmatprep.subr.mxu0 0.0
  %5387 = vmatpush1.msra.mxu0 0.0
  %5388 = vmatprep.subr.mxu0 0.0
  %5389 = vmatpush1.msra.mxu0 0.0
  %5390 = vmatprep.subr.mxu0 0.0
  %5391 = vmatpush1.msra.mxu0 0.0
  %5392 = vmatprep.subr.mxu0 0.0
  %5393 = vmatpush1.msra.mxu0 0.0
  %5394 = vmatprep.subr.mxu0 0.0
  %5395 = vmatpush1.msra.mxu0 0.0
  %5396 = vmatprep.subr.mxu0 0.0
  %5397 = vmatpush1.msra.mxu0 0.0
  %5398 = vmatprep.subr.mxu0 0.0
  %5399 = vmatpush1.msra.mxu0 0.0
  %5400 = vmatprep.subr.mxu0 0.0
  %5401 = vmatpush1.msra.mxu0 0.0
  %5402 = vmatprep.subr.mxu0 0.0
  %5403 = vmatpush1.msra.mxu0 0.0
  %5404 = vmatprep.subr.mxu0 0.0
  %5405 = vmatpush1.msra.mxu0 0.0
  %5406 = vmatprep.subr.mxu0 0.0
  %5407 = vmatpush1.msra.mxu0 0.0
  %5408 = vmatprep.mubr.f32.mxu0 0.0
  %5409 = vmatmul.mubr.f32.gmra.mrb[0].mxu0 %v5115
  %v5410 = vpop.f32.mrb[0].mxu0
  %v5411 = vadd.f32 0.0, %v5410
  %v5412 = vpop.f32.mrb[0].mxu0
  %5413 = vdwg.mxu0
  %v5414 = vadd.f32 %v5085, %v5198
  %v5415 = vadd.f32 %v5086, %v5200
  %v5416 = vadd.f32 %v5087, %v5269
  %v5417 = vadd.f32 %v5088, %v5271
  %v5418 = vadd.f32 %v5089, %v5340
  %v5419 = vadd.f32 %v5090, %v5342
  %v5420 = vadd.f32 %v5091, %v5411
  %5421 = vrot.lane.b32.xlu0 %v513, 53
  %v5422 = vpop.permute.xlu0 %5421
  %5423 = vrot.lane.b32.xlu0 %v506, 68
  %v5424 = vpop.permute.xlu0 %5423
  %5425 = vrot.lane.b32.xlu0 %v507, 68
  %v5426 = vpop.permute.xlu0 %5425
  %5427 = vrot.lane.b32.xlu0 %v508, 68
  %v5428 = vpop.permute.xlu0 %5427
  %5429 = vrot.lane.b32.xlu0 %v509, 68
  %v5430 = vpop.permute.xlu0 %5429
  %5431 = vrot.lane.b32.xlu0 %v510, 68
  %v5432 = vpop.permute.xlu0 %5431
  %5433 = vrot.lane.b32.xlu0 %v511, 68
  %v5434 = vpop.permute.xlu0 %5433
  %5435 = vrot.lane.b32.xlu0 %v512, 68
  %v5436 = vpop.permute.xlu0 %5435
  %vm5437 = vcmask 556032
  %v5438 = vsel %vm5437, %v5424, %v5426
  %v5439 = vsel %vm5437, %v5426, %v5428
  %v5440 = vsel %vm5437, %v5428, %v5430
  %v5441 = vsel %vm5437, %v5430, %v5432
  %v5442 = vsel %vm5437, %v5432, %v5434
  %v5443 = vsel %vm5437, %v5434, %v5436
  %v5444 = vsel %vm545, %v5422, 0
  %v5446 = vsel %vm412, %v5438, 0
  %v5448 = vsel %vm412, %v5439, 0
  %v5450 = vsel %vm412, %v5440, 0
  %v5452 = vsel %vm412, %v5441, 0
  %v5454 = vsel %vm412, %v5442, 0
  %v5456 = vsel %vm412, %v5443, 0
  %v5458 = vsel %vm412, %v5436, 0
  %5460 = vmatprep.subr.mxu0 %v5448
  %5461 = vmatpush1.msra.mxu0 %v5446
  %5462 = vmatprep.subr.mxu0 0.0
  %5463 = vmatpush1.msra.mxu0 0.0
  %5464 = vmatprep.subr.mxu0 0.0
  %5465 = vmatpush1.msra.mxu0 0.0
  %5466 = vmatprep.subr.mxu0 0.0
  %5467 = vmatpush1.msra.mxu0 0.0
  %5468 = vmatprep.subr.mxu0 0.0
  %5469 = vmatpush1.msra.mxu0 0.0
  %5470 = vmatprep.subr.mxu0 0.0
  %5471 = vmatpush1.msra.mxu0 0.0
  %5472 = vmatprep.subr.mxu0 0.0
  %5473 = vmatpush1.msra.mxu0 0.0
  %5474 = vmatprep.subr.mxu0 0.0
  %5475 = vmatpush1.msra.mxu0 0.0
  %5476 = vmatprep.subr.mxu0 0.0
  %5477 = vmatpush1.msra.mxu0 0.0
  %5478 = vmatprep.subr.mxu0 0.0
  %5479 = vmatpush1.msra.mxu0 0.0
  %5480 = vmatprep.subr.mxu0 0.0
  %5481 = vmatpush1.msra.mxu0 0.0
  %5482 = vmatprep.subr.mxu0 0.0
  %5483 = vmatpush1.msra.mxu0 0.0
  %5484 = vmatprep.subr.mxu0 0.0
  %5485 = vmatpush1.msra.mxu0 0.0
  %5486 = vmatprep.subr.mxu0 0.0
  %5487 = vmatpush1.msra.mxu0 0.0
  %5488 = vmatprep.subr.mxu0 0.0
  %5489 = vmatpush1.msra.mxu0 0.0
  %5490 = vmatprep.subr.mxu0 0.0
  %5491 = vmatpush1.msra.mxu0 0.0
  %5492 = vmatprep.subr.mxu0 0.0
  %5493 = vmatpush1.msra.mxu0 0.0
  %5494 = vmatprep.subr.mxu0 0.0
  %5495 = vmatpush1.msra.mxu0 0.0
  %5496 = vmatprep.subr.mxu0 0.0
  %5497 = vmatpush1.msra.mxu0 0.0
  %5498 = vmatprep.subr.mxu0 0.0
  %5499 = vmatpush1.msra.mxu0 0.0
  %5500 = vmatprep.subr.mxu0 0.0
  %5501 = vmatpush1.msra.mxu0 0.0
  %5502 = vmatprep.subr.mxu0 0.0
  %5503 = vmatpush1.msra.mxu0 0.0
  %5504 = vmatprep.subr.mxu0 0.0
  %5505 = vmatpush1.msra.mxu0 0.0
  %5506 = vmatprep.subr.mxu0 0.0
  %5507 = vmatpush1.msra.mxu0 0.0
  %5508 = vmatprep.subr.mxu0 0.0
  %5509 = vmatpush1.msra.mxu0 0.0
  %5510 = vmatprep.subr.mxu0 0.0
  %5511 = vmatpush1.msra.mxu0 0.0
  %5512 = vmatprep.subr.mxu0 0.0
  %5513 = vmatpush1.msra.mxu0 0.0
  %5514 = vmatprep.subr.mxu0 0.0
  %5515 = vmatpush1.msra.mxu0 0.0
  %5516 = vmatprep.subr.mxu0 0.0
  %5517 = vmatpush1.msra.mxu0 0.0
  %5518 = vmatprep.subr.mxu0 0.0
  %5519 = vmatpush1.msra.mxu0 0.0
  %5520 = vmatprep.subr.mxu0 0.0
  %5521 = vmatpush1.msra.mxu0 0.0
  %5522 = vmatprep.subr.mxu0 0.0
  %5523 = vmatpush1.msra.mxu0 0.0
  %5524 = vmatprep.mubr.f32.mxu0 0.0
  %5525 = vmatmul.mubr.f32.gmra.mrb[0].mxu0 %v5444
  %v5526 = vpop.f32.mrb[0].mxu0
  %v5527 = vadd.f32 0.0, %v5526
  %v5528 = vpop.f32.mrb[0].mxu0
  %v5529 = vadd.f32 0.0, %v5528
  %5530 = vdwg.mxu0
  %5531 = vmatprep.subr.mxu0 %v5452
  %5532 = vmatpush1.msra.mxu0 %v5450
  %5533 = vmatprep.subr.mxu0 0.0
  %5534 = vmatpush1.msra.mxu0 0.0
  %5535 = vmatprep.subr.mxu0 0.0
  %5536 = vmatpush1.msra.mxu0 0.0
  %5537 = vmatprep.subr.mxu0 0.0
  %5538 = vmatpush1.msra.mxu0 0.0
  %5539 = vmatprep.subr.mxu0 0.0
  %5540 = vmatpush1.msra.mxu0 0.0
  %5541 = vmatprep.subr.mxu0 0.0
  %5542 = vmatpush1.msra.mxu0 0.0
  %5543 = vmatprep.subr.mxu0 0.0
  %5544 = vmatpush1.msra.mxu0 0.0
  %5545 = vmatprep.subr.mxu0 0.0
  %5546 = vmatpush1.msra.mxu0 0.0
  %5547 = vmatprep.subr.mxu0 0.0
  %5548 = vmatpush1.msra.mxu0 0.0
  %5549 = vmatprep.subr.mxu0 0.0
  %5550 = vmatpush1.msra.mxu0 0.0
  %5551 = vmatprep.subr.mxu0 0.0
  %5552 = vmatpush1.msra.mxu0 0.0
  %5553 = vmatprep.subr.mxu0 0.0
  %5554 = vmatpush1.msra.mxu0 0.0
  %5555 = vmatprep.subr.mxu0 0.0
  %5556 = vmatpush1.msra.mxu0 0.0
  %5557 = vmatprep.subr.mxu0 0.0
  %5558 = vmatpush1.msra.mxu0 0.0
  %5559 = vmatprep.subr.mxu0 0.0
  %5560 = vmatpush1.msra.mxu0 0.0
  %5561 = vmatprep.subr.mxu0 0.0
  %5562 = vmatpush1.msra.mxu0 0.0
  %5563 = vmatprep.subr.mxu0 0.0
  %5564 = vmatpush1.msra.mxu0 0.0
  %5565 = vmatprep.subr.mxu0 0.0
  %5566 = vmatpush1.msra.mxu0 0.0
  %5567 = vmatprep.subr.mxu0 0.0
  %5568 = vmatpush1.msra.mxu0 0.0
  %5569 = vmatprep.subr.mxu0 0.0
  %5570 = vmatpush1.msra.mxu0 0.0
  %5571 = vmatprep.subr.mxu0 0.0
  %5572 = vmatpush1.msra.mxu0 0.0
  %5573 = vmatprep.subr.mxu0 0.0
  %5574 = vmatpush1.msra.mxu0 0.0
  %5575 = vmatprep.subr.mxu0 0.0
  %5576 = vmatpush1.msra.mxu0 0.0
  %5577 = vmatprep.subr.mxu0 0.0
  %5578 = vmatpush1.msra.mxu0 0.0
  %5579 = vmatprep.subr.mxu0 0.0
  %5580 = vmatpush1.msra.mxu0 0.0
  %5581 = vmatprep.subr.mxu0 0.0
  %5582 = vmatpush1.msra.mxu0 0.0
  %5583 = vmatprep.subr.mxu0 0.0
  %5584 = vmatpush1.msra.mxu0 0.0
  %5585 = vmatprep.subr.mxu0 0.0
  %5586 = vmatpush1.msra.mxu0 0.0
  %5587 = vmatprep.subr.mxu0 0.0
  %5588 = vmatpush1.msra.mxu0 0.0
  %5589 = vmatprep.subr.mxu0 0.0
  %5590 = vmatpush1.msra.mxu0 0.0
  %5591 = vmatprep.subr.mxu0 0.0
  %5592 = vmatpush1.msra.mxu0 0.0
  %5593 = vmatprep.subr.mxu0 0.0
  %5594 = vmatpush1.msra.mxu0 0.0
  %5595 = vmatprep.mubr.f32.mxu0 0.0
  %5596 = vmatmul.mubr.f32.gmra.mrb[0].mxu0 %v5444
  %v5597 = vpop.f32.mrb[0].mxu0
  %v5598 = vadd.f32 0.0, %v5597
  %v5599 = vpop.f32.mrb[0].mxu0
  %v5600 = vadd.f32 0.0, %v5599
  %5601 = vdwg.mxu0
  %5602 = vmatprep.subr.mxu0 %v5456
  %5603 = vmatpush1.msra.mxu0 %v5454
  %5604 = vmatprep.subr.mxu0 0.0
  %5605 = vmatpush1.msra.mxu0 0.0
  %5606 = vmatprep.subr.mxu0 0.0
  %5607 = vmatpush1.msra.mxu0 0.0
  %5608 = vmatprep.subr.mxu0 0.0
  %5609 = vmatpush1.msra.mxu0 0.0
  %5610 = vmatprep.subr.mxu0 0.0
  %5611 = vmatpush1.msra.mxu0 0.0
  %5612 = vmatprep.subr.mxu0 0.0
  %5613 = vmatpush1.msra.mxu0 0.0
  %5614 = vmatprep.subr.mxu0 0.0
  %5615 = vmatpush1.msra.mxu0 0.0
  %5616 = vmatprep.subr.mxu0 0.0
  %5617 = vmatpush1.msra.mxu0 0.0
  %5618 = vmatprep.subr.mxu0 0.0
  %5619 = vmatpush1.msra.mxu0 0.0
  %5620 = vmatprep.subr.mxu0 0.0
  %5621 = vmatpush1.msra.mxu0 0.0
  %5622 = vmatprep.subr.mxu0 0.0
  %5623 = vmatpush1.msra.mxu0 0.0
  %5624 = vmatprep.subr.mxu0 0.0
  %5625 = vmatpush1.msra.mxu0 0.0
  %5626 = vmatprep.subr.mxu0 0.0
  %5627 = vmatpush1.msra.mxu0 0.0
  %5628 = vmatprep.subr.mxu0 0.0
  %5629 = vmatpush1.msra.mxu0 0.0
  %5630 = vmatprep.subr.mxu0 0.0
  %5631 = vmatpush1.msra.mxu0 0.0
  %5632 = vmatprep.subr.mxu0 0.0
  %5633 = vmatpush1.msra.mxu0 0.0
  %5634 = vmatprep.subr.mxu0 0.0
  %5635 = vmatpush1.msra.mxu0 0.0
  %5636 = vmatprep.subr.mxu0 0.0
  %5637 = vmatpush1.msra.mxu0 0.0
  %5638 = vmatprep.subr.mxu0 0.0
  %5639 = vmatpush1.msra.mxu0 0.0
  %5640 = vmatprep.subr.mxu0 0.0
  %5641 = vmatpush1.msra.mxu0 0.0
  %5642 = vmatprep.subr.mxu0 0.0
  %5643 = vmatpush1.msra.mxu0 0.0
  %5644 = vmatprep.subr.mxu0 0.0
  %5645 = vmatpush1.msra.mxu0 0.0
  %5646 = vmatprep.subr.mxu0 0.0
  %5647 = vmatpush1.msra.mxu0 0.0
  %5648 = vmatprep.subr.mxu0 0.0
  %5649 = vmatpush1.msra.mxu0 0.0
  %5650 = vmatprep.subr.mxu0 0.0
  %5651 = vmatpush1.msra.mxu0 0.0
  %5652 = vmatprep.subr.mxu0 0.0
  %5653 = vmatpush1.msra.mxu0 0.0
  %5654 = vmatprep.subr.mxu0 0.0
  %5655 = vmatpush1.msra.mxu0 0.0
  %5656 = vmatprep.subr.mxu0 0.0
  %5657 = vmatpush1.msra.mxu0 0.0
  %5658 = vmatprep.subr.mxu0 0.0
  %5659 = vmatpush1.msra.mxu0 0.0
  %5660 = vmatprep.subr.mxu0 0.0
  %5661 = vmatpush1.msra.mxu0 0.0
  %5662 = vmatprep.subr.mxu0 0.0
  %5663 = vmatpush1.msra.mxu0 0.0
  %5664 = vmatprep.subr.mxu0 0.0
  %5665 = vmatpush1.msra.mxu0 0.0
  %5666 = vmatprep.mubr.f32.mxu0 0.0
  %5667 = vmatmul.mubr.f32.gmra.mrb[0].mxu0 %v5444
  %v5668 = vpop.f32.mrb[0].mxu0
  %v5669 = vadd.f32 0.0, %v5668
  %v5670 = vpop.f32.mrb[0].mxu0
  %v5671 = vadd.f32 0.0, %v5670
  %5672 = vdwg.mxu0
  %5673 = vmatprep.subr.mxu0 0.0
  %5674 = vmatpush1.msra.mxu0 %v5458
  %5675 = vmatprep.subr.mxu0 0.0
  %5676 = vmatpush1.msra.mxu0 0.0
  %5677 = vmatprep.subr.mxu0 0.0
  %5678 = vmatpush1.msra.mxu0 0.0
  %5679 = vmatprep.subr.mxu0 0.0
  %5680 = vmatpush1.msra.mxu0 0.0
  %5681 = vmatprep.subr.mxu0 0.0
  %5682 = vmatpush1.msra.mxu0 0.0
  %5683 = vmatprep.subr.mxu0 0.0
  %5684 = vmatpush1.msra.mxu0 0.0
  %5685 = vmatprep.subr.mxu0 0.0
  %5686 = vmatpush1.msra.mxu0 0.0
  %5687 = vmatprep.subr.mxu0 0.0
  %5688 = vmatpush1.msra.mxu0 0.0
  %5689 = vmatprep.subr.mxu0 0.0
  %5690 = vmatpush1.msra.mxu0 0.0
  %5691 = vmatprep.subr.mxu0 0.0
  %5692 = vmatpush1.msra.mxu0 0.0
  %5693 = vmatprep.subr.mxu0 0.0
  %5694 = vmatpush1.msra.mxu0 0.0
  %5695 = vmatprep.subr.mxu0 0.0
  %5696 = vmatpush1.msra.mxu0 0.0
  %5697 = vmatprep.subr.mxu0 0.0
  %5698 = vmatpush1.msra.mxu0 0.0
  %5699 = vmatprep.subr.mxu0 0.0
  %5700 = vmatpush1.msra.mxu0 0.0
  %5701 = vmatprep.subr.mxu0 0.0
  %5702 = vmatpush1.msra.mxu0 0.0
  %5703 = vmatprep.subr.mxu0 0.0
  %5704 = vmatpush1.msra.mxu0 0.0
  %5705 = vmatprep.subr.mxu0 0.0
  %5706 = vmatpush1.msra.mxu0 0.0
  %5707 = vmatprep.subr.mxu0 0.0
  %5708 = vmatpush1.msra.mxu0 0.0
  %5709 = vmatprep.subr.mxu0 0.0
  %5710 = vmatpush1.msra.mxu0 0.0
  %5711 = vmatprep.subr.mxu0 0.0
  %5712 = vmatpush1.msra.mxu0 0.0
  %5713 = vmatprep.subr.mxu0 0.0
  %5714 = vmatpush1.msra.mxu0 0.0
  %5715 = vmatprep.subr.mxu0 0.0
  %5716 = vmatpush1.msra.mxu0 0.0
  %5717 = vmatprep.subr.mxu0 0.0
  %5718 = vmatpush1.msra.mxu0 0.0
  %5719 = vmatprep.subr.mxu0 0.0
  %5720 = vmatpush1.msra.mxu0 0.0
  %5721 = vmatprep.subr.mxu0 0.0
  %5722 = vmatpush1.msra.mxu0 0.0
  %5723 = vmatprep.subr.mxu0 0.0
  %5724 = vmatpush1.msra.mxu0 0.0
  %5725 = vmatprep.subr.mxu0 0.0
  %5726 = vmatpush1.msra.mxu0 0.0
  %5727 = vmatprep.subr.mxu0 0.0
  %5728 = vmatpush1.msra.mxu0 0.0
  %5729 = vmatprep.subr.mxu0 0.0
  %5730 = vmatpush1.msra.mxu0 0.0
  %5731 = vmatprep.subr.mxu0 0.0
  %5732 = vmatpush1.msra.mxu0 0.0
  %5733 = vmatprep.subr.mxu0 0.0
  %5734 = vmatpush1.msra.mxu0 0.0
  %5735 = vmatprep.subr.mxu0 0.0
  %5736 = vmatpush1.msra.mxu0 0.0
  %5737 = vmatprep.mubr.f32.mxu0 0.0
  %5738 = vmatmul.mubr.f32.gmra.mrb[0].mxu0 %v5444
  %v5739 = vpop.f32.mrb[0].mxu0
  %v5740 = vadd.f32 0.0, %v5739
  %v5741 = vpop.f32.mrb[0].mxu0
  %5742 = vdwg.mxu0
  %v5743 = vadd.f32 %v5414, %v5527
  %v5744 = vadd.f32 %v5415, %v5529
  %v5745 = vadd.f32 %v5416, %v5598
  %v5746 = vadd.f32 %v5417, %v5600
  %v5747 = vadd.f32 %v5418, %v5669
  %v5748 = vadd.f32 %v5419, %v5671
  %v5749 = vadd.f32 %v5420, %v5740
  %5750 = vrot.lane.b32.xlu0 %v513, 48
  %v5751 = vpop.permute.xlu0 %5750
  %5752 = vrot.lane.b32.xlu0 %v506, 67
  %v5753 = vpop.permute.xlu0 %5752
  %5754 = vrot.lane.b32.xlu0 %v507, 67
  %v5755 = vpop.permute.xlu0 %5754
  %5756 = vrot.lane.b32.xlu0 %v508, 67
  %v5757 = vpop.permute.xlu0 %5756
  %5758 = vrot.lane.b32.xlu0 %v509, 67
  %v5759 = vpop.permute.xlu0 %5758
  %5760 = vrot.lane.b32.xlu0 %v510, 67
  %v5761 = vpop.permute.xlu0 %5760
  %5762 = vrot.lane.b32.xlu0 %v511, 67
  %v5763 = vpop.permute.xlu0 %5762
  %5764 = vrot.lane.b32.xlu0 %v512, 67
  %v5765 = vpop.permute.xlu0 %5764
  %vm5766 = vcmask 547840
  %v5767 = vsel %vm5766, %v5753, %v5755
  %v5768 = vsel %vm5766, %v5755, %v5757
  %v5769 = vsel %vm5766, %v5757, %v5759
  %v5770 = vsel %vm5766, %v5759, %v5761
  %v5771 = vsel %vm5766, %v5761, %v5763
  %v5772 = vsel %vm5766, %v5763, %v5765
  %v5773 = vsel %vm545, %v5751, 0
  %v5775 = vsel %vm412, %v5767, 0
  %v5777 = vsel %vm412, %v5768, 0
  %v5779 = vsel %vm412, %v5769, 0
  %v5781 = vsel %vm412, %v5770, 0
  %v5783 = vsel %vm412, %v5771, 0
  %v5785 = vsel %vm412, %v5772, 0
  %v5787 = vsel %vm412, %v5765, 0
  %5789 = vmatprep.subr.mxu0 %v5777
  %5790 = vmatpush1.msra.mxu0 %v5775
  %5791 = vmatprep.subr.mxu0 0.0
  %5792 = vmatpush1.msra.mxu0 0.0
  %5793 = vmatprep.subr.mxu0 0.0
  %5794 = vmatpush1.msra.mxu0 0.0
  %5795 = vmatprep.subr.mxu0 0.0
  %5796 = vmatpush1.msra.mxu0 0.0
  %5797 = vmatprep.subr.mxu0 0.0
  %5798 = vmatpush1.msra.mxu0 0.0
  %5799 = vmatprep.subr.mxu0 0.0
  %5800 = vmatpush1.msra.mxu0 0.0
  %5801 = vmatprep.subr.mxu0 0.0
  %5802 = vmatpush1.msra.mxu0 0.0
  %5803 = vmatprep.subr.mxu0 0.0
  %5804 = vmatpush1.msra.mxu0 0.0
  %5805 = vmatprep.subr.mxu0 0.0
  %5806 = vmatpush1.msra.mxu0 0.0
  %5807 = vmatprep.subr.mxu0 0.0
  %5808 = vmatpush1.msra.mxu0 0.0
  %5809 = vmatprep.subr.mxu0 0.0
  %5810 = vmatpush1.msra.mxu0 0.0
  %5811 = vmatprep.subr.mxu0 0.0
  %5812 = vmatpush1.msra.mxu0 0.0
  %5813 = vmatprep.subr.mxu0 0.0
  %5814 = vmatpush1.msra.mxu0 0.0
  %5815 = vmatprep.subr.mxu0 0.0
  %5816 = vmatpush1.msra.mxu0 0.0
  %5817 = vmatprep.subr.mxu0 0.0
  %5818 = vmatpush1.msra.mxu0 0.0
  %5819 = vmatprep.subr.mxu0 0.0
  %5820 = vmatpush1.msra.mxu0 0.0
  %5821 = vmatprep.subr.mxu0 0.0
  %5822 = vmatpush1.msra.mxu0 0.0
  %5823 = vmatprep.subr.mxu0 0.0
  %5824 = vmatpush1.msra.mxu0 0.0
  %5825 = vmatprep.subr.mxu0 0.0
  %5826 = vmatpush1.msra.mxu0 0.0
  %5827 = vmatprep.subr.mxu0 0.0
  %5828 = vmatpush1.msra.mxu0 0.0
  %5829 = vmatprep.subr.mxu0 0.0
  %5830 = vmatpush1.msra.mxu0 0.0
  %5831 = vmatprep.subr.mxu0 0.0
  %5832 = vmatpush1.msra.mxu0 0.0
  %5833 = vmatprep.subr.mxu0 0.0
  %5834 = vmatpush1.msra.mxu0 0.0
  %5835 = vmatprep.subr.mxu0 0.0
  %5836 = vmatpush1.msra.mxu0 0.0
  %5837 = vmatprep.subr.mxu0 0.0
  %5838 = vmatpush1.msra.mxu0 0.0
  %5839 = vmatprep.subr.mxu0 0.0
  %5840 = vmatpush1.msra.mxu0 0.0
  %5841 = vmatprep.subr.mxu0 0.0
  %5842 = vmatpush1.msra.mxu0 0.0
  %5843 = vmatprep.subr.mxu0 0.0
  %5844 = vmatpush1.msra.mxu0 0.0
  %5845 = vmatprep.subr.mxu0 0.0
  %5846 = vmatpush1.msra.mxu0 0.0
  %5847 = vmatprep.subr.mxu0 0.0
  %5848 = vmatpush1.msra.mxu0 0.0
  %5849 = vmatprep.subr.mxu0 0.0
  %5850 = vmatpush1.msra.mxu0 0.0
  %5851 = vmatprep.subr.mxu0 0.0
  %5852 = vmatpush1.msra.mxu0 0.0
  %5853 = vmatprep.mubr.f32.mxu0 0.0
  %5854 = vmatmul.mubr.f32.gmra.mrb[0].mxu0 %v5773
  %v5855 = vpop.f32.mrb[0].mxu0
  %v5856 = vadd.f32 0.0, %v5855
  %v5857 = vpop.f32.mrb[0].mxu0
  %v5858 = vadd.f32 0.0, %v5857
  %5859 = vdwg.mxu0
  %5860 = vmatprep.subr.mxu0 %v5781
  %5861 = vmatpush1.msra.mxu0 %v5779
  %5862 = vmatprep.subr.mxu0 0.0
  %5863 = vmatpush1.msra.mxu0 0.0
  %5864 = vmatprep.subr.mxu0 0.0
  %5865 = vmatpush1.msra.mxu0 0.0
  %5866 = vmatprep.subr.mxu0 0.0
  %5867 = vmatpush1.msra.mxu0 0.0
  %5868 = vmatprep.subr.mxu0 0.0
  %5869 = vmatpush1.msra.mxu0 0.0
  %5870 = vmatprep.subr.mxu0 0.0
  %5871 = vmatpush1.msra.mxu0 0.0
  %5872 = vmatprep.subr.mxu0 0.0
  %5873 = vmatpush1.msra.mxu0 0.0
  %5874 = vmatprep.subr.mxu0 0.0
  %5875 = vmatpush1.msra.mxu0 0.0
  %5876 = vmatprep.subr.mxu0 0.0
  %5877 = vmatpush1.msra.mxu0 0.0
  %5878 = vmatprep.subr.mxu0 0.0
  %5879 = vmatpush1.msra.mxu0 0.0
  %5880 = vmatprep.subr.mxu0 0.0
  %5881 = vmatpush1.msra.mxu0 0.0
  %5882 = vmatprep.subr.mxu0 0.0
  %5883 = vmatpush1.msra.mxu0 0.0
  %5884 = vmatprep.subr.mxu0 0.0
  %5885 = vmatpush1.msra.mxu0 0.0
  %5886 = vmatprep.subr.mxu0 0.0
  %5887 = vmatpush1.msra.mxu0 0.0
  %5888 = vmatprep.subr.mxu0 0.0
  %5889 = vmatpush1.msra.mxu0 0.0
  %5890 = vmatprep.subr.mxu0 0.0
  %5891 = vmatpush1.msra.mxu0 0.0
  %5892 = vmatprep.subr.mxu0 0.0
  %5893 = vmatpush1.msra.mxu0 0.0
  %5894 = vmatprep.subr.mxu0 0.0
  %5895 = vmatpush1.msra.mxu0 0.0
  %5896 = vmatprep.subr.mxu0 0.0
  %5897 = vmatpush1.msra.mxu0 0.0
  %5898 = vmatprep.subr.mxu0 0.0
  %5899 = vmatpush1.msra.mxu0 0.0
  %5900 = vmatprep.subr.mxu0 0.0
  %5901 = vmatpush1.msra.mxu0 0.0
  %5902 = vmatprep.subr.mxu0 0.0
  %5903 = vmatpush1.msra.mxu0 0.0
  %5904 = vmatprep.subr.mxu0 0.0
  %5905 = vmatpush1.msra.mxu0 0.0
  %5906 = vmatprep.subr.mxu0 0.0
  %5907 = vmatpush1.msra.mxu0 0.0
  %5908 = vmatprep.subr.mxu0 0.0
  %5909 = vmatpush1.msra.mxu0 0.0
  %5910 = vmatprep.subr.mxu0 0.0
  %5911 = vmatpush1.msra.mxu0 0.0
  %5912 = vmatprep.subr.mxu0 0.0
  %5913 = vmatpush1.msra.mxu0 0.0
  %5914 = vmatprep.subr.mxu0 0.0
  %5915 = vmatpush1.msra.mxu0 0.0
  %5916 = vmatprep.subr.mxu0 0.0
  %5917 = vmatpush1.msra.mxu0 0.0
  %5918 = vmatprep.subr.mxu0 0.0
  %5919 = vmatpush1.msra.mxu0 0.0
  %5920 = vmatprep.subr.mxu0 0.0
  %5921 = vmatpush1.msra.mxu0 0.0
  %5922 = vmatprep.subr.mxu0 0.0
  %5923 = vmatpush1.msra.mxu0 0.0
  %5924 = vmatprep.mubr.f32.mxu0 0.0
  %5925 = vmatmul.mubr.f32.gmra.mrb[0].mxu0 %v5773
  %v5926 = vpop.f32.mrb[0].mxu0
  %v5927 = vadd.f32 0.0, %v5926
  %v5928 = vpop.f32.mrb[0].mxu0
  %v5929 = vadd.f32 0.0, %v5928
  %5930 = vdwg.mxu0
  %5931 = vmatprep.subr.mxu0 %v5785
  %5932 = vmatpush1.msra.mxu0 %v5783
  %5933 = vmatprep.subr.mxu0 0.0
  %5934 = vmatpush1.msra.mxu0 0.0
  %5935 = vmatprep.subr.mxu0 0.0
  %5936 = vmatpush1.msra.mxu0 0.0
  %5937 = vmatprep.subr.mxu0 0.0
  %5938 = vmatpush1.msra.mxu0 0.0
  %5939 = vmatprep.subr.mxu0 0.0
  %5940 = vmatpush1.msra.mxu0 0.0
  %5941 = vmatprep.subr.mxu0 0.0
  %5942 = vmatpush1.msra.mxu0 0.0
  %5943 = vmatprep.subr.mxu0 0.0
  %5944 = vmatpush1.msra.mxu0 0.0
  %5945 = vmatprep.subr.mxu0 0.0
  %5946 = vmatpush1.msra.mxu0 0.0
  %5947 = vmatprep.subr.mxu0 0.0
  %5948 = vmatpush1.msra.mxu0 0.0
  %5949 = vmatprep.subr.mxu0 0.0
  %5950 = vmatpush1.msra.mxu0 0.0
  %5951 = vmatprep.subr.mxu0 0.0
  %5952 = vmatpush1.msra.mxu0 0.0
  %5953 = vmatprep.subr.mxu0 0.0
  %5954 = vmatpush1.msra.mxu0 0.0
  %5955 = vmatprep.subr.mxu0 0.0
  %5956 = vmatpush1.msra.mxu0 0.0
  %5957 = vmatprep.subr.mxu0 0.0
  %5958 = vmatpush1.msra.mxu0 0.0
  %5959 = vmatprep.subr.mxu0 0.0
  %5960 = vmatpush1.msra.mxu0 0.0
  %5961 = vmatprep.subr.mxu0 0.0
  %5962 = vmatpush1.msra.mxu0 0.0
  %5963 = vmatprep.subr.mxu0 0.0
  %5964 = vmatpush1.msra.mxu0 0.0
  %5965 = vmatprep.subr.mxu0 0.0
  %5966 = vmatpush1.msra.mxu0 0.0
  %5967 = vmatprep.subr.mxu0 0.0
  %5968 = vmatpush1.msra.mxu0 0.0
  %5969 = vmatprep.subr.mxu0 0.0
  %5970 = vmatpush1.msra.mxu0 0.0
  %5971 = vmatprep.subr.mxu0 0.0
  %5972 = vmatpush1.msra.mxu0 0.0
  %5973 = vmatprep.subr.mxu0 0.0
  %5974 = vmatpush1.msra.mxu0 0.0
  %5975 = vmatprep.subr.mxu0 0.0
  %5976 = vmatpush1.msra.mxu0 0.0
  %5977 = vmatprep.subr.mxu0 0.0
  %5978 = vmatpush1.msra.mxu0 0.0
  %5979 = vmatprep.subr.mxu0 0.0
  %5980 = vmatpush1.msra.mxu0 0.0
  %5981 = vmatprep.subr.mxu0 0.0
  %5982 = vmatpush1.msra.mxu0 0.0
  %5983 = vmatprep.subr.mxu0 0.0
  %5984 = vmatpush1.msra.mxu0 0.0
  %5985 = vmatprep.subr.mxu0 0.0
  %5986 = vmatpush1.msra.mxu0 0.0
  %5987 = vmatprep.subr.mxu0 0.0
  %5988 = vmatpush1.msra.mxu0 0.0
  %5989 = vmatprep.subr.mxu0 0.0
  %5990 = vmatpush1.msra.mxu0 0.0
  %5991 = vmatprep.subr.mxu0 0.0
  %5992 = vmatpush1.msra.mxu0 0.0
  %5993 = vmatprep.subr.mxu0 0.0
  %5994 = vmatpush1.msra.mxu0 0.0
  %5995 = vmatprep.mubr.f32.mxu0 0.0
  %5996 = vmatmul.mubr.f32.gmra.mrb[0].mxu0 %v5773
  %v5997 = vpop.f32.mrb[0].mxu0
  %v5998 = vadd.f32 0.0, %v5997
  %v5999 = vpop.f32.mrb[0].mxu0
  %v6000 = vadd.f32 0.0, %v5999
  %6001 = vdwg.mxu0
  %6002 = vmatprep.subr.mxu0 0.0
  %6003 = vmatpush1.msra.mxu0 %v5787
  %6004 = vmatprep.subr.mxu0 0.0
  %6005 = vmatpush1.msra.mxu0 0.0
  %6006 = vmatprep.subr.mxu0 0.0
  %6007 = vmatpush1.msra.mxu0 0.0
  %6008 = vmatprep.subr.mxu0 0.0
  %6009 = vmatpush1.msra.mxu0 0.0
  %6010 = vmatprep.subr.mxu0 0.0
  %6011 = vmatpush1.msra.mxu0 0.0
  %6012 = vmatprep.subr.mxu0 0.0
  %6013 = vmatpush1.msra.mxu0 0.0
  %6014 = vmatprep.subr.mxu0 0.0
  %6015 = vmatpush1.msra.mxu0 0.0
  %6016 = vmatprep.subr.mxu0 0.0
  %6017 = vmatpush1.msra.mxu0 0.0
  %6018 = vmatprep.subr.mxu0 0.0
  %6019 = vmatpush1.msra.mxu0 0.0
  %6020 = vmatprep.subr.mxu0 0.0
  %6021 = vmatpush1.msra.mxu0 0.0
  %6022 = vmatprep.subr.mxu0 0.0
  %6023 = vmatpush1.msra.mxu0 0.0
  %6024 = vmatprep.subr.mxu0 0.0
  %6025 = vmatpush1.msra.mxu0 0.0
  %6026 = vmatprep.subr.mxu0 0.0
  %6027 = vmatpush1.msra.mxu0 0.0
  %6028 = vmatprep.subr.mxu0 0.0
  %6029 = vmatpush1.msra.mxu0 0.0
  %6030 = vmatprep.subr.mxu0 0.0
  %6031 = vmatpush1.msra.mxu0 0.0
  %6032 = vmatprep.subr.mxu0 0.0
  %6033 = vmatpush1.msra.mxu0 0.0
  %6034 = vmatprep.subr.mxu0 0.0
  %6035 = vmatpush1.msra.mxu0 0.0
  %6036 = vmatprep.subr.mxu0 0.0
  %6037 = vmatpush1.msra.mxu0 0.0
  %6038 = vmatprep.subr.mxu0 0.0
  %6039 = vmatpush1.msra.mxu0 0.0
  %6040 = vmatprep.subr.mxu0 0.0
  %6041 = vmatpush1.msra.mxu0 0.0
  %6042 = vmatprep.subr.mxu0 0.0
  %6043 = vmatpush1.msra.mxu0 0.0
  %6044 = vmatprep.subr.mxu0 0.0
  %6045 = vmatpush1.msra.mxu0 0.0
  %6046 = vmatprep.subr.mxu0 0.0
  %6047 = vmatpush1.msra.mxu0 0.0
  %6048 = vmatprep.subr.mxu0 0.0
  %6049 = vmatpush1.msra.mxu0 0.0
  %6050 = vmatprep.subr.mxu0 0.0
  %6051 = vmatpush1.msra.mxu0 0.0
  %6052 = vmatprep.subr.mxu0 0.0
  %6053 = vmatpush1.msra.mxu0 0.0
  %6054 = vmatprep.subr.mxu0 0.0
  %6055 = vmatpush1.msra.mxu0 0.0
  %6056 = vmatprep.subr.mxu0 0.0
  %6057 = vmatpush1.msra.mxu0 0.0
  %6058 = vmatprep.subr.mxu0 0.0
  %6059 = vmatpush1.msra.mxu0 0.0
  %6060 = vmatprep.subr.mxu0 0.0
  %6061 = vmatpush1.msra.mxu0 0.0
  %6062 = vmatprep.subr.mxu0 0.0
  %6063 = vmatpush1.msra.mxu0 0.0
  %6064 = vmatprep.subr.mxu0 0.0
  %6065 = vmatpush1.msra.mxu0 0.0
  %6066 = vmatprep.mubr.f32.mxu0 0.0
  %6067 = vmatmul.mubr.f32.gmra.mrb[0].mxu0 %v5773
  %v6068 = vpop.f32.mrb[0].mxu0
  %v6069 = vadd.f32 0.0, %v6068
  %v6070 = vpop.f32.mrb[0].mxu0
  %6071 = vdwg.mxu0
  %v6072 = vadd.f32 %v5743, %v5856
  %v6073 = vadd.f32 %v5744, %v5858
  %v6074 = vadd.f32 %v5745, %v5927
  %v6075 = vadd.f32 %v5746, %v5929
  %v6076 = vadd.f32 %v5747, %v5998
  %v6077 = vadd.f32 %v5748, %v6000
  %v6078 = vadd.f32 %v5749, %v6069
  %6079 = vrot.lane.b32.xlu0 %v513, 43
  %v6080 = vpop.permute.xlu0 %6079
  %6081 = vrot.lane.b32.xlu0 %v506, 66
  %v6082 = vpop.permute.xlu0 %6081
  %6083 = vrot.lane.b32.xlu0 %v507, 66
  %v6084 = vpop.permute.xlu0 %6083
  %6085 = vrot.lane.b32.xlu0 %v508, 66
  %v6086 = vpop.permute.xlu0 %6085
  %6087 = vrot.lane.b32.xlu0 %v509, 66
  %v6088 = vpop.permute.xlu0 %6087
  %6089 = vrot.lane.b32.xlu0 %v510, 66
  %v6090 = vpop.permute.xlu0 %6089
  %6091 = vrot.lane.b32.xlu0 %v511, 66
  %v6092 = vpop.permute.xlu0 %6091
  %6093 = vrot.lane.b32.xlu0 %v512, 66
  %v6094 = vpop.permute.xlu0 %6093
  %vm6095 = vcmask 539648
  %v6096 = vsel %vm6095, %v6082, %v6084
  %v6097 = vsel %vm6095, %v6084, %v6086
  %v6098 = vsel %vm6095, %v6086, %v6088
  %v6099 = vsel %vm6095, %v6088, %v6090
  %v6100 = vsel %vm6095, %v6090, %v6092
  %v6101 = vsel %vm6095, %v6092, %v6094
  %v6102 = vsel %vm545, %v6080, 0
  %v6104 = vsel %vm412, %v6096, 0
  %v6106 = vsel %vm412, %v6097, 0
  %v6108 = vsel %vm412, %v6098, 0
  %v6110 = vsel %vm412, %v6099, 0
  %v6112 = vsel %vm412, %v6100, 0
  %v6114 = vsel %vm412, %v6101, 0
  %v6116 = vsel %vm412, %v6094, 0
  %6118 = vmatprep.subr.mxu0 %v6106
  %6119 = vmatpush1.msra.mxu0 %v6104
  %6120 = vmatprep.subr.mxu0 0.0
  %6121 = vmatpush1.msra.mxu0 0.0
  %6122 = vmatprep.subr.mxu0 0.0
  %6123 = vmatpush1.msra.mxu0 0.0
  %6124 = vmatprep.subr.mxu0 0.0
  %6125 = vmatpush1.msra.mxu0 0.0
  %6126 = vmatprep.subr.mxu0 0.0
  %6127 = vmatpush1.msra.mxu0 0.0
  %6128 = vmatprep.subr.mxu0 0.0
  %6129 = vmatpush1.msra.mxu0 0.0
  %6130 = vmatprep.subr.mxu0 0.0
  %6131 = vmatpush1.msra.mxu0 0.0
  %6132 = vmatprep.subr.mxu0 0.0
  %6133 = vmatpush1.msra.mxu0 0.0
  %6134 = vmatprep.subr.mxu0 0.0
  %6135 = vmatpush1.msra.mxu0 0.0
  %6136 = vmatprep.subr.mxu0 0.0
  %6137 = vmatpush1.msra.mxu0 0.0
  %6138 = vmatprep.subr.mxu0 0.0
  %6139 = vmatpush1.msra.mxu0 0.0
  %6140 = vmatprep.subr.mxu0 0.0
  %6141 = vmatpush1.msra.mxu0 0.0
  %6142 = vmatprep.subr.mxu0 0.0
  %6143 = vmatpush1.msra.mxu0 0.0
  %6144 = vmatprep.subr.mxu0 0.0
  %6145 = vmatpush1.msra.mxu0 0.0
  %6146 = vmatprep.subr.mxu0 0.0
  %6147 = vmatpush1.msra.mxu0 0.0
  %6148 = vmatprep.subr.mxu0 0.0
  %6149 = vmatpush1.msra.mxu0 0.0
  %6150 = vmatprep.subr.mxu0 0.0
  %6151 = vmatpush1.msra.mxu0 0.0
  %6152 = vmatprep.subr.mxu0 0.0
  %6153 = vmatpush1.msra.mxu0 0.0
  %6154 = vmatprep.subr.mxu0 0.0
  %6155 = vmatpush1.msra.mxu0 0.0
  %6156 = vmatprep.subr.mxu0 0.0
  %6157 = vmatpush1.msra.mxu0 0.0
  %6158 = vmatprep.subr.mxu0 0.0
  %6159 = vmatpush1.msra.mxu0 0.0
  %6160 = vmatprep.subr.mxu0 0.0
  %6161 = vmatpush1.msra.mxu0 0.0
  %6162 = vmatprep.subr.mxu0 0.0
  %6163 = vmatpush1.msra.mxu0 0.0
  %6164 = vmatprep.subr.mxu0 0.0
  %6165 = vmatpush1.msra.mxu0 0.0
  %6166 = vmatprep.subr.mxu0 0.0
  %6167 = vmatpush1.msra.mxu0 0.0
  %6168 = vmatprep.subr.mxu0 0.0
  %6169 = vmatpush1.msra.mxu0 0.0
  %6170 = vmatprep.subr.mxu0 0.0
  %6171 = vmatpush1.msra.mxu0 0.0
  %6172 = vmatprep.subr.mxu0 0.0
  %6173 = vmatpush1.msra.mxu0 0.0
  %6174 = vmatprep.subr.mxu0 0.0
  %6175 = vmatpush1.msra.mxu0 0.0
  %6176 = vmatprep.subr.mxu0 0.0
  %6177 = vmatpush1.msra.mxu0 0.0
  %6178 = vmatprep.subr.mxu0 0.0
  %6179 = vmatpush1.msra.mxu0 0.0
  %6180 = vmatprep.subr.mxu0 0.0
  %6181 = vmatpush1.msra.mxu0 0.0
  %6182 = vmatprep.mubr.f32.mxu0 0.0
  %6183 = vmatmul.mubr.f32.gmra.mrb[0].mxu0 %v6102
  %v6184 = vpop.f32.mrb[0].mxu0
  %v6185 = vadd.f32 0.0, %v6184
  %v6186 = vpop.f32.mrb[0].mxu0
  %v6187 = vadd.f32 0.0, %v6186
  %6188 = vdwg.mxu0
  %6189 = vmatprep.subr.mxu0 %v6110
  %6190 = vmatpush1.msra.mxu0 %v6108
  %6191 = vmatprep.subr.mxu0 0.0
  %6192 = vmatpush1.msra.mxu0 0.0
  %6193 = vmatprep.subr.mxu0 0.0
  %6194 = vmatpush1.msra.mxu0 0.0
  %6195 = vmatprep.subr.mxu0 0.0
  %6196 = vmatpush1.msra.mxu0 0.0
  %6197 = vmatprep.subr.mxu0 0.0
  %6198 = vmatpush1.msra.mxu0 0.0
  %6199 = vmatprep.subr.mxu0 0.0
  %6200 = vmatpush1.msra.mxu0 0.0
  %6201 = vmatprep.subr.mxu0 0.0
  %6202 = vmatpush1.msra.mxu0 0.0
  %6203 = vmatprep.subr.mxu0 0.0
  %6204 = vmatpush1.msra.mxu0 0.0
  %6205 = vmatprep.subr.mxu0 0.0
  %6206 = vmatpush1.msra.mxu0 0.0
  %6207 = vmatprep.subr.mxu0 0.0
  %6208 = vmatpush1.msra.mxu0 0.0
  %6209 = vmatprep.subr.mxu0 0.0
  %6210 = vmatpush1.msra.mxu0 0.0
  %6211 = vmatprep.subr.mxu0 0.0
  %6212 = vmatpush1.msra.mxu0 0.0
  %6213 = vmatprep.subr.mxu0 0.0
  %6214 = vmatpush1.msra.mxu0 0.0
  %6215 = vmatprep.subr.mxu0 0.0
  %6216 = vmatpush1.msra.mxu0 0.0
  %6217 = vmatprep.subr.mxu0 0.0
  %6218 = vmatpush1.msra.mxu0 0.0
  %6219 = vmatprep.subr.mxu0 0.0
  %6220 = vmatpush1.msra.mxu0 0.0
  %6221 = vmatprep.subr.mxu0 0.0
  %6222 = vmatpush1.msra.mxu0 0.0
  %6223 = vmatprep.subr.mxu0 0.0
  %6224 = vmatpush1.msra.mxu0 0.0
  %6225 = vmatprep.subr.mxu0 0.0
  %6226 = vmatpush1.msra.mxu0 0.0
  %6227 = vmatprep.subr.mxu0 0.0
  %6228 = vmatpush1.msra.mxu0 0.0
  %6229 = vmatprep.subr.mxu0 0.0
  %6230 = vmatpush1.msra.mxu0 0.0
  %6231 = vmatprep.subr.mxu0 0.0
  %6232 = vmatpush1.msra.mxu0 0.0
  %6233 = vmatprep.subr.mxu0 0.0
  %6234 = vmatpush1.msra.mxu0 0.0
  %6235 = vmatprep.subr.mxu0 0.0
  %6236 = vmatpush1.msra.mxu0 0.0
  %6237 = vmatprep.subr.mxu0 0.0
  %6238 = vmatpush1.msra.mxu0 0.0
  %6239 = vmatprep.subr.mxu0 0.0
  %6240 = vmatpush1.msra.mxu0 0.0
  %6241 = vmatprep.subr.mxu0 0.0
  %6242 = vmatpush1.msra.mxu0 0.0
  %6243 = vmatprep.subr.mxu0 0.0
  %6244 = vmatpush1.msra.mxu0 0.0
  %6245 = vmatprep.subr.mxu0 0.0
  %6246 = vmatpush1.msra.mxu0 0.0
  %6247 = vmatprep.subr.mxu0 0.0
  %6248 = vmatpush1.msra.mxu0 0.0
  %6249 = vmatprep.subr.mxu0 0.0
  %6250 = vmatpush1.msra.mxu0 0.0
  %6251 = vmatprep.subr.mxu0 0.0
  %6252 = vmatpush1.msra.mxu0 0.0
  %6253 = vmatprep.mubr.f32.mxu0 0.0
  %6254 = vmatmul.mubr.f32.gmra.mrb[0].mxu0 %v6102
  %v6255 = vpop.f32.mrb[0].mxu0
  %v6256 = vadd.f32 0.0, %v6255
  %v6257 = vpop.f32.mrb[0].mxu0
  %v6258 = vadd.f32 0.0, %v6257
  %6259 = vdwg.mxu0
  %6260 = vmatprep.subr.mxu0 %v6114
  %6261 = vmatpush1.msra.mxu0 %v6112
  %6262 = vmatprep.subr.mxu0 0.0
  %6263 = vmatpush1.msra.mxu0 0.0
  %6264 = vmatprep.subr.mxu0 0.0
  %6265 = vmatpush1.msra.mxu0 0.0
  %6266 = vmatprep.subr.mxu0 0.0
  %6267 = vmatpush1.msra.mxu0 0.0
  %6268 = vmatprep.subr.mxu0 0.0
  %6269 = vmatpush1.msra.mxu0 0.0
  %6270 = vmatprep.subr.mxu0 0.0
  %6271 = vmatpush1.msra.mxu0 0.0
  %6272 = vmatprep.subr.mxu0 0.0
  %6273 = vmatpush1.msra.mxu0 0.0
  %6274 = vmatprep.subr.mxu0 0.0
  %6275 = vmatpush1.msra.mxu0 0.0
  %6276 = vmatprep.subr.mxu0 0.0
  %6277 = vmatpush1.msra.mxu0 0.0
  %6278 = vmatprep.subr.mxu0 0.0
  %6279 = vmatpush1.msra.mxu0 0.0
  %6280 = vmatprep.subr.mxu0 0.0
  %6281 = vmatpush1.msra.mxu0 0.0
  %6282 = vmatprep.subr.mxu0 0.0
  %6283 = vmatpush1.msra.mxu0 0.0
  %6284 = vmatprep.subr.mxu0 0.0
  %6285 = vmatpush1.msra.mxu0 0.0
  %6286 = vmatprep.subr.mxu0 0.0
  %6287 = vmatpush1.msra.mxu0 0.0
  %6288 = vmatprep.subr.mxu0 0.0
  %6289 = vmatpush1.msra.mxu0 0.0
  %6290 = vmatprep.subr.mxu0 0.0
  %6291 = vmatpush1.msra.mxu0 0.0
  %6292 = vmatprep.subr.mxu0 0.0
  %6293 = vmatpush1.msra.mxu0 0.0
  %6294 = vmatprep.subr.mxu0 0.0
  %6295 = vmatpush1.msra.mxu0 0.0
  %6296 = vmatprep.subr.mxu0 0.0
  %6297 = vmatpush1.msra.mxu0 0.0
  %6298 = vmatprep.subr.mxu0 0.0
  %6299 = vmatpush1.msra.mxu0 0.0
  %6300 = vmatprep.subr.mxu0 0.0
  %6301 = vmatpush1.msra.mxu0 0.0
  %6302 = vmatprep.subr.mxu0 0.0
  %6303 = vmatpush1.msra.mxu0 0.0
  %6304 = vmatprep.subr.mxu0 0.0
  %6305 = vmatpush1.msra.mxu0 0.0
  %6306 = vmatprep.subr.mxu0 0.0
  %6307 = vmatpush1.msra.mxu0 0.0
  %6308 = vmatprep.subr.mxu0 0.0
  %6309 = vmatpush1.msra.mxu0 0.0
  %6310 = vmatprep.subr.mxu0 0.0
  %6311 = vmatpush1.msra.mxu0 0.0
  %6312 = vmatprep.subr.mxu0 0.0
  %6313 = vmatpush1.msra.mxu0 0.0
  %6314 = vmatprep.subr.mxu0 0.0
  %6315 = vmatpush1.msra.mxu0 0.0
  %6316 = vmatprep.subr.mxu0 0.0
  %6317 = vmatpush1.msra.mxu0 0.0
  %6318 = vmatprep.subr.mxu0 0.0
  %6319 = vmatpush1.msra.mxu0 0.0
  %6320 = vmatprep.subr.mxu0 0.0
  %6321 = vmatpush1.msra.mxu0 0.0
  %6322 = vmatprep.subr.mxu0 0.0
  %6323 = vmatpush1.msra.mxu0 0.0
  %6324 = vmatprep.mubr.f32.mxu0 0.0
  %6325 = vmatmul.mubr.f32.gmra.mrb[0].mxu0 %v6102
  %v6326 = vpop.f32.mrb[0].mxu0
  %v6327 = vadd.f32 0.0, %v6326
  %v6328 = vpop.f32.mrb[0].mxu0
  %v6329 = vadd.f32 0.0, %v6328
  %6330 = vdwg.mxu0
  %6331 = vmatprep.subr.mxu0 0.0
  %6332 = vmatpush1.msra.mxu0 %v6116
  %6333 = vmatprep.subr.mxu0 0.0
  %6334 = vmatpush1.msra.mxu0 0.0
  %6335 = vmatprep.subr.mxu0 0.0
  %6336 = vmatpush1.msra.mxu0 0.0
  %6337 = vmatprep.subr.mxu0 0.0
  %6338 = vmatpush1.msra.mxu0 0.0
  %6339 = vmatprep.subr.mxu0 0.0
  %6340 = vmatpush1.msra.mxu0 0.0
  %6341 = vmatprep.subr.mxu0 0.0
  %6342 = vmatpush1.msra.mxu0 0.0
  %6343 = vmatprep.subr.mxu0 0.0
  %6344 = vmatpush1.msra.mxu0 0.0
  %6345 = vmatprep.subr.mxu0 0.0
  %6346 = vmatpush1.msra.mxu0 0.0
  %6347 = vmatprep.subr.mxu0 0.0
  %6348 = vmatpush1.msra.mxu0 0.0
  %6349 = vmatprep.subr.mxu0 0.0
  %6350 = vmatpush1.msra.mxu0 0.0
  %6351 = vmatprep.subr.mxu0 0.0
  %6352 = vmatpush1.msra.mxu0 0.0
  %6353 = vmatprep.subr.mxu0 0.0
  %6354 = vmatpush1.msra.mxu0 0.0
  %6355 = vmatprep.subr.mxu0 0.0
  %6356 = vmatpush1.msra.mxu0 0.0
  %6357 = vmatprep.subr.mxu0 0.0
  %6358 = vmatpush1.msra.mxu0 0.0
  %6359 = vmatprep.subr.mxu0 0.0
  %6360 = vmatpush1.msra.mxu0 0.0
  %6361 = vmatprep.subr.mxu0 0.0
  %6362 = vmatpush1.msra.mxu0 0.0
  %6363 = vmatprep.subr.mxu0 0.0
  %6364 = vmatpush1.msra.mxu0 0.0
  %6365 = vmatprep.subr.mxu0 0.0
  %6366 = vmatpush1.msra.mxu0 0.0
  %6367 = vmatprep.subr.mxu0 0.0
  %6368 = vmatpush1.msra.mxu0 0.0
  %6369 = vmatprep.subr.mxu0 0.0
  %6370 = vmatpush1.msra.mxu0 0.0
  %6371 = vmatprep.subr.mxu0 0.0
  %6372 = vmatpush1.msra.mxu0 0.0
  %6373 = vmatprep.subr.mxu0 0.0
  %6374 = vmatpush1.msra.mxu0 0.0
  %6375 = vmatprep.subr.mxu0 0.0
  %6376 = vmatpush1.msra.mxu0 0.0
  %6377 = vmatprep.subr.mxu0 0.0
  %6378 = vmatpush1.msra.mxu0 0.0
  %6379 = vmatprep.subr.mxu0 0.0
  %6380 = vmatpush1.msra.mxu0 0.0
  %6381 = vmatprep.subr.mxu0 0.0
  %6382 = vmatpush1.msra.mxu0 0.0
  %6383 = vmatprep.subr.mxu0 0.0
  %6384 = vmatpush1.msra.mxu0 0.0
  %6385 = vmatprep.subr.mxu0 0.0
  %6386 = vmatpush1.msra.mxu0 0.0
  %6387 = vmatprep.subr.mxu0 0.0
  %6388 = vmatpush1.msra.mxu0 0.0
  %6389 = vmatprep.subr.mxu0 0.0
  %6390 = vmatpush1.msra.mxu0 0.0
  %6391 = vmatprep.subr.mxu0 0.0
  %6392 = vmatpush1.msra.mxu0 0.0
  %6393 = vmatprep.subr.mxu0 0.0
  %6394 = vmatpush1.msra.mxu0 0.0
  %6395 = vmatprep.mubr.f32.mxu0 0.0
  %6396 = vmatmul.mubr.f32.gmra.mrb[0].mxu0 %v6102
  %v6397 = vpop.f32.mrb[0].mxu0
  %v6398 = vadd.f32 0.0, %v6397
  %v6399 = vpop.f32.mrb[0].mxu0
  %6400 = vdwg.mxu0
  %v6401 = vadd.f32 %v6072, %v6185
  %v6402 = vadd.f32 %v6073, %v6187
  %v6403 = vadd.f32 %v6074, %v6256
  %v6404 = vadd.f32 %v6075, %v6258
  %v6405 = vadd.f32 %v6076, %v6327
  %v6406 = vadd.f32 %v6077, %v6329
  %v6407 = vadd.f32 %v6078, %v6398
  %6408 = vrot.lane.b32.xlu0 %v513, 38
  %v6409 = vpop.permute.xlu0 %6408
  %6410 = vrot.lane.b32.xlu0 %v506, 65
  %v6411 = vpop.permute.xlu0 %6410
  %6412 = vrot.lane.b32.xlu0 %v507, 65
  %v6413 = vpop.permute.xlu0 %6412
  %6414 = vrot.lane.b32.xlu0 %v508, 65
  %v6415 = vpop.permute.xlu0 %6414
  %6416 = vrot.lane.b32.xlu0 %v509, 65
  %v6417 = vpop.permute.xlu0 %6416
  %6418 = vrot.lane.b32.xlu0 %v510, 65
  %v6419 = vpop.permute.xlu0 %6418
  %6420 = vrot.lane.b32.xlu0 %v511, 65
  %v6421 = vpop.permute.xlu0 %6420
  %6422 = vrot.lane.b32.xlu0 %v512, 65
  %v6423 = vpop.permute.xlu0 %6422
  %vm6424 = vcmask 531456
  %v6425 = vsel %vm6424, %v6411, %v6413
  %v6426 = vsel %vm6424, %v6413, %v6415
  %v6427 = vsel %vm6424, %v6415, %v6417
  %v6428 = vsel %vm6424, %v6417, %v6419
  %v6429 = vsel %vm6424, %v6419, %v6421
  %v6430 = vsel %vm6424, %v6421, %v6423
  %v6431 = vsel %vm545, %v6409, 0
  %v6433 = vsel %vm412, %v6425, 0
  %v6435 = vsel %vm412, %v6426, 0
  %v6437 = vsel %vm412, %v6427, 0
  %v6439 = vsel %vm412, %v6428, 0
  %v6441 = vsel %vm412, %v6429, 0
  %v6443 = vsel %vm412, %v6430, 0
  %v6445 = vsel %vm412, %v6423, 0
  %6447 = vmatprep.subr.mxu0 %v6435
  %6448 = vmatpush1.msra.mxu0 %v6433
  %6449 = vmatprep.subr.mxu0 0.0
  %6450 = vmatpush1.msra.mxu0 0.0
  %6451 = vmatprep.subr.mxu0 0.0
  %6452 = vmatpush1.msra.mxu0 0.0
  %6453 = vmatprep.subr.mxu0 0.0
  %6454 = vmatpush1.msra.mxu0 0.0
  %6455 = vmatprep.subr.mxu0 0.0
  %6456 = vmatpush1.msra.mxu0 0.0
  %6457 = vmatprep.subr.mxu0 0.0
  %6458 = vmatpush1.msra.mxu0 0.0
  %6459 = vmatprep.subr.mxu0 0.0
  %6460 = vmatpush1.msra.mxu0 0.0
  %6461 = vmatprep.subr.mxu0 0.0
  %6462 = vmatpush1.msra.mxu0 0.0
  %6463 = vmatprep.subr.mxu0 0.0
  %6464 = vmatpush1.msra.mxu0 0.0
  %6465 = vmatprep.subr.mxu0 0.0
  %6466 = vmatpush1.msra.mxu0 0.0
  %6467 = vmatprep.subr.mxu0 0.0
  %6468 = vmatpush1.msra.mxu0 0.0
  %6469 = vmatprep.subr.mxu0 0.0
  %6470 = vmatpush1.msra.mxu0 0.0
  %6471 = vmatprep.subr.mxu0 0.0
  %6472 = vmatpush1.msra.mxu0 0.0
  %6473 = vmatprep.subr.mxu0 0.0
  %6474 = vmatpush1.msra.mxu0 0.0
  %6475 = vmatprep.subr.mxu0 0.0
  %6476 = vmatpush1.msra.mxu0 0.0
  %6477 = vmatprep.subr.mxu0 0.0
  %6478 = vmatpush1.msra.mxu0 0.0
  %6479 = vmatprep.subr.mxu0 0.0
  %6480 = vmatpush1.msra.mxu0 0.0
  %6481 = vmatprep.subr.mxu0 0.0
  %6482 = vmatpush1.msra.mxu0 0.0
  %6483 = vmatprep.subr.mxu0 0.0
  %6484 = vmatpush1.msra.mxu0 0.0
  %6485 = vmatprep.subr.mxu0 0.0
  %6486 = vmatpush1.msra.mxu0 0.0
  %6487 = vmatprep.subr.mxu0 0.0
  %6488 = vmatpush1.msra.mxu0 0.0
  %6489 = vmatprep.subr.mxu0 0.0
  %6490 = vmatpush1.msra.mxu0 0.0
  %6491 = vmatprep.subr.mxu0 0.0
  %6492 = vmatpush1.msra.mxu0 0.0
  %6493 = vmatprep.subr.mxu0 0.0
  %6494 = vmatpush1.msra.mxu0 0.0
  %6495 = vmatprep.subr.mxu0 0.0
  %6496 = vmatpush1.msra.mxu0 0.0
  %6497 = vmatprep.subr.mxu0 0.0
  %6498 = vmatpush1.msra.mxu0 0.0
  %6499 = vmatprep.subr.mxu0 0.0
  %6500 = vmatpush1.msra.mxu0 0.0
  %6501 = vmatprep.subr.mxu0 0.0
  %6502 = vmatpush1.msra.mxu0 0.0
  %6503 = vmatprep.subr.mxu0 0.0
  %6504 = vmatpush1.msra.mxu0 0.0
  %6505 = vmatprep.subr.mxu0 0.0
  %6506 = vmatpush1.msra.mxu0 0.0
  %6507 = vmatprep.subr.mxu0 0.0
  %6508 = vmatpush1.msra.mxu0 0.0
  %6509 = vmatprep.subr.mxu0 0.0
  %6510 = vmatpush1.msra.mxu0 0.0
  %6511 = vmatprep.mubr.f32.mxu0 0.0
  %6512 = vmatmul.mubr.f32.gmra.mrb[0].mxu0 %v6431
  %v6513 = vpop.f32.mrb[0].mxu0
  %v6514 = vadd.f32 0.0, %v6513
  %v6515 = vpop.f32.mrb[0].mxu0
  %v6516 = vadd.f32 0.0, %v6515
  %6517 = vdwg.mxu0
  %6518 = vmatprep.subr.mxu0 %v6439
  %6519 = vmatpush1.msra.mxu0 %v6437
  %6520 = vmatprep.subr.mxu0 0.0
  %6521 = vmatpush1.msra.mxu0 0.0
  %6522 = vmatprep.subr.mxu0 0.0
  %6523 = vmatpush1.msra.mxu0 0.0
  %6524 = vmatprep.subr.mxu0 0.0
  %6525 = vmatpush1.msra.mxu0 0.0
  %6526 = vmatprep.subr.mxu0 0.0
  %6527 = vmatpush1.msra.mxu0 0.0
  %6528 = vmatprep.subr.mxu0 0.0
  %6529 = vmatpush1.msra.mxu0 0.0
  %6530 = vmatprep.subr.mxu0 0.0
  %6531 = vmatpush1.msra.mxu0 0.0
  %6532 = vmatprep.subr.mxu0 0.0
  %6533 = vmatpush1.msra.mxu0 0.0
  %6534 = vmatprep.subr.mxu0 0.0
  %6535 = vmatpush1.msra.mxu0 0.0
  %6536 = vmatprep.subr.mxu0 0.0
  %6537 = vmatpush1.msra.mxu0 0.0
  %6538 = vmatprep.subr.mxu0 0.0
  %6539 = vmatpush1.msra.mxu0 0.0
  %6540 = vmatprep.subr.mxu0 0.0
  %6541 = vmatpush1.msra.mxu0 0.0
  %6542 = vmatprep.subr.mxu0 0.0
  %6543 = vmatpush1.msra.mxu0 0.0
  %6544 = vmatprep.subr.mxu0 0.0
  %6545 = vmatpush1.msra.mxu0 0.0
  %6546 = vmatprep.subr.mxu0 0.0
  %6547 = vmatpush1.msra.mxu0 0.0
  %6548 = vmatprep.subr.mxu0 0.0
  %6549 = vmatpush1.msra.mxu0 0.0
  %6550 = vmatprep.subr.mxu0 0.0
  %6551 = vmatpush1.msra.mxu0 0.0
  %6552 = vmatprep.subr.mxu0 0.0
  %6553 = vmatpush1.msra.mxu0 0.0
  %6554 = vmatprep.subr.mxu0 0.0
  %6555 = vmatpush1.msra.mxu0 0.0
  %6556 = vmatprep.subr.mxu0 0.0
  %6557 = vmatpush1.msra.mxu0 0.0
  %6558 = vmatprep.subr.mxu0 0.0
  %6559 = vmatpush1.msra.mxu0 0.0
  %6560 = vmatprep.subr.mxu0 0.0
  %6561 = vmatpush1.msra.mxu0 0.0
  %6562 = vmatprep.subr.mxu0 0.0
  %6563 = vmatpush1.msra.mxu0 0.0
  %6564 = vmatprep.subr.mxu0 0.0
  %6565 = vmatpush1.msra.mxu0 0.0
  %6566 = vmatprep.subr.mxu0 0.0
  %6567 = vmatpush1.msra.mxu0 0.0
  %6568 = vmatprep.subr.mxu0 0.0
  %6569 = vmatpush1.msra.mxu0 0.0
  %6570 = vmatprep.subr.mxu0 0.0
  %6571 = vmatpush1.msra.mxu0 0.0
  %6572 = vmatprep.subr.mxu0 0.0
  %6573 = vmatpush1.msra.mxu0 0.0
  %6574 = vmatprep.subr.mxu0 0.0
  %6575 = vmatpush1.msra.mxu0 0.0
  %6576 = vmatprep.subr.mxu0 0.0
  %6577 = vmatpush1.msra.mxu0 0.0
  %6578 = vmatprep.subr.mxu0 0.0
  %6579 = vmatpush1.msra.mxu0 0.0
  %6580 = vmatprep.subr.mxu0 0.0
  %6581 = vmatpush1.msra.mxu0 0.0
  %6582 = vmatprep.mubr.f32.mxu0 0.0
  %6583 = vmatmul.mubr.f32.gmra.mrb[0].mxu0 %v6431
  %v6584 = vpop.f32.mrb[0].mxu0
  %v6585 = vadd.f32 0.0, %v6584
  %v6586 = vpop.f32.mrb[0].mxu0
  %v6587 = vadd.f32 0.0, %v6586
  %6588 = vdwg.mxu0
  %6589 = vmatprep.subr.mxu0 %v6443
  %6590 = vmatpush1.msra.mxu0 %v6441
  %6591 = vmatprep.subr.mxu0 0.0
  %6592 = vmatpush1.msra.mxu0 0.0
  %6593 = vmatprep.subr.mxu0 0.0
  %6594 = vmatpush1.msra.mxu0 0.0
  %6595 = vmatprep.subr.mxu0 0.0
  %6596 = vmatpush1.msra.mxu0 0.0
  %6597 = vmatprep.subr.mxu0 0.0
  %6598 = vmatpush1.msra.mxu0 0.0
  %6599 = vmatprep.subr.mxu0 0.0
  %6600 = vmatpush1.msra.mxu0 0.0
  %6601 = vmatprep.subr.mxu0 0.0
  %6602 = vmatpush1.msra.mxu0 0.0
  %6603 = vmatprep.subr.mxu0 0.0
  %6604 = vmatpush1.msra.mxu0 0.0
  %6605 = vmatprep.subr.mxu0 0.0
  %6606 = vmatpush1.msra.mxu0 0.0
  %6607 = vmatprep.subr.mxu0 0.0
  %6608 = vmatpush1.msra.mxu0 0.0
  %6609 = vmatprep.subr.mxu0 0.0
  %6610 = vmatpush1.msra.mxu0 0.0
  %6611 = vmatprep.subr.mxu0 0.0
  %6612 = vmatpush1.msra.mxu0 0.0
  %6613 = vmatprep.subr.mxu0 0.0
  %6614 = vmatpush1.msra.mxu0 0.0
  %6615 = vmatprep.subr.mxu0 0.0
  %6616 = vmatpush1.msra.mxu0 0.0
  %6617 = vmatprep.subr.mxu0 0.0
  %6618 = vmatpush1.msra.mxu0 0.0
  %6619 = vmatprep.subr.mxu0 0.0
  %6620 = vmatpush1.msra.mxu0 0.0
  %6621 = vmatprep.subr.mxu0 0.0
  %6622 = vmatpush1.msra.mxu0 0.0
  %6623 = vmatprep.subr.mxu0 0.0
  %6624 = vmatpush1.msra.mxu0 0.0
  %6625 = vmatprep.subr.mxu0 0.0
  %6626 = vmatpush1.msra.mxu0 0.0
  %6627 = vmatprep.subr.mxu0 0.0
  %6628 = vmatpush1.msra.mxu0 0.0
  %6629 = vmatprep.subr.mxu0 0.0
  %6630 = vmatpush1.msra.mxu0 0.0
  %6631 = vmatprep.subr.mxu0 0.0
  %6632 = vmatpush1.msra.mxu0 0.0
  %6633 = vmatprep.subr.mxu0 0.0
  %6634 = vmatpush1.msra.mxu0 0.0
  %6635 = vmatprep.subr.mxu0 0.0
  %6636 = vmatpush1.msra.mxu0 0.0
  %6637 = vmatprep.subr.mxu0 0.0
  %6638 = vmatpush1.msra.mxu0 0.0
  %6639 = vmatprep.subr.mxu0 0.0
  %6640 = vmatpush1.msra.mxu0 0.0
  %6641 = vmatprep.subr.mxu0 0.0
  %6642 = vmatpush1.msra.mxu0 0.0
  %6643 = vmatprep.subr.mxu0 0.0
  %6644 = vmatpush1.msra.mxu0 0.0
  %6645 = vmatprep.subr.mxu0 0.0
  %6646 = vmatpush1.msra.mxu0 0.0
  %6647 = vmatprep.subr.mxu0 0.0
  %6648 = vmatpush1.msra.mxu0 0.0
  %6649 = vmatprep.subr.mxu0 0.0
  %6650 = vmatpush1.msra.mxu0 0.0
  %6651 = vmatprep.subr.mxu0 0.0
  %6652 = vmatpush1.msra.mxu0 0.0
  %6653 = vmatprep.mubr.f32.mxu0 0.0
  %6654 = vmatmul.mubr.f32.gmra.mrb[0].mxu0 %v6431
  %v6655 = vpop.f32.mrb[0].mxu0
  %v6656 = vadd.f32 0.0, %v6655
  %v6657 = vpop.f32.mrb[0].mxu0
  %v6658 = vadd.f32 0.0, %v6657
  %6659 = vdwg.mxu0
  %6660 = vmatprep.subr.mxu0 0.0
  %6661 = vmatpush1.msra.mxu0 %v6445
  %6662 = vmatprep.subr.mxu0 0.0
  %6663 = vmatpush1.msra.mxu0 0.0
  %6664 = vmatprep.subr.mxu0 0.0
  %6665 = vmatpush1.msra.mxu0 0.0
  %6666 = vmatprep.subr.mxu0 0.0
  %6667 = vmatpush1.msra.mxu0 0.0
  %6668 = vmatprep.subr.mxu0 0.0
  %6669 = vmatpush1.msra.mxu0 0.0
  %6670 = vmatprep.subr.mxu0 0.0
  %6671 = vmatpush1.msra.mxu0 0.0
  %6672 = vmatprep.subr.mxu0 0.0
  %6673 = vmatpush1.msra.mxu0 0.0
  %6674 = vmatprep.subr.mxu0 0.0
  %6675 = vmatpush1.msra.mxu0 0.0
  %6676 = vmatprep.subr.mxu0 0.0
  %6677 = vmatpush1.msra.mxu0 0.0
  %6678 = vmatprep.subr.mxu0 0.0
  %6679 = vmatpush1.msra.mxu0 0.0
  %6680 = vmatprep.subr.mxu0 0.0
  %6681 = vmatpush1.msra.mxu0 0.0
  %6682 = vmatprep.subr.mxu0 0.0
  %6683 = vmatpush1.msra.mxu0 0.0
  %6684 = vmatprep.subr.mxu0 0.0
  %6685 = vmatpush1.msra.mxu0 0.0
  %6686 = vmatprep.subr.mxu0 0.0
  %6687 = vmatpush1.msra.mxu0 0.0
  %6688 = vmatprep.subr.mxu0 0.0
  %6689 = vmatpush1.msra.mxu0 0.0
  %6690 = vmatprep.subr.mxu0 0.0
  %6691 = vmatpush1.msra.mxu0 0.0
  %6692 = vmatprep.subr.mxu0 0.0
  %6693 = vmatpush1.msra.mxu0 0.0
  %6694 = vmatprep.subr.mxu0 0.0
  %6695 = vmatpush1.msra.mxu0 0.0
  %6696 = vmatprep.subr.mxu0 0.0
  %6697 = vmatpush1.msra.mxu0 0.0
  %6698 = vmatprep.subr.mxu0 0.0
  %6699 = vmatpush1.msra.mxu0 0.0
  %6700 = vmatprep.subr.mxu0 0.0
  %6701 = vmatpush1.msra.mxu0 0.0
  %6702 = vmatprep.subr.mxu0 0.0
  %6703 = vmatpush1.msra.mxu0 0.0
  %6704 = vmatprep.subr.mxu0 0.0
  %6705 = vmatpush1.msra.mxu0 0.0
  %6706 = vmatprep.subr.mxu0 0.0
  %6707 = vmatpush1.msra.mxu0 0.0
  %6708 = vmatprep.subr.mxu0 0.0
  %6709 = vmatpush1.msra.mxu0 0.0
  %6710 = vmatprep.subr.mxu0 0.0
  %6711 = vmatpush1.msra.mxu0 0.0
  %6712 = vmatprep.subr.mxu0 0.0
  %6713 = vmatpush1.msra.mxu0 0.0
  %6714 = vmatprep.subr.mxu0 0.0
  %6715 = vmatpush1.msra.mxu0 0.0
  %6716 = vmatprep.subr.mxu0 0.0
  %6717 = vmatpush1.msra.mxu0 0.0
  %6718 = vmatprep.subr.mxu0 0.0
  %6719 = vmatpush1.msra.mxu0 0.0
  %6720 = vmatprep.subr.mxu0 0.0
  %6721 = vmatpush1.msra.mxu0 0.0
  %6722 = vmatprep.subr.mxu0 0.0
  %6723 = vmatpush1.msra.mxu0 0.0
  %6724 = vmatprep.mubr.f32.mxu0 0.0
  %6725 = vmatmul.mubr.f32.gmra.mrb[0].mxu0 %v6431
  %v6726 = vpop.f32.mrb[0].mxu0
  %v6727 = vadd.f32 0.0, %v6726
  %v6728 = vpop.f32.mrb[0].mxu0
  %6729 = vdwg.mxu0
  %v6730 = vadd.f32 %v6401, %v6514
  %v6731 = vadd.f32 %v6402, %v6516
  %v6732 = vadd.f32 %v6403, %v6585
  %v6733 = vadd.f32 %v6404, %v6587
  %v6734 = vadd.f32 %v6405, %v6656
  %v6735 = vadd.f32 %v6406, %v6658
  %v6736 = vadd.f32 %v6407, %v6727
  %6737 = vrot.lane.b32.xlu0 %v513, 33
  %v6738 = vpop.permute.xlu0 %6737
  %6739 = vrot.lane.b32.xlu0 %v506, 64
  %v6740 = vpop.permute.xlu0 %6739
  %6741 = vrot.lane.b32.xlu0 %v507, 64
  %v6742 = vpop.permute.xlu0 %6741
  %6743 = vrot.lane.b32.xlu0 %v508, 64
  %v6744 = vpop.permute.xlu0 %6743
  %6745 = vrot.lane.b32.xlu0 %v509, 64
  %v6746 = vpop.permute.xlu0 %6745
  %6747 = vrot.lane.b32.xlu0 %v510, 64
  %v6748 = vpop.permute.xlu0 %6747
  %6749 = vrot.lane.b32.xlu0 %v511, 64
  %v6750 = vpop.permute.xlu0 %6749
  %6751 = vrot.lane.b32.xlu0 %v512, 64
  %v6752 = vpop.permute.xlu0 %6751
  %vm6753 = vcmask 523264
  %v6754 = vsel %vm6753, %v6740, %v6742
  %v6755 = vsel %vm6753, %v6742, %v6744
  %v6756 = vsel %vm6753, %v6744, %v6746
  %v6757 = vsel %vm6753, %v6746, %v6748
  %v6758 = vsel %vm6753, %v6748, %v6750
  %v6759 = vsel %vm6753, %v6750, %v6752
  %v6760 = vsel %vm545, %v6738, 0
  %v6762 = vsel %vm412, %v6754, 0
  %v6764 = vsel %vm412, %v6755, 0
  %v6766 = vsel %vm412, %v6756, 0
  %v6768 = vsel %vm412, %v6757, 0
  %v6770 = vsel %vm412, %v6758, 0
  %v6772 = vsel %vm412, %v6759, 0
  %v6774 = vsel %vm412, %v6752, 0
  %6776 = vmatprep.subr.mxu0 %v6764
  %6777 = vmatpush1.msra.mxu0 %v6762
  %6778 = vmatprep.subr.mxu0 0.0
  %6779 = vmatpush1.msra.mxu0 0.0
  %6780 = vmatprep.subr.mxu0 0.0
  %6781 = vmatpush1.msra.mxu0 0.0
  %6782 = vmatprep.subr.mxu0 0.0
  %6783 = vmatpush1.msra.mxu0 0.0
  %6784 = vmatprep.subr.mxu0 0.0
  %6785 = vmatpush1.msra.mxu0 0.0
  %6786 = vmatprep.subr.mxu0 0.0
  %6787 = vmatpush1.msra.mxu0 0.0
  %6788 = vmatprep.subr.mxu0 0.0
  %6789 = vmatpush1.msra.mxu0 0.0
  %6790 = vmatprep.subr.mxu0 0.0
  %6791 = vmatpush1.msra.mxu0 0.0
  %6792 = vmatprep.subr.mxu0 0.0
  %6793 = vmatpush1.msra.mxu0 0.0
  %6794 = vmatprep.subr.mxu0 0.0
  %6795 = vmatpush1.msra.mxu0 0.0
  %6796 = vmatprep.subr.mxu0 0.0
  %6797 = vmatpush1.msra.mxu0 0.0
  %6798 = vmatprep.subr.mxu0 0.0
  %6799 = vmatpush1.msra.mxu0 0.0
  %6800 = vmatprep.subr.mxu0 0.0
  %6801 = vmatpush1.msra.mxu0 0.0
  %6802 = vmatprep.subr.mxu0 0.0
  %6803 = vmatpush1.msra.mxu0 0.0
  %6804 = vmatprep.subr.mxu0 0.0
  %6805 = vmatpush1.msra.mxu0 0.0
  %6806 = vmatprep.subr.mxu0 0.0
  %6807 = vmatpush1.msra.mxu0 0.0
  %6808 = vmatprep.subr.mxu0 0.0
  %6809 = vmatpush1.msra.mxu0 0.0
  %6810 = vmatprep.subr.mxu0 0.0
  %6811 = vmatpush1.msra.mxu0 0.0
  %6812 = vmatprep.subr.mxu0 0.0
  %6813 = vmatpush1.msra.mxu0 0.0
  %6814 = vmatprep.subr.mxu0 0.0
  %6815 = vmatpush1.msra.mxu0 0.0
  %6816 = vmatprep.subr.mxu0 0.0
  %6817 = vmatpush1.msra.mxu0 0.0
  %6818 = vmatprep.subr.mxu0 0.0
  %6819 = vmatpush1.msra.mxu0 0.0
  %6820 = vmatprep.subr.mxu0 0.0
  %6821 = vmatpush1.msra.mxu0 0.0
  %6822 = vmatprep.subr.mxu0 0.0
  %6823 = vmatpush1.msra.mxu0 0.0
  %6824 = vmatprep.subr.mxu0 0.0
  %6825 = vmatpush1.msra.mxu0 0.0
  %6826 = vmatprep.subr.mxu0 0.0
  %6827 = vmatpush1.msra.mxu0 0.0
  %6828 = vmatprep.subr.mxu0 0.0
  %6829 = vmatpush1.msra.mxu0 0.0
  %6830 = vmatprep.subr.mxu0 0.0
  %6831 = vmatpush1.msra.mxu0 0.0
  %6832 = vmatprep.subr.mxu0 0.0
  %6833 = vmatpush1.msra.mxu0 0.0
  %6834 = vmatprep.subr.mxu0 0.0
  %6835 = vmatpush1.msra.mxu0 0.0
  %6836 = vmatprep.subr.mxu0 0.0
  %6837 = vmatpush1.msra.mxu0 0.0
  %6838 = vmatprep.subr.mxu0 0.0
  %6839 = vmatpush1.msra.mxu0 0.0
  %6840 = vmatprep.mubr.f32.mxu0 0.0
  %6841 = vmatmul.mubr.f32.gmra.mrb[0].mxu0 %v6760
  %v6842 = vpop.f32.mrb[0].mxu0
  %v6843 = vadd.f32 0.0, %v6842
  %v6844 = vpop.f32.mrb[0].mxu0
  %v6845 = vadd.f32 0.0, %v6844
  %6846 = vdwg.mxu0
  %6847 = vmatprep.subr.mxu0 %v6768
  %6848 = vmatpush1.msra.mxu0 %v6766
  %6849 = vmatprep.subr.mxu0 0.0
  %6850 = vmatpush1.msra.mxu0 0.0
  %6851 = vmatprep.subr.mxu0 0.0
  %6852 = vmatpush1.msra.mxu0 0.0
  %6853 = vmatprep.subr.mxu0 0.0
  %6854 = vmatpush1.msra.mxu0 0.0
  %6855 = vmatprep.subr.mxu0 0.0
  %6856 = vmatpush1.msra.mxu0 0.0
  %6857 = vmatprep.subr.mxu0 0.0
  %6858 = vmatpush1.msra.mxu0 0.0
  %6859 = vmatprep.subr.mxu0 0.0
  %6860 = vmatpush1.msra.mxu0 0.0
  %6861 = vmatprep.subr.mxu0 0.0
  %6862 = vmatpush1.msra.mxu0 0.0
  %6863 = vmatprep.subr.mxu0 0.0
  %6864 = vmatpush1.msra.mxu0 0.0
  %6865 = vmatprep.subr.mxu0 0.0
  %6866 = vmatpush1.msra.mxu0 0.0
  %6867 = vmatprep.subr.mxu0 0.0
  %6868 = vmatpush1.msra.mxu0 0.0
  %6869 = vmatprep.subr.mxu0 0.0
  %6870 = vmatpush1.msra.mxu0 0.0
  %6871 = vmatprep.subr.mxu0 0.0
  %6872 = vmatpush1.msra.mxu0 0.0
  %6873 = vmatprep.subr.mxu0 0.0
  %6874 = vmatpush1.msra.mxu0 0.0
  %6875 = vmatprep.subr.mxu0 0.0
  %6876 = vmatpush1.msra.mxu0 0.0
  %6877 = vmatprep.subr.mxu0 0.0
  %6878 = vmatpush1.msra.mxu0 0.0
  %6879 = vmatprep.subr.mxu0 0.0
  %6880 = vmatpush1.msra.mxu0 0.0
  %6881 = vmatprep.subr.mxu0 0.0
  %6882 = vmatpush1.msra.mxu0 0.0
  %6883 = vmatprep.subr.mxu0 0.0
  %6884 = vmatpush1.msra.mxu0 0.0
  %6885 = vmatprep.subr.mxu0 0.0
  %6886 = vmatpush1.msra.mxu0 0.0
  %6887 = vmatprep.subr.mxu0 0.0
  %6888 = vmatpush1.msra.mxu0 0.0
  %6889 = vmatprep.subr.mxu0 0.0
  %6890 = vmatpush1.msra.mxu0 0.0
  %6891 = vmatprep.subr.mxu0 0.0
  %6892 = vmatpush1.msra.mxu0 0.0
  %6893 = vmatprep.subr.mxu0 0.0
  %6894 = vmatpush1.msra.mxu0 0.0
  %6895 = vmatprep.subr.mxu0 0.0
  %6896 = vmatpush1.msra.mxu0 0.0
  %6897 = vmatprep.subr.mxu0 0.0
  %6898 = vmatpush1.msra.mxu0 0.0
  %6899 = vmatprep.subr.mxu0 0.0
  %6900 = vmatpush1.msra.mxu0 0.0
  %6901 = vmatprep.subr.mxu0 0.0
  %6902 = vmatpush1.msra.mxu0 0.0
  %6903 = vmatprep.subr.mxu0 0.0
  %6904 = vmatpush1.msra.mxu0 0.0
  %6905 = vmatprep.subr.mxu0 0.0
  %6906 = vmatpush1.msra.mxu0 0.0
  %6907 = vmatprep.subr.mxu0 0.0
  %6908 = vmatpush1.msra.mxu0 0.0
  %6909 = vmatprep.subr.mxu0 0.0
  %6910 = vmatpush1.msra.mxu0 0.0
  %6911 = vmatprep.mubr.f32.mxu0 0.0
  %6912 = vmatmul.mubr.f32.gmra.mrb[0].mxu0 %v6760
  %v6913 = vpop.f32.mrb[0].mxu0
  %v6914 = vadd.f32 0.0, %v6913
  %v6915 = vpop.f32.mrb[0].mxu0
  %v6916 = vadd.f32 0.0, %v6915
  %6917 = vdwg.mxu0
  %6918 = vmatprep.subr.mxu0 %v6772
  %6919 = vmatpush1.msra.mxu0 %v6770
  %6920 = vmatprep.subr.mxu0 0.0
  %6921 = vmatpush1.msra.mxu0 0.0
  %6922 = vmatprep.subr.mxu0 0.0
  %6923 = vmatpush1.msra.mxu0 0.0
  %6924 = vmatprep.subr.mxu0 0.0
  %6925 = vmatpush1.msra.mxu0 0.0
  %6926 = vmatprep.subr.mxu0 0.0
  %6927 = vmatpush1.msra.mxu0 0.0
  %6928 = vmatprep.subr.mxu0 0.0
  %6929 = vmatpush1.msra.mxu0 0.0
  %6930 = vmatprep.subr.mxu0 0.0
  %6931 = vmatpush1.msra.mxu0 0.0
  %6932 = vmatprep.subr.mxu0 0.0
  %6933 = vmatpush1.msra.mxu0 0.0
  %6934 = vmatprep.subr.mxu0 0.0
  %6935 = vmatpush1.msra.mxu0 0.0
  %6936 = vmatprep.subr.mxu0 0.0
  %6937 = vmatpush1.msra.mxu0 0.0
  %6938 = vmatprep.subr.mxu0 0.0
  %6939 = vmatpush1.msra.mxu0 0.0
  %6940 = vmatprep.subr.mxu0 0.0
  %6941 = vmatpush1.msra.mxu0 0.0
  %6942 = vmatprep.subr.mxu0 0.0
  %6943 = vmatpush1.msra.mxu0 0.0
  %6944 = vmatprep.subr.mxu0 0.0
  %6945 = vmatpush1.msra.mxu0 0.0
  %6946 = vmatprep.subr.mxu0 0.0
  %6947 = vmatpush1.msra.mxu0 0.0
  %6948 = vmatprep.subr.mxu0 0.0
  %6949 = vmatpush1.msra.mxu0 0.0
  %6950 = vmatprep.subr.mxu0 0.0
  %6951 = vmatpush1.msra.mxu0 0.0
  %6952 = vmatprep.subr.mxu0 0.0
  %6953 = vmatpush1.msra.mxu0 0.0
  %6954 = vmatprep.subr.mxu0 0.0
  %6955 = vmatpush1.msra.mxu0 0.0
  %6956 = vmatprep.subr.mxu0 0.0
  %6957 = vmatpush1.msra.mxu0 0.0
  %6958 = vmatprep.subr.mxu0 0.0
  %6959 = vmatpush1.msra.mxu0 0.0
  %6960 = vmatprep.subr.mxu0 0.0
  %6961 = vmatpush1.msra.mxu0 0.0
  %6962 = vmatprep.subr.mxu0 0.0
  %6963 = vmatpush1.msra.mxu0 0.0
  %6964 = vmatprep.subr.mxu0 0.0
  %6965 = vmatpush1.msra.mxu0 0.0
  %6966 = vmatprep.subr.mxu0 0.0
  %6967 = vmatpush1.msra.mxu0 0.0
  %6968 = vmatprep.subr.mxu0 0.0
  %6969 = vmatpush1.msra.mxu0 0.0
  %6970 = vmatprep.subr.mxu0 0.0
  %6971 = vmatpush1.msra.mxu0 0.0
  %6972 = vmatprep.subr.mxu0 0.0
  %6973 = vmatpush1.msra.mxu0 0.0
  %6974 = vmatprep.subr.mxu0 0.0
  %6975 = vmatpush1.msra.mxu0 0.0
  %6976 = vmatprep.subr.mxu0 0.0
  %6977 = vmatpush1.msra.mxu0 0.0
  %6978 = vmatprep.subr.mxu0 0.0
  %6979 = vmatpush1.msra.mxu0 0.0
  %6980 = vmatprep.subr.mxu0 0.0
  %6981 = vmatpush1.msra.mxu0 0.0
  %6982 = vmatprep.mubr.f32.mxu0 0.0
  %6983 = vmatmul.mubr.f32.gmra.mrb[0].mxu0 %v6760
  %v6984 = vpop.f32.mrb[0].mxu0
  %v6985 = vadd.f32 0.0, %v6984
  %v6986 = vpop.f32.mrb[0].mxu0
  %v6987 = vadd.f32 0.0, %v6986
  %6988 = vdwg.mxu0
  %6989 = vmatprep.subr.mxu0 0.0
  %6990 = vmatpush1.msra.mxu0 %v6774
  %6991 = vmatprep.subr.mxu0 0.0
  %6992 = vmatpush1.msra.mxu0 0.0
  %6993 = vmatprep.subr.mxu0 0.0
  %6994 = vmatpush1.msra.mxu0 0.0
  %6995 = vmatprep.subr.mxu0 0.0
  %6996 = vmatpush1.msra.mxu0 0.0
  %6997 = vmatprep.subr.mxu0 0.0
  %6998 = vmatpush1.msra.mxu0 0.0
  %6999 = vmatprep.subr.mxu0 0.0
  %7000 = vmatpush1.msra.mxu0 0.0
  %7001 = vmatprep.subr.mxu0 0.0
  %7002 = vmatpush1.msra.mxu0 0.0
  %7003 = vmatprep.subr.mxu0 0.0
  %7004 = vmatpush1.msra.mxu0 0.0
  %7005 = vmatprep.subr.mxu0 0.0
  %7006 = vmatpush1.msra.mxu0 0.0
  %7007 = vmatprep.subr.mxu0 0.0
  %7008 = vmatpush1.msra.mxu0 0.0
  %7009 = vmatprep.subr.mxu0 0.0
  %7010 = vmatpush1.msra.mxu0 0.0
  %7011 = vmatprep.subr.mxu0 0.0
  %7012 = vmatpush1.msra.mxu0 0.0
  %7013 = vmatprep.subr.mxu0 0.0
  %7014 = vmatpush1.msra.mxu0 0.0
  %7015 = vmatprep.subr.mxu0 0.0
  %7016 = vmatpush1.msra.mxu0 0.0
  %7017 = vmatprep.subr.mxu0 0.0
  %7018 = vmatpush1.msra.mxu0 0.0
  %7019 = vmatprep.subr.mxu0 0.0
  %7020 = vmatpush1.msra.mxu0 0.0
  %7021 = vmatprep.subr.mxu0 0.0
  %7022 = vmatpush1.msra.mxu0 0.0
  %7023 = vmatprep.subr.mxu0 0.0
  %7024 = vmatpush1.msra.mxu0 0.0
  %7025 = vmatprep.subr.mxu0 0.0
  %7026 = vmatpush1.msra.mxu0 0.0
  %7027 = vmatprep.subr.mxu0 0.0
  %7028 = vmatpush1.msra.mxu0 0.0
  %7029 = vmatprep.subr.mxu0 0.0
  %7030 = vmatpush1.msra.mxu0 0.0
  %7031 = vmatprep.subr.mxu0 0.0
  %7032 = vmatpush1.msra.mxu0 0.0
  %7033 = vmatprep.subr.mxu0 0.0
  %7034 = vmatpush1.msra.mxu0 0.0
  %7035 = vmatprep.subr.mxu0 0.0
  %7036 = vmatpush1.msra.mxu0 0.0
  %7037 = vmatprep.subr.mxu0 0.0
  %7038 = vmatpush1.msra.mxu0 0.0
  %7039 = vmatprep.subr.mxu0 0.0
  %7040 = vmatpush1.msra.mxu0 0.0
  %7041 = vmatprep.subr.mxu0 0.0
  %7042 = vmatpush1.msra.mxu0 0.0
  %7043 = vmatprep.subr.mxu0 0.0
  %7044 = vmatpush1.msra.mxu0 0.0
  %7045 = vmatprep.subr.mxu0 0.0
  %7046 = vmatpush1.msra.mxu0 0.0
  %7047 = vmatprep.subr.mxu0 0.0
  %7048 = vmatpush1.msra.mxu0 0.0
  %7049 = vmatprep.subr.mxu0 0.0
  %7050 = vmatpush1.msra.mxu0 0.0
  %7051 = vmatprep.subr.mxu0 0.0
  %7052 = vmatpush1.msra.mxu0 0.0
  %7053 = vmatprep.mubr.f32.mxu0 0.0
  %7054 = vmatmul.mubr.f32.gmra.mrb[0].mxu0 %v6760
  %v7055 = vpop.f32.mrb[0].mxu0
  %v7056 = vadd.f32 0.0, %v7055
  %v7057 = vpop.f32.mrb[0].mxu0
  %7058 = vdwg.mxu0
  %v7059 = vadd.f32 %v6730, %v6843
  %v7060 = vadd.f32 %v6731, %v6845
  %v7061 = vadd.f32 %v6732, %v6914
  %v7062 = vadd.f32 %v6733, %v6916
  %v7063 = vadd.f32 %v6734, %v6985
  %v7064 = vadd.f32 %v6735, %v6987
  %v7065 = vadd.f32 %v6736, %v7056
  %7066 = vrot.lane.b32.xlu0 %v513, 28
  %v7067 = vpop.permute.xlu0 %7066
  %7068 = vrot.lane.b32.xlu0 %v506, 48
  %v7069 = vpop.permute.xlu0 %7068
  %7070 = vrot.lane.b32.xlu0 %v507, 48
  %v7071 = vpop.permute.xlu0 %7070
  %7072 = vrot.lane.b32.xlu0 %v508, 48
  %v7073 = vpop.permute.xlu0 %7072
  %7074 = vrot.lane.b32.xlu0 %v509, 48
  %v7075 = vpop.permute.xlu0 %7074
  %7076 = vrot.lane.b32.xlu0 %v510, 48
  %v7077 = vpop.permute.xlu0 %7076
  %7078 = vrot.lane.b32.xlu0 %v511, 48
  %v7079 = vpop.permute.xlu0 %7078
  %7080 = vrot.lane.b32.xlu0 %v512, 48
  %v7081 = vpop.permute.xlu0 %7080
  %vm7082 = vcmask 392192
  %v7083 = vsel %vm7082, %v7069, %v7071
  %v7084 = vsel %vm7082, %v7071, %v7073
  %v7085 = vsel %vm7082, %v7073, %v7075
  %v7086 = vsel %vm7082, %v7075, %v7077
  %v7087 = vsel %vm7082, %v7077, %v7079
  %v7088 = vsel %vm7082, %v7079, %v7081
  %v7089 = vsel %vm545, %v7067, 0
  %v7091 = vsel %vm412, %v7083, 0
  %v7093 = vsel %vm412, %v7084, 0
  %v7095 = vsel %vm412, %v7085, 0
  %v7097 = vsel %vm412, %v7086, 0
  %v7099 = vsel %vm412, %v7087, 0
  %v7101 = vsel %vm412, %v7088, 0
  %v7103 = vsel %vm412, %v7081, 0
  %7105 = vmatprep.subr.mxu0 %v7093
  %7106 = vmatpush1.msra.mxu0 %v7091
  %7107 = vmatprep.subr.mxu0 0.0
  %7108 = vmatpush1.msra.mxu0 0.0
  %7109 = vmatprep.subr.mxu0 0.0
  %7110 = vmatpush1.msra.mxu0 0.0
  %7111 = vmatprep.subr.mxu0 0.0
  %7112 = vmatpush1.msra.mxu0 0.0
  %7113 = vmatprep.subr.mxu0 0.0
  %7114 = vmatpush1.msra.mxu0 0.0
  %7115 = vmatprep.subr.mxu0 0.0
  %7116 = vmatpush1.msra.mxu0 0.0
  %7117 = vmatprep.subr.mxu0 0.0
  %7118 = vmatpush1.msra.mxu0 0.0
  %7119 = vmatprep.subr.mxu0 0.0
  %7120 = vmatpush1.msra.mxu0 0.0
  %7121 = vmatprep.subr.mxu0 0.0
  %7122 = vmatpush1.msra.mxu0 0.0
  %7123 = vmatprep.subr.mxu0 0.0
  %7124 = vmatpush1.msra.mxu0 0.0
  %7125 = vmatprep.subr.mxu0 0.0
  %7126 = vmatpush1.msra.mxu0 0.0
  %7127 = vmatprep.subr.mxu0 0.0
  %7128 = vmatpush1.msra.mxu0 0.0
  %7129 = vmatprep.subr.mxu0 0.0
  %7130 = vmatpush1.msra.mxu0 0.0
  %7131 = vmatprep.subr.mxu0 0.0
  %7132 = vmatpush1.msra.mxu0 0.0
  %7133 = vmatprep.subr.mxu0 0.0
  %7134 = vmatpush1.msra.mxu0 0.0
  %7135 = vmatprep.subr.mxu0 0.0
  %7136 = vmatpush1.msra.mxu0 0.0
  %7137 = vmatprep.subr.mxu0 0.0
  %7138 = vmatpush1.msra.mxu0 0.0
  %7139 = vmatprep.subr.mxu0 0.0
  %7140 = vmatpush1.msra.mxu0 0.0
  %7141 = vmatprep.subr.mxu0 0.0
  %7142 = vmatpush1.msra.mxu0 0.0
  %7143 = vmatprep.subr.mxu0 0.0
  %7144 = vmatpush1.msra.mxu0 0.0
  %7145 = vmatprep.subr.mxu0 0.0
  %7146 = vmatpush1.msra.mxu0 0.0
  %7147 = vmatprep.subr.mxu0 0.0
  %7148 = vmatpush1.msra.mxu0 0.0
  %7149 = vmatprep.subr.mxu0 0.0
  %7150 = vmatpush1.msra.mxu0 0.0
  %7151 = vmatprep.subr.mxu0 0.0
  %7152 = vmatpush1.msra.mxu0 0.0
  %7153 = vmatprep.subr.mxu0 0.0
  %7154 = vmatpush1.msra.mxu0 0.0
  %7155 = vmatprep.subr.mxu0 0.0
  %7156 = vmatpush1.msra.mxu0 0.0
  %7157 = vmatprep.subr.mxu0 0.0
  %7158 = vmatpush1.msra.mxu0 0.0
  %7159 = vmatprep.subr.mxu0 0.0
  %7160 = vmatpush1.msra.mxu0 0.0
  %7161 = vmatprep.subr.mxu0 0.0
  %7162 = vmatpush1.msra.mxu0 0.0
  %7163 = vmatprep.subr.mxu0 0.0
  %7164 = vmatpush1.msra.mxu0 0.0
  %7165 = vmatprep.subr.mxu0 0.0
  %7166 = vmatpush1.msra.mxu0 0.0
  %7167 = vmatprep.subr.mxu0 0.0
  %7168 = vmatpush1.msra.mxu0 0.0
  %7169 = vmatprep.mubr.f32.mxu0 0.0
  %7170 = vmatmul.mubr.f32.gmra.mrb[0].mxu0 %v7089
  %v7171 = vpop.f32.mrb[0].mxu0
  %v7172 = vadd.f32 0.0, %v7171
  %v7173 = vpop.f32.mrb[0].mxu0
  %v7174 = vadd.f32 0.0, %v7173
  %7175 = vdwg.mxu0
  %7176 = vmatprep.subr.mxu0 %v7097
  %7177 = vmatpush1.msra.mxu0 %v7095
  %7178 = vmatprep.subr.mxu0 0.0
  %7179 = vmatpush1.msra.mxu0 0.0
  %7180 = vmatprep.subr.mxu0 0.0
  %7181 = vmatpush1.msra.mxu0 0.0
  %7182 = vmatprep.subr.mxu0 0.0
  %7183 = vmatpush1.msra.mxu0 0.0
  %7184 = vmatprep.subr.mxu0 0.0
  %7185 = vmatpush1.msra.mxu0 0.0
  %7186 = vmatprep.subr.mxu0 0.0
  %7187 = vmatpush1.msra.mxu0 0.0
  %7188 = vmatprep.subr.mxu0 0.0
  %7189 = vmatpush1.msra.mxu0 0.0
  %7190 = vmatprep.subr.mxu0 0.0
  %7191 = vmatpush1.msra.mxu0 0.0
  %7192 = vmatprep.subr.mxu0 0.0
  %7193 = vmatpush1.msra.mxu0 0.0
  %7194 = vmatprep.subr.mxu0 0.0
  %7195 = vmatpush1.msra.mxu0 0.0
  %7196 = vmatprep.subr.mxu0 0.0
  %7197 = vmatpush1.msra.mxu0 0.0
  %7198 = vmatprep.subr.mxu0 0.0
  %7199 = vmatpush1.msra.mxu0 0.0
  %7200 = vmatprep.subr.mxu0 0.0
  %7201 = vmatpush1.msra.mxu0 0.0
  %7202 = vmatprep.subr.mxu0 0.0
  %7203 = vmatpush1.msra.mxu0 0.0
  %7204 = vmatprep.subr.mxu0 0.0
  %7205 = vmatpush1.msra.mxu0 0.0
  %7206 = vmatprep.subr.mxu0 0.0
  %7207 = vmatpush1.msra.mxu0 0.0
  %7208 = vmatprep.subr.mxu0 0.0
  %7209 = vmatpush1.msra.mxu0 0.0
  %7210 = vmatprep.subr.mxu0 0.0
  %7211 = vmatpush1.msra.mxu0 0.0
  %7212 = vmatprep.subr.mxu0 0.0
  %7213 = vmatpush1.msra.mxu0 0.0
  %7214 = vmatprep.subr.mxu0 0.0
  %7215 = vmatpush1.msra.mxu0 0.0
  %7216 = vmatprep.subr.mxu0 0.0
  %7217 = vmatpush1.msra.mxu0 0.0
  %7218 = vmatprep.subr.mxu0 0.0
  %7219 = vmatpush1.msra.mxu0 0.0
  %7220 = vmatprep.subr.mxu0 0.0
  %7221 = vmatpush1.msra.mxu0 0.0
  %7222 = vmatprep.subr.mxu0 0.0
  %7223 = vmatpush1.msra.mxu0 0.0
  %7224 = vmatprep.subr.mxu0 0.0
  %7225 = vmatpush1.msra.mxu0 0.0
  %7226 = vmatprep.subr.mxu0 0.0
  %7227 = vmatpush1.msra.mxu0 0.0
  %7228 = vmatprep.subr.mxu0 0.0
  %7229 = vmatpush1.msra.mxu0 0.0
  %7230 = vmatprep.subr.mxu0 0.0
  %7231 = vmatpush1.msra.mxu0 0.0
  %7232 = vmatprep.subr.mxu0 0.0
  %7233 = vmatpush1.msra.mxu0 0.0
  %7234 = vmatprep.subr.mxu0 0.0
  %7235 = vmatpush1.msra.mxu0 0.0
  %7236 = vmatprep.subr.mxu0 0.0
  %7237 = vmatpush1.msra.mxu0 0.0
  %7238 = vmatprep.subr.mxu0 0.0
  %7239 = vmatpush1.msra.mxu0 0.0
  %7240 = vmatprep.mubr.f32.mxu0 0.0
  %7241 = vmatmul.mubr.f32.gmra.mrb[0].mxu0 %v7089
  %v7242 = vpop.f32.mrb[0].mxu0
  %v7243 = vadd.f32 0.0, %v7242
  %v7244 = vpop.f32.mrb[0].mxu0
  %v7245 = vadd.f32 0.0, %v7244
  %7246 = vdwg.mxu0
  %7247 = vmatprep.subr.mxu0 %v7101
  %7248 = vmatpush1.msra.mxu0 %v7099
  %7249 = vmatprep.subr.mxu0 0.0
  %7250 = vmatpush1.msra.mxu0 0.0
  %7251 = vmatprep.subr.mxu0 0.0
  %7252 = vmatpush1.msra.mxu0 0.0
  %7253 = vmatprep.subr.mxu0 0.0
  %7254 = vmatpush1.msra.mxu0 0.0
  %7255 = vmatprep.subr.mxu0 0.0
  %7256 = vmatpush1.msra.mxu0 0.0
  %7257 = vmatprep.subr.mxu0 0.0
  %7258 = vmatpush1.msra.mxu0 0.0
  %7259 = vmatprep.subr.mxu0 0.0
  %7260 = vmatpush1.msra.mxu0 0.0
  %7261 = vmatprep.subr.mxu0 0.0
  %7262 = vmatpush1.msra.mxu0 0.0
  %7263 = vmatprep.subr.mxu0 0.0
  %7264 = vmatpush1.msra.mxu0 0.0
  %7265 = vmatprep.subr.mxu0 0.0
  %7266 = vmatpush1.msra.mxu0 0.0
  %7267 = vmatprep.subr.mxu0 0.0
  %7268 = vmatpush1.msra.mxu0 0.0
  %7269 = vmatprep.subr.mxu0 0.0
  %7270 = vmatpush1.msra.mxu0 0.0
  %7271 = vmatprep.subr.mxu0 0.0
  %7272 = vmatpush1.msra.mxu0 0.0
  %7273 = vmatprep.subr.mxu0 0.0
  %7274 = vmatpush1.msra.mxu0 0.0
  %7275 = vmatprep.subr.mxu0 0.0
  %7276 = vmatpush1.msra.mxu0 0.0
  %7277 = vmatprep.subr.mxu0 0.0
  %7278 = vmatpush1.msra.mxu0 0.0
  %7279 = vmatprep.subr.mxu0 0.0
  %7280 = vmatpush1.msra.mxu0 0.0
  %7281 = vmatprep.subr.mxu0 0.0
  %7282 = vmatpush1.msra.mxu0 0.0
  %7283 = vmatprep.subr.mxu0 0.0
  %7284 = vmatpush1.msra.mxu0 0.0
  %7285 = vmatprep.subr.mxu0 0.0
  %7286 = vmatpush1.msra.mxu0 0.0
  %7287 = vmatprep.subr.mxu0 0.0
  %7288 = vmatpush1.msra.mxu0 0.0
  %7289 = vmatprep.subr.mxu0 0.0
  %7290 = vmatpush1.msra.mxu0 0.0
  %7291 = vmatprep.subr.mxu0 0.0
  %7292 = vmatpush1.msra.mxu0 0.0
  %7293 = vmatprep.subr.mxu0 0.0
  %7294 = vmatpush1.msra.mxu0 0.0
  %7295 = vmatprep.subr.mxu0 0.0
  %7296 = vmatpush1.msra.mxu0 0.0
  %7297 = vmatprep.subr.mxu0 0.0
  %7298 = vmatpush1.msra.mxu0 0.0
  %7299 = vmatprep.subr.mxu0 0.0
  %7300 = vmatpush1.msra.mxu0 0.0
  %7301 = vmatprep.subr.mxu0 0.0
  %7302 = vmatpush1.msra.mxu0 0.0
  %7303 = vmatprep.subr.mxu0 0.0
  %7304 = vmatpush1.msra.mxu0 0.0
  %7305 = vmatprep.subr.mxu0 0.0
  %7306 = vmatpush1.msra.mxu0 0.0
  %7307 = vmatprep.subr.mxu0 0.0
  %7308 = vmatpush1.msra.mxu0 0.0
  %7309 = vmatprep.subr.mxu0 0.0
  %7310 = vmatpush1.msra.mxu0 0.0
  %7311 = vmatprep.mubr.f32.mxu0 0.0
  %7312 = vmatmul.mubr.f32.gmra.mrb[0].mxu0 %v7089
  %v7313 = vpop.f32.mrb[0].mxu0
  %v7314 = vadd.f32 0.0, %v7313
  %v7315 = vpop.f32.mrb[0].mxu0
  %v7316 = vadd.f32 0.0, %v7315
  %7317 = vdwg.mxu0
  %7318 = vmatprep.subr.mxu0 0.0
  %7319 = vmatpush1.msra.mxu0 %v7103
  %7320 = vmatprep.subr.mxu0 0.0
  %7321 = vmatpush1.msra.mxu0 0.0
  %7322 = vmatprep.subr.mxu0 0.0
  %7323 = vmatpush1.msra.mxu0 0.0
  %7324 = vmatprep.subr.mxu0 0.0
  %7325 = vmatpush1.msra.mxu0 0.0
  %7326 = vmatprep.subr.mxu0 0.0
  %7327 = vmatpush1.msra.mxu0 0.0
  %7328 = vmatprep.subr.mxu0 0.0
  %7329 = vmatpush1.msra.mxu0 0.0
  %7330 = vmatprep.subr.mxu0 0.0
  %7331 = vmatpush1.msra.mxu0 0.0
  %7332 = vmatprep.subr.mxu0 0.0
  %7333 = vmatpush1.msra.mxu0 0.0
  %7334 = vmatprep.subr.mxu0 0.0
  %7335 = vmatpush1.msra.mxu0 0.0
  %7336 = vmatprep.subr.mxu0 0.0
  %7337 = vmatpush1.msra.mxu0 0.0
  %7338 = vmatprep.subr.mxu0 0.0
  %7339 = vmatpush1.msra.mxu0 0.0
  %7340 = vmatprep.subr.mxu0 0.0
  %7341 = vmatpush1.msra.mxu0 0.0
  %7342 = vmatprep.subr.mxu0 0.0
  %7343 = vmatpush1.msra.mxu0 0.0
  %7344 = vmatprep.subr.mxu0 0.0
  %7345 = vmatpush1.msra.mxu0 0.0
  %7346 = vmatprep.subr.mxu0 0.0
  %7347 = vmatpush1.msra.mxu0 0.0
  %7348 = vmatprep.subr.mxu0 0.0
  %7349 = vmatpush1.msra.mxu0 0.0
  %7350 = vmatprep.subr.mxu0 0.0
  %7351 = vmatpush1.msra.mxu0 0.0
  %7352 = vmatprep.subr.mxu0 0.0
  %7353 = vmatpush1.msra.mxu0 0.0
  %7354 = vmatprep.subr.mxu0 0.0
  %7355 = vmatpush1.msra.mxu0 0.0
  %7356 = vmatprep.subr.mxu0 0.0
  %7357 = vmatpush1.msra.mxu0 0.0
  %7358 = vmatprep.subr.mxu0 0.0
  %7359 = vmatpush1.msra.mxu0 0.0
  %7360 = vmatprep.subr.mxu0 0.0
  %7361 = vmatpush1.msra.mxu0 0.0
  %7362 = vmatprep.subr.mxu0 0.0
  %7363 = vmatpush1.msra.mxu0 0.0
  %7364 = vmatprep.subr.mxu0 0.0
  %7365 = vmatpush1.msra.mxu0 0.0
  %7366 = vmatprep.subr.mxu0 0.0
  %7367 = vmatpush1.msra.mxu0 0.0
  %7368 = vmatprep.subr.mxu0 0.0
  %7369 = vmatpush1.msra.mxu0 0.0
  %7370 = vmatprep.subr.mxu0 0.0
  %7371 = vmatpush1.msra.mxu0 0.0
  %7372 = vmatprep.subr.mxu0 0.0
  %7373 = vmatpush1.msra.mxu0 0.0
  %7374 = vmatprep.subr.mxu0 0.0
  %7375 = vmatpush1.msra.mxu0 0.0
  %7376 = vmatprep.subr.mxu0 0.0
  %7377 = vmatpush1.msra.mxu0 0.0
  %7378 = vmatprep.subr.mxu0 0.0
  %7379 = vmatpush1.msra.mxu0 0.0
  %7380 = vmatprep.subr.mxu0 0.0
  %7381 = vmatpush1.msra.mxu0 0.0
  %7382 = vmatprep.mubr.f32.mxu0 0.0
  %7383 = vmatmul.mubr.f32.gmra.mrb[0].mxu0 %v7089
  %v7384 = vpop.f32.mrb[0].mxu0
  %v7385 = vadd.f32 0.0, %v7384
  %v7386 = vpop.f32.mrb[0].mxu0
  %7387 = vdwg.mxu0
  %v7388 = vadd.f32 %v7059, %v7172
  %v7389 = vadd.f32 %v7060, %v7174
  %v7390 = vadd.f32 %v7061, %v7243
  %v7391 = vadd.f32 %v7062, %v7245
  %v7392 = vadd.f32 %v7063, %v7314
  %v7393 = vadd.f32 %v7064, %v7316
  %v7394 = vadd.f32 %v7065, %v7385
  %7395 = vrot.lane.b32.xlu0 %v513, 23
  %v7396 = vpop.permute.xlu0 %7395
  %7397 = vrot.lane.b32.xlu0 %v506, 47
  %v7398 = vpop.permute.xlu0 %7397
  %7399 = vrot.lane.b32.xlu0 %v507, 47
  %v7400 = vpop.permute.xlu0 %7399
  %7401 = vrot.lane.b32.xlu0 %v508, 47
  %v7402 = vpop.permute.xlu0 %7401
  %7403 = vrot.lane.b32.xlu0 %v509, 47
  %v7404 = vpop.permute.xlu0 %7403
  %7405 = vrot.lane.b32.xlu0 %v510, 47
  %v7406 = vpop.permute.xlu0 %7405
  %7407 = vrot.lane.b32.xlu0 %v511, 47
  %v7408 = vpop.permute.xlu0 %7407
  %7409 = vrot.lane.b32.xlu0 %v512, 47
  %v7410 = vpop.permute.xlu0 %7409
  %vm7411 = vcmask 384000
  %v7412 = vsel %vm7411, %v7398, %v7400
  %v7413 = vsel %vm7411, %v7400, %v7402
  %v7414 = vsel %vm7411, %v7402, %v7404
  %v7415 = vsel %vm7411, %v7404, %v7406
  %v7416 = vsel %vm7411, %v7406, %v7408
  %v7417 = vsel %vm7411, %v7408, %v7410
  %v7418 = vsel %vm545, %v7396, 0
  %v7420 = vsel %vm412, %v7412, 0
  %v7422 = vsel %vm412, %v7413, 0
  %v7424 = vsel %vm412, %v7414, 0
  %v7426 = vsel %vm412, %v7415, 0
  %v7428 = vsel %vm412, %v7416, 0
  %v7430 = vsel %vm412, %v7417, 0
  %v7432 = vsel %vm412, %v7410, 0
  %7434 = vmatprep.subr.mxu0 %v7422
  %7435 = vmatpush1.msra.mxu0 %v7420
  %7436 = vmatprep.subr.mxu0 0.0
  %7437 = vmatpush1.msra.mxu0 0.0
  %7438 = vmatprep.subr.mxu0 0.0
  %7439 = vmatpush1.msra.mxu0 0.0
  %7440 = vmatprep.subr.mxu0 0.0
  %7441 = vmatpush1.msra.mxu0 0.0
  %7442 = vmatprep.subr.mxu0 0.0
  %7443 = vmatpush1.msra.mxu0 0.0
  %7444 = vmatprep.subr.mxu0 0.0
  %7445 = vmatpush1.msra.mxu0 0.0
  %7446 = vmatprep.subr.mxu0 0.0
  %7447 = vmatpush1.msra.mxu0 0.0
  %7448 = vmatprep.subr.mxu0 0.0
  %7449 = vmatpush1.msra.mxu0 0.0
  %7450 = vmatprep.subr.mxu0 0.0
  %7451 = vmatpush1.msra.mxu0 0.0
  %7452 = vmatprep.subr.mxu0 0.0
  %7453 = vmatpush1.msra.mxu0 0.0
  %7454 = vmatprep.subr.mxu0 0.0
  %7455 = vmatpush1.msra.mxu0 0.0
  %7456 = vmatprep.subr.mxu0 0.0
  %7457 = vmatpush1.msra.mxu0 0.0
  %7458 = vmatprep.subr.mxu0 0.0
  %7459 = vmatpush1.msra.mxu0 0.0
  %7460 = vmatprep.subr.mxu0 0.0
  %7461 = vmatpush1.msra.mxu0 0.0
  %7462 = vmatprep.subr.mxu0 0.0
  %7463 = vmatpush1.msra.mxu0 0.0
  %7464 = vmatprep.subr.mxu0 0.0
  %7465 = vmatpush1.msra.mxu0 0.0
  %7466 = vmatprep.subr.mxu0 0.0
  %7467 = vmatpush1.msra.mxu0 0.0
  %7468 = vmatprep.subr.mxu0 0.0
  %7469 = vmatpush1.msra.mxu0 0.0
  %7470 = vmatprep.subr.mxu0 0.0
  %7471 = vmatpush1.msra.mxu0 0.0
  %7472 = vmatprep.subr.mxu0 0.0
  %7473 = vmatpush1.msra.mxu0 0.0
  %7474 = vmatprep.subr.mxu0 0.0
  %7475 = vmatpush1.msra.mxu0 0.0
  %7476 = vmatprep.subr.mxu0 0.0
  %7477 = vmatpush1.msra.mxu0 0.0
  %7478 = vmatprep.subr.mxu0 0.0
  %7479 = vmatpush1.msra.mxu0 0.0
  %7480 = vmatprep.subr.mxu0 0.0
  %7481 = vmatpush1.msra.mxu0 0.0
  %7482 = vmatprep.subr.mxu0 0.0
  %7483 = vmatpush1.msra.mxu0 0.0
  %7484 = vmatprep.subr.mxu0 0.0
  %7485 = vmatpush1.msra.mxu0 0.0
  %7486 = vmatprep.subr.mxu0 0.0
  %7487 = vmatpush1.msra.mxu0 0.0
  %7488 = vmatprep.subr.mxu0 0.0
  %7489 = vmatpush1.msra.mxu0 0.0
  %7490 = vmatprep.subr.mxu0 0.0
  %7491 = vmatpush1.msra.mxu0 0.0
  %7492 = vmatprep.subr.mxu0 0.0
  %7493 = vmatpush1.msra.mxu0 0.0
  %7494 = vmatprep.subr.mxu0 0.0
  %7495 = vmatpush1.msra.mxu0 0.0
  %7496 = vmatprep.subr.mxu0 0.0
  %7497 = vmatpush1.msra.mxu0 0.0
  %7498 = vmatprep.mubr.f32.mxu0 0.0
  %7499 = vmatmul.mubr.f32.gmra.mrb[0].mxu0 %v7418
  %v7500 = vpop.f32.mrb[0].mxu0
  %v7501 = vadd.f32 0.0, %v7500
  %v7502 = vpop.f32.mrb[0].mxu0
  %v7503 = vadd.f32 0.0, %v7502
  %7504 = vdwg.mxu0
  %7505 = vmatprep.subr.mxu0 %v7426
  %7506 = vmatpush1.msra.mxu0 %v7424
  %7507 = vmatprep.subr.mxu0 0.0
  %7508 = vmatpush1.msra.mxu0 0.0
  %7509 = vmatprep.subr.mxu0 0.0
  %7510 = vmatpush1.msra.mxu0 0.0
  %7511 = vmatprep.subr.mxu0 0.0
  %7512 = vmatpush1.msra.mxu0 0.0
  %7513 = vmatprep.subr.mxu0 0.0
  %7514 = vmatpush1.msra.mxu0 0.0
  %7515 = vmatprep.subr.mxu0 0.0
  %7516 = vmatpush1.msra.mxu0 0.0
  %7517 = vmatprep.subr.mxu0 0.0
  %7518 = vmatpush1.msra.mxu0 0.0
  %7519 = vmatprep.subr.mxu0 0.0
  %7520 = vmatpush1.msra.mxu0 0.0
  %7521 = vmatprep.subr.mxu0 0.0
  %7522 = vmatpush1.msra.mxu0 0.0
  %7523 = vmatprep.subr.mxu0 0.0
  %7524 = vmatpush1.msra.mxu0 0.0
  %7525 = vmatprep.subr.mxu0 0.0
  %7526 = vmatpush1.msra.mxu0 0.0
  %7527 = vmatprep.subr.mxu0 0.0
  %7528 = vmatpush1.msra.mxu0 0.0
  %7529 = vmatprep.subr.mxu0 0.0
  %7530 = vmatpush1.msra.mxu0 0.0
  %7531 = vmatprep.subr.mxu0 0.0
  %7532 = vmatpush1.msra.mxu0 0.0
  %7533 = vmatprep.subr.mxu0 0.0
  %7534 = vmatpush1.msra.mxu0 0.0
  %7535 = vmatprep.subr.mxu0 0.0
  %7536 = vmatpush1.msra.mxu0 0.0
  %7537 = vmatprep.subr.mxu0 0.0
  %7538 = vmatpush1.msra.mxu0 0.0
  %7539 = vmatprep.subr.mxu0 0.0
  %7540 = vmatpush1.msra.mxu0 0.0
  %7541 = vmatprep.subr.mxu0 0.0
  %7542 = vmatpush1.msra.mxu0 0.0
  %7543 = vmatprep.subr.mxu0 0.0
  %7544 = vmatpush1.msra.mxu0 0.0
  %7545 = vmatprep.subr.mxu0 0.0
  %7546 = vmatpush1.msra.mxu0 0.0
  %7547 = vmatprep.subr.mxu0 0.0
  %7548 = vmatpush1.msra.mxu0 0.0
  %7549 = vmatprep.subr.mxu0 0.0
  %7550 = vmatpush1.msra.mxu0 0.0
  %7551 = vmatprep.subr.mxu0 0.0
  %7552 = vmatpush1.msra.mxu0 0.0
  %7553 = vmatprep.subr.mxu0 0.0
  %7554 = vmatpush1.msra.mxu0 0.0
  %7555 = vmatprep.subr.mxu0 0.0
  %7556 = vmatpush1.msra.mxu0 0.0
  %7557 = vmatprep.subr.mxu0 0.0
  %7558 = vmatpush1.msra.mxu0 0.0
  %7559 = vmatprep.subr.mxu0 0.0
  %7560 = vmatpush1.msra.mxu0 0.0
  %7561 = vmatprep.subr.mxu0 0.0
  %7562 = vmatpush1.msra.mxu0 0.0
  %7563 = vmatprep.subr.mxu0 0.0
  %7564 = vmatpush1.msra.mxu0 0.0
  %7565 = vmatprep.subr.mxu0 0.0
  %7566 = vmatpush1.msra.mxu0 0.0
  %7567 = vmatprep.subr.mxu0 0.0
  %7568 = vmatpush1.msra.mxu0 0.0
  %7569 = vmatprep.mubr.f32.mxu0 0.0
  %7570 = vmatmul.mubr.f32.gmra.mrb[0].mxu0 %v7418
  %v7571 = vpop.f32.mrb[0].mxu0
  %v7572 = vadd.f32 0.0, %v7571
  %v7573 = vpop.f32.mrb[0].mxu0
  %v7574 = vadd.f32 0.0, %v7573
  %7575 = vdwg.mxu0
  %7576 = vmatprep.subr.mxu0 %v7430
  %7577 = vmatpush1.msra.mxu0 %v7428
  %7578 = vmatprep.subr.mxu0 0.0
  %7579 = vmatpush1.msra.mxu0 0.0
  %7580 = vmatprep.subr.mxu0 0.0
  %7581 = vmatpush1.msra.mxu0 0.0
  %7582 = vmatprep.subr.mxu0 0.0
  %7583 = vmatpush1.msra.mxu0 0.0
  %7584 = vmatprep.subr.mxu0 0.0
  %7585 = vmatpush1.msra.mxu0 0.0
  %7586 = vmatprep.subr.mxu0 0.0
  %7587 = vmatpush1.msra.mxu0 0.0
  %7588 = vmatprep.subr.mxu0 0.0
  %7589 = vmatpush1.msra.mxu0 0.0
  %7590 = vmatprep.subr.mxu0 0.0
  %7591 = vmatpush1.msra.mxu0 0.0
  %7592 = vmatprep.subr.mxu0 0.0
  %7593 = vmatpush1.msra.mxu0 0.0
  %7594 = vmatprep.subr.mxu0 0.0
  %7595 = vmatpush1.msra.mxu0 0.0
  %7596 = vmatprep.subr.mxu0 0.0
  %7597 = vmatpush1.msra.mxu0 0.0
  %7598 = vmatprep.subr.mxu0 0.0
  %7599 = vmatpush1.msra.mxu0 0.0
  %7600 = vmatprep.subr.mxu0 0.0
  %7601 = vmatpush1.msra.mxu0 0.0
  %7602 = vmatprep.subr.mxu0 0.0
  %7603 = vmatpush1.msra.mxu0 0.0
  %7604 = vmatprep.subr.mxu0 0.0
  %7605 = vmatpush1.msra.mxu0 0.0
  %7606 = vmatprep.subr.mxu0 0.0
  %7607 = vmatpush1.msra.mxu0 0.0
  %7608 = vmatprep.subr.mxu0 0.0
  %7609 = vmatpush1.msra.mxu0 0.0
  %7610 = vmatprep.subr.mxu0 0.0
  %7611 = vmatpush1.msra.mxu0 0.0
  %7612 = vmatprep.subr.mxu0 0.0
  %7613 = vmatpush1.msra.mxu0 0.0
  %7614 = vmatprep.subr.mxu0 0.0
  %7615 = vmatpush1.msra.mxu0 0.0
  %7616 = vmatprep.subr.mxu0 0.0
  %7617 = vmatpush1.msra.mxu0 0.0
  %7618 = vmatprep.subr.mxu0 0.0
  %7619 = vmatpush1.msra.mxu0 0.0
  %7620 = vmatprep.subr.mxu0 0.0
  %7621 = vmatpush1.msra.mxu0 0.0
  %7622 = vmatprep.subr.mxu0 0.0
  %7623 = vmatpush1.msra.mxu0 0.0
  %7624 = vmatprep.subr.mxu0 0.0
  %7625 = vmatpush1.msra.mxu0 0.0
  %7626 = vmatprep.subr.mxu0 0.0
  %7627 = vmatpush1.msra.mxu0 0.0
  %7628 = vmatprep.subr.mxu0 0.0
  %7629 = vmatpush1.msra.mxu0 0.0
  %7630 = vmatprep.subr.mxu0 0.0
  %7631 = vmatpush1.msra.mxu0 0.0
  %7632 = vmatprep.subr.mxu0 0.0
  %7633 = vmatpush1.msra.mxu0 0.0
  %7634 = vmatprep.subr.mxu0 0.0
  %7635 = vmatpush1.msra.mxu0 0.0
  %7636 = vmatprep.subr.mxu0 0.0
  %7637 = vmatpush1.msra.mxu0 0.0
  %7638 = vmatprep.subr.mxu0 0.0
  %7639 = vmatpush1.msra.mxu0 0.0
  %7640 = vmatprep.mubr.f32.mxu0 0.0
  %7641 = vmatmul.mubr.f32.gmra.mrb[0].mxu0 %v7418
  %v7642 = vpop.f32.mrb[0].mxu0
  %v7643 = vadd.f32 0.0, %v7642
  %v7644 = vpop.f32.mrb[0].mxu0
  %v7645 = vadd.f32 0.0, %v7644
  %7646 = vdwg.mxu0
  %7647 = vmatprep.subr.mxu0 0.0
  %7648 = vmatpush1.msra.mxu0 %v7432
  %7649 = vmatprep.subr.mxu0 0.0
  %7650 = vmatpush1.msra.mxu0 0.0
  %7651 = vmatprep.subr.mxu0 0.0
  %7652 = vmatpush1.msra.mxu0 0.0
  %7653 = vmatprep.subr.mxu0 0.0
  %7654 = vmatpush1.msra.mxu0 0.0
  %7655 = vmatprep.subr.mxu0 0.0
  %7656 = vmatpush1.msra.mxu0 0.0
  %7657 = vmatprep.subr.mxu0 0.0
  %7658 = vmatpush1.msra.mxu0 0.0
  %7659 = vmatprep.subr.mxu0 0.0
  %7660 = vmatpush1.msra.mxu0 0.0
  %7661 = vmatprep.subr.mxu0 0.0
  %7662 = vmatpush1.msra.mxu0 0.0
  %7663 = vmatprep.subr.mxu0 0.0
  %7664 = vmatpush1.msra.mxu0 0.0
  %7665 = vmatprep.subr.mxu0 0.0
  %7666 = vmatpush1.msra.mxu0 0.0
  %7667 = vmatprep.subr.mxu0 0.0
  %7668 = vmatpush1.msra.mxu0 0.0
  %7669 = vmatprep.subr.mxu0 0.0
  %7670 = vmatpush1.msra.mxu0 0.0
  %7671 = vmatprep.subr.mxu0 0.0
  %7672 = vmatpush1.msra.mxu0 0.0
  %7673 = vmatprep.subr.mxu0 0.0
  %7674 = vmatpush1.msra.mxu0 0.0
  %7675 = vmatprep.subr.mxu0 0.0
  %7676 = vmatpush1.msra.mxu0 0.0
  %7677 = vmatprep.subr.mxu0 0.0
  %7678 = vmatpush1.msra.mxu0 0.0
  %7679 = vmatprep.subr.mxu0 0.0
  %7680 = vmatpush1.msra.mxu0 0.0
  %7681 = vmatprep.subr.mxu0 0.0
  %7682 = vmatpush1.msra.mxu0 0.0
  %7683 = vmatprep.subr.mxu0 0.0
  %7684 = vmatpush1.msra.mxu0 0.0
  %7685 = vmatprep.subr.mxu0 0.0
  %7686 = vmatpush1.msra.mxu0 0.0
  %7687 = vmatprep.subr.mxu0 0.0
  %7688 = vmatpush1.msra.mxu0 0.0
  %7689 = vmatprep.subr.mxu0 0.0
  %7690 = vmatpush1.msra.mxu0 0.0
  %7691 = vmatprep.subr.mxu0 0.0
  %7692 = vmatpush1.msra.mxu0 0.0
  %7693 = vmatprep.subr.mxu0 0.0
  %7694 = vmatpush1.msra.mxu0 0.0
  %7695 = vmatprep.subr.mxu0 0.0
  %7696 = vmatpush1.msra.mxu0 0.0
  %7697 = vmatprep.subr.mxu0 0.0
  %7698 = vmatpush1.msra.mxu0 0.0
  %7699 = vmatprep.subr.mxu0 0.0
  %7700 = vmatpush1.msra.mxu0 0.0
  %7701 = vmatprep.subr.mxu0 0.0
  %7702 = vmatpush1.msra.mxu0 0.0
  %7703 = vmatprep.subr.mxu0 0.0
  %7704 = vmatpush1.msra.mxu0 0.0
  %7705 = vmatprep.subr.mxu0 0.0
  %7706 = vmatpush1.msra.mxu0 0.0
  %7707 = vmatprep.subr.mxu0 0.0
  %7708 = vmatpush1.msra.mxu0 0.0
  %7709 = vmatprep.subr.mxu0 0.0
  %7710 = vmatpush1.msra.mxu0 0.0
  %7711 = vmatprep.mubr.f32.mxu0 0.0
  %7712 = vmatmul.mubr.f32.gmra.mrb[0].mxu0 %v7418
  %v7713 = vpop.f32.mrb[0].mxu0
  %v7714 = vadd.f32 0.0, %v7713
  %v7715 = vpop.f32.mrb[0].mxu0
  %7716 = vdwg.mxu0
  %v7717 = vadd.f32 %v7388, %v7501
  %v7718 = vadd.f32 %v7389, %v7503
  %v7719 = vadd.f32 %v7390, %v7572
  %v7720 = vadd.f32 %v7391, %v7574
  %v7721 = vadd.f32 %v7392, %v7643
  %v7722 = vadd.f32 %v7393, %v7645
  %v7723 = vadd.f32 %v7394, %v7714
  %7724 = vrot.lane.b32.xlu0 %v513, 18
  %v7725 = vpop.permute.xlu0 %7724
  %7726 = vrot.lane.b32.xlu0 %v506, 46
  %v7727 = vpop.permute.xlu0 %7726
  %7728 = vrot.lane.b32.xlu0 %v507, 46
  %v7729 = vpop.permute.xlu0 %7728
  %7730 = vrot.lane.b32.xlu0 %v508, 46
  %v7731 = vpop.permute.xlu0 %7730
  %7732 = vrot.lane.b32.xlu0 %v509, 46
  %v7733 = vpop.permute.xlu0 %7732
  %7734 = vrot.lane.b32.xlu0 %v510, 46
  %v7735 = vpop.permute.xlu0 %7734
  %7736 = vrot.lane.b32.xlu0 %v511, 46
  %v7737 = vpop.permute.xlu0 %7736
  %7738 = vrot.lane.b32.xlu0 %v512, 46
  %v7739 = vpop.permute.xlu0 %7738
  %vm7740 = vcmask 375808
  %v7741 = vsel %vm7740, %v7727, %v7729
  %v7742 = vsel %vm7740, %v7729, %v7731
  %v7743 = vsel %vm7740, %v7731, %v7733
  %v7744 = vsel %vm7740, %v7733, %v7735
  %v7745 = vsel %vm7740, %v7735, %v7737
  %v7746 = vsel %vm7740, %v7737, %v7739
  %v7747 = vsel %vm545, %v7725, 0
  %v7749 = vsel %vm412, %v7741, 0
  %v7751 = vsel %vm412, %v7742, 0
  %v7753 = vsel %vm412, %v7743, 0
  %v7755 = vsel %vm412, %v7744, 0
  %v7757 = vsel %vm412, %v7745, 0
  %v7759 = vsel %vm412, %v7746, 0
  %v7761 = vsel %vm412, %v7739, 0
  %7763 = vmatprep.subr.mxu0 %v7751
  %7764 = vmatpush1.msra.mxu0 %v7749
  %7765 = vmatprep.subr.mxu0 0.0
  %7766 = vmatpush1.msra.mxu0 0.0
  %7767 = vmatprep.subr.mxu0 0.0
  %7768 = vmatpush1.msra.mxu0 0.0
  %7769 = vmatprep.subr.mxu0 0.0
  %7770 = vmatpush1.msra.mxu0 0.0
  %7771 = vmatprep.subr.mxu0 0.0
  %7772 = vmatpush1.msra.mxu0 0.0
  %7773 = vmatprep.subr.mxu0 0.0
  %7774 = vmatpush1.msra.mxu0 0.0
  %7775 = vmatprep.subr.mxu0 0.0
  %7776 = vmatpush1.msra.mxu0 0.0
  %7777 = vmatprep.subr.mxu0 0.0
  %7778 = vmatpush1.msra.mxu0 0.0
  %7779 = vmatprep.subr.mxu0 0.0
  %7780 = vmatpush1.msra.mxu0 0.0
  %7781 = vmatprep.subr.mxu0 0.0
  %7782 = vmatpush1.msra.mxu0 0.0
  %7783 = vmatprep.subr.mxu0 0.0
  %7784 = vmatpush1.msra.mxu0 0.0
  %7785 = vmatprep.subr.mxu0 0.0
  %7786 = vmatpush1.msra.mxu0 0.0
  %7787 = vmatprep.subr.mxu0 0.0
  %7788 = vmatpush1.msra.mxu0 0.0
  %7789 = vmatprep.subr.mxu0 0.0
  %7790 = vmatpush1.msra.mxu0 0.0
  %7791 = vmatprep.subr.mxu0 0.0
  %7792 = vmatpush1.msra.mxu0 0.0
  %7793 = vmatprep.subr.mxu0 0.0
  %7794 = vmatpush1.msra.mxu0 0.0
  %7795 = vmatprep.subr.mxu0 0.0
  %7796 = vmatpush1.msra.mxu0 0.0
  %7797 = vmatprep.subr.mxu0 0.0
  %7798 = vmatpush1.msra.mxu0 0.0
  %7799 = vmatprep.subr.mxu0 0.0
  %7800 = vmatpush1.msra.mxu0 0.0
  %7801 = vmatprep.subr.mxu0 0.0
  %7802 = vmatpush1.msra.mxu0 0.0
  %7803 = vmatprep.subr.mxu0 0.0
  %7804 = vmatpush1.msra.mxu0 0.0
  %7805 = vmatprep.subr.mxu0 0.0
  %7806 = vmatpush1.msra.mxu0 0.0
  %7807 = vmatprep.subr.mxu0 0.0
  %7808 = vmatpush1.msra.mxu0 0.0
  %7809 = vmatprep.subr.mxu0 0.0
  %7810 = vmatpush1.msra.mxu0 0.0
  %7811 = vmatprep.subr.mxu0 0.0
  %7812 = vmatpush1.msra.mxu0 0.0
  %7813 = vmatprep.subr.mxu0 0.0
  %7814 = vmatpush1.msra.mxu0 0.0
  %7815 = vmatprep.subr.mxu0 0.0
  %7816 = vmatpush1.msra.mxu0 0.0
  %7817 = vmatprep.subr.mxu0 0.0
  %7818 = vmatpush1.msra.mxu0 0.0
  %7819 = vmatprep.subr.mxu0 0.0
  %7820 = vmatpush1.msra.mxu0 0.0
  %7821 = vmatprep.subr.mxu0 0.0
  %7822 = vmatpush1.msra.mxu0 0.0
  %7823 = vmatprep.subr.mxu0 0.0
  %7824 = vmatpush1.msra.mxu0 0.0
  %7825 = vmatprep.subr.mxu0 0.0
  %7826 = vmatpush1.msra.mxu0 0.0
  %7827 = vmatprep.mubr.f32.mxu0 0.0
  %7828 = vmatmul.mubr.f32.gmra.mrb[0].mxu0 %v7747
  %v7829 = vpop.f32.mrb[0].mxu0
  %v7830 = vadd.f32 0.0, %v7829
  %v7831 = vpop.f32.mrb[0].mxu0
  %v7832 = vadd.f32 0.0, %v7831
  %7833 = vdwg.mxu0
  %7834 = vmatprep.subr.mxu0 %v7755
  %7835 = vmatpush1.msra.mxu0 %v7753
  %7836 = vmatprep.subr.mxu0 0.0
  %7837 = vmatpush1.msra.mxu0 0.0
  %7838 = vmatprep.subr.mxu0 0.0
  %7839 = vmatpush1.msra.mxu0 0.0
  %7840 = vmatprep.subr.mxu0 0.0
  %7841 = vmatpush1.msra.mxu0 0.0
  %7842 = vmatprep.subr.mxu0 0.0
  %7843 = vmatpush1.msra.mxu0 0.0
  %7844 = vmatprep.subr.mxu0 0.0
  %7845 = vmatpush1.msra.mxu0 0.0
  %7846 = vmatprep.subr.mxu0 0.0
  %7847 = vmatpush1.msra.mxu0 0.0
  %7848 = vmatprep.subr.mxu0 0.0
  %7849 = vmatpush1.msra.mxu0 0.0
  %7850 = vmatprep.subr.mxu0 0.0
  %7851 = vmatpush1.msra.mxu0 0.0
  %7852 = vmatprep.subr.mxu0 0.0
  %7853 = vmatpush1.msra.mxu0 0.0
  %7854 = vmatprep.subr.mxu0 0.0
  %7855 = vmatpush1.msra.mxu0 0.0
  %7856 = vmatprep.subr.mxu0 0.0
  %7857 = vmatpush1.msra.mxu0 0.0
  %7858 = vmatprep.subr.mxu0 0.0
  %7859 = vmatpush1.msra.mxu0 0.0
  %7860 = vmatprep.subr.mxu0 0.0
  %7861 = vmatpush1.msra.mxu0 0.0
  %7862 = vmatprep.subr.mxu0 0.0
  %7863 = vmatpush1.msra.mxu0 0.0
  %7864 = vmatprep.subr.mxu0 0.0
  %7865 = vmatpush1.msra.mxu0 0.0
  %7866 = vmatprep.subr.mxu0 0.0
  %7867 = vmatpush1.msra.mxu0 0.0
  %7868 = vmatprep.subr.mxu0 0.0
  %7869 = vmatpush1.msra.mxu0 0.0
  %7870 = vmatprep.subr.mxu0 0.0
  %7871 = vmatpush1.msra.mxu0 0.0
  %7872 = vmatprep.subr.mxu0 0.0
  %7873 = vmatpush1.msra.mxu0 0.0
  %7874 = vmatprep.subr.mxu0 0.0
  %7875 = vmatpush1.msra.mxu0 0.0
  %7876 = vmatprep.subr.mxu0 0.0
  %7877 = vmatpush1.msra.mxu0 0.0
  %7878 = vmatprep.subr.mxu0 0.0
  %7879 = vmatpush1.msra.mxu0 0.0
  %7880 = vmatprep.subr.mxu0 0.0
  %7881 = vmatpush1.msra.mxu0 0.0
  %7882 = vmatprep.subr.mxu0 0.0
  %7883 = vmatpush1.msra.mxu0 0.0
  %7884 = vmatprep.subr.mxu0 0.0
  %7885 = vmatpush1.msra.mxu0 0.0
  %7886 = vmatprep.subr.mxu0 0.0
  %7887 = vmatpush1.msra.mxu0 0.0
  %7888 = vmatprep.subr.mxu0 0.0
  %7889 = vmatpush1.msra.mxu0 0.0
  %7890 = vmatprep.subr.mxu0 0.0
  %7891 = vmatpush1.msra.mxu0 0.0
  %7892 = vmatprep.subr.mxu0 0.0
  %7893 = vmatpush1.msra.mxu0 0.0
  %7894 = vmatprep.subr.mxu0 0.0
  %7895 = vmatpush1.msra.mxu0 0.0
  %7896 = vmatprep.subr.mxu0 0.0
  %7897 = vmatpush1.msra.mxu0 0.0
  %7898 = vmatprep.mubr.f32.mxu0 0.0
  %7899 = vmatmul.mubr.f32.gmra.mrb[0].mxu0 %v7747
  %v7900 = vpop.f32.mrb[0].mxu0
  %v7901 = vadd.f32 0.0, %v7900
  %v7902 = vpop.f32.mrb[0].mxu0
  %v7903 = vadd.f32 0.0, %v7902
  %7904 = vdwg.mxu0
  %7905 = vmatprep.subr.mxu0 %v7759
  %7906 = vmatpush1.msra.mxu0 %v7757
  %7907 = vmatprep.subr.mxu0 0.0
  %7908 = vmatpush1.msra.mxu0 0.0
  %7909 = vmatprep.subr.mxu0 0.0
  %7910 = vmatpush1.msra.mxu0 0.0
  %7911 = vmatprep.subr.mxu0 0.0
  %7912 = vmatpush1.msra.mxu0 0.0
  %7913 = vmatprep.subr.mxu0 0.0
  %7914 = vmatpush1.msra.mxu0 0.0
  %7915 = vmatprep.subr.mxu0 0.0
  %7916 = vmatpush1.msra.mxu0 0.0
  %7917 = vmatprep.subr.mxu0 0.0
  %7918 = vmatpush1.msra.mxu0 0.0
  %7919 = vmatprep.subr.mxu0 0.0
  %7920 = vmatpush1.msra.mxu0 0.0
  %7921 = vmatprep.subr.mxu0 0.0
  %7922 = vmatpush1.msra.mxu0 0.0
  %7923 = vmatprep.subr.mxu0 0.0
  %7924 = vmatpush1.msra.mxu0 0.0
  %7925 = vmatprep.subr.mxu0 0.0
  %7926 = vmatpush1.msra.mxu0 0.0
  %7927 = vmatprep.subr.mxu0 0.0
  %7928 = vmatpush1.msra.mxu0 0.0
  %7929 = vmatprep.subr.mxu0 0.0
  %7930 = vmatpush1.msra.mxu0 0.0
  %7931 = vmatprep.subr.mxu0 0.0
  %7932 = vmatpush1.msra.mxu0 0.0
  %7933 = vmatprep.subr.mxu0 0.0
  %7934 = vmatpush1.msra.mxu0 0.0
  %7935 = vmatprep.subr.mxu0 0.0
  %7936 = vmatpush1.msra.mxu0 0.0
  %7937 = vmatprep.subr.mxu0 0.0
  %7938 = vmatpush1.msra.mxu0 0.0
  %7939 = vmatprep.subr.mxu0 0.0
  %7940 = vmatpush1.msra.mxu0 0.0
  %7941 = vmatprep.subr.mxu0 0.0
  %7942 = vmatpush1.msra.mxu0 0.0
  %7943 = vmatprep.subr.mxu0 0.0
  %7944 = vmatpush1.msra.mxu0 0.0
  %7945 = vmatprep.subr.mxu0 0.0
  %7946 = vmatpush1.msra.mxu0 0.0
  %7947 = vmatprep.subr.mxu0 0.0
  %7948 = vmatpush1.msra.mxu0 0.0
  %7949 = vmatprep.subr.mxu0 0.0
  %7950 = vmatpush1.msra.mxu0 0.0
  %7951 = vmatprep.subr.mxu0 0.0
  %7952 = vmatpush1.msra.mxu0 0.0
  %7953 = vmatprep.subr.mxu0 0.0
  %7954 = vmatpush1.msra.mxu0 0.0
  %7955 = vmatprep.subr.mxu0 0.0
  %7956 = vmatpush1.msra.mxu0 0.0
  %7957 = vmatprep.subr.mxu0 0.0
  %7958 = vmatpush1.msra.mxu0 0.0
  %7959 = vmatprep.subr.mxu0 0.0
  %7960 = vmatpush1.msra.mxu0 0.0
  %7961 = vmatprep.subr.mxu0 0.0
  %7962 = vmatpush1.msra.mxu0 0.0
  %7963 = vmatprep.subr.mxu0 0.0
  %7964 = vmatpush1.msra.mxu0 0.0
  %7965 = vmatprep.subr.mxu0 0.0
  %7966 = vmatpush1.msra.mxu0 0.0
  %7967 = vmatprep.subr.mxu0 0.0
  %7968 = vmatpush1.msra.mxu0 0.0
  %7969 = vmatprep.mubr.f32.mxu0 0.0
  %7970 = vmatmul.mubr.f32.gmra.mrb[0].mxu0 %v7747
  %v7971 = vpop.f32.mrb[0].mxu0
  %v7972 = vadd.f32 0.0, %v7971
  %v7973 = vpop.f32.mrb[0].mxu0
  %v7974 = vadd.f32 0.0, %v7973
  %7975 = vdwg.mxu0
  %7976 = vmatprep.subr.mxu0 0.0
  %7977 = vmatpush1.msra.mxu0 %v7761
  %7978 = vmatprep.subr.mxu0 0.0
  %7979 = vmatpush1.msra.mxu0 0.0
  %7980 = vmatprep.subr.mxu0 0.0
  %7981 = vmatpush1.msra.mxu0 0.0
  %7982 = vmatprep.subr.mxu0 0.0
  %7983 = vmatpush1.msra.mxu0 0.0
  %7984 = vmatprep.subr.mxu0 0.0
  %7985 = vmatpush1.msra.mxu0 0.0
  %7986 = vmatprep.subr.mxu0 0.0
  %7987 = vmatpush1.msra.mxu0 0.0
  %7988 = vmatprep.subr.mxu0 0.0
  %7989 = vmatpush1.msra.mxu0 0.0
  %7990 = vmatprep.subr.mxu0 0.0
  %7991 = vmatpush1.msra.mxu0 0.0
  %7992 = vmatprep.subr.mxu0 0.0
  %7993 = vmatpush1.msra.mxu0 0.0
  %7994 = vmatprep.subr.mxu0 0.0
  %7995 = vmatpush1.msra.mxu0 0.0
  %7996 = vmatprep.subr.mxu0 0.0
  %7997 = vmatpush1.msra.mxu0 0.0
  %7998 = vmatprep.subr.mxu0 0.0
  %7999 = vmatpush1.msra.mxu0 0.0
  %8000 = vmatprep.subr.mxu0 0.0
  %8001 = vmatpush1.msra.mxu0 0.0
  %8002 = vmatprep.subr.mxu0 0.0
  %8003 = vmatpush1.msra.mxu0 0.0
  %8004 = vmatprep.subr.mxu0 0.0
  %8005 = vmatpush1.msra.mxu0 0.0
  %8006 = vmatprep.subr.mxu0 0.0
  %8007 = vmatpush1.msra.mxu0 0.0
  %8008 = vmatprep.subr.mxu0 0.0
  %8009 = vmatpush1.msra.mxu0 0.0
  %8010 = vmatprep.subr.mxu0 0.0
  %8011 = vmatpush1.msra.mxu0 0.0
  %8012 = vmatprep.subr.mxu0 0.0
  %8013 = vmatpush1.msra.mxu0 0.0
  %8014 = vmatprep.subr.mxu0 0.0
  %8015 = vmatpush1.msra.mxu0 0.0
  %8016 = vmatprep.subr.mxu0 0.0
  %8017 = vmatpush1.msra.mxu0 0.0
  %8018 = vmatprep.subr.mxu0 0.0
  %8019 = vmatpush1.msra.mxu0 0.0
  %8020 = vmatprep.subr.mxu0 0.0
  %8021 = vmatpush1.msra.mxu0 0.0
  %8022 = vmatprep.subr.mxu0 0.0
  %8023 = vmatpush1.msra.mxu0 0.0
  %8024 = vmatprep.subr.mxu0 0.0
  %8025 = vmatpush1.msra.mxu0 0.0
  %8026 = vmatprep.subr.mxu0 0.0
  %8027 = vmatpush1.msra.mxu0 0.0
  %8028 = vmatprep.subr.mxu0 0.0
  %8029 = vmatpush1.msra.mxu0 0.0
  %8030 = vmatprep.subr.mxu0 0.0
  %8031 = vmatpush1.msra.mxu0 0.0
  %8032 = vmatprep.subr.mxu0 0.0
  %8033 = vmatpush1.msra.mxu0 0.0
  %8034 = vmatprep.subr.mxu0 0.0
  %8035 = vmatpush1.msra.mxu0 0.0
  %8036 = vmatprep.subr.mxu0 0.0
  %8037 = vmatpush1.msra.mxu0 0.0
  %8038 = vmatprep.subr.mxu0 0.0
  %8039 = vmatpush1.msra.mxu0 0.0
  %8040 = vmatprep.mubr.f32.mxu0 0.0
  %8041 = vmatmul.mubr.f32.gmra.mrb[0].mxu0 %v7747
  %v8042 = vpop.f32.mrb[0].mxu0
  %v8043 = vadd.f32 0.0, %v8042
  %v8044 = vpop.f32.mrb[0].mxu0
  %8045 = vdwg.mxu0
  %v8046 = vadd.f32 %v7717, %v7830
  %v8047 = vadd.f32 %v7718, %v7832
  %v8048 = vadd.f32 %v7719, %v7901
  %v8049 = vadd.f32 %v7720, %v7903
  %v8050 = vadd.f32 %v7721, %v7972
  %v8051 = vadd.f32 %v7722, %v7974
  %v8052 = vadd.f32 %v7723, %v8043
  %8053 = vrot.lane.b32.xlu0 %v513, 13
  %v8054 = vpop.permute.xlu0 %8053
  %8055 = vrot.lane.b32.xlu0 %v506, 45
  %v8056 = vpop.permute.xlu0 %8055
  %8057 = vrot.lane.b32.xlu0 %v507, 45
  %v8058 = vpop.permute.xlu0 %8057
  %8059 = vrot.lane.b32.xlu0 %v508, 45
  %v8060 = vpop.permute.xlu0 %8059
  %8061 = vrot.lane.b32.xlu0 %v509, 45
  %v8062 = vpop.permute.xlu0 %8061
  %8063 = vrot.lane.b32.xlu0 %v510, 45
  %v8064 = vpop.permute.xlu0 %8063
  %8065 = vrot.lane.b32.xlu0 %v511, 45
  %v8066 = vpop.permute.xlu0 %8065
  %8067 = vrot.lane.b32.xlu0 %v512, 45
  %v8068 = vpop.permute.xlu0 %8067
  %vm8069 = vcmask 367616
  %v8070 = vsel %vm8069, %v8056, %v8058
  %v8071 = vsel %vm8069, %v8058, %v8060
  %v8072 = vsel %vm8069, %v8060, %v8062
  %v8073 = vsel %vm8069, %v8062, %v8064
  %v8074 = vsel %vm8069, %v8064, %v8066
  %v8075 = vsel %vm8069, %v8066, %v8068
  %v8076 = vsel %vm545, %v8054, 0
  %v8078 = vsel %vm412, %v8070, 0
  %v8080 = vsel %vm412, %v8071, 0
  %v8082 = vsel %vm412, %v8072, 0
  %v8084 = vsel %vm412, %v8073, 0
  %v8086 = vsel %vm412, %v8074, 0
  %v8088 = vsel %vm412, %v8075, 0
  %v8090 = vsel %vm412, %v8068, 0
  %8092 = vmatprep.subr.mxu0 %v8080
  %8093 = vmatpush1.msra.mxu0 %v8078
  %8094 = vmatprep.subr.mxu0 0.0
  %8095 = vmatpush1.msra.mxu0 0.0
  %8096 = vmatprep.subr.mxu0 0.0
  %8097 = vmatpush1.msra.mxu0 0.0
  %8098 = vmatprep.subr.mxu0 0.0
  %8099 = vmatpush1.msra.mxu0 0.0
  %8100 = vmatprep.subr.mxu0 0.0
  %8101 = vmatpush1.msra.mxu0 0.0
  %8102 = vmatprep.subr.mxu0 0.0
  %8103 = vmatpush1.msra.mxu0 0.0
  %8104 = vmatprep.subr.mxu0 0.0
  %8105 = vmatpush1.msra.mxu0 0.0
  %8106 = vmatprep.subr.mxu0 0.0
  %8107 = vmatpush1.msra.mxu0 0.0
  %8108 = vmatprep.subr.mxu0 0.0
  %8109 = vmatpush1.msra.mxu0 0.0
  %8110 = vmatprep.subr.mxu0 0.0
  %8111 = vmatpush1.msra.mxu0 0.0
  %8112 = vmatprep.subr.mxu0 0.0
  %8113 = vmatpush1.msra.mxu0 0.0
  %8114 = vmatprep.subr.mxu0 0.0
  %8115 = vmatpush1.msra.mxu0 0.0
  %8116 = vmatprep.subr.mxu0 0.0
  %8117 = vmatpush1.msra.mxu0 0.0
  %8118 = vmatprep.subr.mxu0 0.0
  %8119 = vmatpush1.msra.mxu0 0.0
  %8120 = vmatprep.subr.mxu0 0.0
  %8121 = vmatpush1.msra.mxu0 0.0
  %8122 = vmatprep.subr.mxu0 0.0
  %8123 = vmatpush1.msra.mxu0 0.0
  %8124 = vmatprep.subr.mxu0 0.0
  %8125 = vmatpush1.msra.mxu0 0.0
  %8126 = vmatprep.subr.mxu0 0.0
  %8127 = vmatpush1.msra.mxu0 0.0
  %8128 = vmatprep.subr.mxu0 0.0
  %8129 = vmatpush1.msra.mxu0 0.0
  %8130 = vmatprep.subr.mxu0 0.0
  %8131 = vmatpush1.msra.mxu0 0.0
  %8132 = vmatprep.subr.mxu0 0.0
  %8133 = vmatpush1.msra.mxu0 0.0
  %8134 = vmatprep.subr.mxu0 0.0
  %8135 = vmatpush1.msra.mxu0 0.0
  %8136 = vmatprep.subr.mxu0 0.0
  %8137 = vmatpush1.msra.mxu0 0.0
  %8138 = vmatprep.subr.mxu0 0.0
  %8139 = vmatpush1.msra.mxu0 0.0
  %8140 = vmatprep.subr.mxu0 0.0
  %8141 = vmatpush1.msra.mxu0 0.0
  %8142 = vmatprep.subr.mxu0 0.0
  %8143 = vmatpush1.msra.mxu0 0.0
  %8144 = vmatprep.subr.mxu0 0.0
  %8145 = vmatpush1.msra.mxu0 0.0
  %8146 = vmatprep.subr.mxu0 0.0
  %8147 = vmatpush1.msra.mxu0 0.0
  %8148 = vmatprep.subr.mxu0 0.0
  %8149 = vmatpush1.msra.mxu0 0.0
  %8150 = vmatprep.subr.mxu0 0.0
  %8151 = vmatpush1.msra.mxu0 0.0
  %8152 = vmatprep.subr.mxu0 0.0
  %8153 = vmatpush1.msra.mxu0 0.0
  %8154 = vmatprep.subr.mxu0 0.0
  %8155 = vmatpush1.msra.mxu0 0.0
  %8156 = vmatprep.mubr.f32.mxu0 0.0
  %8157 = vmatmul.mubr.f32.gmra.mrb[0].mxu0 %v8076
  %v8158 = vpop.f32.mrb[0].mxu0
  %v8159 = vadd.f32 0.0, %v8158
  %v8160 = vpop.f32.mrb[0].mxu0
  %v8161 = vadd.f32 0.0, %v8160
  %8162 = vdwg.mxu0
  %8163 = vmatprep.subr.mxu0 %v8084
  %8164 = vmatpush1.msra.mxu0 %v8082
  %8165 = vmatprep.subr.mxu0 0.0
  %8166 = vmatpush1.msra.mxu0 0.0
  %8167 = vmatprep.subr.mxu0 0.0
  %8168 = vmatpush1.msra.mxu0 0.0
  %8169 = vmatprep.subr.mxu0 0.0
  %8170 = vmatpush1.msra.mxu0 0.0
  %8171 = vmatprep.subr.mxu0 0.0
  %8172 = vmatpush1.msra.mxu0 0.0
  %8173 = vmatprep.subr.mxu0 0.0
  %8174 = vmatpush1.msra.mxu0 0.0
  %8175 = vmatprep.subr.mxu0 0.0
  %8176 = vmatpush1.msra.mxu0 0.0
  %8177 = vmatprep.subr.mxu0 0.0
  %8178 = vmatpush1.msra.mxu0 0.0
  %8179 = vmatprep.subr.mxu0 0.0
  %8180 = vmatpush1.msra.mxu0 0.0
  %8181 = vmatprep.subr.mxu0 0.0
  %8182 = vmatpush1.msra.mxu0 0.0
  %8183 = vmatprep.subr.mxu0 0.0
  %8184 = vmatpush1.msra.mxu0 0.0
  %8185 = vmatprep.subr.mxu0 0.0
  %8186 = vmatpush1.msra.mxu0 0.0
  %8187 = vmatprep.subr.mxu0 0.0
  %8188 = vmatpush1.msra.mxu0 0.0
  %8189 = vmatprep.subr.mxu0 0.0
  %8190 = vmatpush1.msra.mxu0 0.0
  %8191 = vmatprep.subr.mxu0 0.0
  %8192 = vmatpush1.msra.mxu0 0.0
  %8193 = vmatprep.subr.mxu0 0.0
  %8194 = vmatpush1.msra.mxu0 0.0
  %8195 = vmatprep.subr.mxu0 0.0
  %8196 = vmatpush1.msra.mxu0 0.0
  %8197 = vmatprep.subr.mxu0 0.0
  %8198 = vmatpush1.msra.mxu0 0.0
  %8199 = vmatprep.subr.mxu0 0.0
  %8200 = vmatpush1.msra.mxu0 0.0
  %8201 = vmatprep.subr.mxu0 0.0
  %8202 = vmatpush1.msra.mxu0 0.0
  %8203 = vmatprep.subr.mxu0 0.0
  %8204 = vmatpush1.msra.mxu0 0.0
  %8205 = vmatprep.subr.mxu0 0.0
  %8206 = vmatpush1.msra.mxu0 0.0
  %8207 = vmatprep.subr.mxu0 0.0
  %8208 = vmatpush1.msra.mxu0 0.0
  %8209 = vmatprep.subr.mxu0 0.0
  %8210 = vmatpush1.msra.mxu0 0.0
  %8211 = vmatprep.subr.mxu0 0.0
  %8212 = vmatpush1.msra.mxu0 0.0
  %8213 = vmatprep.subr.mxu0 0.0
  %8214 = vmatpush1.msra.mxu0 0.0
  %8215 = vmatprep.subr.mxu0 0.0
  %8216 = vmatpush1.msra.mxu0 0.0
  %8217 = vmatprep.subr.mxu0 0.0
  %8218 = vmatpush1.msra.mxu0 0.0
  %8219 = vmatprep.subr.mxu0 0.0
  %8220 = vmatpush1.msra.mxu0 0.0
  %8221 = vmatprep.subr.mxu0 0.0
  %8222 = vmatpush1.msra.mxu0 0.0
  %8223 = vmatprep.subr.mxu0 0.0
  %8224 = vmatpush1.msra.mxu0 0.0
  %8225 = vmatprep.subr.mxu0 0.0
  %8226 = vmatpush1.msra.mxu0 0.0
  %8227 = vmatprep.mubr.f32.mxu0 0.0
  %8228 = vmatmul.mubr.f32.gmra.mrb[0].mxu0 %v8076
  %v8229 = vpop.f32.mrb[0].mxu0
  %v8230 = vadd.f32 0.0, %v8229
  %v8231 = vpop.f32.mrb[0].mxu0
  %v8232 = vadd.f32 0.0, %v8231
  %8233 = vdwg.mxu0
  %8234 = vmatprep.subr.mxu0 %v8088
  %8235 = vmatpush1.msra.mxu0 %v8086
  %8236 = vmatprep.subr.mxu0 0.0
  %8237 = vmatpush1.msra.mxu0 0.0
  %8238 = vmatprep.subr.mxu0 0.0
  %8239 = vmatpush1.msra.mxu0 0.0
  %8240 = vmatprep.subr.mxu0 0.0
  %8241 = vmatpush1.msra.mxu0 0.0
  %8242 = vmatprep.subr.mxu0 0.0
  %8243 = vmatpush1.msra.mxu0 0.0
  %8244 = vmatprep.subr.mxu0 0.0
  %8245 = vmatpush1.msra.mxu0 0.0
  %8246 = vmatprep.subr.mxu0 0.0
  %8247 = vmatpush1.msra.mxu0 0.0
  %8248 = vmatprep.subr.mxu0 0.0
  %8249 = vmatpush1.msra.mxu0 0.0
  %8250 = vmatprep.subr.mxu0 0.0
  %8251 = vmatpush1.msra.mxu0 0.0
  %8252 = vmatprep.subr.mxu0 0.0
  %8253 = vmatpush1.msra.mxu0 0.0
  %8254 = vmatprep.subr.mxu0 0.0
  %8255 = vmatpush1.msra.mxu0 0.0
  %8256 = vmatprep.subr.mxu0 0.0
  %8257 = vmatpush1.msra.mxu0 0.0
  %8258 = vmatprep.subr.mxu0 0.0
  %8259 = vmatpush1.msra.mxu0 0.0
  %8260 = vmatprep.subr.mxu0 0.0
  %8261 = vmatpush1.msra.mxu0 0.0
  %8262 = vmatprep.subr.mxu0 0.0
  %8263 = vmatpush1.msra.mxu0 0.0
  %8264 = vmatprep.subr.mxu0 0.0
  %8265 = vmatpush1.msra.mxu0 0.0
  %8266 = vmatprep.subr.mxu0 0.0
  %8267 = vmatpush1.msra.mxu0 0.0
  %8268 = vmatprep.subr.mxu0 0.0
  %8269 = vmatpush1.msra.mxu0 0.0
  %8270 = vmatprep.subr.mxu0 0.0
  %8271 = vmatpush1.msra.mxu0 0.0
  %8272 = vmatprep.subr.mxu0 0.0
  %8273 = vmatpush1.msra.mxu0 0.0
  %8274 = vmatprep.subr.mxu0 0.0
  %8275 = vmatpush1.msra.mxu0 0.0
  %8276 = vmatprep.subr.mxu0 0.0
  %8277 = vmatpush1.msra.mxu0 0.0
  %8278 = vmatprep.subr.mxu0 0.0
  %8279 = vmatpush1.msra.mxu0 0.0
  %8280 = vmatprep.subr.mxu0 0.0
  %8281 = vmatpush1.msra.mxu0 0.0
  %8282 = vmatprep.subr.mxu0 0.0
  %8283 = vmatpush1.msra.mxu0 0.0
  %8284 = vmatprep.subr.mxu0 0.0
  %8285 = vmatpush1.msra.mxu0 0.0
  %8286 = vmatprep.subr.mxu0 0.0
  %8287 = vmatpush1.msra.mxu0 0.0
  %8288 = vmatprep.subr.mxu0 0.0
  %8289 = vmatpush1.msra.mxu0 0.0
  %8290 = vmatprep.subr.mxu0 0.0
  %8291 = vmatpush1.msra.mxu0 0.0
  %8292 = vmatprep.subr.mxu0 0.0
  %8293 = vmatpush1.msra.mxu0 0.0
  %8294 = vmatprep.subr.mxu0 0.0
  %8295 = vmatpush1.msra.mxu0 0.0
  %8296 = vmatprep.subr.mxu0 0.0
  %8297 = vmatpush1.msra.mxu0 0.0
  %8298 = vmatprep.mubr.f32.mxu0 0.0
  %8299 = vmatmul.mubr.f32.gmra.mrb[0].mxu0 %v8076
  %v8300 = vpop.f32.mrb[0].mxu0
  %v8301 = vadd.f32 0.0, %v8300
  %v8302 = vpop.f32.mrb[0].mxu0
  %v8303 = vadd.f32 0.0, %v8302
  %8304 = vdwg.mxu0
  %8305 = vmatprep.subr.mxu0 0.0
  %8306 = vmatpush1.msra.mxu0 %v8090
  %8307 = vmatprep.subr.mxu0 0.0
  %8308 = vmatpush1.msra.mxu0 0.0
  %8309 = vmatprep.subr.mxu0 0.0
  %8310 = vmatpush1.msra.mxu0 0.0
  %8311 = vmatprep.subr.mxu0 0.0
  %8312 = vmatpush1.msra.mxu0 0.0
  %8313 = vmatprep.subr.mxu0 0.0
  %8314 = vmatpush1.msra.mxu0 0.0
  %8315 = vmatprep.subr.mxu0 0.0
  %8316 = vmatpush1.msra.mxu0 0.0
  %8317 = vmatprep.subr.mxu0 0.0
  %8318 = vmatpush1.msra.mxu0 0.0
  %8319 = vmatprep.subr.mxu0 0.0
  %8320 = vmatpush1.msra.mxu0 0.0
  %8321 = vmatprep.subr.mxu0 0.0
  %8322 = vmatpush1.msra.mxu0 0.0
  %8323 = vmatprep.subr.mxu0 0.0
  %8324 = vmatpush1.msra.mxu0 0.0
  %8325 = vmatprep.subr.mxu0 0.0
  %8326 = vmatpush1.msra.mxu0 0.0
  %8327 = vmatprep.subr.mxu0 0.0
  %8328 = vmatpush1.msra.mxu0 0.0
  %8329 = vmatprep.subr.mxu0 0.0
  %8330 = vmatpush1.msra.mxu0 0.0
  %8331 = vmatprep.subr.mxu0 0.0
  %8332 = vmatpush1.msra.mxu0 0.0
  %8333 = vmatprep.subr.mxu0 0.0
  %8334 = vmatpush1.msra.mxu0 0.0
  %8335 = vmatprep.subr.mxu0 0.0
  %8336 = vmatpush1.msra.mxu0 0.0
  %8337 = vmatprep.subr.mxu0 0.0
  %8338 = vmatpush1.msra.mxu0 0.0
  %8339 = vmatprep.subr.mxu0 0.0
  %8340 = vmatpush1.msra.mxu0 0.0
  %8341 = vmatprep.subr.mxu0 0.0
  %8342 = vmatpush1.msra.mxu0 0.0
  %8343 = vmatprep.subr.mxu0 0.0
  %8344 = vmatpush1.msra.mxu0 0.0
  %8345 = vmatprep.subr.mxu0 0.0
  %8346 = vmatpush1.msra.mxu0 0.0
  %8347 = vmatprep.subr.mxu0 0.0
  %8348 = vmatpush1.msra.mxu0 0.0
  %8349 = vmatprep.subr.mxu0 0.0
  %8350 = vmatpush1.msra.mxu0 0.0
  %8351 = vmatprep.subr.mxu0 0.0
  %8352 = vmatpush1.msra.mxu0 0.0
  %8353 = vmatprep.subr.mxu0 0.0
  %8354 = vmatpush1.msra.mxu0 0.0
  %8355 = vmatprep.subr.mxu0 0.0
  %8356 = vmatpush1.msra.mxu0 0.0
  %8357 = vmatprep.subr.mxu0 0.0
  %8358 = vmatpush1.msra.mxu0 0.0
  %8359 = vmatprep.subr.mxu0 0.0
  %8360 = vmatpush1.msra.mxu0 0.0
  %8361 = vmatprep.subr.mxu0 0.0
  %8362 = vmatpush1.msra.mxu0 0.0
  %8363 = vmatprep.subr.mxu0 0.0
  %8364 = vmatpush1.msra.mxu0 0.0
  %8365 = vmatprep.subr.mxu0 0.0
  %8366 = vmatpush1.msra.mxu0 0.0
  %8367 = vmatprep.subr.mxu0 0.0
  %8368 = vmatpush1.msra.mxu0 0.0
  %8369 = vmatprep.mubr.f32.mxu0 0.0
  %8370 = vmatmul.mubr.f32.gmra.mrb[0].mxu0 %v8076
  %v8371 = vpop.f32.mrb[0].mxu0
  %v8372 = vadd.f32 0.0, %v8371
  %v8373 = vpop.f32.mrb[0].mxu0
  %8374 = vdwg.mxu0
  %v8375 = vadd.f32 %v8046, %v8159
  %v8376 = vadd.f32 %v8047, %v8161
  %v8377 = vadd.f32 %v8048, %v8230
  %v8378 = vadd.f32 %v8049, %v8232
  %v8379 = vadd.f32 %v8050, %v8301
  %v8380 = vadd.f32 %v8051, %v8303
  %v8381 = vadd.f32 %v8052, %v8372
  %8382 = vrot.lane.b32.xlu0 %v513, 8
  %v8383 = vpop.permute.xlu0 %8382
  %8384 = vrot.lane.b32.xlu0 %v506, 44
  %v8385 = vpop.permute.xlu0 %8384
  %8386 = vrot.lane.b32.xlu0 %v507, 44
  %v8387 = vpop.permute.xlu0 %8386
  %8388 = vrot.lane.b32.xlu0 %v508, 44
  %v8389 = vpop.permute.xlu0 %8388
  %8390 = vrot.lane.b32.xlu0 %v509, 44
  %v8391 = vpop.permute.xlu0 %8390
  %8392 = vrot.lane.b32.xlu0 %v510, 44
  %v8393 = vpop.permute.xlu0 %8392
  %8394 = vrot.lane.b32.xlu0 %v511, 44
  %v8395 = vpop.permute.xlu0 %8394
  %8396 = vrot.lane.b32.xlu0 %v512, 44
  %v8397 = vpop.permute.xlu0 %8396
  %vm8398 = vcmask 359424
  %v8399 = vsel %vm8398, %v8385, %v8387
  %v8400 = vsel %vm8398, %v8387, %v8389
  %v8401 = vsel %vm8398, %v8389, %v8391
  %v8402 = vsel %vm8398, %v8391, %v8393
  %v8403 = vsel %vm8398, %v8393, %v8395
  %v8404 = vsel %vm8398, %v8395, %v8397
  %v8405 = vsel %vm545, %v8383, 0
  %v8407 = vsel %vm412, %v8399, 0
  %v8409 = vsel %vm412, %v8400, 0
  %v8411 = vsel %vm412, %v8401, 0
  %v8413 = vsel %vm412, %v8402, 0
  %v8415 = vsel %vm412, %v8403, 0
  %v8417 = vsel %vm412, %v8404, 0
  %v8419 = vsel %vm412, %v8397, 0
  %8421 = vmatprep.subr.mxu0 %v8409
  %8422 = vmatpush1.msra.mxu0 %v8407
  %8423 = vmatprep.subr.mxu0 0.0
  %8424 = vmatpush1.msra.mxu0 0.0
  %8425 = vmatprep.subr.mxu0 0.0
  %8426 = vmatpush1.msra.mxu0 0.0
  %8427 = vmatprep.subr.mxu0 0.0
  %8428 = vmatpush1.msra.mxu0 0.0
  %8429 = vmatprep.subr.mxu0 0.0
  %8430 = vmatpush1.msra.mxu0 0.0
  %8431 = vmatprep.subr.mxu0 0.0
  %8432 = vmatpush1.msra.mxu0 0.0
  %8433 = vmatprep.subr.mxu0 0.0
  %8434 = vmatpush1.msra.mxu0 0.0
  %8435 = vmatprep.subr.mxu0 0.0
  %8436 = vmatpush1.msra.mxu0 0.0
  %8437 = vmatprep.subr.mxu0 0.0
  %8438 = vmatpush1.msra.mxu0 0.0
  %8439 = vmatprep.subr.mxu0 0.0
  %8440 = vmatpush1.msra.mxu0 0.0
  %8441 = vmatprep.subr.mxu0 0.0
  %8442 = vmatpush1.msra.mxu0 0.0
  %8443 = vmatprep.subr.mxu0 0.0
  %8444 = vmatpush1.msra.mxu0 0.0
  %8445 = vmatprep.subr.mxu0 0.0
  %8446 = vmatpush1.msra.mxu0 0.0
  %8447 = vmatprep.subr.mxu0 0.0
  %8448 = vmatpush1.msra.mxu0 0.0
  %8449 = vmatprep.subr.mxu0 0.0
  %8450 = vmatpush1.msra.mxu0 0.0
  %8451 = vmatprep.subr.mxu0 0.0
  %8452 = vmatpush1.msra.mxu0 0.0
  %8453 = vmatprep.subr.mxu0 0.0
  %8454 = vmatpush1.msra.mxu0 0.0
  %8455 = vmatprep.subr.mxu0 0.0
  %8456 = vmatpush1.msra.mxu0 0.0
  %8457 = vmatprep.subr.mxu0 0.0
  %8458 = vmatpush1.msra.mxu0 0.0
  %8459 = vmatprep.subr.mxu0 0.0
  %8460 = vmatpush1.msra.mxu0 0.0
  %8461 = vmatprep.subr.mxu0 0.0
  %8462 = vmatpush1.msra.mxu0 0.0
  %8463 = vmatprep.subr.mxu0 0.0
  %8464 = vmatpush1.msra.mxu0 0.0
  %8465 = vmatprep.subr.mxu0 0.0
  %8466 = vmatpush1.msra.mxu0 0.0
  %8467 = vmatprep.subr.mxu0 0.0
  %8468 = vmatpush1.msra.mxu0 0.0
  %8469 = vmatprep.subr.mxu0 0.0
  %8470 = vmatpush1.msra.mxu0 0.0
  %8471 = vmatprep.subr.mxu0 0.0
  %8472 = vmatpush1.msra.mxu0 0.0
  %8473 = vmatprep.subr.mxu0 0.0
  %8474 = vmatpush1.msra.mxu0 0.0
  %8475 = vmatprep.subr.mxu0 0.0
  %8476 = vmatpush1.msra.mxu0 0.0
  %8477 = vmatprep.subr.mxu0 0.0
  %8478 = vmatpush1.msra.mxu0 0.0
  %8479 = vmatprep.subr.mxu0 0.0
  %8480 = vmatpush1.msra.mxu0 0.0
  %8481 = vmatprep.subr.mxu0 0.0
  %8482 = vmatpush1.msra.mxu0 0.0
  %8483 = vmatprep.subr.mxu0 0.0
  %8484 = vmatpush1.msra.mxu0 0.0
  %8485 = vmatprep.mubr.f32.mxu0 0.0
  %8486 = vmatmul.mubr.f32.gmra.mrb[0].mxu0 %v8405
  %v8487 = vpop.f32.mrb[0].mxu0
  %v8488 = vadd.f32 0.0, %v8487
  %v8489 = vpop.f32.mrb[0].mxu0
  %v8490 = vadd.f32 0.0, %v8489
  %8491 = vdwg.mxu0
  %8492 = vmatprep.subr.mxu0 %v8413
  %8493 = vmatpush1.msra.mxu0 %v8411
  %8494 = vmatprep.subr.mxu0 0.0
  %8495 = vmatpush1.msra.mxu0 0.0
  %8496 = vmatprep.subr.mxu0 0.0
  %8497 = vmatpush1.msra.mxu0 0.0
  %8498 = vmatprep.subr.mxu0 0.0
  %8499 = vmatpush1.msra.mxu0 0.0
  %8500 = vmatprep.subr.mxu0 0.0
  %8501 = vmatpush1.msra.mxu0 0.0
  %8502 = vmatprep.subr.mxu0 0.0
  %8503 = vmatpush1.msra.mxu0 0.0
  %8504 = vmatprep.subr.mxu0 0.0
  %8505 = vmatpush1.msra.mxu0 0.0
  %8506 = vmatprep.subr.mxu0 0.0
  %8507 = vmatpush1.msra.mxu0 0.0
  %8508 = vmatprep.subr.mxu0 0.0
  %8509 = vmatpush1.msra.mxu0 0.0
  %8510 = vmatprep.subr.mxu0 0.0
  %8511 = vmatpush1.msra.mxu0 0.0
  %8512 = vmatprep.subr.mxu0 0.0
  %8513 = vmatpush1.msra.mxu0 0.0
  %8514 = vmatprep.subr.mxu0 0.0
  %8515 = vmatpush1.msra.mxu0 0.0
  %8516 = vmatprep.subr.mxu0 0.0
  %8517 = vmatpush1.msra.mxu0 0.0
  %8518 = vmatprep.subr.mxu0 0.0
  %8519 = vmatpush1.msra.mxu0 0.0
  %8520 = vmatprep.subr.mxu0 0.0
  %8521 = vmatpush1.msra.mxu0 0.0
  %8522 = vmatprep.subr.mxu0 0.0
  %8523 = vmatpush1.msra.mxu0 0.0
  %8524 = vmatprep.subr.mxu0 0.0
  %8525 = vmatpush1.msra.mxu0 0.0
  %8526 = vmatprep.subr.mxu0 0.0
  %8527 = vmatpush1.msra.mxu0 0.0
  %8528 = vmatprep.subr.mxu0 0.0
  %8529 = vmatpush1.msra.mxu0 0.0
  %8530 = vmatprep.subr.mxu0 0.0
  %8531 = vmatpush1.msra.mxu0 0.0
  %8532 = vmatprep.subr.mxu0 0.0
  %8533 = vmatpush1.msra.mxu0 0.0
  %8534 = vmatprep.subr.mxu0 0.0
  %8535 = vmatpush1.msra.mxu0 0.0
  %8536 = vmatprep.subr.mxu0 0.0
  %8537 = vmatpush1.msra.mxu0 0.0
  %8538 = vmatprep.subr.mxu0 0.0
  %8539 = vmatpush1.msra.mxu0 0.0
  %8540 = vmatprep.subr.mxu0 0.0
  %8541 = vmatpush1.msra.mxu0 0.0
  %8542 = vmatprep.subr.mxu0 0.0
  %8543 = vmatpush1.msra.mxu0 0.0
  %8544 = vmatprep.subr.mxu0 0.0
  %8545 = vmatpush1.msra.mxu0 0.0
  %8546 = vmatprep.subr.mxu0 0.0
  %8547 = vmatpush1.msra.mxu0 0.0
  %8548 = vmatprep.subr.mxu0 0.0
  %8549 = vmatpush1.msra.mxu0 0.0
  %8550 = vmatprep.subr.mxu0 0.0
  %8551 = vmatpush1.msra.mxu0 0.0
  %8552 = vmatprep.subr.mxu0 0.0
  %8553 = vmatpush1.msra.mxu0 0.0
  %8554 = vmatprep.subr.mxu0 0.0
  %8555 = vmatpush1.msra.mxu0 0.0
  %8556 = vmatprep.mubr.f32.mxu0 0.0
  %8557 = vmatmul.mubr.f32.gmra.mrb[0].mxu0 %v8405
  %v8558 = vpop.f32.mrb[0].mxu0
  %v8559 = vadd.f32 0.0, %v8558
  %v8560 = vpop.f32.mrb[0].mxu0
  %v8561 = vadd.f32 0.0, %v8560
  %8562 = vdwg.mxu0
  %8563 = vmatprep.subr.mxu0 %v8417
  %8564 = vmatpush1.msra.mxu0 %v8415
  %8565 = vmatprep.subr.mxu0 0.0
  %8566 = vmatpush1.msra.mxu0 0.0
  %8567 = vmatprep.subr.mxu0 0.0
  %8568 = vmatpush1.msra.mxu0 0.0
  %8569 = vmatprep.subr.mxu0 0.0
  %8570 = vmatpush1.msra.mxu0 0.0
  %8571 = vmatprep.subr.mxu0 0.0
  %8572 = vmatpush1.msra.mxu0 0.0
  %8573 = vmatprep.subr.mxu0 0.0
  %8574 = vmatpush1.msra.mxu0 0.0
  %8575 = vmatprep.subr.mxu0 0.0
  %8576 = vmatpush1.msra.mxu0 0.0
  %8577 = vmatprep.subr.mxu0 0.0
  %8578 = vmatpush1.msra.mxu0 0.0
  %8579 = vmatprep.subr.mxu0 0.0
  %8580 = vmatpush1.msra.mxu0 0.0
  %8581 = vmatprep.subr.mxu0 0.0
  %8582 = vmatpush1.msra.mxu0 0.0
  %8583 = vmatprep.subr.mxu0 0.0
  %8584 = vmatpush1.msra.mxu0 0.0
  %8585 = vmatprep.subr.mxu0 0.0
  %8586 = vmatpush1.msra.mxu0 0.0
  %8587 = vmatprep.subr.mxu0 0.0
  %8588 = vmatpush1.msra.mxu0 0.0
  %8589 = vmatprep.subr.mxu0 0.0
  %8590 = vmatpush1.msra.mxu0 0.0
  %8591 = vmatprep.subr.mxu0 0.0
  %8592 = vmatpush1.msra.mxu0 0.0
  %8593 = vmatprep.subr.mxu0 0.0
  %8594 = vmatpush1.msra.mxu0 0.0
  %8595 = vmatprep.subr.mxu0 0.0
  %8596 = vmatpush1.msra.mxu0 0.0
  %8597 = vmatprep.subr.mxu0 0.0
  %8598 = vmatpush1.msra.mxu0 0.0
  %8599 = vmatprep.subr.mxu0 0.0
  %8600 = vmatpush1.msra.mxu0 0.0
  %8601 = vmatprep.subr.mxu0 0.0
  %8602 = vmatpush1.msra.mxu0 0.0
  %8603 = vmatprep.subr.mxu0 0.0
  %8604 = vmatpush1.msra.mxu0 0.0
  %8605 = vmatprep.subr.mxu0 0.0
  %8606 = vmatpush1.msra.mxu0 0.0
  %8607 = vmatprep.subr.mxu0 0.0
  %8608 = vmatpush1.msra.mxu0 0.0
  %8609 = vmatprep.subr.mxu0 0.0
  %8610 = vmatpush1.msra.mxu0 0.0
  %8611 = vmatprep.subr.mxu0 0.0
  %8612 = vmatpush1.msra.mxu0 0.0
  %8613 = vmatprep.subr.mxu0 0.0
  %8614 = vmatpush1.msra.mxu0 0.0
  %8615 = vmatprep.subr.mxu0 0.0
  %8616 = vmatpush1.msra.mxu0 0.0
  %8617 = vmatprep.subr.mxu0 0.0
  %8618 = vmatpush1.msra.mxu0 0.0
  %8619 = vmatprep.subr.mxu0 0.0
  %8620 = vmatpush1.msra.mxu0 0.0
  %8621 = vmatprep.subr.mxu0 0.0
  %8622 = vmatpush1.msra.mxu0 0.0
  %8623 = vmatprep.subr.mxu0 0.0
  %8624 = vmatpush1.msra.mxu0 0.0
  %8625 = vmatprep.subr.mxu0 0.0
  %8626 = vmatpush1.msra.mxu0 0.0
  %8627 = vmatprep.mubr.f32.mxu0 0.0
  %8628 = vmatmul.mubr.f32.gmra.mrb[0].mxu0 %v8405
  %v8629 = vpop.f32.mrb[0].mxu0
  %v8630 = vadd.f32 0.0, %v8629
  %v8631 = vpop.f32.mrb[0].mxu0
  %v8632 = vadd.f32 0.0, %v8631
  %8633 = vdwg.mxu0
  %8634 = vmatprep.subr.mxu0 0.0
  %8635 = vmatpush1.msra.mxu0 %v8419
  %8636 = vmatprep.subr.mxu0 0.0
  %8637 = vmatpush1.msra.mxu0 0.0
  %8638 = vmatprep.subr.mxu0 0.0
  %8639 = vmatpush1.msra.mxu0 0.0
  %8640 = vmatprep.subr.mxu0 0.0
  %8641 = vmatpush1.msra.mxu0 0.0
  %8642 = vmatprep.subr.mxu0 0.0
  %8643 = vmatpush1.msra.mxu0 0.0
  %8644 = vmatprep.subr.mxu0 0.0
  %8645 = vmatpush1.msra.mxu0 0.0
  %8646 = vmatprep.subr.mxu0 0.0
  %8647 = vmatpush1.msra.mxu0 0.0
  %8648 = vmatprep.subr.mxu0 0.0
  %8649 = vmatpush1.msra.mxu0 0.0
  %8650 = vmatprep.subr.mxu0 0.0
  %8651 = vmatpush1.msra.mxu0 0.0
  %8652 = vmatprep.subr.mxu0 0.0
  %8653 = vmatpush1.msra.mxu0 0.0
  %8654 = vmatprep.subr.mxu0 0.0
  %8655 = vmatpush1.msra.mxu0 0.0
  %8656 = vmatprep.subr.mxu0 0.0
  %8657 = vmatpush1.msra.mxu0 0.0
  %8658 = vmatprep.subr.mxu0 0.0
  %8659 = vmatpush1.msra.mxu0 0.0
  %8660 = vmatprep.subr.mxu0 0.0
  %8661 = vmatpush1.msra.mxu0 0.0
  %8662 = vmatprep.subr.mxu0 0.0
  %8663 = vmatpush1.msra.mxu0 0.0
  %8664 = vmatprep.subr.mxu0 0.0
  %8665 = vmatpush1.msra.mxu0 0.0
  %8666 = vmatprep.subr.mxu0 0.0
  %8667 = vmatpush1.msra.mxu0 0.0
  %8668 = vmatprep.subr.mxu0 0.0
  %8669 = vmatpush1.msra.mxu0 0.0
  %8670 = vmatprep.subr.mxu0 0.0
  %8671 = vmatpush1.msra.mxu0 0.0
  %8672 = vmatprep.subr.mxu0 0.0
  %8673 = vmatpush1.msra.mxu0 0.0
  %8674 = vmatprep.subr.mxu0 0.0
  %8675 = vmatpush1.msra.mxu0 0.0
  %8676 = vmatprep.subr.mxu0 0.0
  %8677 = vmatpush1.msra.mxu0 0.0
  %8678 = vmatprep.subr.mxu0 0.0
  %8679 = vmatpush1.msra.mxu0 0.0
  %8680 = vmatprep.subr.mxu0 0.0
  %8681 = vmatpush1.msra.mxu0 0.0
  %8682 = vmatprep.subr.mxu0 0.0
  %8683 = vmatpush1.msra.mxu0 0.0
  %8684 = vmatprep.subr.mxu0 0.0
  %8685 = vmatpush1.msra.mxu0 0.0
  %8686 = vmatprep.subr.mxu0 0.0
  %8687 = vmatpush1.msra.mxu0 0.0
  %8688 = vmatprep.subr.mxu0 0.0
  %8689 = vmatpush1.msra.mxu0 0.0
  %8690 = vmatprep.subr.mxu0 0.0
  %8691 = vmatpush1.msra.mxu0 0.0
  %8692 = vmatprep.subr.mxu0 0.0
  %8693 = vmatpush1.msra.mxu0 0.0
  %8694 = vmatprep.subr.mxu0 0.0
  %8695 = vmatpush1.msra.mxu0 0.0
  %8696 = vmatprep.subr.mxu0 0.0
  %8697 = vmatpush1.msra.mxu0 0.0
  %8698 = vmatprep.mubr.f32.mxu0 0.0
  %8699 = vmatmul.mubr.f32.gmra.mrb[0].mxu0 %v8405
  %v8700 = vpop.f32.mrb[0].mxu0
  %v8701 = vadd.f32 0.0, %v8700
  %v8702 = vpop.f32.mrb[0].mxu0
  %8703 = vdwg.mxu0
  %v8704 = vadd.f32 %v8375, %v8488
  %v8705 = vadd.f32 %v8376, %v8490
  %v8706 = vadd.f32 %v8377, %v8559
  %v8707 = vadd.f32 %v8378, %v8561
  %v8708 = vadd.f32 %v8379, %v8630
  %v8709 = vadd.f32 %v8380, %v8632
  %v8710 = vadd.f32 %v8381, %v8701
  %v8711 = vmax.f32 %v8704, 0.0
  %v8712 = vmax.f32 %v8705, 0.0
  %v8713 = vmax.f32 %v8706, 0.0
  %v8714 = vmax.f32 %v8707, 0.0
  %v8715 = vmax.f32 %v8708, 0.0
  %v8716 = vmax.f32 %v8709, 0.0
  %v8717 = vmax.f32 %v8710, 0.0
  %8718 = vst [vmem:[%s6] sm:$0x1f] %v8711
  %8719 = vst [vmem:[%s6 + $0x8] sm:$0x1f] %v8712
  %8720 = vst [vmem:[%s6 + $0x10] sm:$0x1f] %v8713
  %8721 = vst [vmem:[%s6 + $0x18] sm:$0x1f] %v8714
  %8722 = vst [vmem:[%s6 + $0x20] sm:$0x1f] %v8715
  %8723 = vst [vmem:[%s6 + $0x28] sm:$0x1f] %v8716
  %vm8724 = vcmask 258048
  %8725 = vst.msk [vmem:[%s6 + $0x30] sm:$0x1f] %vm8724, %v8717
  // Predicated region
  $region26: #{memory_module_forward.1} parent=0 // pred_check
    _
  $region27: #{memory_module_forward.1} parent=0 // pred_check_branch
    %8727 = sbr.rel (0) target = $region29
  $region28: #{memory_module_forward.1} parent=0 // pred_region
    _
  $region29: #{memory_module_forward.1} parent=0 // pred_fallthru
    _
  // Predicated region
  $region30: #{memory_module_forward.1} parent=0 // pred_check
    _
  $region31: #{memory_module_forward.1} parent=0 // pred_check_branch
    %8729 = sbr.rel (0) target = $region33
  $region32: #{memory_module_forward.1} parent=0 // pred_region
    _
  $region33: #{memory_module_forward.1} parent=0 // pred_fallthru
    _

</llo_original>
